<compile_context>
chip_gen: v6e
topology: v6e:2x2x1
jax: 0.10.0
libtpu: 0.0.40
codegen_flags: <defaults>
</compile_context>

<pallas_src>
import math
from functools import partial

import jax
import jax.numpy as jnp
from jax.experimental import pallas as pl
from jax.experimental.pallas import tpu as pltpu

# ----------------------------- config (small) -----------------------------
B = 2            # batch
C = 3            # image channels
IMG = 16         # image resolution (config['resolution'] scaled down)
PATCH = 4        # patch size (16 in the original, scaled down)
D = 32           # embed dim (768 in the original)
VIT_HEADS = 4    # heads (12 in the original)
VIT_DEPTH = 2    # depth (12 in the original)
MLP = 4 * D      # mlp_ratio=4
BERT_HEADS = 4
TEXT_LAYERS = 2
FUSION_LAYERS = 2
S_T = 8          # text sequence length
VOCAB = 100
MAX_POS = 16

EPS_VIT = 1e-6
EPS_BERT = 1e-12
NEG_INF = -1e9   # bias for internally padded (invalid) keys


# ----------------------------- in-kernel helpers -----------------------------

def _ln_f32(x, g, b, eps):
    """LayerNorm in f32. x: [S, D], g/b: [1, D]."""
    mean = jnp.mean(x, axis=-1, keepdims=True)
    var = jnp.mean((x - mean) ** 2, axis=-1, keepdims=True)
    return (x - mean) * jax.lax.rsqrt(var + eps) * g + b


def _gelu(x):
    # TODO(synk): nn.GELU / BERT gelu is exact erf-GELU; using tanh
    # approximation since erf lowering in Mosaic is not guaranteed.
    return jax.nn.gelu(x, approximate=True)


def _mha(q_all, k_all, v_all, bias, heads, scale):
    """Multi-head attention on packed-lane layout.

    q_all: [Sq, D] (f32), k_all/v_all: [Sk, D] (f32), bias: [1, Sk] additive.
    Heads are split by static lane slices; matmuls run in bf16 with f32 acc.
    """
    d = q_all.shape[-1]
    dh = d // heads
    ctx = []
    for i in range(heads):
        q = q_all[:, i * dh:(i + 1) * dh].astype(jnp.bfloat16)
        k = k_all[:, i * dh:(i + 1) * dh].astype(jnp.bfloat16)
        v = v_all[:, i * dh:(i + 1) * dh].astype(jnp.bfloat16)
        s = jax.lax.dot_general(q, k, (((1,), (1,)), ((), ())),
                                preferred_element_type=jnp.float32)
        s = s * scale + bias
        m = jnp.max(s, axis=-1, keepdims=True)
        p = jnp.exp(s - m)
        p = p * pl.reciprocal(jnp.sum(p, axis=-1, keepdims=True), approx=True)
        ctx.append(jnp.dot(p.astype(jnp.bfloat16), v,
                           preferred_element_type=jnp.float32))
    return jnp.concatenate(ctx, axis=-1)   # [Sq, D]


# ----------------------------- Pallas kernels -----------------------------

def _self_attn_block_kernel(x_ref, g_ref, bln_ref, wqkv_ref, bqkv_ref,
                            wo_ref, bo_ref, bias_ref, o_ref,
                            *, heads, scale, eps, pre_norm):
    """Fused [LN ->] QKV -> MHA -> out-proj -> residual [-> LN], per batch."""
    x = x_ref[0].astype(jnp.float32)                       # [S, D]
    d = x.shape[-1]
    h = _ln_f32(x, g_ref[...], bln_ref[...], eps) if pre_norm else x
    qkv = jnp.dot(h.astype(jnp.bfloat16), wqkv_ref[...],
                  preferred_element_type=jnp.float32) + bqkv_ref[...]
    bias = bias_ref[0]                                     # [1, Sk]
    ctx = _mha(qkv[:, 0:d], qkv[:, d:2 * d], qkv[:, 2 * d:3 * d],
               bias, heads, scale)
    out = jnp.dot(ctx.astype(jnp.bfloat16), wo_ref[...],
                  preferred_element_type=jnp.float32) + bo_ref[...]
    y = x + out
    if not pre_norm:
        y = _ln_f32(y, g_ref[...], bln_ref[...], eps)
    o_ref[0] = y.astype(o_ref.dtype)


def _cross_attn_block_kernel(x_ref, enc_ref, g_ref, bln_ref, wq_ref, bq_ref,
                             wkv_ref, bkv_ref, wo_ref, bo_ref, bias_ref, o_ref,
                             *, heads, scale, eps):
    """Fused Q-proj / KV-proj -> MHA -> out-proj -> residual -> LN (post-norm)."""
    x = x_ref[0].astype(jnp.float32)                       # [Sq, D]
    enc = enc_ref[0].astype(jnp.float32)                   # [Sk, D]
    d = x.shape[-1]
    q_all = jnp.dot(x.astype(jnp.bfloat16), wq_ref[...],
                    preferred_element_type=jnp.float32) + bq_ref[...]
    kv = jnp.dot(enc.astype(jnp.bfloat16), wkv_ref[...],
                 preferred_element_type=jnp.float32) + bkv_ref[...]
    bias = bias_ref[0]                                     # [1, Sk]
    ctx = _mha(q_all, kv[:, 0:d], kv[:, d:2 * d], bias, heads, scale)
    out = jnp.dot(ctx.astype(jnp.bfloat16), wo_ref[...],
                  preferred_element_type=jnp.float32) + bo_ref[...]
    o_ref[0] = _ln_f32(x + out, g_ref[...], bln_ref[...], eps).astype(o_ref.dtype)


def _ffn_block_kernel(x_ref, g_ref, bln_ref, w1_ref, b1_ref, w2_ref, b2_ref,
                      o_ref, *, eps, pre_norm):
    """Fused [LN ->] fc1 + GELU -> fc2 -> residual [-> LN], per batch."""
    x = x_ref[0].astype(jnp.float32)
    h = _ln_f32(x, g_ref[...], bln_ref[...], eps) if pre_norm else x
    h = jnp.dot(h.astype(jnp.bfloat16), w1_ref[...],
                preferred_element_type=jnp.float32) + b1_ref[...]
    h = _gelu(h)
    out = jnp.dot(h.astype(jnp.bfloat16), w2_ref[...],
                  preferred_element_type=jnp.float32) + b2_ref[...]
    y = x + out
    if not pre_norm:
        y = _ln_f32(y, g_ref[...], bln_ref[...], eps)
    o_ref[0] = y.astype(o_ref.dtype)


def _layernorm_kernel(x_ref, g_ref, b_ref, o_ref, *, eps):
    x = x_ref[0].astype(jnp.float32)
    o_ref[0] = _ln_f32(x, g_ref[...], b_ref[...], eps).astype(o_ref.dtype)


def _linear_kernel(x_ref, w_ref, b_ref, o_ref):
    y = jnp.dot(x_ref[0].astype(jnp.bfloat16), w_ref[...],
                preferred_element_type=jnp.float32) + b_ref[...]
    o_ref[0] = y.astype(o_ref.dtype)


# ----------------------------- pallas_call wrappers -----------------------------

_PAR = pltpu.CompilerParams(dimension_semantics=("parallel",))


def self_attn_block(x, ln_p, qkv_p, o_p, bias, *, heads, eps, pre_norm):
    Bx, S, Dm = x.shape
    Sk = bias.shape[-1]
    scale = 1.0 / math.sqrt(Dm // heads)
    bias_idx = (lambda b: (b, 0, 0)) if bias.shape[0] == Bx else (lambda b: (0, 0, 0))
    return pl.pallas_call(
        partial(_self_attn_block_kernel, heads=heads, scale=scale, eps=eps,
                pre_norm=pre_norm),
        out_shape=jax.ShapeDtypeStruct((Bx, S, Dm), x.dtype),
        grid=(Bx,),
        in_specs=[
            pl.BlockSpec((1, S, Dm), lambda b: (b, 0, 0)),      # x
            pl.BlockSpec((1, Dm), lambda b: (0, 0)),            # ln gamma
            pl.BlockSpec((1, Dm), lambda b: (0, 0)),            # ln beta
            pl.BlockSpec((Dm, 3 * Dm), lambda b: (0, 0)),       # wqkv (bf16)
            pl.BlockSpec((1, 3 * Dm), lambda b: (0, 0)),        # bqkv
            pl.BlockSpec((Dm, Dm), lambda b: (0, 0)),           # wo (bf16)
            pl.BlockSpec((1, Dm), lambda b: (0, 0)),            # bo
            pl.BlockSpec((1, 1, Sk), bias_idx),                 # additive bias
        ],
        out_specs=pl.BlockSpec((1, S, Dm), lambda b: (b, 0, 0)),
        compiler_params=_PAR,
    )(x, ln_p["g"].reshape(1, Dm), ln_p["b"].reshape(1, Dm),
      qkv_p["w"], qkv_p["b"].reshape(1, 3 * Dm),
      o_p["w"], o_p["b"].reshape(1, Dm), bias)


def cross_attn_block(x, enc, p, bias, *, heads, eps):
    Bx, Sq, Dm = x.shape
    Sk = enc.shape[1]
    scale = 1.0 / math.sqrt(Dm // heads)
    bias_idx = (lambda b: (b, 0, 0)) if bias.shape[0] == Bx else (lambda b: (0, 0, 0))
    return pl.pallas_call(
        partial(_cross_attn_block_kernel, heads=heads, scale=scale, eps=eps),
        out_shape=jax.ShapeDtypeStruct((Bx, Sq, Dm), x.dtype),
        grid=(Bx,),
        in_specs=[
            pl.BlockSpec((1, Sq, Dm), lambda b: (b, 0, 0)),     # x (text)
            pl.BlockSpec((1, Sk, Dm), lambda b: (b, 0, 0)),     # enc (image)
            pl.BlockSpec((1, Dm), lambda b: (0, 0)),            # ln gamma
            pl.BlockSpec((1, Dm), lambda b: (0, 0)),            # ln beta
            pl.BlockSpec((Dm, Dm), lambda b: (0, 0)),           # wq
            pl.BlockSpec((1, Dm), lambda b: (0, 0)),            # bq
            pl.BlockSpec((Dm, 2 * Dm), lambda b: (0, 0)),       # wkv
            pl.BlockSpec((1, 2 * Dm), lambda b: (0, 0)),        # bkv
            pl.BlockSpec((Dm, Dm), lambda b: (0, 0)),           # wo
            pl.BlockSpec((1, Dm), lambda b: (0, 0)),            # bo
            pl.BlockSpec((1, 1, Sk), bias_idx),                 # image key bias
        ],
        out_specs=pl.BlockSpec((1, Sq, Dm), lambda b: (b, 0, 0)),
        compiler_params=_PAR,
    )(x, enc, p["ln"]["g"].reshape(1, Dm), p["ln"]["b"].reshape(1, Dm),
      p["q"]["w"], p["q"]["b"].reshape(1, Dm),
      p["kv"]["w"], p["kv"]["b"].reshape(1, 2 * Dm),
      p["o"]["w"], p["o"]["b"].reshape(1, Dm), bias)


def ffn_block(x, ln_p, p1, p2, *, eps, pre_norm):
    Bx, S, Dm = x.shape
    Dff = p1["w"].shape[1]
    return pl.pallas_call(
        partial(_ffn_block_kernel, eps=eps, pre_norm=pre_norm),
        out_shape=jax.ShapeDtypeStruct((Bx, S, Dm), x.dtype),
        grid=(Bx,),
        in_specs=[
            pl.BlockSpec((1, S, Dm), lambda b: (b, 0, 0)),
            pl.BlockSpec((1, Dm), lambda b: (0, 0)),
            pl.BlockSpec((1, Dm), lambda b: (0, 0)),
            pl.BlockSpec((Dm, Dff), lambda b: (0, 0)),
            pl.BlockSpec((1, Dff), lambda b: (0, 0)),
            pl.BlockSpec((Dff, Dm), lambda b: (0, 0)),
            pl.BlockSpec((1, Dm), lambda b: (0, 0)),
        ],
        out_specs=pl.BlockSpec((1, S, Dm), lambda b: (b, 0, 0)),
        compiler_params=_PAR,
    )(x, ln_p["g"].reshape(1, Dm), ln_p["b"].reshape(1, Dm),
      p1["w"], p1["b"].reshape(1, Dff), p2["w"], p2["b"].reshape(1, Dm))


def layernorm3(x, p, eps):
    Bx, S, Dm = x.shape
    return pl.pallas_call(
        partial(_layernorm_kernel, eps=eps),
        out_shape=jax.ShapeDtypeStruct((Bx, S, Dm), x.dtype),
        grid=(Bx,),
        in_specs=[pl.BlockSpec((1, S, Dm), lambda b: (b, 0, 0)),
                  pl.BlockSpec((1, Dm), lambda b: (0, 0)),
                  pl.BlockSpec((1, Dm), lambda b: (0, 0))],
        out_specs=pl.BlockSpec((1, S, Dm), lambda b: (b, 0, 0)),
        compiler_params=_PAR,
    )(x, p["g"].reshape(1, Dm), p["b"].reshape(1, Dm))


def linear3(x, p):
    """Patch-embedding projection: [B, S, K] @ [K, N] + b, gridded over batch."""
    Bx, S, K = x.shape
    N = p["w"].shape[1]
    return pl.pallas_call(
        _linear_kernel,
        out_shape=jax.ShapeDtypeStruct((Bx, S, N), jnp.float32),
        grid=(Bx,),
        in_specs=[pl.BlockSpec((1, S, K), lambda b: (b, 0, 0)),
                  pl.BlockSpec((K, N), lambda b: (0, 0)),
                  pl.BlockSpec((1, N), lambda b: (0, 0))],
        out_specs=pl.BlockSpec((1, S, N), lambda b: (b, 0, 0)),
        compiler_params=_PAR,
    )(x, p["w"], p["b"].reshape(1, N))


# ----------------------------- parameter init -----------------------------

def init_linear_params(key, din, dout):
    kw, kb = jax.random.split(key)
    # matmul weights stored in bf16 (f32 accumulation in-kernel); biases f32.
    return {"w": (jax.random.normal(kw, (din, dout), jnp.float32) * 0.02
                  ).astype(jnp.bfloat16),
            "b": jax.random.normal(kb, (dout,), jnp.float32) * 0.02}


def init_ln(d):
    return {"g": jnp.ones((d,), jnp.float32), "b": jnp.zeros((d,), jnp.float32)}


def init_vit(key):
    n_patches = (IMG // PATCH) ** 2
    keys = jax.random.split(key, VIT_DEPTH + 3)
    params = {
        "patch_proj": init_linear_params(keys[0], C * PATCH * PATCH, D),
        "cls": jax.random.normal(keys[1], (1, 1, D), jnp.float32) * 0.02,
        "pos": jax.random.normal(keys[2], (1, n_patches + 1, D), jnp.float32) * 0.02,
        "blocks": [],
        "norm": init_ln(D),
    }
    for i in range(VIT_DEPTH):
        ks = jax.random.split(keys[3 + i], 4)
        params["blocks"].append({
            "ln1": init_ln(D),
            "qkv": init_linear_params(ks[0], D, 3 * D),   # fused QKV
            "proj": init_linear_params(ks[1], D, D),
            "ln2": init_ln(D),
            "fc1": init_linear_params(ks[2], D, MLP),
            "fc2": init_linear_params(ks[3], MLP, D),
        })
    return params


def init_bert_layer(key, cross):
    ks = jax.random.split(key, 7)
    p = {
        "attn": {"qkv": init_linear_params(ks[0], D, 3 * D),   # fused QKV
                 "o": init_linear_params(ks[1], D, D),
                 "ln": init_ln(D)},
        "inter": init_linear_params(ks[2], D, MLP),
        "out": init_linear_params(ks[3], MLP, D),
        "out_ln": init_ln(D),
    }
    if cross:
        p["xattn"] = {"q": init_linear_params(ks[4], D, D),
                      "kv": init_linear_params(ks[5], D, 2 * D),  # fused KV
                      "o": init_linear_params(ks[6], D, D),
                      "ln": init_ln(D)}
    return p


def init_albef(k_vit, k_bert):
    vit = init_vit(k_vit)
    kb = jax.random.split(k_bert, 3 + TEXT_LAYERS + FUSION_LAYERS)
    emb = {"word": jax.random.normal(kb[0], (VOCAB, D), jnp.float32) * 0.02,
           "pos": jax.random.normal(kb[1], (MAX_POS, D), jnp.float32) * 0.02,
           "type": jax.random.normal(kb[2], (2, D), jnp.float32) * 0.02,
           "ln": init_ln(D)}
    text_layers = [init_bert_layer(kb[3 + i], cross=False) for i in range(TEXT_LAYERS)]
    fusion_layers = [init_bert_layer(kb[3 + TEXT_LAYERS + i], cross=True)
                     for i in range(FUSION_LAYERS)]
    return {"visual": vit,
            "bert": {"embeddings": emb,
                     "text_layers": text_layers,
                     "fusion_layers": fusion_layers}}


# ----------------------------- forward passes -----------------------------

def vit_forward(params, image):
    Bx, Cc, H, W = image.shape
    nh, nw = H // PATCH, W // PATCH
    # patch-embed conv(stride=patch) == patch extraction + linear (C,P,P order
    # matches flattened PyTorch conv weight [D, C, P, P])
    x = image.reshape(Bx, Cc, nh, PATCH, nw, PATCH)
    x = x.transpose(0, 2, 4, 1, 3, 5).reshape(Bx, nh * nw, Cc * PATCH * PATCH)
    x = linear3(x, params["patch_proj"])
    cls = jnp.broadcast_to(params["cls"], (Bx, 1, D))
    x = jnp.concatenate([cls, x], axis=1) + params["pos"]          # [B, 17, D]
    # pad sequence to a multiple of 8 so every kernel tile is sublane-aligned;
    # padded rows are masked out of attention via the key bias.
    S = x.shape[1]
    S_pad = ((S + 7) // 8) * 8
    x = jnp.pad(x, ((0, 0), (0, S_pad - S), (0, 0)))               # [B, 24, D]
    key_valid = (jnp.arange(S_pad) < S).astype(jnp.float32)
    img_bias = ((1.0 - key_valid) * NEG_INF).reshape(1, 1, S_pad)  # shared over B
    for blk in params["blocks"]:
        x = self_attn_block(x, blk["ln1"], blk["qkv"], blk["proj"], img_bias,
                            heads=VIT_HEADS, eps=EPS_VIT, pre_norm=True)
        x = ffn_block(x, blk["ln2"], blk["fc1"], blk["fc2"],
                      eps=EPS_VIT, pre_norm=True)
    x = layernorm3(x, params["norm"], EPS_VIT)
    # image_atts == all ones on the 17 valid tokens; padded keys carry NEG_INF
    return x, img_bias


def bert_embed(params, input_ids):
    Bx, S = input_ids.shape
    we = params["word"][input_ids]
    pe = params["pos"][jnp.arange(S)][None, :, :]
    te = params["type"][jnp.zeros((Bx, S), jnp.int32)]
    return layernorm3(we + pe + te, params["ln"], EPS_BERT)


def albef_forward(params, image, input_ids, attention_mask):
    # visual encoder
    image_embeds, img_bias = vit_forward(params["visual"], image)
    # extended text attention mask: (1 - m) * -10000  -> [B, 1, S_T]
    text_bias = ((1.0 - attention_mask.astype(jnp.float32)) * -10000.0)[:, None, :]
    # text mode
    x = bert_embed(params["bert"]["embeddings"], input_ids)
    for layer in params["bert"]["text_layers"]:
        x = self_attn_block(x, layer["attn"]["ln"], layer["attn"]["qkv"],
                            layer["attn"]["o"], text_bias,
                            heads=BERT_HEADS, eps=EPS_BERT, pre_norm=False)
        x = ffn_block(x, layer["out_ln"], layer["inter"], layer["out"],
                      eps=EPS_BERT, pre_norm=False)
    # fusion mode (self-attn + cross-attention to image embeds)
    for layer in params["bert"]["fusion_layers"]:
        x = self_attn_block(x, layer["attn"]["ln"], layer["attn"]["qkv"],
                            layer["attn"]["o"], text_bias,
                            heads=BERT_HEADS, eps=EPS_BERT, pre_norm=False)
        x = cross_attn_block(x, image_embeds, layer["xattn"], img_bias,
                             heads=BERT_HEADS, eps=EPS_BERT)
        x = ffn_block(x, layer["out_ln"], layer["inter"], layer["out"],
                      eps=EPS_BERT, pre_norm=False)
    return x  # last_hidden_state of the fusion encoder


# ----------------------------- main -----------------------------

if __name__ == "__main__":
    key = jax.random.PRNGKey(0)
    k_img, k_ids, k_vit, k_bert = jax.random.split(key, 4)
    image = jax.random.normal(k_img, (B, C, IMG, IMG), jnp.float32)
    input_ids = jax.random.randint(k_ids, (B, S_T), 0, VOCAB)
    attention_mask = jnp.array([[1] * S_T,
                                [1] * (S_T - 2) + [0, 0]], jnp.int32)
    params = init_albef(k_vit, k_bert)

    out = jax.jit(albef_forward)(params, image, input_ids, attention_mask)
    out = jax.block_until_ready(out)
    assert out.shape == (B, S_T, D), out.shape
    assert bool(jnp.all(jnp.isfinite(out)))
    print("KERNEL_OK")
</pallas_src>

<mosaic_0001>
module attributes {stable_mosaic.version = 11 : i64} {
  func.func @_layernorm_kernel(%arg0: i32, %arg1: memref<1x8x32xf32, #tpu.memory_space<vmem>>, %arg2: memref<1x32xf32, #tpu.memory_space<vmem>>, %arg3: memref<1x32xf32, #tpu.memory_space<vmem>>, %arg4: memref<1x8x32xf32, #tpu.memory_space<vmem>>) attributes {dimension_semantics = [#tpu.dimension_semantics<parallel>], iteration_bounds = array<i64: 2>, scalar_prefetch = 0 : i64, scratch_operands = 0 : i64, tpu.core_type = #tpu.core_type<tc>, window_params = [{transform_indices = @transform_0, window_bounds = array<i64: 1, 8, 32>}, {pipeline_mode = #tpu.pipeline_mode<synchronous>, transform_indices = @transform_1, window_bounds = array<i64: 1, 32>}, {pipeline_mode = #tpu.pipeline_mode<synchronous>, transform_indices = @transform_2, window_bounds = array<i64: 1, 32>}, {transform_indices = @transform_3, window_bounds = array<i64: 1, 8, 32>}]} {
    %c0 = arith.constant 0 : index
    %c0_0 = arith.constant 0 : index
    %c0_1 = arith.constant 0 : index
    %0 = vector.load %arg1[%c0, %c0_0, %c0_1] : memref<1x8x32xf32, #tpu.memory_space<vmem>>, vector<1x8x32xf32>
    %1 = vector.shape_cast %0 : vector<1x8x32xf32> to vector<8x32xf32>
    %c0_2 = arith.constant 0 : index
    %c0_3 = arith.constant 0 : index
    %2 = vector.load %arg2[%c0_2, %c0_3] : memref<1x32xf32, #tpu.memory_space<vmem>>, vector<1x32xf32>
    %c0_4 = arith.constant 0 : index
    %c0_5 = arith.constant 0 : index
    %3 = vector.load %arg3[%c0_4, %c0_5] : memref<1x32xf32, #tpu.memory_space<vmem>>, vector<1x32xf32>
    %cst = arith.constant dense<0.000000e+00> : vector<8xf32>
    %4 = vector.multi_reduction <add>, %1, %cst [1] : vector<8x32xf32> to vector<8xf32>
    %5 = vector.shape_cast %4 : vector<8xf32> to vector<8x1xf32>
    %cst_6 = arith.constant 3.200000e+01 : f32
    %6 = vector.broadcast %cst_6 : f32 to vector<8x1xf32>
    %7 = arith.divf %5, %6 : vector<8x1xf32>
    %8 = vector.broadcast %7 : vector<8x1xf32> to vector<8x32xf32>
    %9 = arith.subf %1, %8 : vector<8x32xf32>
    %10 = arith.mulf %9, %9 : vector<8x32xf32>
    %cst_7 = arith.constant dense<0.000000e+00> : vector<8xf32>
    %11 = vector.multi_reduction <add>, %10, %cst_7 [1] : vector<8x32xf32> to vector<8xf32>
    %12 = vector.shape_cast %11 : vector<8xf32> to vector<8x1xf32>
    %cst_8 = arith.constant 3.200000e+01 : f32
    %13 = vector.broadcast %cst_8 : f32 to vector<8x1xf32>
    %14 = arith.divf %12, %13 : vector<8x1xf32>
    %15 = vector.broadcast %7 : vector<8x1xf32> to vector<8x32xf32>
    %16 = arith.subf %1, %15 : vector<8x32xf32>
    %cst_9 = arith.constant 9.99999996E-13 : f32
    %17 = vector.broadcast %cst_9 : f32 to vector<8x1xf32>
    %18 = arith.addf %14, %17 : vector<8x1xf32>
    %19 = math.rsqrt %18 : vector<8x1xf32>
    %20 = vector.broadcast %19 : vector<8x1xf32> to vector<8x32xf32>
    %21 = arith.mulf %16, %20 : vector<8x32xf32>
    %22 = vector.broadcast %2 : vector<1x32xf32> to vector<8x32xf32>
    %23 = arith.mulf %21, %22 : vector<8x32xf32>
    %24 = vector.broadcast %3 : vector<1x32xf32> to vector<8x32xf32>
    %25 = arith.addf %23, %24 : vector<8x32xf32>
    %c0_10 = arith.constant 0 : index
    %c0_11 = arith.constant 0 : index
    %c0_12 = arith.constant 0 : index
    %26 = vector.load %arg4[%c0_10, %c0_11, %c0_12] : memref<1x8x32xf32, #tpu.memory_space<vmem>>, vector<1x8x32xf32>
    %27 = vector.shape_cast %26 : vector<1x8x32xf32> to vector<8x32xf32>
    %28 = vector.shape_cast %25 : vector<8x32xf32> to vector<1x8x32xf32>
    tpu.vector_store %arg4[%c0_10, %c0_11, %c0_12], %28 {strides = array<i32>} : memref<1x8x32xf32, #tpu.memory_space<vmem>>, vector<1x8x32xf32>,
    return
  }
  func.func @transform_0(%arg0: i32) -> (i32, i32, i32) {
    %c0_i32 = arith.constant 0 : i32
    %c0_i32_0 = arith.constant 0 : i32
    %c0_i32_1 = arith.constant 0 : i32
    return %arg0, %c0_i32, %c0_i32_0 : i32, i32, i32
  }
  func.func @transform_1(%arg0: i32) -> (i32, i32) {
    %c0_i32 = arith.constant 0 : i32
    %c0_i32_0 = arith.constant 0 : i32
    %c0_i32_1 = arith.constant 0 : i32
    return %c0_i32, %c0_i32_0 : i32, i32
  }
  func.func @transform_2(%arg0: i32) -> (i32, i32) {
    %c0_i32 = arith.constant 0 : i32
    %c0_i32_0 = arith.constant 0 : i32
    %c0_i32_1 = arith.constant 0 : i32
    return %c0_i32, %c0_i32_0 : i32, i32
  }
  func.func @transform_3(%arg0: i32) -> (i32, i32, i32) {
    %c0_i32 = arith.constant 0 : i32
    %c0_i32_0 = arith.constant 0 : i32
    %c0_i32_1 = arith.constant 0 : i32
    return %arg0, %c0_i32, %c0_i32_0 : i32, i32, i32
  }
}

module attributes {stable_mosaic.version = 11 : i64} {
  func.func @_self_attn_block_kernel(%arg0: i32, %arg1: memref<1x8x32xf32, #tpu.memory_space<vmem>>, %arg2: memref<1x32xf32, #tpu.memory_space<vmem>>, %arg3: memref<1x32xf32, #tpu.memory_space<vmem>>, %arg4: memref<32x96xbf16, #tpu.memory_space<vmem>>, %arg5: memref<1x96xf32, #tpu.memory_space<vmem>>, %arg6: memref<32x32xbf16, #tpu.memory_space<vmem>>, %arg7: memref<1x32xf32, #tpu.memory_space<vmem>>, %arg8: memref<1x1x8xf32, #tpu.memory_space<vmem>>, %arg9: memref<1x8x32xf32, #tpu.memory_space<vmem>>) attributes {dimension_semantics = [#tpu.dimension_semantics<parallel>], iteration_bounds = array<i64: 2>, scalar_prefetch = 0 : i64, scratch_operands = 0 : i64, tpu.core_type = #tpu.core_type<tc>, window_params = [{transform_indices = @transform_0, window_bounds = array<i64: 1, 8, 32>}, {pipeline_mode = #tpu.pipeline_mode<synchronous>, transform_indices = @transform_1, window_bounds = array<i64: 1, 32>}, {pipeline_mode = #tpu.pipeline_mode<synchronous>, transform_indices = @transform_2, window_bounds = array<i64: 1, 32>}, {pipeline_mode = #tpu.pipeline_mode<synchronous>, transform_indices = @transform_3, window_bounds = array<i64: 32, 96>}, {pipeline_mode = #tpu.pipeline_mode<synchronous>, transform_indices = @transform_4, window_bounds = array<i64: 1, 96>}, {pipeline_mode = #tpu.pipeline_mode<synchronous>, transform_indices = @transform_5, window_bounds = array<i64: 32, 32>}, {pipeline_mode = #tpu.pipeline_mode<synchronous>, transform_indices = @transform_6, window_bounds = array<i64: 1, 32>}, {transform_indices = @transform_7, window_bounds = array<i64: 1, 1, 8>}, {transform_indices = @transform_8, window_bounds = array<i64: 1, 8, 32>}]} {
    %c0 = arith.constant 0 : index
    %c0_0 = arith.constant 0 : index
    %c0_1 = arith.constant 0 : index
    %0 = vector.load %arg1[%c0, %c0_0, %c0_1] : memref<1x8x32xf32, #tpu.memory_space<vmem>>, vector<1x8x32xf32>
    %1 = vector.shape_cast %0 : vector<1x8x32xf32> to vector<8x32xf32>
    %2 = arith.truncf %1 : vector<8x32xf32> to vector<8x32xbf16>
    %c0_2 = arith.constant 0 : index
    %c0_3 = arith.constant 0 : index
    %3 = vector.load %arg4[%c0_2, %c0_3] : memref<32x96xbf16, #tpu.memory_space<vmem>>, vector<32x96xbf16>
    %cst = arith.constant dense<0.000000e+00> : vector<8x96xf32>
    %4 = tpu.matmul %2, %3, %cst {dimension_numbers = #tpu.dot_dimension_numbers<[1], [0], [0], [1], [0, 0, 1, 1], [], []>} : vector<8x32xbf16>, vector<32x96xbf16>, vector<8x96xf32> -> vector<8x96xf32>
    %c0_4 = arith.constant 0 : index
    %c0_5 = arith.constant 0 : index
    %5 = vector.load %arg5[%c0_4, %c0_5] : memref<1x96xf32, #tpu.memory_space<vmem>>, vector<1x96xf32>
    %6 = vector.broadcast %5 : vector<1x96xf32> to vector<8x96xf32>
    %7 = arith.addf %4, %6 : vector<8x96xf32>
    %c0_6 = arith.constant 0 : index
    %c0_7 = arith.constant 0 : index
    %c0_8 = arith.constant 0 : index
    %8 = vector.load %arg8[%c0_6, %c0_7, %c0_8] : memref<1x1x8xf32, #tpu.memory_space<vmem>>, vector<1x1x8xf32>
    %9 = vector.shape_cast %8 : vector<1x1x8xf32> to vector<1x8xf32>
    %10 = vector.extract_strided_slice %7 {offsets = [0, 0], sizes = [8, 32], strides = [1, 1]} : vector<8x96xf32> to vector<8x32xf32>
    %11 = vector.extract_strided_slice %7 {offsets = [0, 32], sizes = [8, 32], strides = [1, 1]} : vector<8x96xf32> to vector<8x32xf32>
    %12 = vector.extract_strided_slice %7 {offsets = [0, 64], sizes = [8, 32], strides = [1, 1]} : vector<8x96xf32> to vector<8x32xf32>
    %13 = vector.extract_strided_slice %10 {offsets = [0, 0], sizes = [8, 8], strides = [1, 1]} : vector<8x32xf32> to vector<8x8xf32>
    %14 = arith.truncf %13 : vector<8x8xf32> to vector<8x8xbf16>
    %15 = vector.extract_strided_slice %11 {offsets = [0, 0], sizes = [8, 8], strides = [1, 1]} : vector<8x32xf32> to vector<8x8xf32>
    %16 = arith.truncf %15 : vector<8x8xf32> to vector<8x8xbf16>
    %17 = vector.extract_strided_slice %12 {offsets = [0, 0], sizes = [8, 8], strides = [1, 1]} : vector<8x32xf32> to vector<8x8xf32>
    %18 = arith.truncf %17 : vector<8x8xf32> to vector<8x8xbf16>
    %cst_9 = arith.constant dense<0.000000e+00> : vector<8x8xf32>
    %19 = tpu.matmul %14, %16, %cst_9 {dimension_numbers = #tpu.dot_dimension_numbers<[1], [1], [0], [0], [0, 0, 1, 0], [], []>} : vector<8x8xbf16>, vector<8x8xbf16>, vector<8x8xf32> -> vector<8x8xf32>
    %cst_10 = arith.constant 0.353553385 : f32
    %20 = vector.broadcast %cst_10 : f32 to vector<8x8xf32>
    %21 = arith.mulf %19, %20 : vector<8x8xf32>
    %22 = vector.broadcast %9 : vector<1x8xf32> to vector<8x8xf32>
    %23 = arith.addf %21, %22 : vector<8x8xf32>
    %cst_11 = arith.constant dense<0xFF800000> : vector<8xf32>
    %24 = vector.multi_reduction <maximumf>, %23, %cst_11 [1] : vector<8x8xf32> to vector<8xf32>
    %25 = vector.shape_cast %24 : vector<8xf32> to vector<8x1xf32>
    %26 = vector.broadcast %25 : vector<8x1xf32> to vector<8x8xf32>
    %27 = arith.subf %23, %26 : vector<8x8xf32>
    %28 = math.exp %27 : vector<8x8xf32>
    %cst_12 = arith.constant dense<0.000000e+00> : vector<8xf32>
    %29 = vector.multi_reduction <add>, %28, %cst_12 [1] : vector<8x8xf32> to vector<8xf32>
    %30 = vector.shape_cast %29 : vector<8xf32> to vector<8x1xf32>
    %31 = tpu.reciprocal %30 {approx = true} : vector<8x1xf32> -> vector<8x1xf32>
    %32 = vector.broadcast %31 : vector<8x1xf32> to vector<8x8xf32>
    %33 = arith.mulf %28, %32 : vector<8x8xf32>
    %34 = arith.truncf %33 : vector<8x8xf32> to vector<8x8xbf16>
    %cst_13 = arith.constant dense<0.000000e+00> : vector<8x8xf32>
    %35 = tpu.matmul %34, %18, %cst_13 {dimension_numbers = #tpu.dot_dimension_numbers<[1], [0], [0], [1], [0, 0, 1, 1], [], []>} : vector<8x8xbf16>, vector<8x8xbf16>, vector<8x8xf32> -> vector<8x8xf32>
    %36 = vector.extract_strided_slice %10 {offsets = [0, 8], sizes = [8, 8], strides = [1, 1]} : vector<8x32xf32> to vector<8x8xf32>
    %37 = arith.truncf %36 : vector<8x8xf32> to vector<8x8xbf16>
    %38 = vector.extract_strided_slice %11 {offsets = [0, 8], sizes = [8, 8], strides = [1, 1]} : vector<8x32xf32> to vector<8x8xf32>
    %39 = arith.truncf %38 : vector<8x8xf32> to vector<8x8xbf16>
    %40 = vector.extract_strided_slice %12 {offsets = [0, 8], sizes = [8, 8], strides = [1, 1]} : vector<8x32xf32> to vector<8x8xf32>
    %41 = arith.truncf %40 : vector<8x8xf32> to vector<8x8xbf16>
    %cst_14 = arith.constant dense<0.000000e+00> : vector<8x8xf32>
    %42 = tpu.matmul %37, %39, %cst_14 {dimension_numbers = #tpu.dot_dimension_numbers<[1], [1], [0], [0], [0, 0, 1, 0], [], []>} : vector<8x8xbf16>, vector<8x8xbf16>, vector<8x8xf32> -> vector<8x8xf32>
    %cst_15 = arith.constant 0.353553385 : f32
    %43 = vector.broadcast %cst_15 : f32 to vector<8x8xf32>
    %44 = arith.mulf %42, %43 : vector<8x8xf32>
    %45 = vector.broadcast %9 : vector<1x8xf32> to vector<8x8xf32>
    %46 = arith.addf %44, %45 : vector<8x8xf32>
    %cst_16 = arith.constant dense<0xFF800000> : vector<8xf32>
    %47 = vector.multi_reduction <maximumf>, %46, %cst_16 [1] : vector<8x8xf32> to vector<8xf32>
    %48 = vector.shape_cast %47 : vector<8xf32> to vector<8x1xf32>
    %49 = vector.broadcast %48 : vector<8x1xf32> to vector<8x8xf32>
    %50 = arith.subf %46, %49 : vector<8x8xf32>
    %51 = math.exp %50 : vector<8x8xf32>
    %cst_17 = arith.constant dense<0.000000e+00> : vector<8xf32>
    %52 = vector.multi_reduction <add>, %51, %cst_17 [1] : vector<8x8xf32> to vector<8xf32>
    %53 = vector.shape_cast %52 : vector<8xf32> to vector<8x1xf32>
    %54 = tpu.reciprocal %53 {approx = true} : vector<8x1xf32> -> vector<8x1xf32>
    %55 = vector.broadcast %54 : vector<8x1xf32> to vector<8x8xf32>
    %56 = arith.mulf %51, %55 : vector<8x8xf32>
    %57 = arith.truncf %56 : vector<8x8xf32> to vector<8x8xbf16>
    %cst_18 = arith.constant dense<0.000000e+00> : vector<8x8xf32>
    %58 = tpu.matmul %57, %41, %cst_18 {dimension_numbers = #tpu.dot_dimension_numbers<[1], [0], [0], [1], [0, 0, 1, 1], [], []>} : vector<8x8xbf16>, vector<8x8xbf16>, vector<8x8xf32> -> vector<8x8xf32>
    %59 = vector.extract_strided_slice %10 {offsets = [0, 16], sizes = [8, 8], strides = [1, 1]} : vector<8x32xf32> to vector<8x8xf32>
    %60 = arith.truncf %59 : vector<8x8xf32> to vector<8x8xbf16>
    %61 = vector.extract_strided_slice %11 {offsets = [0, 16], sizes = [8, 8], strides = [1, 1]} : vector<8x32xf32> to vector<8x8xf32>
    %62 = arith.truncf %61 : vector<8x8xf32> to vector<8x8xbf16>
    %63 = vector.extract_strided_slice %12 {offsets = [0, 16], sizes = [8, 8], strides = [1, 1]} : vector<8x32xf32> to vector<8x8xf32>
    %64 = arith.truncf %63 : vector<8x8xf32> to vector<8x8xbf16>
    %cst_19 = arith.constant dense<0.000000e+00> : vector<8x8xf32>
    %65 = tpu.matmul %60, %62, %cst_19 {dimension_numbers = #tpu.dot_dimension_numbers<[1], [1], [0], [0], [0, 0, 1, 0], [], []>} : vector<8x8xbf16>, vector<8x8xbf16>, vector<8x8xf32> -> vector<8x8xf32>
    %cst_20 = arith.constant 0.353553385 : f32
    %66 = vector.broadcast %cst_20 : f32 to vector<8x8xf32>
    %67 = arith.mulf %65, %66 : vector<8x8xf32>
    %68 = vector.broadcast %9 : vector<1x8xf32> to vector<8x8xf32>
    %69 = arith.addf %67, %68 : vector<8x8xf32>
    %cst_21 = arith.constant dense<0xFF800000> : vector<8xf32>
    %70 = vector.multi_reduction <maximumf>, %69, %cst_21 [1] : vector<8x8xf32> to vector<8xf32>
    %71 = vector.shape_cast %70 : vector<8xf32> to vector<8x1xf32>
    %72 = vector.broadcast %71 : vector<8x1xf32> to vector<8x8xf32>
    %73 = arith.subf %69, %72 : vector<8x8xf32>
    %74 = math.exp %73 : vector<8x8xf32>
    %cst_22 = arith.constant dense<0.000000e+00> : vector<8xf32>
    %75 = vector.multi_reduction <add>, %74, %cst_22 [1] : vector<8x8xf32> to vector<8xf32>
    %76 = vector.shape_cast %75 : vector<8xf32> to vector<8x1xf32>
    %77 = tpu.reciprocal %76 {approx = true} : vector<8x1xf32> -> vector<8x1xf32>
    %78 = vector.broadcast %77 : vector<8x1xf32> to vector<8x8xf32>
    %79 = arith.mulf %74, %78 : vector<8x8xf32>
    %80 = arith.truncf %79 : vector<8x8xf32> to vector<8x8xbf16>
    %cst_23 = arith.constant dense<0.000000e+00> : vector<8x8xf32>
    %81 = tpu.matmul %80, %64, %cst_23 {dimension_numbers = #tpu.dot_dimension_numbers<[1], [0], [0], [1], [0, 0, 1, 1], [], []>} : vector<8x8xbf16>, vector<8x8xbf16>, vector<8x8xf32> -> vector<8x8xf32>
    %82 = vector.extract_strided_slice %10 {offsets = [0, 24], sizes = [8, 8], strides = [1, 1]} : vector<8x32xf32> to vector<8x8xf32>
    %83 = arith.truncf %82 : vector<8x8xf32> to vector<8x8xbf16>
    %84 = vector.extract_strided_slice %11 {offsets = [0, 24], sizes = [8, 8], strides = [1, 1]} : vector<8x32xf32> to vector<8x8xf32>
    %85 = arith.truncf %84 : vector<8x8xf32> to vector<8x8xbf16>
    %86 = vector.extract_strided_slice %12 {offsets = [0, 24], sizes = [8, 8], strides = [1, 1]} : vector<8x32xf32> to vector<8x8xf32>
    %87 = arith.truncf %86 : vector<8x8xf32> to vector<8x8xbf16>
    %cst_24 = arith.constant dense<0.000000e+00> : vector<8x8xf32>
    %88 = tpu.matmul %83, %85, %cst_24 {dimension_numbers = #tpu.dot_dimension_numbers<[1], [1], [0], [0], [0, 0, 1, 0], [], []>} : vector<8x8xbf16>, vector<8x8xbf16>, vector<8x8xf32> -> vector<8x8xf32>
    %cst_25 = arith.constant 0.353553385 : f32
    %89 = vector.broadcast %cst_25 : f32 to vector<8x8xf32>
    %90 = arith.mulf %88, %89 : vector<8x8xf32>
    %91 = vector.broadcast %9 : vector<1x8xf32> to vector<8x8xf32>
    %92 = arith.addf %90, %91 : vector<8x8xf32>
    %cst_26 = arith.constant dense<0xFF800000> : vector<8xf32>
    %93 = vector.multi_reduction <maximumf>, %92, %cst_26 [1] : vector<8x8xf32> to vector<8xf32>
    %94 = vector.shape_cast %93 : vector<8xf32> to vector<8x1xf32>
    %95 = vector.broadcast %94 : vector<8x1xf32> to vector<8x8xf32>
    %96 = arith.subf %92, %95 : vector<8x8xf32>
    %97 = math.exp %96 : vector<8x8xf32>
    %cst_27 = arith.constant dense<0.000000e+00> : vector<8xf32>
    %98 = vector.multi_reduction <add>, %97, %cst_27 [1] : vector<8x8xf32> to vector<8xf32>
    %99 = vector.shape_cast %98 : vector<8xf32> to vector<8x1xf32>
    %100 = tpu.reciprocal %99 {approx = true} : vector<8x1xf32> -> vector<8x1xf32>
    %101 = vector.broadcast %100 : vector<8x1xf32> to vector<8x8xf32>
    %102 = arith.mulf %97, %101 : vector<8x8xf32>
    %103 = arith.truncf %102 : vector<8x8xf32> to vector<8x8xbf16>
    %cst_28 = arith.constant dense<0.000000e+00> : vector<8x8xf32>
    %104 = tpu.matmul %103, %87, %cst_28 {dimension_numbers = #tpu.dot_dimension_numbers<[1], [0], [0], [1], [0, 0, 1, 1], [], []>} : vector<8x8xbf16>, vector<8x8xbf16>, vector<8x8xf32> -> vector<8x8xf32>
    %105 = tpu.concatenate %35, %58, %81, %104 in 1 : vector<8x8xf32>, vector<8x8xf32>, vector<8x8xf32>, vector<8x8xf32> -> vector<8x32xf32>
    %106 = arith.truncf %105 : vector<8x32xf32> to vector<8x32xbf16>
    %c0_29 = arith.constant 0 : index
    %c0_30 = arith.constant 0 : index
    %107 = vector.load %arg6[%c0_29, %c0_30] : memref<32x32xbf16, #tpu.memory_space<vmem>>, vector<32x32xbf16>
    %cst_31 = arith.constant dense<0.000000e+00> : vector<8x32xf32>
    %108 = tpu.matmul %106, %107, %cst_31 {dimension_numbers = #tpu.dot_dimension_numbers<[1], [0], [0], [1], [0, 0, 1, 1], [], []>} : vector<8x32xbf16>, vector<32x32xbf16>, vector<8x32xf32> -> vector<8x32xf32>
    %c0_32 = arith.constant 0 : index
    %c0_33 = arith.constant 0 : index
    %109 = vector.load %arg7[%c0_32, %c0_33] : memref<1x32xf32, #tpu.memory_space<vmem>>, vector<1x32xf32>
    %110 = vector.broadcast %109 : vector<1x32xf32> to vector<8x32xf32>
    %111 = arith.addf %108, %110 : vector<8x32xf32>
    %112 = arith.addf %1, %111 : vector<8x32xf32>
    %c0_34 = arith.constant 0 : index
    %c0_35 = arith.constant 0 : index
    %113 = vector.load %arg2[%c0_34, %c0_35] : memref<1x32xf32, #tpu.memory_space<vmem>>, vector<1x32xf32>
    %c0_36 = arith.constant 0 : index
    %c0_37 = arith.constant 0 : index
    %114 = vector.load %arg3[%c0_36, %c0_37] : memref<1x32xf32, #tpu.memory_space<vmem>>, vector<1x32xf32>
    %cst_38 = arith.constant dense<0.000000e+00> : vector<8xf32>
    %115 = vector.multi_reduction <add>, %112, %cst_38 [1] : vector<8x32xf32> to vector<8xf32>
    %116 = vector.shape_cast %115 : vector<8xf32> to vector<8x1xf32>
    %cst_39 = arith.constant 3.200000e+01 : f32
    %117 = vector.broadcast %cst_39 : f32 to vector<8x1xf32>
    %118 = arith.divf %116, %117 : vector<8x1xf32>
    %119 = vector.broadcast %118 : vector<8x1xf32> to vector<8x32xf32>
    %120 = arith.subf %112, %119 : vector<8x32xf32>
    %121 = arith.mulf %120, %120 : vector<8x32xf32>
    %cst_40 = arith.constant dense<0.000000e+00> : vector<8xf32>
    %122 = vector.multi_reduction <add>, %121, %cst_40 [1] : vector<8x32xf32> to vector<8xf32>
    %123 = vector.shape_cast %122 : vector<8xf32> to vector<8x1xf32>
    %cst_41 = arith.constant 3.200000e+01 : f32
    %124 = vector.broadcast %cst_41 : f32 to vector<8x1xf32>
    %125 = arith.divf %123, %124 : vector<8x1xf32>
    %126 = vector.broadcast %118 : vector<8x1xf32> to vector<8x32xf32>
    %127 = arith.subf %112, %126 : vector<8x32xf32>
    %cst_42 = arith.constant 9.99999996E-13 : f32
    %128 = vector.broadcast %cst_42 : f32 to vector<8x1xf32>
    %129 = arith.addf %125, %128 : vector<8x1xf32>
    %130 = math.rsqrt %129 : vector<8x1xf32>
    %131 = vector.broadcast %130 : vector<8x1xf32> to vector<8x32xf32>
    %132 = arith.mulf %127, %131 : vector<8x32xf32>
    %133 = vector.broadcast %113 : vector<1x32xf32> to vector<8x32xf32>
    %134 = arith.mulf %132, %133 : vector<8x32xf32>
    %135 = vector.broadcast %114 : vector<1x32xf32> to vector<8x32xf32>
    %136 = arith.addf %134, %135 : vector<8x32xf32>
    %c0_43 = arith.constant 0 : index
    %c0_44 = arith.constant 0 : index
    %c0_45 = arith.constant 0 : index
    %137 = vector.load %arg9[%c0_43, %c0_44, %c0_45] : memref<1x8x32xf32, #tpu.memory_space<vmem>>, vector<1x8x32xf32>
    %138 = vector.shape_cast %137 : vector<1x8x32xf32> to vector<8x32xf32>
    %139 = vector.shape_cast %136 : vector<8x32xf32> to vector<1x8x32xf32>
    tpu.vector_store %arg9[%c0_43, %c0_44, %c0_45], %139 {strides = array<i32>} : memref<1x8x32xf32, #tpu.memory_space<vmem>>, vector<1x8x32xf32>,
    return
  }
  func.func @transform_0(%arg0: i32) -> (i32, i32, i32) {
    %c0_i32 = arith.constant 0 : i32
    %c0_i32_0 = arith.constant 0 : i32
    %c0_i32_1 = arith.constant 0 : i32
    return %arg0, %c0_i32, %c0_i32_0 : i32, i32, i32
  }
  func.func @transform_1(%arg0: i32) -> (i32, i32) {
    %c0_i32 = arith.constant 0 : i32
    %c0_i32_0 = arith.constant 0 : i32
    %c0_i32_1 = arith.constant 0 : i32
    return %c0_i32, %c0_i32_0 : i32, i32
  }
  func.func @transform_2(%arg0: i32) -> (i32, i32) {
    %c0_i32 = arith.constant 0 : i32
    %c0_i32_0 = arith.constant 0 : i32
    %c0_i32_1 = arith.constant 0 : i32
    return %c0_i32, %c0_i32_0 : i32, i32
  }
  func.func @transform_3(%arg0: i32) -> (i32, i32) {
    %c0_i32 = arith.constant 0 : i32
    %c0_i32_0 = arith.constant 0 : i32
    %c0_i32_1 = arith.constant 0 : i32
    return %c0_i32, %c0_i32_0 : i32, i32
  }
  func.func @transform_4(%arg0: i32) -> (i32, i32) {
    %c0_i32 = arith.constant 0 : i32
    %c0_i32_0 = arith.constant 0 : i32
    %c0_i32_1 = arith.constant 0 : i32
    return %c0_i32, %c0_i32_0 : i32, i32
  }
  func.func @transform_5(%arg0: i32) -> (i32, i32) {
    %c0_i32 = arith.constant 0 : i32
    %c0_i32_0 = arith.constant 0 : i32
    %c0_i32_1 = arith.constant 0 : i32
    return %c0_i32, %c0_i32_0 : i32, i32
  }
  func.func @transform_6(%arg0: i32) -> (i32, i32) {
    %c0_i32 = arith.constant 0 : i32
    %c0_i32_0 = arith.constant 0 : i32
    %c0_i32_1 = arith.constant 0 : i32
    return %c0_i32, %c0_i32_0 : i32, i32
  }
  func.func @transform_7(%arg0: i32) -> (i32, i32, i32) {
    %c0_i32 = arith.constant 0 : i32
    %c0_i32_0 = arith.constant 0 : i32
    %c0_i32_1 = arith.constant 0 : i32
    return %arg0, %c0_i32, %c0_i32_0 : i32, i32, i32
  }
  func.func @transform_8(%arg0: i32) -> (i32, i32, i32) {
    %c0_i32 = arith.constant 0 : i32
    %c0_i32_0 = arith.constant 0 : i32
    %c0_i32_1 = arith.constant 0 : i32
    return %arg0, %c0_i32, %c0_i32_0 : i32, i32, i32
  }
}

module attributes {stable_mosaic.version = 11 : i64} {
  func.func @_ffn_block_kernel(%arg0: i32, %arg1: memref<1x8x32xf32, #tpu.memory_space<vmem>>, %arg2: memref<1x32xf32, #tpu.memory_space<vmem>>, %arg3: memref<1x32xf32, #tpu.memory_space<vmem>>, %arg4: memref<32x128xbf16, #tpu.memory_space<vmem>>, %arg5: memref<1x128xf32, #tpu.memory_space<vmem>>, %arg6: memref<128x32xbf16, #tpu.memory_space<vmem>>, %arg7: memref<1x32xf32, #tpu.memory_space<vmem>>, %arg8: memref<1x8x32xf32, #tpu.memory_space<vmem>>) attributes {dimension_semantics = [#tpu.dimension_semantics<parallel>], iteration_bounds = array<i64: 2>, scalar_prefetch = 0 : i64, scratch_operands = 0 : i64, tpu.core_type = #tpu.core_type<tc>, window_params = [{transform_indices = @transform_0, window_bounds = array<i64: 1, 8, 32>}, {pipeline_mode = #tpu.pipeline_mode<synchronous>, transform_indices = @transform_1, window_bounds = array<i64: 1, 32>}, {pipeline_mode = #tpu.pipeline_mode<synchronous>, transform_indices = @transform_2, window_bounds = array<i64: 1, 32>}, {pipeline_mode = #tpu.pipeline_mode<synchronous>, transform_indices = @transform_3, window_bounds = array<i64: 32, 128>}, {pipeline_mode = #tpu.pipeline_mode<synchronous>, transform_indices = @transform_4, window_bounds = array<i64: 1, 128>}, {pipeline_mode = #tpu.pipeline_mode<synchronous>, transform_indices = @transform_5, window_bounds = array<i64: 128, 32>}, {pipeline_mode = #tpu.pipeline_mode<synchronous>, transform_indices = @transform_6, window_bounds = array<i64: 1, 32>}, {transform_indices = @transform_7, window_bounds = array<i64: 1, 8, 32>}]} {
    %c0 = arith.constant 0 : index
    %c0_0 = arith.constant 0 : index
    %c0_1 = arith.constant 0 : index
    %0 = vector.load %arg1[%c0, %c0_0, %c0_1] : memref<1x8x32xf32, #tpu.memory_space<vmem>>, vector<1x8x32xf32>
    %1 = vector.shape_cast %0 : vector<1x8x32xf32> to vector<8x32xf32>
    %2 = arith.truncf %1 : vector<8x32xf32> to vector<8x32xbf16>
    %c0_2 = arith.constant 0 : index
    %c0_3 = arith.constant 0 : index
    %3 = vector.load %arg4[%c0_2, %c0_3] : memref<32x128xbf16, #tpu.memory_space<vmem>>, vector<32x128xbf16>
    %cst = arith.constant dense<0.000000e+00> : vector<8x128xf32>
    %4 = tpu.matmul %2, %3, %cst {dimension_numbers = #tpu.dot_dimension_numbers<[1], [0], [0], [1], [0, 0, 1, 1], [], []>} : vector<8x32xbf16>, vector<32x128xbf16>, vector<8x128xf32> -> vector<8x128xf32>
    %c0_4 = arith.constant 0 : index
    %c0_5 = arith.constant 0 : index
    %5 = vector.load %arg5[%c0_4, %c0_5] : memref<1x128xf32, #tpu.memory_space<vmem>>, vector<1x128xf32>
    %6 = vector.broadcast %5 : vector<1x128xf32> to vector<8x128xf32>
    %7 = arith.addf %4, %6 : vector<8x128xf32>
    %8 = arith.mulf %7, %7 : vector<8x128xf32>
    %9 = arith.mulf %7, %8 : vector<8x128xf32>
    %cst_6 = arith.constant 4.471500e-02 : f32
    %10 = vector.broadcast %cst_6 : f32 to vector<8x128xf32>
    %11 = arith.mulf %10, %9 : vector<8x128xf32>
    %12 = arith.addf %7, %11 : vector<8x128xf32>
    %cst_7 = arith.constant 0.797884583 : f32
    %13 = vector.broadcast %cst_7 : f32 to vector<8x128xf32>
    %14 = arith.mulf %13, %12 : vector<8x128xf32>
    %15 = math.tanh %14 : vector<8x128xf32>
    %cst_8 = arith.constant 1.000000e+00 : f32
    %16 = vector.broadcast %cst_8 : f32 to vector<8x128xf32>
    %17 = arith.addf %16, %15 : vector<8x128xf32>
    %cst_9 = arith.constant 5.000000e-01 : f32
    %18 = vector.broadcast %cst_9 : f32 to vector<8x128xf32>
    %19 = arith.mulf %18, %17 : vector<8x128xf32>
    %20 = arith.mulf %7, %19 : vector<8x128xf32>
    %21 = arith.truncf %20 : vector<8x128xf32> to vector<8x128xbf16>
    %c0_10 = arith.constant 0 : index
    %c0_11 = arith.constant 0 : index
    %22 = vector.load %arg6[%c0_10, %c0_11] : memref<128x32xbf16, #tpu.memory_space<vmem>>, vector<128x32xbf16>
    %cst_12 = arith.constant dense<0.000000e+00> : vector<8x32xf32>
    %23 = tpu.matmul %21, %22, %cst_12 {dimension_numbers = #tpu.dot_dimension_numbers<[1], [0], [0], [1], [0, 0, 1, 1], [], []>} : vector<8x128xbf16>, vector<128x32xbf16>, vector<8x32xf32> -> vector<8x32xf32>
    %c0_13 = arith.constant 0 : index
    %c0_14 = arith.constant 0 : index
    %24 = vector.load %arg7[%c0_13, %c0_14] : memref<1x32xf32, #tpu.memory_space<vmem>>, vector<1x32xf32>
    %25 = vector.broadcast %24 : vector<1x32xf32> to vector<8x32xf32>
    %26 = arith.addf %23, %25 : vector<8x32xf32>
    %27 = arith.addf %1, %26 : vector<8x32xf32>
    %c0_15 = arith.constant 0 : index
    %c0_16 = arith.constant 0 : index
    %28 = vector.load %arg2[%c0_15, %c0_16] : memref<1x32xf32, #tpu.memory_space<vmem>>, vector<1x32xf32>
    %c0_17 = arith.constant 0 : index
    %c0_18 = arith.constant 0 : index
    %29 = vector.load %arg3[%c0_17, %c0_18] : memref<1x32xf32, #tpu.memory_space<vmem>>, vector<1x32xf32>
    %cst_19 = arith.constant dense<0.000000e+00> : vector<8xf32>
    %30 = vector.multi_reduction <add>, %27, %cst_19 [1] : vector<8x32xf32> to vector<8xf32>
    %31 = vector.shape_cast %30 : vector<8xf32> to vector<8x1xf32>
    %cst_20 = arith.constant 3.200000e+01 : f32
    %32 = vector.broadcast %cst_20 : f32 to vector<8x1xf32>
    %33 = arith.divf %31, %32 : vector<8x1xf32>
    %34 = vector.broadcast %33 : vector<8x1xf32> to vector<8x32xf32>
    %35 = arith.subf %27, %34 : vector<8x32xf32>
    %36 = arith.mulf %35, %35 : vector<8x32xf32>
    %cst_21 = arith.constant dense<0.000000e+00> : vector<8xf32>
    %37 = vector.multi_reduction <add>, %36, %cst_21 [1] : vector<8x32xf32> to vector<8xf32>
    %38 = vector.shape_cast %37 : vector<8xf32> to vector<8x1xf32>
    %cst_22 = arith.constant 3.200000e+01 : f32
    %39 = vector.broadcast %cst_22 : f32 to vector<8x1xf32>
    %40 = arith.divf %38, %39 : vector<8x1xf32>
    %41 = vector.broadcast %33 : vector<8x1xf32> to vector<8x32xf32>
    %42 = arith.subf %27, %41 : vector<8x32xf32>
    %cst_23 = arith.constant 9.99999996E-13 : f32
    %43 = vector.broadcast %cst_23 : f32 to vector<8x1xf32>
    %44 = arith.addf %40, %43 : vector<8x1xf32>
    %45 = math.rsqrt %44 : vector<8x1xf32>
    %46 = vector.broadcast %45 : vector<8x1xf32> to vector<8x32xf32>
    %47 = arith.mulf %42, %46 : vector<8x32xf32>
    %48 = vector.broadcast %28 : vector<1x32xf32> to vector<8x32xf32>
    %49 = arith.mulf %47, %48 : vector<8x32xf32>
    %50 = vector.broadcast %29 : vector<1x32xf32> to vector<8x32xf32>
    %51 = arith.addf %49, %50 : vector<8x32xf32>
    %c0_24 = arith.constant 0 : index
    %c0_25 = arith.constant 0 : index
    %c0_26 = arith.constant 0 : index
    %52 = vector.load %arg8[%c0_24, %c0_25, %c0_26] : memref<1x8x32xf32, #tpu.memory_space<vmem>>, vector<1x8x32xf32>
    %53 = vector.shape_cast %52 : vector<1x8x32xf32> to vector<8x32xf32>
    %54 = vector.shape_cast %51 : vector<8x32xf32> to vector<1x8x32xf32>
    tpu.vector_store %arg8[%c0_24, %c0_25, %c0_26], %54 {strides = array<i32>} : memref<1x8x32xf32, #tpu.memory_space<vmem>>, vector<1x8x32xf32>,
    return
  }
  func.func @transform_0(%arg0: i32) -> (i32, i32, i32) {
    %c0_i32 = arith.constant 0 : i32
    %c0_i32_0 = arith.constant 0 : i32
    %c0_i32_1 = arith.constant 0 : i32
    return %arg0, %c0_i32, %c0_i32_0 : i32, i32, i32
  }
  func.func @transform_1(%arg0: i32) -> (i32, i32) {
    %c0_i32 = arith.constant 0 : i32
    %c0_i32_0 = arith.constant 0 : i32
    %c0_i32_1 = arith.constant 0 : i32
    return %c0_i32, %c0_i32_0 : i32, i32
  }
  func.func @transform_2(%arg0: i32) -> (i32, i32) {
    %c0_i32 = arith.constant 0 : i32
    %c0_i32_0 = arith.constant 0 : i32
    %c0_i32_1 = arith.constant 0 : i32
    return %c0_i32, %c0_i32_0 : i32, i32
  }
  func.func @transform_3(%arg0: i32) -> (i32, i32) {
    %c0_i32 = arith.constant 0 : i32
    %c0_i32_0 = arith.constant 0 : i32
    %c0_i32_1 = arith.constant 0 : i32
    return %c0_i32, %c0_i32_0 : i32, i32
  }
  func.func @transform_4(%arg0: i32) -> (i32, i32) {
    %c0_i32 = arith.constant 0 : i32
    %c0_i32_0 = arith.constant 0 : i32
    %c0_i32_1 = arith.constant 0 : i32
    return %c0_i32, %c0_i32_0 : i32, i32
  }
  func.func @transform_5(%arg0: i32) -> (i32, i32) {
    %c0_i32 = arith.constant 0 : i32
    %c0_i32_0 = arith.constant 0 : i32
    %c0_i32_1 = arith.constant 0 : i32
    return %c0_i32, %c0_i32_0 : i32, i32
  }
  func.func @transform_6(%arg0: i32) -> (i32, i32) {
    %c0_i32 = arith.constant 0 : i32
    %c0_i32_0 = arith.constant 0 : i32
    %c0_i32_1 = arith.constant 0 : i32
    return %c0_i32, %c0_i32_0 : i32, i32
  }
  func.func @transform_7(%arg0: i32) -> (i32, i32, i32) {
    %c0_i32 = arith.constant 0 : i32
    %c0_i32_0 = arith.constant 0 : i32
    %c0_i32_1 = arith.constant 0 : i32
    return %arg0, %c0_i32, %c0_i32_0 : i32, i32, i32
  }
}

module attributes {stable_mosaic.version = 11 : i64} {
  func.func @_linear_kernel(%arg0: i32, %arg1: memref<1x16x48xf32, #tpu.memory_space<vmem>>, %arg2: memref<48x32xbf16, #tpu.memory_space<vmem>>, %arg3: memref<1x32xf32, #tpu.memory_space<vmem>>, %arg4: memref<1x16x32xf32, #tpu.memory_space<vmem>>) attributes {dimension_semantics = [#tpu.dimension_semantics<parallel>], iteration_bounds = array<i64: 2>, scalar_prefetch = 0 : i64, scratch_operands = 0 : i64, tpu.core_type = #tpu.core_type<tc>, window_params = [{transform_indices = @transform_0, window_bounds = array<i64: 1, 16, 48>}, {pipeline_mode = #tpu.pipeline_mode<synchronous>, transform_indices = @transform_1, window_bounds = array<i64: 48, 32>}, {pipeline_mode = #tpu.pipeline_mode<synchronous>, transform_indices = @transform_2, window_bounds = array<i64: 1, 32>}, {transform_indices = @transform_3, window_bounds = array<i64: 1, 16, 32>}]} {
    %c0 = arith.constant 0 : index
    %c0_0 = arith.constant 0 : index
    %c0_1 = arith.constant 0 : index
    %0 = vector.load %arg1[%c0, %c0_0, %c0_1] : memref<1x16x48xf32, #tpu.memory_space<vmem>>, vector<1x16x48xf32>
    %1 = vector.shape_cast %0 : vector<1x16x48xf32> to vector<16x48xf32>
    %2 = arith.truncf %1 : vector<16x48xf32> to vector<16x48xbf16>
    %c0_2 = arith.constant 0 : index
    %c0_3 = arith.constant 0 : index
    %3 = vector.load %arg2[%c0_2, %c0_3] : memref<48x32xbf16, #tpu.memory_space<vmem>>, vector<48x32xbf16>
    %cst = arith.constant dense<0.000000e+00> : vector<16x32xf32>
    %4 = tpu.matmul %2, %3, %cst {dimension_numbers = #tpu.dot_dimension_numbers<[1], [0], [0], [1], [0, 0, 1, 1], [], []>} : vector<16x48xbf16>, vector<48x32xbf16>, vector<16x32xf32> -> vector<16x32xf32>
    %c0_4 = arith.constant 0 : index
    %c0_5 = arith.constant 0 : index
    %5 = vector.load %arg3[%c0_4, %c0_5] : memref<1x32xf32, #tpu.memory_space<vmem>>, vector<1x32xf32>
    %6 = vector.broadcast %5 : vector<1x32xf32> to vector<16x32xf32>
    %7 = arith.addf %4, %6 : vector<16x32xf32>
    %c0_6 = arith.constant 0 : index
    %c0_7 = arith.constant 0 : index
    %c0_8 = arith.constant 0 : index
    %8 = vector.load %arg4[%c0_6, %c0_7, %c0_8] : memref<1x16x32xf32, #tpu.memory_space<vmem>>, vector<1x16x32xf32>
    %9 = vector.shape_cast %8 : vector<1x16x32xf32> to vector<16x32xf32>
    %10 = vector.shape_cast %7 : vector<16x32xf32> to vector<1x16x32xf32>
    tpu.vector_store %arg4[%c0_6, %c0_7, %c0_8], %10 {strides = array<i32>} : memref<1x16x32xf32, #tpu.memory_space<vmem>>, vector<1x16x32xf32>,
    return
  }
  func.func @transform_0(%arg0: i32) -> (i32, i32, i32) {
    %c0_i32 = arith.constant 0 : i32
    %c0_i32_0 = arith.constant 0 : i32
    %c0_i32_1 = arith.constant 0 : i32
    return %arg0, %c0_i32, %c0_i32_0 : i32, i32, i32
  }
  func.func @transform_1(%arg0: i32) -> (i32, i32) {
    %c0_i32 = arith.constant 0 : i32
    %c0_i32_0 = arith.constant 0 : i32
    %c0_i32_1 = arith.constant 0 : i32
    return %c0_i32, %c0_i32_0 : i32, i32
  }
  func.func @transform_2(%arg0: i32) -> (i32, i32) {
    %c0_i32 = arith.constant 0 : i32
    %c0_i32_0 = arith.constant 0 : i32
    %c0_i32_1 = arith.constant 0 : i32
    return %c0_i32, %c0_i32_0 : i32, i32
  }
  func.func @transform_3(%arg0: i32) -> (i32, i32, i32) {
    %c0_i32 = arith.constant 0 : i32
    %c0_i32_0 = arith.constant 0 : i32
    %c0_i32_1 = arith.constant 0 : i32
    return %arg0, %c0_i32, %c0_i32_0 : i32, i32, i32
  }
}

module attributes {stable_mosaic.version = 11 : i64} {
  func.func @_ffn_block_kernel(%arg0: i32, %arg1: memref<1x24x32xf32, #tpu.memory_space<vmem>>, %arg2: memref<1x32xf32, #tpu.memory_space<vmem>>, %arg3: memref<1x32xf32, #tpu.memory_space<vmem>>, %arg4: memref<32x128xbf16, #tpu.memory_space<vmem>>, %arg5: memref<1x128xf32, #tpu.memory_space<vmem>>, %arg6: memref<128x32xbf16, #tpu.memory_space<vmem>>, %arg7: memref<1x32xf32, #tpu.memory_space<vmem>>, %arg8: memref<1x24x32xf32, #tpu.memory_space<vmem>>) attributes {dimension_semantics = [#tpu.dimension_semantics<parallel>], iteration_bounds = array<i64: 2>, scalar_prefetch = 0 : i64, scratch_operands = 0 : i64, tpu.core_type = #tpu.core_type<tc>, window_params = [{transform_indices = @transform_0, window_bounds = array<i64: 1, 24, 32>}, {pipeline_mode = #tpu.pipeline_mode<synchronous>, transform_indices = @transform_1, window_bounds = array<i64: 1, 32>}, {pipeline_mode = #tpu.pipeline_mode<synchronous>, transform_indices = @transform_2, window_bounds = array<i64: 1, 32>}, {pipeline_mode = #tpu.pipeline_mode<synchronous>, transform_indices = @transform_3, window_bounds = array<i64: 32, 128>}, {pipeline_mode = #tpu.pipeline_mode<synchronous>, transform_indices = @transform_4, window_bounds = array<i64: 1, 128>}, {pipeline_mode = #tpu.pipeline_mode<synchronous>, transform_indices = @transform_5, window_bounds = array<i64: 128, 32>}, {pipeline_mode = #tpu.pipeline_mode<synchronous>, transform_indices = @transform_6, window_bounds = array<i64: 1, 32>}, {transform_indices = @transform_7, window_bounds = array<i64: 1, 24, 32>}]} {
    %c0 = arith.constant 0 : index
    %c0_0 = arith.constant 0 : index
    %c0_1 = arith.constant 0 : index
    %0 = vector.load %arg1[%c0, %c0_0, %c0_1] : memref<1x24x32xf32, #tpu.memory_space<vmem>>, vector<1x24x32xf32>
    %1 = vector.shape_cast %0 : vector<1x24x32xf32> to vector<24x32xf32>
    %c0_2 = arith.constant 0 : index
    %c0_3 = arith.constant 0 : index
    %2 = vector.load %arg2[%c0_2, %c0_3] : memref<1x32xf32, #tpu.memory_space<vmem>>, vector<1x32xf32>
    %c0_4 = arith.constant 0 : index
    %c0_5 = arith.constant 0 : index
    %3 = vector.load %arg3[%c0_4, %c0_5] : memref<1x32xf32, #tpu.memory_space<vmem>>, vector<1x32xf32>
    %cst = arith.constant dense<0.000000e+00> : vector<24xf32>
    %4 = vector.multi_reduction <add>, %1, %cst [1] : vector<24x32xf32> to vector<24xf32>
    %5 = vector.shape_cast %4 : vector<24xf32> to vector<24x1xf32>
    %cst_6 = arith.constant 3.200000e+01 : f32
    %6 = vector.broadcast %cst_6 : f32 to vector<24x1xf32>
    %7 = arith.divf %5, %6 : vector<24x1xf32>
    %8 = vector.broadcast %7 : vector<24x1xf32> to vector<24x32xf32>
    %9 = arith.subf %1, %8 : vector<24x32xf32>
    %10 = arith.mulf %9, %9 : vector<24x32xf32>
    %cst_7 = arith.constant dense<0.000000e+00> : vector<24xf32>
    %11 = vector.multi_reduction <add>, %10, %cst_7 [1] : vector<24x32xf32> to vector<24xf32>
    %12 = vector.shape_cast %11 : vector<24xf32> to vector<24x1xf32>
    %cst_8 = arith.constant 3.200000e+01 : f32
    %13 = vector.broadcast %cst_8 : f32 to vector<24x1xf32>
    %14 = arith.divf %12, %13 : vector<24x1xf32>
    %15 = vector.broadcast %7 : vector<24x1xf32> to vector<24x32xf32>
    %16 = arith.subf %1, %15 : vector<24x32xf32>
    %cst_9 = arith.constant 9.99999997E-7 : f32
    %17 = vector.broadcast %cst_9 : f32 to vector<24x1xf32>
    %18 = arith.addf %14, %17 : vector<24x1xf32>
    %19 = math.rsqrt %18 : vector<24x1xf32>
    %20 = vector.broadcast %19 : vector<24x1xf32> to vector<24x32xf32>
    %21 = arith.mulf %16, %20 : vector<24x32xf32>
    %22 = vector.broadcast %2 : vector<1x32xf32> to vector<24x32xf32>
    %23 = arith.mulf %21, %22 : vector<24x32xf32>
    %24 = vector.broadcast %3 : vector<1x32xf32> to vector<24x32xf32>
    %25 = arith.addf %23, %24 : vector<24x32xf32>
    %26 = arith.truncf %25 : vector<24x32xf32> to vector<24x32xbf16>
    %c0_10 = arith.constant 0 : index
    %c0_11 = arith.constant 0 : index
    %27 = vector.load %arg4[%c0_10, %c0_11] : memref<32x128xbf16, #tpu.memory_space<vmem>>, vector<32x128xbf16>
    %cst_12 = arith.constant dense<0.000000e+00> : vector<24x128xf32>
    %28 = tpu.matmul %26, %27, %cst_12 {dimension_numbers = #tpu.dot_dimension_numbers<[1], [0], [0], [1], [0, 0, 1, 1], [], []>} : vector<24x32xbf16>, vector<32x128xbf16>, vector<24x128xf32> -> vector<24x128xf32>
    %c0_13 = arith.constant 0 : index
    %c0_14 = arith.constant 0 : index
    %29 = vector.load %arg5[%c0_13, %c0_14] : memref<1x128xf32, #tpu.memory_space<vmem>>, vector<1x128xf32>
    %30 = vector.broadcast %29 : vector<1x128xf32> to vector<24x128xf32>
    %31 = arith.addf %28, %30 : vector<24x128xf32>
    %32 = arith.mulf %31, %31 : vector<24x128xf32>
    %33 = arith.mulf %31, %32 : vector<24x128xf32>
    %cst_15 = arith.constant 4.471500e-02 : f32
    %34 = vector.broadcast %cst_15 : f32 to vector<24x128xf32>
    %35 = arith.mulf %34, %33 : vector<24x128xf32>
    %36 = arith.addf %31, %35 : vector<24x128xf32>
    %cst_16 = arith.constant 0.797884583 : f32
    %37 = vector.broadcast %cst_16 : f32 to vector<24x128xf32>
    %38 = arith.mulf %37, %36 : vector<24x128xf32>
    %39 = math.tanh %38 : vector<24x128xf32>
    %cst_17 = arith.constant 1.000000e+00 : f32
    %40 = vector.broadcast %cst_17 : f32 to vector<24x128xf32>
    %41 = arith.addf %40, %39 : vector<24x128xf32>
    %cst_18 = arith.constant 5.000000e-01 : f32
    %42 = vector.broadcast %cst_18 : f32 to vector<24x128xf32>
    %43 = arith.mulf %42, %41 : vector<24x128xf32>
    %44 = arith.mulf %31, %43 : vector<24x128xf32>
    %45 = arith.truncf %44 : vector<24x128xf32> to vector<24x128xbf16>
    %c0_19 = arith.constant 0 : index
    %c0_20 = arith.constant 0 : index
    %46 = vector.load %arg6[%c0_19, %c0_20] : memref<128x32xbf16, #tpu.memory_space<vmem>>, vector<128x32xbf16>
    %cst_21 = arith.constant dense<0.000000e+00> : vector<24x32xf32>
    %47 = tpu.matmul %45, %46, %cst_21 {dimension_numbers = #tpu.dot_dimension_numbers<[1], [0], [0], [1], [0, 0, 1, 1], [], []>} : vector<24x128xbf16>, vector<128x32xbf16>, vector<24x32xf32> -> vector<24x32xf32>
    %c0_22 = arith.constant 0 : index
    %c0_23 = arith.constant 0 : index
    %48 = vector.load %arg7[%c0_22, %c0_23] : memref<1x32xf32, #tpu.memory_space<vmem>>, vector<1x32xf32>
    %49 = vector.broadcast %48 : vector<1x32xf32> to vector<24x32xf32>
    %50 = arith.addf %47, %49 : vector<24x32xf32>
    %51 = arith.addf %1, %50 : vector<24x32xf32>
    %c0_24 = arith.constant 0 : index
    %c0_25 = arith.constant 0 : index
    %c0_26 = arith.constant 0 : index
    %52 = vector.load %arg8[%c0_24, %c0_25, %c0_26] : memref<1x24x32xf32, #tpu.memory_space<vmem>>, vector<1x24x32xf32>
    %53 = vector.shape_cast %52 : vector<1x24x32xf32> to vector<24x32xf32>
    %54 = vector.shape_cast %51 : vector<24x32xf32> to vector<1x24x32xf32>
    tpu.vector_store %arg8[%c0_24, %c0_25, %c0_26], %54 {strides = array<i32>} : memref<1x24x32xf32, #tpu.memory_space<vmem>>, vector<1x24x32xf32>,
    return
  }
  func.func @transform_0(%arg0: i32) -> (i32, i32, i32) {
    %c0_i32 = arith.constant 0 : i32
    %c0_i32_0 = arith.constant 0 : i32
    %c0_i32_1 = arith.constant 0 : i32
    return %arg0, %c0_i32, %c0_i32_0 : i32, i32, i32
  }
  func.func @transform_1(%arg0: i32) -> (i32, i32) {
    %c0_i32 = arith.constant 0 : i32
    %c0_i32_0 = arith.constant 0 : i32
    %c0_i32_1 = arith.constant 0 : i32
    return %c0_i32, %c0_i32_0 : i32, i32
  }
  func.func @transform_2(%arg0: i32) -> (i32, i32) {
    %c0_i32 = arith.constant 0 : i32
    %c0_i32_0 = arith.constant 0 : i32
    %c0_i32_1 = arith.constant 0 : i32
    return %c0_i32, %c0_i32_0 : i32, i32
  }
  func.func @transform_3(%arg0: i32) -> (i32, i32) {
    %c0_i32 = arith.constant 0 : i32
    %c0_i32_0 = arith.constant 0 : i32
    %c0_i32_1 = arith.constant 0 : i32
    return %c0_i32, %c0_i32_0 : i32, i32
  }
  func.func @transform_4(%arg0: i32) -> (i32, i32) {
    %c0_i32 = arith.constant 0 : i32
    %c0_i32_0 = arith.constant 0 : i32
    %c0_i32_1 = arith.constant 0 : i32
    return %c0_i32, %c0_i32_0 : i32, i32
  }
  func.func @transform_5(%arg0: i32) -> (i32, i32) {
    %c0_i32 = arith.constant 0 : i32
    %c0_i32_0 = arith.constant 0 : i32
    %c0_i32_1 = arith.constant 0 : i32
    return %c0_i32, %c0_i32_0 : i32, i32
  }
  func.func @transform_6(%arg0: i32) -> (i32, i32) {
    %c0_i32 = arith.constant 0 : i32
    %c0_i32_0 = arith.constant 0 : i32
    %c0_i32_1 = arith.constant 0 : i32
    return %c0_i32, %c0_i32_0 : i32, i32
  }
  func.func @transform_7(%arg0: i32) -> (i32, i32, i32) {
    %c0_i32 = arith.constant 0 : i32
    %c0_i32_0 = arith.constant 0 : i32
    %c0_i32_1 = arith.constant 0 : i32
    return %arg0, %c0_i32, %c0_i32_0 : i32, i32, i32
  }
}

module attributes {stable_mosaic.version = 11 : i64} {
  func.func @_layernorm_kernel(%arg0: i32, %arg1: memref<1x24x32xf32, #tpu.memory_space<vmem>>, %arg2: memref<1x32xf32, #tpu.memory_space<vmem>>, %arg3: memref<1x32xf32, #tpu.memory_space<vmem>>, %arg4: memref<1x24x32xf32, #tpu.memory_space<vmem>>) attributes {dimension_semantics = [#tpu.dimension_semantics<parallel>], iteration_bounds = array<i64: 2>, scalar_prefetch = 0 : i64, scratch_operands = 0 : i64, tpu.core_type = #tpu.core_type<tc>, window_params = [{transform_indices = @transform_0, window_bounds = array<i64: 1, 24, 32>}, {pipeline_mode = #tpu.pipeline_mode<synchronous>, transform_indices = @transform_1, window_bounds = array<i64: 1, 32>}, {pipeline_mode = #tpu.pipeline_mode<synchronous>, transform_indices = @transform_2, window_bounds = array<i64: 1, 32>}, {transform_indices = @transform_3, window_bounds = array<i64: 1, 24, 32>}]} {
    %c0 = arith.constant 0 : index
    %c0_0 = arith.constant 0 : index
    %c0_1 = arith.constant 0 : index
    %0 = vector.load %arg1[%c0, %c0_0, %c0_1] : memref<1x24x32xf32, #tpu.memory_space<vmem>>, vector<1x24x32xf32>
    %1 = vector.shape_cast %0 : vector<1x24x32xf32> to vector<24x32xf32>
    %c0_2 = arith.constant 0 : index
    %c0_3 = arith.constant 0 : index
    %2 = vector.load %arg2[%c0_2, %c0_3] : memref<1x32xf32, #tpu.memory_space<vmem>>, vector<1x32xf32>
    %c0_4 = arith.constant 0 : index
    %c0_5 = arith.constant 0 : index
    %3 = vector.load %arg3[%c0_4, %c0_5] : memref<1x32xf32, #tpu.memory_space<vmem>>, vector<1x32xf32>
    %cst = arith.constant dense<0.000000e+00> : vector<24xf32>
    %4 = vector.multi_reduction <add>, %1, %cst [1] : vector<24x32xf32> to vector<24xf32>
    %5 = vector.shape_cast %4 : vector<24xf32> to vector<24x1xf32>
    %cst_6 = arith.constant 3.200000e+01 : f32
    %6 = vector.broadcast %cst_6 : f32 to vector<24x1xf32>
    %7 = arith.divf %5, %6 : vector<24x1xf32>
    %8 = vector.broadcast %7 : vector<24x1xf32> to vector<24x32xf32>
    %9 = arith.subf %1, %8 : vector<24x32xf32>
    %10 = arith.mulf %9, %9 : vector<24x32xf32>
    %cst_7 = arith.constant dense<0.000000e+00> : vector<24xf32>
    %11 = vector.multi_reduction <add>, %10, %cst_7 [1] : vector<24x32xf32> to vector<24xf32>
    %12 = vector.shape_cast %11 : vector<24xf32> to vector<24x1xf32>
    %cst_8 = arith.constant 3.200000e+01 : f32
    %13 = vector.broadcast %cst_8 : f32 to vector<24x1xf32>
    %14 = arith.divf %12, %13 : vector<24x1xf32>
    %15 = vector.broadcast %7 : vector<24x1xf32> to vector<24x32xf32>
    %16 = arith.subf %1, %15 : vector<24x32xf32>
    %cst_9 = arith.constant 9.99999997E-7 : f32
    %17 = vector.broadcast %cst_9 : f32 to vector<24x1xf32>
    %18 = arith.addf %14, %17 : vector<24x1xf32>
    %19 = math.rsqrt %18 : vector<24x1xf32>
    %20 = vector.broadcast %19 : vector<24x1xf32> to vector<24x32xf32>
    %21 = arith.mulf %16, %20 : vector<24x32xf32>
    %22 = vector.broadcast %2 : vector<1x32xf32> to vector<24x32xf32>
    %23 = arith.mulf %21, %22 : vector<24x32xf32>
    %24 = vector.broadcast %3 : vector<1x32xf32> to vector<24x32xf32>
    %25 = arith.addf %23, %24 : vector<24x32xf32>
    %c0_10 = arith.constant 0 : index
    %c0_11 = arith.constant 0 : index
    %c0_12 = arith.constant 0 : index
    %26 = vector.load %arg4[%c0_10, %c0_11, %c0_12] : memref<1x24x32xf32, #tpu.memory_space<vmem>>, vector<1x24x32xf32>
    %27 = vector.shape_cast %26 : vector<1x24x32xf32> to vector<24x32xf32>
    %28 = vector.shape_cast %25 : vector<24x32xf32> to vector<1x24x32xf32>
    tpu.vector_store %arg4[%c0_10, %c0_11, %c0_12], %28 {strides = array<i32>} : memref<1x24x32xf32, #tpu.memory_space<vmem>>, vector<1x24x32xf32>,
    return
  }
  func.func @transform_0(%arg0: i32) -> (i32, i32, i32) {
    %c0_i32 = arith.constant 0 : i32
    %c0_i32_0 = arith.constant 0 : i32
    %c0_i32_1 = arith.constant 0 : i32
    return %arg0, %c0_i32, %c0_i32_0 : i32, i32, i32
  }
  func.func @transform_1(%arg0: i32) -> (i32, i32) {
    %c0_i32 = arith.constant 0 : i32
    %c0_i32_0 = arith.constant 0 : i32
    %c0_i32_1 = arith.constant 0 : i32
    return %c0_i32, %c0_i32_0 : i32, i32
  }
  func.func @transform_2(%arg0: i32) -> (i32, i32) {
    %c0_i32 = arith.constant 0 : i32
    %c0_i32_0 = arith.constant 0 : i32
    %c0_i32_1 = arith.constant 0 : i32
    return %c0_i32, %c0_i32_0 : i32, i32
  }
  func.func @transform_3(%arg0: i32) -> (i32, i32, i32) {
    %c0_i32 = arith.constant 0 : i32
    %c0_i32_0 = arith.constant 0 : i32
    %c0_i32_1 = arith.constant 0 : i32
    return %arg0, %c0_i32, %c0_i32_0 : i32, i32, i32
  }
}

module attributes {stable_mosaic.version = 11 : i64} {
  func.func @_self_attn_block_kernel(%arg0: i32, %arg1: memref<1x24x32xf32, #tpu.memory_space<vmem>>, %arg2: memref<1x32xf32, #tpu.memory_space<vmem>>, %arg3: memref<1x32xf32, #tpu.memory_space<vmem>>, %arg4: memref<32x96xbf16, #tpu.memory_space<vmem>>, %arg5: memref<1x96xf32, #tpu.memory_space<vmem>>, %arg6: memref<32x32xbf16, #tpu.memory_space<vmem>>, %arg7: memref<1x32xf32, #tpu.memory_space<vmem>>, %arg8: memref<1x1x24xf32, #tpu.memory_space<vmem>>, %arg9: memref<1x24x32xf32, #tpu.memory_space<vmem>>) attributes {dimension_semantics = [#tpu.dimension_semantics<parallel>], iteration_bounds = array<i64: 2>, scalar_prefetch = 0 : i64, scratch_operands = 0 : i64, tpu.core_type = #tpu.core_type<tc>, window_params = [{transform_indices = @transform_0, window_bounds = array<i64: 1, 24, 32>}, {pipeline_mode = #tpu.pipeline_mode<synchronous>, transform_indices = @transform_1, window_bounds = array<i64: 1, 32>}, {pipeline_mode = #tpu.pipeline_mode<synchronous>, transform_indices = @transform_2, window_bounds = array<i64: 1, 32>}, {pipeline_mode = #tpu.pipeline_mode<synchronous>, transform_indices = @transform_3, window_bounds = array<i64: 32, 96>}, {pipeline_mode = #tpu.pipeline_mode<synchronous>, transform_indices = @transform_4, window_bounds = array<i64: 1, 96>}, {pipeline_mode = #tpu.pipeline_mode<synchronous>, transform_indices = @transform_5, window_bounds = array<i64: 32, 32>}, {pipeline_mode = #tpu.pipeline_mode<synchronous>, transform_indices = @transform_6, window_bounds = array<i64: 1, 32>}, {pipeline_mode = #tpu.pipeline_mode<synchronous>, transform_indices = @transform_7, window_bounds = array<i64: 1, 1, 24>}, {transform_indices = @transform_8, window_bounds = array<i64: 1, 24, 32>}]} {
    %c0 = arith.constant 0 : index
    %c0_0 = arith.constant 0 : index
    %c0_1 = arith.constant 0 : index
    %0 = vector.load %arg1[%c0, %c0_0, %c0_1] : memref<1x24x32xf32, #tpu.memory_space<vmem>>, vector<1x24x32xf32>
    %1 = vector.shape_cast %0 : vector<1x24x32xf32> to vector<24x32xf32>
    %c0_2 = arith.constant 0 : index
    %c0_3 = arith.constant 0 : index
    %2 = vector.load %arg2[%c0_2, %c0_3] : memref<1x32xf32, #tpu.memory_space<vmem>>, vector<1x32xf32>
    %c0_4 = arith.constant 0 : index
    %c0_5 = arith.constant 0 : index
    %3 = vector.load %arg3[%c0_4, %c0_5] : memref<1x32xf32, #tpu.memory_space<vmem>>, vector<1x32xf32>
    %cst = arith.constant dense<0.000000e+00> : vector<24xf32>
    %4 = vector.multi_reduction <add>, %1, %cst [1] : vector<24x32xf32> to vector<24xf32>
    %5 = vector.shape_cast %4 : vector<24xf32> to vector<24x1xf32>
    %cst_6 = arith.constant 3.200000e+01 : f32
    %6 = vector.broadcast %cst_6 : f32 to vector<24x1xf32>
    %7 = arith.divf %5, %6 : vector<24x1xf32>
    %8 = vector.broadcast %7 : vector<24x1xf32> to vector<24x32xf32>
    %9 = arith.subf %1, %8 : vector<24x32xf32>
    %10 = arith.mulf %9, %9 : vector<24x32xf32>
    %cst_7 = arith.constant dense<0.000000e+00> : vector<24xf32>
    %11 = vector.multi_reduction <add>, %10, %cst_7 [1] : vector<24x32xf32> to vector<24xf32>
    %12 = vector.shape_cast %11 : vector<24xf32> to vector<24x1xf32>
    %cst_8 = arith.constant 3.200000e+01 : f32
    %13 = vector.broadcast %cst_8 : f32 to vector<24x1xf32>
    %14 = arith.divf %12, %13 : vector<24x1xf32>
    %15 = vector.broadcast %7 : vector<24x1xf32> to vector<24x32xf32>
    %16 = arith.subf %1, %15 : vector<24x32xf32>
    %cst_9 = arith.constant 9.99999997E-7 : f32
    %17 = vector.broadcast %cst_9 : f32 to vector<24x1xf32>
    %18 = arith.addf %14, %17 : vector<24x1xf32>
    %19 = math.rsqrt %18 : vector<24x1xf32>
    %20 = vector.broadcast %19 : vector<24x1xf32> to vector<24x32xf32>
    %21 = arith.mulf %16, %20 : vector<24x32xf32>
    %22 = vector.broadcast %2 : vector<1x32xf32> to vector<24x32xf32>
    %23 = arith.mulf %21, %22 : vector<24x32xf32>
    %24 = vector.broadcast %3 : vector<1x32xf32> to vector<24x32xf32>
    %25 = arith.addf %23, %24 : vector<24x32xf32>
    %26 = arith.truncf %25 : vector<24x32xf32> to vector<24x32xbf16>
    %c0_10 = arith.constant 0 : index
    %c0_11 = arith.constant 0 : index
    %27 = vector.load %arg4[%c0_10, %c0_11] : memref<32x96xbf16, #tpu.memory_space<vmem>>, vector<32x96xbf16>
    %cst_12 = arith.constant dense<0.000000e+00> : vector<24x96xf32>
    %28 = tpu.matmul %26, %27, %cst_12 {dimension_numbers = #tpu.dot_dimension_numbers<[1], [0], [0], [1], [0, 0, 1, 1], [], []>} : vector<24x32xbf16>, vector<32x96xbf16>, vector<24x96xf32> -> vector<24x96xf32>
    %c0_13 = arith.constant 0 : index
    %c0_14 = arith.constant 0 : index
    %29 = vector.load %arg5[%c0_13, %c0_14] : memref<1x96xf32, #tpu.memory_space<vmem>>, vector<1x96xf32>
    %30 = vector.broadcast %29 : vector<1x96xf32> to vector<24x96xf32>
    %31 = arith.addf %28, %30 : vector<24x96xf32>
    %c0_15 = arith.constant 0 : index
    %c0_16 = arith.constant 0 : index
    %c0_17 = arith.constant 0 : index
    %32 = vector.load %arg8[%c0_15, %c0_16, %c0_17] : memref<1x1x24xf32, #tpu.memory_space<vmem>>, vector<1x1x24xf32>
    %33 = vector.shape_cast %32 : vector<1x1x24xf32> to vector<1x24xf32>
    %34 = vector.extract_strided_slice %31 {offsets = [0, 0], sizes = [24, 32], strides = [1, 1]} : vector<24x96xf32> to vector<24x32xf32>
    %35 = vector.extract_strided_slice %31 {offsets = [0, 32], sizes = [24, 32], strides = [1, 1]} : vector<24x96xf32> to vector<24x32xf32>
    %36 = vector.extract_strided_slice %31 {offsets = [0, 64], sizes = [24, 32], strides = [1, 1]} : vector<24x96xf32> to vector<24x32xf32>
    %37 = vector.extract_strided_slice %34 {offsets = [0, 0], sizes = [24, 8], strides = [1, 1]} : vector<24x32xf32> to vector<24x8xf32>
    %38 = arith.truncf %37 : vector<24x8xf32> to vector<24x8xbf16>
    %39 = vector.extract_strided_slice %35 {offsets = [0, 0], sizes = [24, 8], strides = [1, 1]} : vector<24x32xf32> to vector<24x8xf32>
    %40 = arith.truncf %39 : vector<24x8xf32> to vector<24x8xbf16>
    %41 = vector.extract_strided_slice %36 {offsets = [0, 0], sizes = [24, 8], strides = [1, 1]} : vector<24x32xf32> to vector<24x8xf32>
    %42 = arith.truncf %41 : vector<24x8xf32> to vector<24x8xbf16>
    %cst_18 = arith.constant dense<0.000000e+00> : vector<24x24xf32>
    %43 = tpu.matmul %38, %40, %cst_18 {dimension_numbers = #tpu.dot_dimension_numbers<[1], [1], [0], [0], [0, 0, 1, 0], [], []>} : vector<24x8xbf16>, vector<24x8xbf16>, vector<24x24xf32> -> vector<24x24xf32>
    %cst_19 = arith.constant 0.353553385 : f32
    %44 = vector.broadcast %cst_19 : f32 to vector<24x24xf32>
    %45 = arith.mulf %43, %44 : vector<24x24xf32>
    %46 = vector.broadcast %33 : vector<1x24xf32> to vector<24x24xf32>
    %47 = arith.addf %45, %46 : vector<24x24xf32>
    %cst_20 = arith.constant dense<0xFF800000> : vector<24xf32>
    %48 = vector.multi_reduction <maximumf>, %47, %cst_20 [1] : vector<24x24xf32> to vector<24xf32>
    %49 = vector.shape_cast %48 : vector<24xf32> to vector<24x1xf32>
    %50 = vector.broadcast %49 : vector<24x1xf32> to vector<24x24xf32>
    %51 = arith.subf %47, %50 : vector<24x24xf32>
    %52 = math.exp %51 : vector<24x24xf32>
    %cst_21 = arith.constant dense<0.000000e+00> : vector<24xf32>
    %53 = vector.multi_reduction <add>, %52, %cst_21 [1] : vector<24x24xf32> to vector<24xf32>
    %54 = vector.shape_cast %53 : vector<24xf32> to vector<24x1xf32>
    %55 = tpu.reciprocal %54 {approx = true} : vector<24x1xf32> -> vector<24x1xf32>
    %56 = vector.broadcast %55 : vector<24x1xf32> to vector<24x24xf32>
    %57 = arith.mulf %52, %56 : vector<24x24xf32>
    %58 = arith.truncf %57 : vector<24x24xf32> to vector<24x24xbf16>
    %cst_22 = arith.constant dense<0.000000e+00> : vector<24x8xf32>
    %59 = tpu.matmul %58, %42, %cst_22 {dimension_numbers = #tpu.dot_dimension_numbers<[1], [0], [0], [1], [0, 0, 1, 1], [], []>} : vector<24x24xbf16>, vector<24x8xbf16>, vector<24x8xf32> -> vector<24x8xf32>
    %60 = vector.extract_strided_slice %34 {offsets = [0, 8], sizes = [24, 8], strides = [1, 1]} : vector<24x32xf32> to vector<24x8xf32>
    %61 = arith.truncf %60 : vector<24x8xf32> to vector<24x8xbf16>
    %62 = vector.extract_strided_slice %35 {offsets = [0, 8], sizes = [24, 8], strides = [1, 1]} : vector<24x32xf32> to vector<24x8xf32>
    %63 = arith.truncf %62 : vector<24x8xf32> to vector<24x8xbf16>
    %64 = vector.extract_strided_slice %36 {offsets = [0, 8], sizes = [24, 8], strides = [1, 1]} : vector<24x32xf32> to vector<24x8xf32>
    %65 = arith.truncf %64 : vector<24x8xf32> to vector<24x8xbf16>
    %cst_23 = arith.constant dense<0.000000e+00> : vector<24x24xf32>
    %66 = tpu.matmul %61, %63, %cst_23 {dimension_numbers = #tpu.dot_dimension_numbers<[1], [1], [0], [0], [0, 0, 1, 0], [], []>} : vector<24x8xbf16>, vector<24x8xbf16>, vector<24x24xf32> -> vector<24x24xf32>
    %cst_24 = arith.constant 0.353553385 : f32
    %67 = vector.broadcast %cst_24 : f32 to vector<24x24xf32>
    %68 = arith.mulf %66, %67 : vector<24x24xf32>
    %69 = vector.broadcast %33 : vector<1x24xf32> to vector<24x24xf32>
    %70 = arith.addf %68, %69 : vector<24x24xf32>
    %cst_25 = arith.constant dense<0xFF800000> : vector<24xf32>
    %71 = vector.multi_reduction <maximumf>, %70, %cst_25 [1] : vector<24x24xf32> to vector<24xf32>
    %72 = vector.shape_cast %71 : vector<24xf32> to vector<24x1xf32>
    %73 = vector.broadcast %72 : vector<24x1xf32> to vector<24x24xf32>
    %74 = arith.subf %70, %73 : vector<24x24xf32>
    %75 = math.exp %74 : vector<24x24xf32>
    %cst_26 = arith.constant dense<0.000000e+00> : vector<24xf32>
    %76 = vector.multi_reduction <add>, %75, %cst_26 [1] : vector<24x24xf32> to vector<24xf32>
    %77 = vector.shape_cast %76 : vector<24xf32> to vector<24x1xf32>
    %78 = tpu.reciprocal %77 {approx = true} : vector<24x1xf32> -> vector<24x1xf32>
    %79 = vector.broadcast %78 : vector<24x1xf32> to vector<24x24xf32>
    %80 = arith.mulf %75, %79 : vector<24x24xf32>
    %81 = arith.truncf %80 : vector<24x24xf32> to vector<24x24xbf16>
    %cst_27 = arith.constant dense<0.000000e+00> : vector<24x8xf32>
    %82 = tpu.matmul %81, %65, %cst_27 {dimension_numbers = #tpu.dot_dimension_numbers<[1], [0], [0], [1], [0, 0, 1, 1], [], []>} : vector<24x24xbf16>, vector<24x8xbf16>, vector<24x8xf32> -> vector<24x8xf32>
    %83 = vector.extract_strided_slice %34 {offsets = [0, 16], sizes = [24, 8], strides = [1, 1]} : vector<24x32xf32> to vector<24x8xf32>
    %84 = arith.truncf %83 : vector<24x8xf32> to vector<24x8xbf16>
    %85 = vector.extract_strided_slice %35 {offsets = [0, 16], sizes = [24, 8], strides = [1, 1]} : vector<24x32xf32> to vector<24x8xf32>
    %86 = arith.truncf %85 : vector<24x8xf32> to vector<24x8xbf16>
    %87 = vector.extract_strided_slice %36 {offsets = [0, 16], sizes = [24, 8], strides = [1, 1]} : vector<24x32xf32> to vector<24x8xf32>
    %88 = arith.truncf %87 : vector<24x8xf32> to vector<24x8xbf16>
    %cst_28 = arith.constant dense<0.000000e+00> : vector<24x24xf32>
    %89 = tpu.matmul %84, %86, %cst_28 {dimension_numbers = #tpu.dot_dimension_numbers<[1], [1], [0], [0], [0, 0, 1, 0], [], []>} : vector<24x8xbf16>, vector<24x8xbf16>, vector<24x24xf32> -> vector<24x24xf32>
    %cst_29 = arith.constant 0.353553385 : f32
    %90 = vector.broadcast %cst_29 : f32 to vector<24x24xf32>
    %91 = arith.mulf %89, %90 : vector<24x24xf32>
    %92 = vector.broadcast %33 : vector<1x24xf32> to vector<24x24xf32>
    %93 = arith.addf %91, %92 : vector<24x24xf32>
    %cst_30 = arith.constant dense<0xFF800000> : vector<24xf32>
    %94 = vector.multi_reduction <maximumf>, %93, %cst_30 [1] : vector<24x24xf32> to vector<24xf32>
    %95 = vector.shape_cast %94 : vector<24xf32> to vector<24x1xf32>
    %96 = vector.broadcast %95 : vector<24x1xf32> to vector<24x24xf32>
    %97 = arith.subf %93, %96 : vector<24x24xf32>
    %98 = math.exp %97 : vector<24x24xf32>
    %cst_31 = arith.constant dense<0.000000e+00> : vector<24xf32>
    %99 = vector.multi_reduction <add>, %98, %cst_31 [1] : vector<24x24xf32> to vector<24xf32>
    %100 = vector.shape_cast %99 : vector<24xf32> to vector<24x1xf32>
    %101 = tpu.reciprocal %100 {approx = true} : vector<24x1xf32> -> vector<24x1xf32>
    %102 = vector.broadcast %101 : vector<24x1xf32> to vector<24x24xf32>
    %103 = arith.mulf %98, %102 : vector<24x24xf32>
    %104 = arith.truncf %103 : vector<24x24xf32> to vector<24x24xbf16>
    %cst_32 = arith.constant dense<0.000000e+00> : vector<24x8xf32>
    %105 = tpu.matmul %104, %88, %cst_32 {dimension_numbers = #tpu.dot_dimension_numbers<[1], [0], [0], [1], [0, 0, 1, 1], [], []>} : vector<24x24xbf16>, vector<24x8xbf16>, vector<24x8xf32> -> vector<24x8xf32>
    %106 = vector.extract_strided_slice %34 {offsets = [0, 24], sizes = [24, 8], strides = [1, 1]} : vector<24x32xf32> to vector<24x8xf32>
    %107 = arith.truncf %106 : vector<24x8xf32> to vector<24x8xbf16>
    %108 = vector.extract_strided_slice %35 {offsets = [0, 24], sizes = [24, 8], strides = [1, 1]} : vector<24x32xf32> to vector<24x8xf32>
    %109 = arith.truncf %108 : vector<24x8xf32> to vector<24x8xbf16>
    %110 = vector.extract_strided_slice %36 {offsets = [0, 24], sizes = [24, 8], strides = [1, 1]} : vector<24x32xf32> to vector<24x8xf32>
    %111 = arith.truncf %110 : vector<24x8xf32> to vector<24x8xbf16>
    %cst_33 = arith.constant dense<0.000000e+00> : vector<24x24xf32>
    %112 = tpu.matmul %107, %109, %cst_33 {dimension_numbers = #tpu.dot_dimension_numbers<[1], [1], [0], [0], [0, 0, 1, 0], [], []>} : vector<24x8xbf16>, vector<24x8xbf16>, vector<24x24xf32> -> vector<24x24xf32>
    %cst_34 = arith.constant 0.353553385 : f32
    %113 = vector.broadcast %cst_34 : f32 to vector<24x24xf32>
    %114 = arith.mulf %112, %113 : vector<24x24xf32>
    %115 = vector.broadcast %33 : vector<1x24xf32> to vector<24x24xf32>
    %116 = arith.addf %114, %115 : vector<24x24xf32>
    %cst_35 = arith.constant dense<0xFF800000> : vector<24xf32>
    %117 = vector.multi_reduction <maximumf>, %116, %cst_35 [1] : vector<24x24xf32> to vector<24xf32>
    %118 = vector.shape_cast %117 : vector<24xf32> to vector<24x1xf32>
    %119 = vector.broadcast %118 : vector<24x1xf32> to vector<24x24xf32>
    %120 = arith.subf %116, %119 : vector<24x24xf32>
    %121 = math.exp %120 : vector<24x24xf32>
    %cst_36 = arith.constant dense<0.000000e+00> : vector<24xf32>
    %122 = vector.multi_reduction <add>, %121, %cst_36 [1] : vector<24x24xf32> to vector<24xf32>
    %123 = vector.shape_cast %122 : vector<24xf32> to vector<24x1xf32>
    %124 = tpu.reciprocal %123 {approx = true} : vector<24x1xf32> -> vector<24x1xf32>
    %125 = vector.broadcast %124 : vector<24x1xf32> to vector<24x24xf32>
    %126 = arith.mulf %121, %125 : vector<24x24xf32>
    %127 = arith.truncf %126 : vector<24x24xf32> to vector<24x24xbf16>
    %cst_37 = arith.constant dense<0.000000e+00> : vector<24x8xf32>
    %128 = tpu.matmul %127, %111, %cst_37 {dimension_numbers = #tpu.dot_dimension_numbers<[1], [0], [0], [1], [0, 0, 1, 1], [], []>} : vector<24x24xbf16>, vector<24x8xbf16>, vector<24x8xf32> -> vector<24x8xf32>
    %129 = tpu.concatenate %59, %82, %105, %128 in 1 : vector<24x8xf32>, vector<24x8xf32>, vector<24x8xf32>, vector<24x8xf32> -> vector<24x32xf32>
    %130 = arith.truncf %129 : vector<24x32xf32> to vector<24x32xbf16>
    %c0_38 = arith.constant 0 : index
    %c0_39 = arith.constant 0 : index
    %131 = vector.load %arg6[%c0_38, %c0_39] : memref<32x32xbf16, #tpu.memory_space<vmem>>, vector<32x32xbf16>
    %cst_40 = arith.constant dense<0.000000e+00> : vector<24x32xf32>
    %132 = tpu.matmul %130, %131, %cst_40 {dimension_numbers = #tpu.dot_dimension_numbers<[1], [0], [0], [1], [0, 0, 1, 1], [], []>} : vector<24x32xbf16>, vector<32x32xbf16>, vector<24x32xf32> -> vector<24x32xf32>
    %c0_41 = arith.constant 0 : index
    %c0_42 = arith.constant 0 : index
    %133 = vector.load %arg7[%c0_41, %c0_42] : memref<1x32xf32, #tpu.memory_space<vmem>>, vector<1x32xf32>
    %134 = vector.broadcast %133 : vector<1x32xf32> to vector<24x32xf32>
    %135 = arith.addf %132, %134 : vector<24x32xf32>
    %136 = arith.addf %1, %135 : vector<24x32xf32>
    %c0_43 = arith.constant 0 : index
    %c0_44 = arith.constant 0 : index
    %c0_45 = arith.constant 0 : index
    %137 = vector.load %arg9[%c0_43, %c0_44, %c0_45] : memref<1x24x32xf32, #tpu.memory_space<vmem>>, vector<1x24x32xf32>
    %138 = vector.shape_cast %137 : vector<1x24x32xf32> to vector<24x32xf32>
    %139 = vector.shape_cast %136 : vector<24x32xf32> to vector<1x24x32xf32>
    tpu.vector_store %arg9[%c0_43, %c0_44, %c0_45], %139 {strides = array<i32>} : memref<1x24x32xf32, #tpu.memory_space<vmem>>, vector<1x24x32xf32>,
    return
  }
  func.func @transform_0(%arg0: i32) -> (i32, i32, i32) {
    %c0_i32 = arith.constant 0 : i32
    %c0_i32_0 = arith.constant 0 : i32
    %c0_i32_1 = arith.constant 0 : i32
    return %arg0, %c0_i32, %c0_i32_0 : i32, i32, i32
  }
  func.func @transform_1(%arg0: i32) -> (i32, i32) {
    %c0_i32 = arith.constant 0 : i32
    %c0_i32_0 = arith.constant 0 : i32
    %c0_i32_1 = arith.constant 0 : i32
    return %c0_i32, %c0_i32_0 : i32, i32
  }
  func.func @transform_2(%arg0: i32) -> (i32, i32) {
    %c0_i32 = arith.constant 0 : i32
    %c0_i32_0 = arith.constant 0 : i32
    %c0_i32_1 = arith.constant 0 : i32
    return %c0_i32, %c0_i32_0 : i32, i32
  }
  func.func @transform_3(%arg0: i32) -> (i32, i32) {
    %c0_i32 = arith.constant 0 : i32
    %c0_i32_0 = arith.constant 0 : i32
    %c0_i32_1 = arith.constant 0 : i32
    return %c0_i32, %c0_i32_0 : i32, i32
  }
  func.func @transform_4(%arg0: i32) -> (i32, i32) {
    %c0_i32 = arith.constant 0 : i32
    %c0_i32_0 = arith.constant 0 : i32
    %c0_i32_1 = arith.constant 0 : i32
    return %c0_i32, %c0_i32_0 : i32, i32
  }
  func.func @transform_5(%arg0: i32) -> (i32, i32) {
    %c0_i32 = arith.constant 0 : i32
    %c0_i32_0 = arith.constant 0 : i32
    %c0_i32_1 = arith.constant 0 : i32
    return %c0_i32, %c0_i32_0 : i32, i32
  }
  func.func @transform_6(%arg0: i32) -> (i32, i32) {
    %c0_i32 = arith.constant 0 : i32
    %c0_i32_0 = arith.constant 0 : i32
    %c0_i32_1 = arith.constant 0 : i32
    return %c0_i32, %c0_i32_0 : i32, i32
  }
  func.func @transform_7(%arg0: i32) -> (i32, i32, i32) {
    %c0_i32 = arith.constant 0 : i32
    %c0_i32_0 = arith.constant 0 : i32
    %c0_i32_1 = arith.constant 0 : i32
    %c0_i32_2 = arith.constant 0 : i32
    return %c0_i32, %c0_i32_0, %c0_i32_1 : i32, i32, i32
  }
  func.func @transform_8(%arg0: i32) -> (i32, i32, i32) {
    %c0_i32 = arith.constant 0 : i32
    %c0_i32_0 = arith.constant 0 : i32
    %c0_i32_1 = arith.constant 0 : i32
    return %arg0, %c0_i32, %c0_i32_0 : i32, i32, i32
  }
}

module attributes {stable_mosaic.version = 11 : i64} {
  func.func @_cross_attn_block_kernel(%arg0: i32, %arg1: memref<1x8x32xf32, #tpu.memory_space<vmem>>, %arg2: memref<1x24x32xf32, #tpu.memory_space<vmem>>, %arg3: memref<1x32xf32, #tpu.memory_space<vmem>>, %arg4: memref<1x32xf32, #tpu.memory_space<vmem>>, %arg5: memref<32x32xbf16, #tpu.memory_space<vmem>>, %arg6: memref<1x32xf32, #tpu.memory_space<vmem>>, %arg7: memref<32x64xbf16, #tpu.memory_space<vmem>>, %arg8: memref<1x64xf32, #tpu.memory_space<vmem>>, %arg9: memref<32x32xbf16, #tpu.memory_space<vmem>>, %arg10: memref<1x32xf32, #tpu.memory_space<vmem>>, %arg11: memref<1x1x24xf32, #tpu.memory_space<vmem>>, %arg12: memref<1x8x32xf32, #tpu.memory_space<vmem>>) attributes {dimension_semantics = [#tpu.dimension_semantics<parallel>], iteration_bounds = array<i64: 2>, scalar_prefetch = 0 : i64, scratch_operands = 0 : i64, tpu.core_type = #tpu.core_type<tc>, window_params = [{transform_indices = @transform_0, window_bounds = array<i64: 1, 8, 32>}, {transform_indices = @transform_1, window_bounds = array<i64: 1, 24, 32>}, {pipeline_mode = #tpu.pipeline_mode<synchronous>, transform_indices = @transform_2, window_bounds = array<i64: 1, 32>}, {pipeline_mode = #tpu.pipeline_mode<synchronous>, transform_indices = @transform_3, window_bounds = array<i64: 1, 32>}, {pipeline_mode = #tpu.pipeline_mode<synchronous>, transform_indices = @transform_4, window_bounds = array<i64: 32, 32>}, {pipeline_mode = #tpu.pipeline_mode<synchronous>, transform_indices = @transform_5, window_bounds = array<i64: 1, 32>}, {pipeline_mode = #tpu.pipeline_mode<synchronous>, transform_indices = @transform_6, window_bounds = array<i64: 32, 64>}, {pipeline_mode = #tpu.pipeline_mode<synchronous>, transform_indices = @transform_7, window_bounds = array<i64: 1, 64>}, {pipeline_mode = #tpu.pipeline_mode<synchronous>, transform_indices = @transform_8, window_bounds = array<i64: 32, 32>}, {pipeline_mode = #tpu.pipeline_mode<synchronous>, transform_indices = @transform_9, window_bounds = array<i64: 1, 32>}, {pipeline_mode = #tpu.pipeline_mode<synchronous>, transform_indices = @transform_10, window_bounds = array<i64: 1, 1, 24>}, {transform_indices = @transform_11, window_bounds = array<i64: 1, 8, 32>}]} {
    %c0 = arith.constant 0 : index
    %c0_0 = arith.constant 0 : index
    %c0_1 = arith.constant 0 : index
    %0 = vector.load %arg1[%c0, %c0_0, %c0_1] : memref<1x8x32xf32, #tpu.memory_space<vmem>>, vector<1x8x32xf32>
    %1 = vector.shape_cast %0 : vector<1x8x32xf32> to vector<8x32xf32>
    %c0_2 = arith.constant 0 : index
    %c0_3 = arith.constant 0 : index
    %c0_4 = arith.constant 0 : index
    %2 = vector.load %arg2[%c0_2, %c0_3, %c0_4] : memref<1x24x32xf32, #tpu.memory_space<vmem>>, vector<1x24x32xf32>
    %3 = vector.shape_cast %2 : vector<1x24x32xf32> to vector<24x32xf32>
    %4 = arith.truncf %1 : vector<8x32xf32> to vector<8x32xbf16>
    %c0_5 = arith.constant 0 : index
    %c0_6 = arith.constant 0 : index
    %5 = vector.load %arg5[%c0_5, %c0_6] : memref<32x32xbf16, #tpu.memory_space<vmem>>, vector<32x32xbf16>
    %cst = arith.constant dense<0.000000e+00> : vector<8x32xf32>
    %6 = tpu.matmul %4, %5, %cst {dimension_numbers = #tpu.dot_dimension_numbers<[1], [0], [0], [1], [0, 0, 1, 1], [], []>} : vector<8x32xbf16>, vector<32x32xbf16>, vector<8x32xf32> -> vector<8x32xf32>
    %c0_7 = arith.constant 0 : index
    %c0_8 = arith.constant 0 : index
    %7 = vector.load %arg6[%c0_7, %c0_8] : memref<1x32xf32, #tpu.memory_space<vmem>>, vector<1x32xf32>
    %8 = vector.broadcast %7 : vector<1x32xf32> to vector<8x32xf32>
    %9 = arith.addf %6, %8 : vector<8x32xf32>
    %10 = arith.truncf %3 : vector<24x32xf32> to vector<24x32xbf16>
    %c0_9 = arith.constant 0 : index
    %c0_10 = arith.constant 0 : index
    %11 = vector.load %arg7[%c0_9, %c0_10] : memref<32x64xbf16, #tpu.memory_space<vmem>>, vector<32x64xbf16>
    %cst_11 = arith.constant dense<0.000000e+00> : vector<24x64xf32>
    %12 = tpu.matmul %10, %11, %cst_11 {dimension_numbers = #tpu.dot_dimension_numbers<[1], [0], [0], [1], [0, 0, 1, 1], [], []>} : vector<24x32xbf16>, vector<32x64xbf16>, vector<24x64xf32> -> vector<24x64xf32>
    %c0_12 = arith.constant 0 : index
    %c0_13 = arith.constant 0 : index
    %13 = vector.load %arg8[%c0_12, %c0_13] : memref<1x64xf32, #tpu.memory_space<vmem>>, vector<1x64xf32>
    %14 = vector.broadcast %13 : vector<1x64xf32> to vector<24x64xf32>
    %15 = arith.addf %12, %14 : vector<24x64xf32>
    %c0_14 = arith.constant 0 : index
    %c0_15 = arith.constant 0 : index
    %c0_16 = arith.constant 0 : index
    %16 = vector.load %arg11[%c0_14, %c0_15, %c0_16] : memref<1x1x24xf32, #tpu.memory_space<vmem>>, vector<1x1x24xf32>
    %17 = vector.shape_cast %16 : vector<1x1x24xf32> to vector<1x24xf32>
    %18 = vector.extract_strided_slice %15 {offsets = [0, 0], sizes = [24, 32], strides = [1, 1]} : vector<24x64xf32> to vector<24x32xf32>
    %19 = vector.extract_strided_slice %15 {offsets = [0, 32], sizes = [24, 32], strides = [1, 1]} : vector<24x64xf32> to vector<24x32xf32>
    %20 = vector.extract_strided_slice %9 {offsets = [0, 0], sizes = [8, 8], strides = [1, 1]} : vector<8x32xf32> to vector<8x8xf32>
    %21 = arith.truncf %20 : vector<8x8xf32> to vector<8x8xbf16>
    %22 = vector.extract_strided_slice %18 {offsets = [0, 0], sizes = [24, 8], strides = [1, 1]} : vector<24x32xf32> to vector<24x8xf32>
    %23 = arith.truncf %22 : vector<24x8xf32> to vector<24x8xbf16>
    %24 = vector.extract_strided_slice %19 {offsets = [0, 0], sizes = [24, 8], strides = [1, 1]} : vector<24x32xf32> to vector<24x8xf32>
    %25 = arith.truncf %24 : vector<24x8xf32> to vector<24x8xbf16>
    %cst_17 = arith.constant dense<0.000000e+00> : vector<8x24xf32>
    %26 = tpu.matmul %21, %23, %cst_17 {dimension_numbers = #tpu.dot_dimension_numbers<[1], [1], [0], [0], [0, 0, 1, 0], [], []>} : vector<8x8xbf16>, vector<24x8xbf16>, vector<8x24xf32> -> vector<8x24xf32>
    %cst_18 = arith.constant 0.353553385 : f32
    %27 = vector.broadcast %cst_18 : f32 to vector<8x24xf32>
    %28 = arith.mulf %26, %27 : vector<8x24xf32>
    %29 = vector.broadcast %17 : vector<1x24xf32> to vector<8x24xf32>
    %30 = arith.addf %28, %29 : vector<8x24xf32>
    %cst_19 = arith.constant dense<0xFF800000> : vector<8xf32>
    %31 = vector.multi_reduction <maximumf>, %30, %cst_19 [1] : vector<8x24xf32> to vector<8xf32>
    %32 = vector.shape_cast %31 : vector<8xf32> to vector<8x1xf32>
    %33 = vector.broadcast %32 : vector<8x1xf32> to vector<8x24xf32>
    %34 = arith.subf %30, %33 : vector<8x24xf32>
    %35 = math.exp %34 : vector<8x24xf32>
    %cst_20 = arith.constant dense<0.000000e+00> : vector<8xf32>
    %36 = vector.multi_reduction <add>, %35, %cst_20 [1] : vector<8x24xf32> to vector<8xf32>
    %37 = vector.shape_cast %36 : vector<8xf32> to vector<8x1xf32>
    %38 = tpu.reciprocal %37 {approx = true} : vector<8x1xf32> -> vector<8x1xf32>
    %39 = vector.broadcast %38 : vector<8x1xf32> to vector<8x24xf32>
    %40 = arith.mulf %35, %39 : vector<8x24xf32>
    %41 = arith.truncf %40 : vector<8x24xf32> to vector<8x24xbf16>
    %cst_21 = arith.constant dense<0.000000e+00> : vector<8x8xf32>
    %42 = tpu.matmul %41, %25, %cst_21 {dimension_numbers = #tpu.dot_dimension_numbers<[1], [0], [0], [1], [0, 0, 1, 1], [], []>} : vector<8x24xbf16>, vector<24x8xbf16>, vector<8x8xf32> -> vector<8x8xf32>
    %43 = vector.extract_strided_slice %9 {offsets = [0, 8], sizes = [8, 8], strides = [1, 1]} : vector<8x32xf32> to vector<8x8xf32>
    %44 = arith.truncf %43 : vector<8x8xf32> to vector<8x8xbf16>
    %45 = vector.extract_strided_slice %18 {offsets = [0, 8], sizes = [24, 8], strides = [1, 1]} : vector<24x32xf32> to vector<24x8xf32>
    %46 = arith.truncf %45 : vector<24x8xf32> to vector<24x8xbf16>
    %47 = vector.extract_strided_slice %19 {offsets = [0, 8], sizes = [24, 8], strides = [1, 1]} : vector<24x32xf32> to vector<24x8xf32>
    %48 = arith.truncf %47 : vector<24x8xf32> to vector<24x8xbf16>
    %cst_22 = arith.constant dense<0.000000e+00> : vector<8x24xf32>
    %49 = tpu.matmul %44, %46, %cst_22 {dimension_numbers = #tpu.dot_dimension_numbers<[1], [1], [0], [0], [0, 0, 1, 0], [], []>} : vector<8x8xbf16>, vector<24x8xbf16>, vector<8x24xf32> -> vector<8x24xf32>
    %cst_23 = arith.constant 0.353553385 : f32
    %50 = vector.broadcast %cst_23 : f32 to vector<8x24xf32>
    %51 = arith.mulf %49, %50 : vector<8x24xf32>
    %52 = vector.broadcast %17 : vector<1x24xf32> to vector<8x24xf32>
    %53 = arith.addf %51, %52 : vector<8x24xf32>
    %cst_24 = arith.constant dense<0xFF800000> : vector<8xf32>
    %54 = vector.multi_reduction <maximumf>, %53, %cst_24 [1] : vector<8x24xf32> to vector<8xf32>
    %55 = vector.shape_cast %54 : vector<8xf32> to vector<8x1xf32>
    %56 = vector.broadcast %55 : vector<8x1xf32> to vector<8x24xf32>
    %57 = arith.subf %53, %56 : vector<8x24xf32>
    %58 = math.exp %57 : vector<8x24xf32>
    %cst_25 = arith.constant dense<0.000000e+00> : vector<8xf32>
    %59 = vector.multi_reduction <add>, %58, %cst_25 [1] : vector<8x24xf32> to vector<8xf32>
    %60 = vector.shape_cast %59 : vector<8xf32> to vector<8x1xf32>
    %61 = tpu.reciprocal %60 {approx = true} : vector<8x1xf32> -> vector<8x1xf32>
    %62 = vector.broadcast %61 : vector<8x1xf32> to vector<8x24xf32>
    %63 = arith.mulf %58, %62 : vector<8x24xf32>
    %64 = arith.truncf %63 : vector<8x24xf32> to vector<8x24xbf16>
    %cst_26 = arith.constant dense<0.000000e+00> : vector<8x8xf32>
    %65 = tpu.matmul %64, %48, %cst_26 {dimension_numbers = #tpu.dot_dimension_numbers<[1], [0], [0], [1], [0, 0, 1, 1], [], []>} : vector<8x24xbf16>, vector<24x8xbf16>, vector<8x8xf32> -> vector<8x8xf32>
    %66 = vector.extract_strided_slice %9 {offsets = [0, 16], sizes = [8, 8], strides = [1, 1]} : vector<8x32xf32> to vector<8x8xf32>
    %67 = arith.truncf %66 : vector<8x8xf32> to vector<8x8xbf16>
    %68 = vector.extract_strided_slice %18 {offsets = [0, 16], sizes = [24, 8], strides = [1, 1]} : vector<24x32xf32> to vector<24x8xf32>
    %69 = arith.truncf %68 : vector<24x8xf32> to vector<24x8xbf16>
    %70 = vector.extract_strided_slice %19 {offsets = [0, 16], sizes = [24, 8], strides = [1, 1]} : vector<24x32xf32> to vector<24x8xf32>
    %71 = arith.truncf %70 : vector<24x8xf32> to vector<24x8xbf16>
    %cst_27 = arith.constant dense<0.000000e+00> : vector<8x24xf32>
    %72 = tpu.matmul %67, %69, %cst_27 {dimension_numbers = #tpu.dot_dimension_numbers<[1], [1], [0], [0], [0, 0, 1, 0], [], []>} : vector<8x8xbf16>, vector<24x8xbf16>, vector<8x24xf32> -> vector<8x24xf32>
    %cst_28 = arith.constant 0.353553385 : f32
    %73 = vector.broadcast %cst_28 : f32 to vector<8x24xf32>
    %74 = arith.mulf %72, %73 : vector<8x24xf32>
    %75 = vector.broadcast %17 : vector<1x24xf32> to vector<8x24xf32>
    %76 = arith.addf %74, %75 : vector<8x24xf32>
    %cst_29 = arith.constant dense<0xFF800000> : vector<8xf32>
    %77 = vector.multi_reduction <maximumf>, %76, %cst_29 [1] : vector<8x24xf32> to vector<8xf32>
    %78 = vector.shape_cast %77 : vector<8xf32> to vector<8x1xf32>
    %79 = vector.broadcast %78 : vector<8x1xf32> to vector<8x24xf32>
    %80 = arith.subf %76, %79 : vector<8x24xf32>
    %81 = math.exp %80 : vector<8x24xf32>
    %cst_30 = arith.constant dense<0.000000e+00> : vector<8xf32>
    %82 = vector.multi_reduction <add>, %81, %cst_30 [1] : vector<8x24xf32> to vector<8xf32>
    %83 = vector.shape_cast %82 : vector<8xf32> to vector<8x1xf32>
    %84 = tpu.reciprocal %83 {approx = true} : vector<8x1xf32> -> vector<8x1xf32>
    %85 = vector.broadcast %84 : vector<8x1xf32> to vector<8x24xf32>
    %86 = arith.mulf %81, %85 : vector<8x24xf32>
    %87 = arith.truncf %86 : vector<8x24xf32> to vector<8x24xbf16>
    %cst_31 = arith.constant dense<0.000000e+00> : vector<8x8xf32>
    %88 = tpu.matmul %87, %71, %cst_31 {dimension_numbers = #tpu.dot_dimension_numbers<[1], [0], [0], [1], [0, 0, 1, 1], [], []>} : vector<8x24xbf16>, vector<24x8xbf16>, vector<8x8xf32> -> vector<8x8xf32>
    %89 = vector.extract_strided_slice %9 {offsets = [0, 24], sizes = [8, 8], strides = [1, 1]} : vector<8x32xf32> to vector<8x8xf32>
    %90 = arith.truncf %89 : vector<8x8xf32> to vector<8x8xbf16>
    %91 = vector.extract_strided_slice %18 {offsets = [0, 24], sizes = [24, 8], strides = [1, 1]} : vector<24x32xf32> to vector<24x8xf32>
    %92 = arith.truncf %91 : vector<24x8xf32> to vector<24x8xbf16>
    %93 = vector.extract_strided_slice %19 {offsets = [0, 24], sizes = [24, 8], strides = [1, 1]} : vector<24x32xf32> to vector<24x8xf32>
    %94 = arith.truncf %93 : vector<24x8xf32> to vector<24x8xbf16>
    %cst_32 = arith.constant dense<0.000000e+00> : vector<8x24xf32>
    %95 = tpu.matmul %90, %92, %cst_32 {dimension_numbers = #tpu.dot_dimension_numbers<[1], [1], [0], [0], [0, 0, 1, 0], [], []>} : vector<8x8xbf16>, vector<24x8xbf16>, vector<8x24xf32> -> vector<8x24xf32>
    %cst_33 = arith.constant 0.353553385 : f32
    %96 = vector.broadcast %cst_33 : f32 to vector<8x24xf32>
    %97 = arith.mulf %95, %96 : vector<8x24xf32>
    %98 = vector.broadcast %17 : vector<1x24xf32> to vector<8x24xf32>
    %99 = arith.addf %97, %98 : vector<8x24xf32>
    %cst_34 = arith.constant dense<0xFF800000> : vector<8xf32>
    %100 = vector.multi_reduction <maximumf>, %99, %cst_34 [1] : vector<8x24xf32> to vector<8xf32>
    %101 = vector.shape_cast %100 : vector<8xf32> to vector<8x1xf32>
    %102 = vector.broadcast %101 : vector<8x1xf32> to vector<8x24xf32>
    %103 = arith.subf %99, %102 : vector<8x24xf32>
    %104 = math.exp %103 : vector<8x24xf32>
    %cst_35 = arith.constant dense<0.000000e+00> : vector<8xf32>
    %105 = vector.multi_reduction <add>, %104, %cst_35 [1] : vector<8x24xf32> to vector<8xf32>
    %106 = vector.shape_cast %105 : vector<8xf32> to vector<8x1xf32>
    %107 = tpu.reciprocal %106 {approx = true} : vector<8x1xf32> -> vector<8x1xf32>
    %108 = vector.broadcast %107 : vector<8x1xf32> to vector<8x24xf32>
    %109 = arith.mulf %104, %108 : vector<8x24xf32>
    %110 = arith.truncf %109 : vector<8x24xf32> to vector<8x24xbf16>
    %cst_36 = arith.constant dense<0.000000e+00> : vector<8x8xf32>
    %111 = tpu.matmul %110, %94, %cst_36 {dimension_numbers = #tpu.dot_dimension_numbers<[1], [0], [0], [1], [0, 0, 1, 1], [], []>} : vector<8x24xbf16>, vector<24x8xbf16>, vector<8x8xf32> -> vector<8x8xf32>
    %112 = tpu.concatenate %42, %65, %88, %111 in 1 : vector<8x8xf32>, vector<8x8xf32>, vector<8x8xf32>, vector<8x8xf32> -> vector<8x32xf32>
    %113 = arith.truncf %112 : vector<8x32xf32> to vector<8x32xbf16>
    %c0_37 = arith.constant 0 : index
    %c0_38 = arith.constant 0 : index
    %114 = vector.load %arg9[%c0_37, %c0_38] : memref<32x32xbf16, #tpu.memory_space<vmem>>, vector<32x32xbf16>
    %cst_39 = arith.constant dense<0.000000e+00> : vector<8x32xf32>
    %115 = tpu.matmul %113, %114, %cst_39 {dimension_numbers = #tpu.dot_dimension_numbers<[1], [0], [0], [1], [0, 0, 1, 1], [], []>} : vector<8x32xbf16>, vector<32x32xbf16>, vector<8x32xf32> -> vector<8x32xf32>
    %c0_40 = arith.constant 0 : index
    %c0_41 = arith.constant 0 : index
    %116 = vector.load %arg10[%c0_40, %c0_41] : memref<1x32xf32, #tpu.memory_space<vmem>>, vector<1x32xf32>
    %117 = vector.broadcast %116 : vector<1x32xf32> to vector<8x32xf32>
    %118 = arith.addf %115, %117 : vector<8x32xf32>
    %119 = arith.addf %1, %118 : vector<8x32xf32>
    %c0_42 = arith.constant 0 : index
    %c0_43 = arith.constant 0 : index
    %120 = vector.load %arg3[%c0_42, %c0_43] : memref<1x32xf32, #tpu.memory_space<vmem>>, vector<1x32xf32>
    %c0_44 = arith.constant 0 : index
    %c0_45 = arith.constant 0 : index
    %121 = vector.load %arg4[%c0_44, %c0_45] : memref<1x32xf32, #tpu.memory_space<vmem>>, vector<1x32xf32>
    %cst_46 = arith.constant dense<0.000000e+00> : vector<8xf32>
    %122 = vector.multi_reduction <add>, %119, %cst_46 [1] : vector<8x32xf32> to vector<8xf32>
    %123 = vector.shape_cast %122 : vector<8xf32> to vector<8x1xf32>
    %cst_47 = arith.constant 3.200000e+01 : f32
    %124 = vector.broadcast %cst_47 : f32 to vector<8x1xf32>
    %125 = arith.divf %123, %124 : vector<8x1xf32>
    %126 = vector.broadcast %125 : vector<8x1xf32> to vector<8x32xf32>
    %127 = arith.subf %119, %126 : vector<8x32xf32>
    %128 = arith.mulf %127, %127 : vector<8x32xf32>
    %cst_48 = arith.constant dense<0.000000e+00> : vector<8xf32>
    %129 = vector.multi_reduction <add>, %128, %cst_48 [1] : vector<8x32xf32> to vector<8xf32>
    %130 = vector.shape_cast %129 : vector<8xf32> to vector<8x1xf32>
    %cst_49 = arith.constant 3.200000e+01 : f32
    %131 = vector.broadcast %cst_49 : f32 to vector<8x1xf32>
    %132 = arith.divf %130, %131 : vector<8x1xf32>
    %133 = vector.broadcast %125 : vector<8x1xf32> to vector<8x32xf32>
    %134 = arith.subf %119, %133 : vector<8x32xf32>
    %cst_50 = arith.constant 9.99999996E-13 : f32
    %135 = vector.broadcast %cst_50 : f32 to vector<8x1xf32>
    %136 = arith.addf %132, %135 : vector<8x1xf32>
    %137 = math.rsqrt %136 : vector<8x1xf32>
    %138 = vector.broadcast %137 : vector<8x1xf32> to vector<8x32xf32>
    %139 = arith.mulf %134, %138 : vector<8x32xf32>
    %140 = vector.broadcast %120 : vector<1x32xf32> to vector<8x32xf32>
    %141 = arith.mulf %139, %140 : vector<8x32xf32>
    %142 = vector.broadcast %121 : vector<1x32xf32> to vector<8x32xf32>
    %143 = arith.addf %141, %142 : vector<8x32xf32>
    %c0_51 = arith.constant 0 : index
    %c0_52 = arith.constant 0 : index
    %c0_53 = arith.constant 0 : index
    %144 = vector.load %arg12[%c0_51, %c0_52, %c0_53] : memref<1x8x32xf32, #tpu.memory_space<vmem>>, vector<1x8x32xf32>
    %145 = vector.shape_cast %144 : vector<1x8x32xf32> to vector<8x32xf32>
    %146 = vector.shape_cast %143 : vector<8x32xf32> to vector<1x8x32xf32>
    tpu.vector_store %arg12[%c0_51, %c0_52, %c0_53], %146 {strides = array<i32>} : memref<1x8x32xf32, #tpu.memory_space<vmem>>, vector<1x8x32xf32>,
    return
  }
  func.func @transform_0(%arg0: i32) -> (i32, i32, i32) {
    %c0_i32 = arith.constant 0 : i32
    %c0_i32_0 = arith.constant 0 : i32
    %c0_i32_1 = arith.constant 0 : i32
    return %arg0, %c0_i32, %c0_i32_0 : i32, i32, i32
  }
  func.func @transform_1(%arg0: i32) -> (i32, i32, i32) {
    %c0_i32 = arith.constant 0 : i32
    %c0_i32_0 = arith.constant 0 : i32
    %c0_i32_1 = arith.constant 0 : i32
    return %arg0, %c0_i32, %c0_i32_0 : i32, i32, i32
  }
  func.func @transform_2(%arg0: i32) -> (i32, i32) {
    %c0_i32 = arith.constant 0 : i32
    %c0_i32_0 = arith.constant 0 : i32
    %c0_i32_1 = arith.constant 0 : i32
    return %c0_i32, %c0_i32_0 : i32, i32
  }
  func.func @transform_3(%arg0: i32) -> (i32, i32) {
    %c0_i32 = arith.constant 0 : i32
    %c0_i32_0 = arith.constant 0 : i32
    %c0_i32_1 = arith.constant 0 : i32
    return %c0_i32, %c0_i32_0 : i32, i32
  }
  func.func @transform_4(%arg0: i32) -> (i32, i32) {
    %c0_i32 = arith.constant 0 : i32
    %c0_i32_0 = arith.constant 0 : i32
    %c0_i32_1 = arith.constant 0 : i32
    return %c0_i32, %c0_i32_0 : i32, i32
  }
  func.func @transform_5(%arg0: i32) -> (i32, i32) {
    %c0_i32 = arith.constant 0 : i32
    %c0_i32_0 = arith.constant 0 : i32
    %c0_i32_1 = arith.constant 0 : i32
    return %c0_i32, %c0_i32_0 : i32, i32
  }
  func.func @transform_6(%arg0: i32) -> (i32, i32) {
    %c0_i32 = arith.constant 0 : i32
    %c0_i32_0 = arith.constant 0 : i32
    %c0_i32_1 = arith.constant 0 : i32
    return %c0_i32, %c0_i32_0 : i32, i32
  }
  func.func @transform_7(%arg0: i32) -> (i32, i32) {
    %c0_i32 = arith.constant 0 : i32
    %c0_i32_0 = arith.constant 0 : i32
    %c0_i32_1 = arith.constant 0 : i32
    return %c0_i32, %c0_i32_0 : i32, i32
  }
  func.func @transform_8(%arg0: i32) -> (i32, i32) {
    %c0_i32 = arith.constant 0 : i32
    %c0_i32_0 = arith.constant 0 : i32
    %c0_i32_1 = arith.constant 0 : i32
    return %c0_i32, %c0_i32_0 : i32, i32
  }
  func.func @transform_9(%arg0: i32) -> (i32, i32) {
    %c0_i32 = arith.constant 0 : i32
    %c0_i32_0 = arith.constant 0 : i32
    %c0_i32_1 = arith.constant 0 : i32
    return %c0_i32, %c0_i32_0 : i32, i32
  }
  func.func @transform_10(%arg0: i32) -> (i32, i32, i32) {
    %c0_i32 = arith.constant 0 : i32
    %c0_i32_0 = arith.constant 0 : i32
    %c0_i32_1 = arith.constant 0 : i32
    %c0_i32_2 = arith.constant 0 : i32
    return %c0_i32, %c0_i32_0, %c0_i32_1 : i32, i32, i32
  }
  func.func @transform_11(%arg0: i32) -> (i32, i32, i32) {
    %c0_i32 = arith.constant 0 : i32
    %c0_i32_0 = arith.constant 0 : i32
    %c0_i32_1 = arith.constant 0 : i32
    return %arg0, %c0_i32, %c0_i32_0 : i32, i32, i32
  }
}

module attributes {stable_mosaic.version = 11 : i64} {
  func.func @_ffn_block_kernel(%arg0: i32, %arg1: memref<1x8x32xf32, #tpu.memory_space<vmem>>, %arg2: memref<1x32xf32, #tpu.memory_space<vmem>>, %arg3: memref<1x32xf32, #tpu.memory_space<vmem>>, %arg4: memref<32x128xbf16, #tpu.memory_space<vmem>>, %arg5: memref<1x128xf32, #tpu.memory_space<vmem>>, %arg6: memref<128x32xbf16, #tpu.memory_space<vmem>>, %arg7: memref<1x32xf32, #tpu.memory_space<vmem>>, %arg8: memref<1x8x32xf32, #tpu.memory_space<vmem>>) attributes {dimension_semantics = [#tpu.dimension_semantics<parallel>], iteration_bounds = array<i64: 2>, scalar_prefetch = 0 : i64, scratch_operands = 0 : i64, tpu.core_type = #tpu.core_type<tc>, window_params = [{transform_indices = @transform_0, window_bounds = array<i64: 1, 8, 32>}, {pipeline_mode = #tpu.pipeline_mode<synchronous>, transform_indices = @transform_1, window_bounds = array<i64: 1, 32>}, {pipeline_mode = #tpu.pipeline_mode<synchronous>, transform_indices = @transform_2, window_bounds = array<i64: 1, 32>}, {pipeline_mode = #tpu.pipeline_mode<synchronous>, transform_indices = @transform_3, window_bounds = array<i64: 32, 128>}, {pipeline_mode = #tpu.pipeline_mode<synchronous>, transform_indices = @transform_4, window_bounds = array<i64: 1, 128>}, {pipeline_mode = #tpu.pipeline_mode<synchronous>, transform_indices = @transform_5, window_bounds = array<i64: 128, 32>}, {pipeline_mode = #tpu.pipeline_mode<synchronous>, transform_indices = @transform_6, window_bounds = array<i64: 1, 32>}, {transform_indices = @transform_7, window_bounds = array<i64: 1, 8, 32>}]} {
    %c0 = arith.constant 0 : index
    %c0_0 = arith.constant 0 : index
    %c0_1 = arith.constant 0 : index
    %0 = vector.load %arg1[%c0, %c0_0, %c0_1] : memref<1x8x32xf32, #tpu.memory_space<vmem>>, vector<1x8x32xf32>
    %1 = vector.shape_cast %0 : vector<1x8x32xf32> to vector<8x32xf32>
    %2 = arith.truncf %1 : vector<8x32xf32> to vector<8x32xbf16>
    %c0_2 = arith.constant 0 : index
    %c0_3 = arith.constant 0 : index
    %3 = vector.load %arg4[%c0_2, %c0_3] : memref<32x128xbf16, #tpu.memory_space<vmem>>, vector<32x128xbf16>
    %cst = arith.constant dense<0.000000e+00> : vector<8x128xf32>
    %4 = tpu.matmul %2, %3, %cst {dimension_numbers = #tpu.dot_dimension_numbers<[1], [0], [0], [1], [0, 0, 1, 1], [], []>} : vector<8x32xbf16>, vector<32x128xbf16>, vector<8x128xf32> -> vector<8x128xf32>
    %c0_4 = arith.constant 0 : index
    %c0_5 = arith.constant 0 : index
    %5 = vector.load %arg5[%c0_4, %c0_5] : memref<1x128xf32, #tpu.memory_space<vmem>>, vector<1x128xf32>
    %6 = vector.broadcast %5 : vector<1x128xf32> to vector<8x128xf32>
    %7 = arith.addf %4, %6 : vector<8x128xf32>
    %8 = arith.mulf %7, %7 : vector<8x128xf32>
    %9 = arith.mulf %7, %8 : vector<8x128xf32>
    %cst_6 = arith.constant 4.471500e-02 : f32
    %10 = vector.broadcast %cst_6 : f32 to vector<8x128xf32>
    %11 = arith.mulf %10, %9 : vector<8x128xf32>
    %12 = arith.addf %7, %11 : vector<8x128xf32>
    %cst_7 = arith.constant 0.797884583 : f32
    %13 = vector.broadcast %cst_7 : f32 to vector<8x128xf32>
    %14 = arith.mulf %13, %12 : vector<8x128xf32>
    %15 = math.tanh %14 : vector<8x128xf32>
    %cst_8 = arith.constant 1.000000e+00 : f32
    %16 = vector.broadcast %cst_8 : f32 to vector<8x128xf32>
    %17 = arith.addf %16, %15 : vector<8x128xf32>
    %cst_9 = arith.constant 5.000000e-01 : f32
    %18 = vector.broadcast %cst_9 : f32 to vector<8x128xf32>
    %19 = arith.mulf %18, %17 : vector<8x128xf32>
    %20 = arith.mulf %7, %19 : vector<8x128xf32>
    %21 = arith.truncf %20 : vector<8x128xf32> to vector<8x128xbf16>
    %c0_10 = arith.constant 0 : index
    %c0_11 = arith.constant 0 : index
    %22 = vector.load %arg6[%c0_10, %c0_11] : memref<128x32xbf16, #tpu.memory_space<vmem>>, vector<128x32xbf16>
    %cst_12 = arith.constant dense<0.000000e+00> : vector<8x32xf32>
    %23 = tpu.matmul %21, %22, %cst_12 {dimension_numbers = #tpu.dot_dimension_numbers<[1], [0], [0], [1], [0, 0, 1, 1], [], []>} : vector<8x128xbf16>, vector<128x32xbf16>, vector<8x32xf32> -> vector<8x32xf32>
    %c0_13 = arith.constant 0 : index
    %c0_14 = arith.constant 0 : index
    %24 = vector.load %arg7[%c0_13, %c0_14] : memref<1x32xf32, #tpu.memory_space<vmem>>, vector<1x32xf32>
    %25 = vector.broadcast %24 : vector<1x32xf32> to vector<8x32xf32>
    %26 = arith.addf %23, %25 : vector<8x32xf32>
    %27 = arith.addf %1, %26 : vector<8x32xf32>
    %c0_15 = arith.constant 0 : index
    %c0_16 = arith.constant 0 : index
    %28 = vector.load %arg2[%c0_15, %c0_16] : memref<1x32xf32, #tpu.memory_space<vmem>>, vector<1x32xf32>
    %c0_17 = arith.constant 0 : index
    %c0_18 = arith.constant 0 : index
    %29 = vector.load %arg3[%c0_17, %c0_18] : memref<1x32xf32, #tpu.memory_space<vmem>>, vector<1x32xf32>
    %cst_19 = arith.constant dense<0.000000e+00> : vector<8xf32>
    %30 = vector.multi_reduction <add>, %27, %cst_19 [1] : vector<8x32xf32> to vector<8xf32>
    %31 = vector.shape_cast %30 : vector<8xf32> to vector<8x1xf32>
    %cst_20 = arith.constant 3.200000e+01 : f32
    %32 = vector.broadcast %cst_20 : f32 to vector<8x1xf32>
    %33 = arith.divf %31, %32 : vector<8x1xf32>
    %34 = vector.broadcast %33 : vector<8x1xf32> to vector<8x32xf32>
    %35 = arith.subf %27, %34 : vector<8x32xf32>
    %36 = arith.mulf %35, %35 : vector<8x32xf32>
    %cst_21 = arith.constant dense<0.000000e+00> : vector<8xf32>
    %37 = vector.multi_reduction <add>, %36, %cst_21 [1] : vector<8x32xf32> to vector<8xf32>
    %38 = vector.shape_cast %37 : vector<8xf32> to vector<8x1xf32>
    %cst_22 = arith.constant 3.200000e+01 : f32
    %39 = vector.broadcast %cst_22 : f32 to vector<8x1xf32>
    %40 = arith.divf %38, %39 : vector<8x1xf32>
    %41 = vector.broadcast %33 : vector<8x1xf32> to vector<8x32xf32>
    %42 = arith.subf %27, %41 : vector<8x32xf32>
    %cst_23 = arith.constant 9.99999996E-13 : f32
    %43 = vector.broadcast %cst_23 : f32 to vector<8x1xf32>
    %44 = arith.addf %40, %43 : vector<8x1xf32>
    %45 = math.rsqrt %44 : vector<8x1xf32>
    %46 = vector.broadcast %45 : vector<8x1xf32> to vector<8x32xf32>
    %47 = arith.mulf %42, %46 : vector<8x32xf32>
    %48 = vector.broadcast %28 : vector<1x32xf32> to vector<8x32xf32>
    %49 = arith.mulf %47, %48 : vector<8x32xf32>
    %50 = vector.broadcast %29 : vector<1x32xf32> to vector<8x32xf32>
    %51 = arith.addf %49, %50 : vector<8x32xf32>
    %c0_24 = arith.constant 0 : index
    %c0_25 = arith.constant 0 : index
    %c0_26 = arith.constant 0 : index
    %52 = vector.load %arg8[%c0_24, %c0_25, %c0_26] : memref<1x8x32xf32, #tpu.memory_space<vmem>>, vector<1x8x32xf32>
    %53 = vector.shape_cast %52 : vector<1x8x32xf32> to vector<8x32xf32>
    %54 = vector.shape_cast %51 : vector<8x32xf32> to vector<1x8x32xf32>
    tpu.vector_store %arg8[%c0_24, %c0_25, %c0_26], %54 {strides = array<i32>} : memref<1x8x32xf32, #tpu.memory_space<vmem>>, vector<1x8x32xf32>,
    return
  }
  func.func @transform_0(%arg0: i32) -> (i32, i32, i32) {
    %c0_i32 = arith.constant 0 : i32
    %c0_i32_0 = arith.constant 0 : i32
    %c0_i32_1 = arith.constant 0 : i32
    return %arg0, %c0_i32, %c0_i32_0 : i32, i32, i32
  }
  func.func @transform_1(%arg0: i32) -> (i32, i32) {
    %c0_i32 = arith.constant 0 : i32
    %c0_i32_0 = arith.constant 0 : i32
    %c0_i32_1 = arith.constant 0 : i32
    return %c0_i32, %c0_i32_0 : i32, i32
  }
  func.func @transform_2(%arg0: i32) -> (i32, i32) {
    %c0_i32 = arith.constant 0 : i32
    %c0_i32_0 = arith.constant 0 : i32
    %c0_i32_1 = arith.constant 0 : i32
    return %c0_i32, %c0_i32_0 : i32, i32
  }
  func.func @transform_3(%arg0: i32) -> (i32, i32) {
    %c0_i32 = arith.constant 0 : i32
    %c0_i32_0 = arith.constant 0 : i32
    %c0_i32_1 = arith.constant 0 : i32
    return %c0_i32, %c0_i32_0 : i32, i32
  }
  func.func @transform_4(%arg0: i32) -> (i32, i32) {
    %c0_i32 = arith.constant 0 : i32
    %c0_i32_0 = arith.constant 0 : i32
    %c0_i32_1 = arith.constant 0 : i32
    return %c0_i32, %c0_i32_0 : i32, i32
  }
  func.func @transform_5(%arg0: i32) -> (i32, i32) {
    %c0_i32 = arith.constant 0 : i32
    %c0_i32_0 = arith.constant 0 : i32
    %c0_i32_1 = arith.constant 0 : i32
    return %c0_i32, %c0_i32_0 : i32, i32
  }
  func.func @transform_6(%arg0: i32) -> (i32, i32) {
    %c0_i32 = arith.constant 0 : i32
    %c0_i32_0 = arith.constant 0 : i32
    %c0_i32_1 = arith.constant 0 : i32
    return %c0_i32, %c0_i32_0 : i32, i32
  }
  func.func @transform_7(%arg0: i32) -> (i32, i32, i32) {
    %c0_i32 = arith.constant 0 : i32
    %c0_i32_0 = arith.constant 0 : i32
    %c0_i32_1 = arith.constant 0 : i32
    return %arg0, %c0_i32, %c0_i32_0 : i32, i32, i32
  }
}

</mosaic_0001>

<llo_original>
// kernel: albef_forward.23
$region0: #{albef_forward.23}
  #allocation0 [shape = 'u32[]', space=smem, size = 0x4, offset = 0x4, fixed_abs, tag = 'smem constant byte address 0x4 - core index']
  #allocation1 [shape = 'u32[144,128]{1,0:T(1,128)}', space=vmem, size = 0x12000, scoped, tag = 'internal scratch']
  %s0 = inlined_call_operand.vmem [shape: f32[2,8,32], index: 0, kind: input, shape index: {}]
  %s1 = inlined_call_operand.vmem [shape: f32[1,32], index: 1, kind: input, shape index: {}]
  %s2 = inlined_call_operand.vmem [shape: f32[1,32], index: 2, kind: input, shape index: {}]
  %s3 = inlined_call_operand.vmem [shape: f32[2,8,32], index: 3, kind: output, shape index: {}]
  %s4 = sld [smem:[#allocation0]]
  $region45: #{albef_forward.23} parent=0
    _
  %s6 = ssub.s32 1, %s4
  %s7 = scalar_select 0, %s6, %s4
  loop: start=0, step=1, limit=4
  $region2: #{albef_forward.23} parent=0 // loop_pre_header
    _
  $region3: #{albef_forward.23} parent=0 // loop_header
    %s9 = sphi 0, %s13
    %p10 = scmp.ge.s32.totalorder %s9, 4
    %s19 = sphi 0, %s21
    %s22 = sphi 0, %s19
    %s23 = sphi 0, %s22
    %s39 = sphi 0, %s23
    %s43 = sphi 0, %s43
    %s45 = sphi 0, %s43
    %s46 = sphi 0, %s45
    %s60 = sphi 0, %s46
    %s64 = sphi 0, %s64
    %s66 = sphi 0, %s64
    %s67 = sphi 0, %s66
    %s81 = sphi 0, %s67
    %s87 = sphi 0, %s89
    %s90 = sphi 0, %s87
    %s91 = sphi 0, %s90
    %s107 = sphi 0, %s91
  $region4: #{albef_forward.23} parent=0 // loop_header_branch
    %12 = sbr.rel (%p10) target = $region8
  $region5: #{albef_forward.23} parent=0 // loop_body
    %s14 = ssub.s32 %s9, 1
    %s15 = ssub.s32 %s9, 2
    %s16 = sadd.s32 %s9, 1
    %s17 = ssub.s32 %s9, %s16
    %p18 = scmp.eq.s32.totalorder %s17, 0
    %s20 = sadd.s32 %s19, 1
    %s21 = scalar_select %p18, %s19, %s20
    %p24 = pneg %p18
    %p25 = scmp.eq.s32.totalorder %s9, 1
    %p26 = por %p24, %p25
    %p27 = scmp.ne.s32.totalorder %s19, %s22
    %p28 = scmp.eq.s32.totalorder %s9, 0
    %p29 = por %p27, %p28
    %p30 = scmp.ne.s32.totalorder %s19, %s22
    %p31 = scmp.eq.s32.totalorder %s14, 1
    %p32 = por %p30, %p31
    %p33 = scmp.ne.s32.totalorder %s22, %s23
    %p34 = scmp.eq.s32.totalorder %s14, 0
    %p35 = por %p33, %p34
    %p36 = scmp.ne.s32.totalorder %s22, %s23
    %p37 = scmp.eq.s32.totalorder %s15, 1
    %p38 = por %p36, %p37
    %p40 = scmp.ne.s32.totalorder %s23, %s39
    %p41 = scmp.eq.s32.totalorder %s15, 0
    %p42 = por %p40, %p41
    %s44 = sadd.s32 %s43, 1
    %p47 = scmp.eq.s32.totalorder %s9, 1
    %p48 = scmp.ne.s32.totalorder %s43, %s45
    %p49 = scmp.eq.s32.totalorder %s9, 0
    %p50 = por %p48, %p49
    %p51 = scmp.ne.s32.totalorder %s43, %s45
    %p52 = scmp.eq.s32.totalorder %s14, 1
    %p53 = por %p51, %p52
    %p54 = scmp.ne.s32.totalorder %s45, %s46
    %p55 = scmp.eq.s32.totalorder %s14, 0
    %p56 = por %p54, %p55
    %p57 = scmp.ne.s32.totalorder %s45, %s46
    %p58 = scmp.eq.s32.totalorder %s15, 1
    %p59 = por %p57, %p58
    %p61 = scmp.ne.s32.totalorder %s46, %s60
    %p62 = scmp.eq.s32.totalorder %s15, 0
    %p63 = por %p61, %p62
    %s65 = sadd.s32 %s64, 1
    %p68 = scmp.eq.s32.totalorder %s9, 1
    %p69 = scmp.ne.s32.totalorder %s64, %s66
    %p70 = scmp.eq.s32.totalorder %s9, 0
    %p71 = por %p69, %p70
    %p72 = scmp.ne.s32.totalorder %s64, %s66
    %p73 = scmp.eq.s32.totalorder %s14, 1
    %p74 = por %p72, %p73
    %p75 = scmp.ne.s32.totalorder %s66, %s67
    %p76 = scmp.eq.s32.totalorder %s14, 0
    %p77 = por %p75, %p76
    %p78 = scmp.ne.s32.totalorder %s66, %s67
    %p79 = scmp.eq.s32.totalorder %s15, 1
    %p80 = por %p78, %p79
    %p82 = scmp.ne.s32.totalorder %s67, %s81
    %p83 = scmp.eq.s32.totalorder %s15, 0
    %p84 = por %p82, %p83
    %s85 = ssub.s32 %s9, %s16
    %p86 = scmp.eq.s32.totalorder %s85, 0
    %s88 = sadd.s32 %s87, 1
    %s89 = scalar_select %p86, %s87, %s88
    %p92 = pneg %p86
    %p93 = scmp.eq.s32.totalorder %s9, 1
    %p94 = por %p92, %p93
    %p95 = scmp.ne.s32.totalorder %s87, %s90
    %p96 = scmp.eq.s32.totalorder %s9, 0
    %p97 = por %p95, %p96
    %p98 = scmp.ne.s32.totalorder %s87, %s90
    %p99 = scmp.eq.s32.totalorder %s14, 1
    %p100 = por %p98, %p99
    %p101 = scmp.ne.s32.totalorder %s90, %s91
    %p102 = scmp.eq.s32.totalorder %s14, 0
    %p103 = por %p101, %p102
    %p104 = scmp.ne.s32.totalorder %s90, %s91
    %p105 = scmp.eq.s32.totalorder %s15, 1
    %p106 = por %p104, %p105
    %p108 = scmp.ne.s32.totalorder %s91, %s107
    %p109 = scmp.eq.s32.totalorder %s15, 0
    %p110 = por %p108, %p109
    %p111 = scmp.le.s32.totalorder 1, %s9
    %p112 = scmp.lt.s32.totalorder %s9, 3
    %p113 = pnand %p111, %p112
    %p114 = pneg %p113
    // Predicated region
    $region9: #{albef_forward.23} parent=5 // pred_check
      _
    $region10: #{albef_forward.23} parent=5 // pred_check_branch
      %116 = sbr.rel (%p113) target = $region12
    $region11: #{albef_forward.23} parent=5 // pred_region
      %s117 = ssub.s32 %s9, 1
      // Predicated region
      $region13: #{albef_forward.23} parent=11 // pred_check
        %p118 = pneg %p56
      $region14: #{albef_forward.23} parent=11 // pred_check_branch
        %120 = sbr.rel (%p118) target = $region16
      $region15: #{albef_forward.23} parent=11 // pred_region
        _
      $region16: #{albef_forward.23} parent=11 // pred_fallthru
        _
      // Predicated region
      $region17: #{albef_forward.23} parent=11 // pred_check
        %p121 = pneg %p77
      $region18: #{albef_forward.23} parent=11 // pred_check_branch
        %123 = sbr.rel (%p121) target = $region20
      $region19: #{albef_forward.23} parent=11 // pred_region
        _
      $region20: #{albef_forward.23} parent=11 // pred_fallthru
        _
    $region12: #{albef_forward.23} parent=5 // pred_fallthru
      _
    %p124 = scmp.lt.s32.totalorder %s9, 2
    // Predicated region
    $region21: #{albef_forward.23} parent=5 // pred_check
      %p125 = pneg %p124
    $region22: #{albef_forward.23} parent=5 // pred_check_branch
      %127 = sbr.rel (%p125) target = $region24
    $region23: #{albef_forward.23} parent=5 // pred_region
      // Predicated region
      $region25: #{albef_forward.23} parent=23 // pred_check
        %p128 = pneg %p29
      $region26: #{albef_forward.23} parent=23 // pred_check_branch
        %130 = sbr.rel (%p128) target = $region28
      $region27: #{albef_forward.23} parent=23 // pred_region
        %p131 = scmp.lt.s32.totalorder %s9, 1
        %s132 = scalar_select %p131, %s9, 1
        %s133 = smul.addr %s132, 8
        %s134 = scalar_lea.vmem %s0, %s133
      $region28: #{albef_forward.23} parent=23 // pred_fallthru
        _
    $region24: #{albef_forward.23} parent=5 // pred_fallthru
      _
    %p135 = scmp.le.s32.totalorder 1, %s9
    %p136 = scmp.lt.s32.totalorder %s9, 3
    %p137 = pnand %p135, %p136
    %p138 = pneg %p137
    // Predicated region
    $region29: #{albef_forward.23} parent=5 // pred_check
      _
    $region30: #{albef_forward.23} parent=5 // pred_check_branch
      %140 = sbr.rel (%p137) target = $region32
    $region31: #{albef_forward.23} parent=5 // pred_region
      %s141 = ssub.s32 %s9, 1
      %p142 = scmp.lt.s32.totalorder %s14, 1
      %s143 = scalar_select %p142, %s14, 1
      %s144 = smul.addr %s143, 8
      %s145 = scalar_lea.vmem %s0, %s144
      %p146 = pneg %p35
      %p147 = pneg %p32
      %p148 = pneg %p56
      %p149 = pneg %p53
      %p150 = pneg %p77
      %p151 = pneg %p74
      %p152 = pneg %p103
      %p153 = pneg %p100
      %p154 = scmp.lt.s32.totalorder %s14, 1
      %s155 = scalar_select %p154, %s14, 1
      %s156 = smul.addr %s155, 8
      %s157 = scalar_lea.vmem %s3, %s156
      %p158 = scmp.lt.s32.totalorder %s14, 1
      %s159 = scalar_select %p158, %s14, 1
      %s160 = smul.addr %s159, 8
      %s161 = scalar_lea.vmem %s0, %s160
      %p162 = scmp.lt.s32.totalorder %s14, 1
      %s163 = scalar_select %p162, %s14, 1
      %s164 = smul.addr %s163, 8
      %s165 = scalar_lea.vmem %s3, %s164
      %v166 = vld [vmem:[%s161] sm:$0xff]
      %v167 = vld [vmem:[%s1] sm:$0x1]
      %v168 = vld [vmem:[%s2] sm:$0x1]
      %vm169 = vcmask 261120
      %v170 = vsel %vm169, %v166, 0.0
      %171 = vadd.xlane.f32.xlu0 %v170
      %v172 = vpop.xlane.xlu0 %171
      %v173 = vrcp.pop 32.0
      %v174 = vmul.f32 %v172, %v173
      %v175 = vsub.f32 %v166, %v174
      %v176 = vmul.f32 %v175, %v175
      %v177 = vsel %vm169, %v176, 0.0
      %178 = vadd.xlane.f32.xlu0 %v177
      %v179 = vpop.xlane.xlu0 %178
      %v180 = vmul.f32 %v179, %v173
      %v181 = vadd.f32 %v180, 1e-12
      %v182 = vrsqrt.pop %v181
      %v183 = vmul.f32 %v175, %v182
      %v185 = vlaneseq
      %v186 = vshrl.u32 %v185, 7
      %v187 = vsub.s32 0, %v186
      %v188 = vrot.slane %v167, %v187
      %v190 = vmul.f32 %v183, %v188
      %v192 = vlaneseq
      %v193 = vshrl.u32 %v192, 7
      %v194 = vsub.s32 0, %v193
      %v195 = vrot.slane %v168, %v194
      %v197 = vadd.f32 %v190, %v195
      %198 = vst.msk [vmem:[%s165] sm:$0xff] %vm169, %v197
      %p199 = scmp.lt.s32.totalorder %s14, 1
      %s200 = scalar_select %p199, %s14, 1
      %s201 = smul.addr %s200, 8
      %s202 = scalar_lea.vmem %s3, %s201
      // Predicated region
      $region33: #{albef_forward.23} parent=31 // pred_check
        %p203 = pneg %p100
      $region34: #{albef_forward.23} parent=31 // pred_check_branch
        %205 = sbr.rel (%p203) target = $region36
      $region35: #{albef_forward.23} parent=31 // pred_region
        _
      $region36: #{albef_forward.23} parent=31 // pred_fallthru
        _
    $region32: #{albef_forward.23} parent=5 // pred_fallthru
      _
    %p206 = scmp.le.s32.totalorder 2, %s9
    // Predicated region
    $region37: #{albef_forward.23} parent=5 // pred_check
      %p207 = pneg %p206
    $region38: #{albef_forward.23} parent=5 // pred_check_branch
      %209 = sbr.rel (%p207) target = $region40
    $region39: #{albef_forward.23} parent=5 // pred_region
      %s210 = ssub.s32 %s9, 2
      // Predicated region
      $region41: #{albef_forward.23} parent=39 // pred_check
        %p211 = pneg %p106
      $region42: #{albef_forward.23} parent=39 // pred_check_branch
        %213 = sbr.rel (%p211) target = $region44
      $region43: #{albef_forward.23} parent=39 // pred_region
        %p214 = scmp.lt.s32.totalorder %s15, 1
        %s215 = scalar_select %p214, %s15, 1
        %s216 = smul.addr %s215, 8
        %s217 = scalar_lea.vmem %s3, %s216
      $region44: #{albef_forward.23} parent=39 // pred_fallthru
        _
    $region40: #{albef_forward.23} parent=5 // pred_fallthru
      _
  $region6: #{albef_forward.23} parent=0 // loop_footer
    %s13 = sadd.s32 1, %s9
  $region7: #{albef_forward.23} parent=0 // loop_footer_branch
    %8 = sbr.rel target = $region3
  $region8: #{albef_forward.23} parent=0 // loop_exit
    _

// kernel: albef_forward.25
$region0: #{albef_forward.25}
  #allocation0 [shape = 'u32[]', space=smem, size = 0x4, offset = 0x4, fixed_abs, tag = 'smem constant byte address 0x4 - core index']
  #allocation1 [shape = 'u32[144,128]{1,0:T(1,128)}', space=vmem, size = 0x12000, scoped, tag = 'internal scratch']
  %s0 = inlined_call_operand.vmem [shape: f32[2,8,32], index: 0, kind: input, shape index: {}]
  %s1 = inlined_call_operand.vmem [shape: f32[1,32], index: 1, kind: input, shape index: {}]
  %s2 = inlined_call_operand.vmem [shape: f32[1,32], index: 2, kind: input, shape index: {}]
  %s3 = inlined_call_operand.vmem [shape: bf16[32,128], index: 3, kind: input, shape index: {}]
  %s4 = inlined_call_operand.vmem [shape: f32[1,128], index: 4, kind: input, shape index: {}]
  %s5 = inlined_call_operand.vmem [shape: bf16[128,32], index: 5, kind: input, shape index: {}]
  %s6 = inlined_call_operand.vmem [shape: f32[1,32], index: 6, kind: input, shape index: {}]
  %s7 = inlined_call_operand.vmem [shape: f32[2,8,32], index: 7, kind: output, shape index: {}]
  %s8 = sld [smem:[#allocation0]]
  $region61: #{albef_forward.25} parent=0
    _
  %s10 = ssub.s32 1, %s8
  %s11 = scalar_select 0, %s10, %s8
  loop: start=0, step=1, limit=4
  $region2: #{albef_forward.25} parent=0 // loop_pre_header
    _
  $region3: #{albef_forward.25} parent=0 // loop_header
    %s13 = sphi 0, %s17
    %p14 = scmp.ge.s32.totalorder %s13, 4
    %s23 = sphi 0, %s25
    %s26 = sphi 0, %s23
    %s27 = sphi 0, %s26
    %s43 = sphi 0, %s27
    %s47 = sphi 0, %s47
    %s49 = sphi 0, %s47
    %s50 = sphi 0, %s49
    %s64 = sphi 0, %s50
    %s68 = sphi 0, %s68
    %s70 = sphi 0, %s68
    %s71 = sphi 0, %s70
    %s85 = sphi 0, %s71
    %s89 = sphi 0, %s89
    %s91 = sphi 0, %s89
    %s92 = sphi 0, %s91
    %s106 = sphi 0, %s92
    %s110 = sphi 0, %s110
    %s112 = sphi 0, %s110
    %s113 = sphi 0, %s112
    %s127 = sphi 0, %s113
    %s131 = sphi 0, %s131
    %s133 = sphi 0, %s131
    %s134 = sphi 0, %s133
    %s148 = sphi 0, %s134
    %s152 = sphi 0, %s152
    %s154 = sphi 0, %s152
    %s155 = sphi 0, %s154
    %s169 = sphi 0, %s155
    %s175 = sphi 0, %s177
    %s178 = sphi 0, %s175
    %s179 = sphi 0, %s178
    %s195 = sphi 0, %s179
  $region4: #{albef_forward.25} parent=0 // loop_header_branch
    %16 = sbr.rel (%p14) target = $region8
  $region5: #{albef_forward.25} parent=0 // loop_body
    %s18 = ssub.s32 %s13, 1
    %s19 = ssub.s32 %s13, 2
    %s20 = sadd.s32 %s13, 1
    %s21 = ssub.s32 %s13, %s20
    %p22 = scmp.eq.s32.totalorder %s21, 0
    %s24 = sadd.s32 %s23, 1
    %s25 = scalar_select %p22, %s23, %s24
    %p28 = pneg %p22
    %p29 = scmp.eq.s32.totalorder %s13, 1
    %p30 = por %p28, %p29
    %p31 = scmp.ne.s32.totalorder %s23, %s26
    %p32 = scmp.eq.s32.totalorder %s13, 0
    %p33 = por %p31, %p32
    %p34 = scmp.ne.s32.totalorder %s23, %s26
    %p35 = scmp.eq.s32.totalorder %s18, 1
    %p36 = por %p34, %p35
    %p37 = scmp.ne.s32.totalorder %s26, %s27
    %p38 = scmp.eq.s32.totalorder %s18, 0
    %p39 = por %p37, %p38
    %p40 = scmp.ne.s32.totalorder %s26, %s27
    %p41 = scmp.eq.s32.totalorder %s19, 1
    %p42 = por %p40, %p41
    %p44 = scmp.ne.s32.totalorder %s27, %s43
    %p45 = scmp.eq.s32.totalorder %s19, 0
    %p46 = por %p44, %p45
    %s48 = sadd.s32 %s47, 1
    %p51 = scmp.eq.s32.totalorder %s13, 1
    %p52 = scmp.ne.s32.totalorder %s47, %s49
    %p53 = scmp.eq.s32.totalorder %s13, 0
    %p54 = por %p52, %p53
    %p55 = scmp.ne.s32.totalorder %s47, %s49
    %p56 = scmp.eq.s32.totalorder %s18, 1
    %p57 = por %p55, %p56
    %p58 = scmp.ne.s32.totalorder %s49, %s50
    %p59 = scmp.eq.s32.totalorder %s18, 0
    %p60 = por %p58, %p59
    %p61 = scmp.ne.s32.totalorder %s49, %s50
    %p62 = scmp.eq.s32.totalorder %s19, 1
    %p63 = por %p61, %p62
    %p65 = scmp.ne.s32.totalorder %s50, %s64
    %p66 = scmp.eq.s32.totalorder %s19, 0
    %p67 = por %p65, %p66
    %s69 = sadd.s32 %s68, 1
    %p72 = scmp.eq.s32.totalorder %s13, 1
    %p73 = scmp.ne.s32.totalorder %s68, %s70
    %p74 = scmp.eq.s32.totalorder %s13, 0
    %p75 = por %p73, %p74
    %p76 = scmp.ne.s32.totalorder %s68, %s70
    %p77 = scmp.eq.s32.totalorder %s18, 1
    %p78 = por %p76, %p77
    %p79 = scmp.ne.s32.totalorder %s70, %s71
    %p80 = scmp.eq.s32.totalorder %s18, 0
    %p81 = por %p79, %p80
    %p82 = scmp.ne.s32.totalorder %s70, %s71
    %p83 = scmp.eq.s32.totalorder %s19, 1
    %p84 = por %p82, %p83
    %p86 = scmp.ne.s32.totalorder %s71, %s85
    %p87 = scmp.eq.s32.totalorder %s19, 0
    %p88 = por %p86, %p87
    %s90 = sadd.s32 %s89, 1
    %p93 = scmp.eq.s32.totalorder %s13, 1
    %p94 = scmp.ne.s32.totalorder %s89, %s91
    %p95 = scmp.eq.s32.totalorder %s13, 0
    %p96 = por %p94, %p95
    %p97 = scmp.ne.s32.totalorder %s89, %s91
    %p98 = scmp.eq.s32.totalorder %s18, 1
    %p99 = por %p97, %p98
    %p100 = scmp.ne.s32.totalorder %s91, %s92
    %p101 = scmp.eq.s32.totalorder %s18, 0
    %p102 = por %p100, %p101
    %p103 = scmp.ne.s32.totalorder %s91, %s92
    %p104 = scmp.eq.s32.totalorder %s19, 1
    %p105 = por %p103, %p104
    %p107 = scmp.ne.s32.totalorder %s92, %s106
    %p108 = scmp.eq.s32.totalorder %s19, 0
    %p109 = por %p107, %p108
    %s111 = sadd.s32 %s110, 1
    %p114 = scmp.eq.s32.totalorder %s13, 1
    %p115 = scmp.ne.s32.totalorder %s110, %s112
    %p116 = scmp.eq.s32.totalorder %s13, 0
    %p117 = por %p115, %p116
    %p118 = scmp.ne.s32.totalorder %s110, %s112
    %p119 = scmp.eq.s32.totalorder %s18, 1
    %p120 = por %p118, %p119
    %p121 = scmp.ne.s32.totalorder %s112, %s113
    %p122 = scmp.eq.s32.totalorder %s18, 0
    %p123 = por %p121, %p122
    %p124 = scmp.ne.s32.totalorder %s112, %s113
    %p125 = scmp.eq.s32.totalorder %s19, 1
    %p126 = por %p124, %p125
    %p128 = scmp.ne.s32.totalorder %s113, %s127
    %p129 = scmp.eq.s32.totalorder %s19, 0
    %p130 = por %p128, %p129
    %s132 = sadd.s32 %s131, 1
    %p135 = scmp.eq.s32.totalorder %s13, 1
    %p136 = scmp.ne.s32.totalorder %s131, %s133
    %p137 = scmp.eq.s32.totalorder %s13, 0
    %p138 = por %p136, %p137
    %p139 = scmp.ne.s32.totalorder %s131, %s133
    %p140 = scmp.eq.s32.totalorder %s18, 1
    %p141 = por %p139, %p140
    %p142 = scmp.ne.s32.totalorder %s133, %s134
    %p143 = scmp.eq.s32.totalorder %s18, 0
    %p144 = por %p142, %p143
    %p145 = scmp.ne.s32.totalorder %s133, %s134
    %p146 = scmp.eq.s32.totalorder %s19, 1
    %p147 = por %p145, %p146
    %p149 = scmp.ne.s32.totalorder %s134, %s148
    %p150 = scmp.eq.s32.totalorder %s19, 0
    %p151 = por %p149, %p150
    %s153 = sadd.s32 %s152, 1
    %p156 = scmp.eq.s32.totalorder %s13, 1
    %p157 = scmp.ne.s32.totalorder %s152, %s154
    %p158 = scmp.eq.s32.totalorder %s13, 0
    %p159 = por %p157, %p158
    %p160 = scmp.ne.s32.totalorder %s152, %s154
    %p161 = scmp.eq.s32.totalorder %s18, 1
    %p162 = por %p160, %p161
    %p163 = scmp.ne.s32.totalorder %s154, %s155
    %p164 = scmp.eq.s32.totalorder %s18, 0
    %p165 = por %p163, %p164
    %p166 = scmp.ne.s32.totalorder %s154, %s155
    %p167 = scmp.eq.s32.totalorder %s19, 1
    %p168 = por %p166, %p167
    %p170 = scmp.ne.s32.totalorder %s155, %s169
    %p171 = scmp.eq.s32.totalorder %s19, 0
    %p172 = por %p170, %p171
    %s173 = ssub.s32 %s13, %s20
    %p174 = scmp.eq.s32.totalorder %s173, 0
    %s176 = sadd.s32 %s175, 1
    %s177 = scalar_select %p174, %s175, %s176
    %p180 = pneg %p174
    %p181 = scmp.eq.s32.totalorder %s13, 1
    %p182 = por %p180, %p181
    %p183 = scmp.ne.s32.totalorder %s175, %s178
    %p184 = scmp.eq.s32.totalorder %s13, 0
    %p185 = por %p183, %p184
    %p186 = scmp.ne.s32.totalorder %s175, %s178
    %p187 = scmp.eq.s32.totalorder %s18, 1
    %p188 = por %p186, %p187
    %p189 = scmp.ne.s32.totalorder %s178, %s179
    %p190 = scmp.eq.s32.totalorder %s18, 0
    %p191 = por %p189, %p190
    %p192 = scmp.ne.s32.totalorder %s178, %s179
    %p193 = scmp.eq.s32.totalorder %s19, 1
    %p194 = por %p192, %p193
    %p196 = scmp.ne.s32.totalorder %s179, %s195
    %p197 = scmp.eq.s32.totalorder %s19, 0
    %p198 = por %p196, %p197
    %p199 = scmp.le.s32.totalorder 1, %s13
    %p200 = scmp.lt.s32.totalorder %s13, 3
    %p201 = pnand %p199, %p200
    %p202 = pneg %p201
    // Predicated region
    $region9: #{albef_forward.25} parent=5 // pred_check
      _
    $region10: #{albef_forward.25} parent=5 // pred_check_branch
      %204 = sbr.rel (%p201) target = $region12
    $region11: #{albef_forward.25} parent=5 // pred_region
      %s205 = ssub.s32 %s13, 1
      // Predicated region
      $region13: #{albef_forward.25} parent=11 // pred_check
        %p206 = pneg %p60
      $region14: #{albef_forward.25} parent=11 // pred_check_branch
        %208 = sbr.rel (%p206) target = $region16
      $region15: #{albef_forward.25} parent=11 // pred_region
        _
      $region16: #{albef_forward.25} parent=11 // pred_fallthru
        _
      // Predicated region
      $region17: #{albef_forward.25} parent=11 // pred_check
        %p209 = pneg %p81
      $region18: #{albef_forward.25} parent=11 // pred_check_branch
        %211 = sbr.rel (%p209) target = $region20
      $region19: #{albef_forward.25} parent=11 // pred_region
        _
      $region20: #{albef_forward.25} parent=11 // pred_fallthru
        _
      // Predicated region
      $region21: #{albef_forward.25} parent=11 // pred_check
        %p212 = pneg %p102
      $region22: #{albef_forward.25} parent=11 // pred_check_branch
        %214 = sbr.rel (%p212) target = $region24
      $region23: #{albef_forward.25} parent=11 // pred_region
        _
      $region24: #{albef_forward.25} parent=11 // pred_fallthru
        _
      // Predicated region
      $region25: #{albef_forward.25} parent=11 // pred_check
        %p215 = pneg %p123
      $region26: #{albef_forward.25} parent=11 // pred_check_branch
        %217 = sbr.rel (%p215) target = $region28
      $region27: #{albef_forward.25} parent=11 // pred_region
        _
      $region28: #{albef_forward.25} parent=11 // pred_fallthru
        _
      // Predicated region
      $region29: #{albef_forward.25} parent=11 // pred_check
        %p218 = pneg %p144
      $region30: #{albef_forward.25} parent=11 // pred_check_branch
        %220 = sbr.rel (%p218) target = $region32
      $region31: #{albef_forward.25} parent=11 // pred_region
        _
      $region32: #{albef_forward.25} parent=11 // pred_fallthru
        _
      // Predicated region
      $region33: #{albef_forward.25} parent=11 // pred_check
        %p221 = pneg %p165
      $region34: #{albef_forward.25} parent=11 // pred_check_branch
        %223 = sbr.rel (%p221) target = $region36
      $region35: #{albef_forward.25} parent=11 // pred_region
        _
      $region36: #{albef_forward.25} parent=11 // pred_fallthru
        _
    $region12: #{albef_forward.25} parent=5 // pred_fallthru
      _
    %p224 = scmp.lt.s32.totalorder %s13, 2
    // Predicated region
    $region37: #{albef_forward.25} parent=5 // pred_check
      %p225 = pneg %p224
    $region38: #{albef_forward.25} parent=5 // pred_check_branch
      %227 = sbr.rel (%p225) target = $region40
    $region39: #{albef_forward.25} parent=5 // pred_region
      // Predicated region
      $region41: #{albef_forward.25} parent=39 // pred_check
        %p228 = pneg %p33
      $region42: #{albef_forward.25} parent=39 // pred_check_branch
        %230 = sbr.rel (%p228) target = $region44
      $region43: #{albef_forward.25} parent=39 // pred_region
        %p231 = scmp.lt.s32.totalorder %s13, 1
        %s232 = scalar_select %p231, %s13, 1
        %s233 = smul.addr %s232, 8
        %s234 = scalar_lea.vmem %s0, %s233
      $region44: #{albef_forward.25} parent=39 // pred_fallthru
        _
    $region40: #{albef_forward.25} parent=5 // pred_fallthru
      _
    %p235 = scmp.le.s32.totalorder 1, %s13
    %p236 = scmp.lt.s32.totalorder %s13, 3
    %p237 = pnand %p235, %p236
    %p238 = pneg %p237
    // Predicated region
    $region45: #{albef_forward.25} parent=5 // pred_check
      _
    $region46: #{albef_forward.25} parent=5 // pred_check_branch
      %240 = sbr.rel (%p237) target = $region48
    $region47: #{albef_forward.25} parent=5 // pred_region
      %s241 = ssub.s32 %s13, 1
      %p242 = scmp.lt.s32.totalorder %s18, 1
      %s243 = scalar_select %p242, %s18, 1
      %s244 = smul.addr %s243, 8
      %s245 = scalar_lea.vmem %s0, %s244
      %p246 = pneg %p39
      %p247 = pneg %p36
      %p248 = pneg %p60
      %p249 = pneg %p57
      %p250 = pneg %p81
      %p251 = pneg %p78
      %p252 = pneg %p102
      %p253 = pneg %p99
      %p254 = pneg %p123
      %p255 = pneg %p120
      %p256 = pneg %p144
      %p257 = pneg %p141
      %p258 = pneg %p165
      %p259 = pneg %p162
      %p260 = pneg %p191
      %p261 = pneg %p188
      %p262 = scmp.lt.s32.totalorder %s18, 1
      %s263 = scalar_select %p262, %s18, 1
      %s264 = smul.addr %s263, 8
      %s265 = scalar_lea.vmem %s7, %s264
      %p266 = scmp.lt.s32.totalorder %s18, 1
      %s267 = scalar_select %p266, %s18, 1
      %s268 = smul.addr %s267, 8
      %s269 = scalar_lea.vmem %s0, %s268
      %p270 = scmp.lt.s32.totalorder %s18, 1
      %s271 = scalar_select %p270, %s18, 1
      %s272 = smul.addr %s271, 8
      %s273 = scalar_lea.vmem %s7, %s272
      %v275 = vld [vmem:[%s269] sm:$0xff]
      %v276 = vpack.c.bf16 %v275, %v275
      %v277 = vld [vmem:[%s3] sm:$0xf]
      %v278 = vld [vmem:[%s3 + $0x4] sm:$0xf]
      %v279 = vld [vmem:[%s3 + $0x8] sm:$0xf]
      %v280 = vld [vmem:[%s3 + $0xc] sm:$0xf]
      %v281 = vld [vmem:[%s4] sm:$0x1]
      %v283 = vlaneseq
      %v284 = vshrl.u32 %v283, 7
      %v285 = vsub.s32 0, %v284
      %v286 = vrot.slane %v281, %v285
      %v292 = vunpack.c.l.b16 %v277
      %v293 = vunpack.c.l.b16 %v278
      %v294 = vunpack.c.l.b16 %v279
      %v295 = vunpack.c.l.b16 %v280
      %v296 = vpack.c.b16 %v293, %v292
      %v297 = vpack.c.b16 %v295, %v294
      %vm300 = vcmask 261120
      %v302 = vsel %vm300, %v276, 0
      %304 = vmatprep.subr.bf16.mxu0 0
      %305 = vmatpush1.bf16.msra.mxu0 0
      %306 = vmatprep.subr.bf16.mxu0 0
      %307 = vmatpush1.bf16.msra.mxu0 0
      %308 = vmatprep.subr.bf16.mxu0 0
      %309 = vmatpush1.bf16.msra.mxu0 0
      %310 = vmatprep.subr.bf16.mxu0 0
      %311 = vmatpush1.bf16.msra.mxu0 0
      %312 = vmatprep.subr.bf16.mxu0 0
      %313 = vmatpush1.bf16.msra.mxu0 0
      %314 = vmatprep.subr.bf16.mxu0 0
      %315 = vmatpush1.bf16.msra.mxu0 0
      %316 = vmatprep.subr.bf16.mxu0 0
      %317 = vmatpush1.bf16.msra.mxu0 %v297
      %318 = vmatprep.subr.bf16.mxu0 0
      %319 = vmatpush1.bf16.msra.mxu0 %v296
      %320 = vmatprep.subr.bf16.mxu0 0
      %321 = vmatpush2.bf16.msra.mxu0 0
      %322 = vmatprep.subr.bf16.mxu0 0
      %323 = vmatpush2.bf16.msra.mxu0 0
      %324 = vmatprep.subr.bf16.mxu0 0
      %325 = vmatpush2.bf16.msra.mxu0 0
      %326 = vmatprep.subr.bf16.mxu0 0
      %327 = vmatpush2.bf16.msra.mxu0 0
      %328 = vmatprep.subr.bf16.mxu0 0
      %329 = vmatpush2.bf16.msra.mxu0 0
      %330 = vmatprep.subr.bf16.mxu0 0
      %331 = vmatpush2.bf16.msra.mxu0 0
      %332 = vmatprep.subr.bf16.mxu0 0
      %333 = vmatpush2.bf16.msra.mxu0 0
      %334 = vmatprep.subr.bf16.mxu0 0
      %335 = vmatpush2.bf16.msra.mxu0 0
      %336 = vmatprep.mubr.bf16.mxu0 0
      %337 = vmatmul.mubr.bf16.gmra.mxu0 %v302
      %v338 = vpop.f32.mrf.mxu0
      %v339 = vadd.f32 %v286, %v338
      %v340 = vpop.f32.mrf.mxu0
      %v341 = vpop.f32.mrf.mxu0
      %v342 = vpop.f32.mrf.mxu0
      %343 = vdwg.mxu0
      %v344 = vmul.f32 %v339, %v339
      %v345 = vmul.f32 %v339, %v344
      %v346 = vmul.f32 %v345, 0.044715
      %v347 = vadd.f32 %v339, %v346
      %v348 = vmul.f32 %v347, 0.7978846
      %v349 = vtanh.pop %v348
      %v350 = vadd.f32 %v349, 1.0
      %v351 = vmul.f32 %v350, 0.5
      %v352 = vmul.f32 %v339, %v351
      %v353 = vpack.c.bf16 %v352, %v352
      %v354 = vld [vmem:[%s5] sm:$0xf]
      %v355 = vld [vmem:[%s5 + $0x4] sm:$0xf]
      %v356 = vld [vmem:[%s5 + $0x8] sm:$0xf]
      %v357 = vld [vmem:[%s5 + $0xc] sm:$0xf]
      %v358 = vld [vmem:[%s5 + $0x10] sm:$0xf]
      %v359 = vld [vmem:[%s5 + $0x14] sm:$0xf]
      %v360 = vld [vmem:[%s5 + $0x18] sm:$0xf]
      %v361 = vld [vmem:[%s5 + $0x1c] sm:$0xf]
      %v362 = vld [vmem:[%s5 + $0x20] sm:$0xf]
      %v363 = vld [vmem:[%s5 + $0x24] sm:$0xf]
      %v364 = vld [vmem:[%s5 + $0x28] sm:$0xf]
      %v365 = vld [vmem:[%s5 + $0x2c] sm:$0xf]
      %v366 = vld [vmem:[%s5 + $0x30] sm:$0xf]
      %v367 = vld [vmem:[%s5 + $0x34] sm:$0xf]
      %v368 = vld [vmem:[%s5 + $0x38] sm:$0xf]
      %v369 = vld [vmem:[%s5 + $0x3c] sm:$0xf]
      %v370 = vld [vmem:[%s6] sm:$0x1]
      %v372 = vlaneseq
      %v373 = vshrl.u32 %v372, 7
      %v374 = vsub.s32 0, %v373
      %v375 = vrot.slane %v370, %v374
      %v393 = vunpack.c.l.b16 %v354
      %v394 = vunpack.c.l.b16 %v355
      %v395 = vunpack.c.l.b16 %v356
      %v396 = vunpack.c.l.b16 %v357
      %v397 = vunpack.c.l.b16 %v358
      %v398 = vunpack.c.l.b16 %v359
      %v399 = vunpack.c.l.b16 %v360
      %v400 = vunpack.c.l.b16 %v361
      %v401 = vunpack.c.l.b16 %v362
      %v402 = vunpack.c.l.b16 %v363
      %v403 = vunpack.c.l.b16 %v364
      %v404 = vunpack.c.l.b16 %v365
      %v405 = vunpack.c.l.b16 %v366
      %v406 = vunpack.c.l.b16 %v367
      %v407 = vunpack.c.l.b16 %v368
      %v408 = vunpack.c.l.b16 %v369
      %v409 = vpack.c.b16 %v394, %v393
      %v410 = vpack.c.b16 %v396, %v395
      %v411 = vpack.c.b16 %v398, %v397
      %v412 = vpack.c.b16 %v400, %v399
      %v413 = vpack.c.b16 %v402, %v401
      %v414 = vpack.c.b16 %v404, %v403
      %v415 = vpack.c.b16 %v406, %v405
      %v416 = vpack.c.b16 %v408, %v407
      %425 = vmatprep.subr.bf16.mxu0 0
      %426 = vmatpush1.bf16.msra.mxu0 %v416
      %427 = vmatprep.subr.bf16.mxu0 0
      %428 = vmatpush1.bf16.msra.mxu0 %v415
      %429 = vmatprep.subr.bf16.mxu0 0
      %430 = vmatpush1.bf16.msra.mxu0 %v414
      %431 = vmatprep.subr.bf16.mxu0 0
      %432 = vmatpush1.bf16.msra.mxu0 %v413
      %433 = vmatprep.subr.bf16.mxu0 0
      %434 = vmatpush1.bf16.msra.mxu0 %v412
      %435 = vmatprep.subr.bf16.mxu0 0
      %436 = vmatpush1.bf16.msra.mxu0 %v411
      %437 = vmatprep.subr.bf16.mxu0 0
      %438 = vmatpush1.bf16.msra.mxu0 %v410
      %439 = vmatprep.subr.bf16.mxu0 0
      %440 = vmatpush1.bf16.msra.mxu0 %v409
      %441 = vmatprep.subr.bf16.mxu0 0
      %442 = vmatpush2.bf16.msra.mxu0 0
      %443 = vmatprep.subr.bf16.mxu0 0
      %444 = vmatpush2.bf16.msra.mxu0 0
      %445 = vmatprep.subr.bf16.mxu0 0
      %446 = vmatpush2.bf16.msra.mxu0 0
      %447 = vmatprep.subr.bf16.mxu0 0
      %448 = vmatpush2.bf16.msra.mxu0 0
      %449 = vmatprep.subr.bf16.mxu0 0
      %450 = vmatpush2.bf16.msra.mxu0 0
      %451 = vmatprep.subr.bf16.mxu0 0
      %452 = vmatpush2.bf16.msra.mxu0 0
      %453 = vmatprep.subr.bf16.mxu0 0
      %454 = vmatpush2.bf16.msra.mxu0 0
      %455 = vmatprep.subr.bf16.mxu0 0
      %456 = vmatpush2.bf16.msra.mxu0 0
      %457 = vmatprep.mubr.bf16.mxu0 0
      %458 = vmatmul.mubr.bf16.gmra.mxu0 %v353
      %v459 = vpop.f32.mrf.mxu0
      %v460 = vadd.f32 %v375, %v459
      %v461 = vpop.f32.mrf.mxu0
      %v462 = vpop.f32.mrf.mxu0
      %v463 = vpop.f32.mrf.mxu0
      %464 = vdwg.mxu0
      %v465 = vadd.f32 %v275, %v460
      %v466 = vld [vmem:[%s1] sm:$0x1]
      %v467 = vld [vmem:[%s2] sm:$0x1]
      %v468 = vsel %vm300, %v465, 0.0
      %469 = vadd.xlane.f32.xlu0 %v468
      %v470 = vpop.xlane.xlu0 %469
      %v471 = vrcp.pop 32.0
      %v472 = vmul.f32 %v470, %v471
      %v473 = vsub.f32 %v465, %v472
      %v474 = vmul.f32 %v473, %v473
      %v475 = vsel %vm300, %v474, 0.0
      %476 = vadd.xlane.f32.xlu0 %v475
      %v477 = vpop.xlane.xlu0 %476
      %v478 = vmul.f32 %v477, %v471
      %v479 = vadd.f32 %v478, 1e-12
      %v480 = vrsqrt.pop %v479
      %v481 = vmul.f32 %v473, %v480
      %v483 = vlaneseq
      %v484 = vshrl.u32 %v483, 7
      %v485 = vsub.s32 0, %v484
      %v486 = vrot.slane %v466, %v485
      %v488 = vmul.f32 %v481, %v486
      %v490 = vlaneseq
      %v491 = vshrl.u32 %v490, 7
      %v492 = vsub.s32 0, %v491
      %v493 = vrot.slane %v467, %v492
      %v495 = vadd.f32 %v488, %v493
      %496 = vst.msk [vmem:[%s273] sm:$0xff] %vm300, %v495
      %p497 = scmp.lt.s32.totalorder %s18, 1
      %s498 = scalar_select %p497, %s18, 1
      %s499 = smul.addr %s498, 8
      %s500 = scalar_lea.vmem %s7, %s499
      // Predicated region
      $region49: #{albef_forward.25} parent=47 // pred_check
        %p501 = pneg %p188
      $region50: #{albef_forward.25} parent=47 // pred_check_branch
        %503 = sbr.rel (%p501) target = $region52
      $region51: #{albef_forward.25} parent=47 // pred_region
        _
      $region52: #{albef_forward.25} parent=47 // pred_fallthru
        _
    $region48: #{albef_forward.25} parent=5 // pred_fallthru
      _
    %p504 = scmp.le.s32.totalorder 2, %s13
    // Predicated region
    $region53: #{albef_forward.25} parent=5 // pred_check
      %p505 = pneg %p504
    $region54: #{albef_forward.25} parent=5 // pred_check_branch
      %507 = sbr.rel (%p505) target = $region56
    $region55: #{albef_forward.25} parent=5 // pred_region
      %s508 = ssub.s32 %s13, 2
      // Predicated region
      $region57: #{albef_forward.25} parent=55 // pred_check
        %p509 = pneg %p194
      $region58: #{albef_forward.25} parent=55 // pred_check_branch
        %511 = sbr.rel (%p509) target = $region60
      $region59: #{albef_forward.25} parent=55 // pred_region
        %p512 = scmp.lt.s32.totalorder %s19, 1
        %s513 = scalar_select %p512, %s19, 1
        %s514 = smul.addr %s513, 8
        %s515 = scalar_lea.vmem %s7, %s514
      $region60: #{albef_forward.25} parent=55 // pred_fallthru
        _
    $region56: #{albef_forward.25} parent=5 // pred_fallthru
      _
  $region6: #{albef_forward.25} parent=0 // loop_footer
    %s17 = sadd.s32 1, %s13
  $region7: #{albef_forward.25} parent=0 // loop_footer_branch
    %12 = sbr.rel target = $region3
  $region8: #{albef_forward.25} parent=0 // loop_exit
    _

// kernel: albef_forward.24
$region0: #{albef_forward.24}
  #allocation0 [shape = 'u32[]', space=smem, size = 0x4, offset = 0x4, fixed_abs, tag = 'smem constant byte address 0x4 - core index']
  #allocation1 [shape = 'u32[144,128]{1,0:T(1,128)}', space=vmem, size = 0x12000, scoped, tag = 'internal scratch']
  %s0 = inlined_call_operand.vmem [shape: f32[2,8,32], index: 0, kind: input, shape index: {}]
  %s1 = inlined_call_operand.vmem [shape: f32[1,32], index: 1, kind: input, shape index: {}]
  %s2 = inlined_call_operand.vmem [shape: f32[1,32], index: 2, kind: input, shape index: {}]
  %s3 = inlined_call_operand.vmem [shape: bf16[32,96], index: 3, kind: input, shape index: {}]
  %s4 = inlined_call_operand.vmem [shape: f32[1,96], index: 4, kind: input, shape index: {}]
  %s5 = inlined_call_operand.vmem [shape: bf16[32,32], index: 5, kind: input, shape index: {}]
  %s6 = inlined_call_operand.vmem [shape: f32[1,32], index: 6, kind: input, shape index: {}]
  %s7 = inlined_call_operand.vmem [shape: f32[2,1,8], index: 7, kind: input, shape index: {}]
  %s8 = inlined_call_operand.vmem [shape: f32[2,8,32], index: 8, kind: output, shape index: {}]
  %s9 = sld [smem:[#allocation0]]
  $region65: #{albef_forward.24} parent=0
    _
  %s11 = ssub.s32 1, %s9
  %s12 = scalar_select 0, %s11, %s9
  loop: start=0, step=1, limit=4
  $region2: #{albef_forward.24} parent=0 // loop_pre_header
    _
  $region3: #{albef_forward.24} parent=0 // loop_header
    %s14 = sphi 0, %s18
    %p15 = scmp.ge.s32.totalorder %s14, 4
    %s24 = sphi 0, %s26
    %s27 = sphi 0, %s24
    %s28 = sphi 0, %s27
    %s44 = sphi 0, %s28
    %s48 = sphi 0, %s48
    %s50 = sphi 0, %s48
    %s51 = sphi 0, %s50
    %s65 = sphi 0, %s51
    %s69 = sphi 0, %s69
    %s71 = sphi 0, %s69
    %s72 = sphi 0, %s71
    %s86 = sphi 0, %s72
    %s90 = sphi 0, %s90
    %s92 = sphi 0, %s90
    %s93 = sphi 0, %s92
    %s107 = sphi 0, %s93
    %s111 = sphi 0, %s111
    %s113 = sphi 0, %s111
    %s114 = sphi 0, %s113
    %s128 = sphi 0, %s114
    %s132 = sphi 0, %s132
    %s134 = sphi 0, %s132
    %s135 = sphi 0, %s134
    %s149 = sphi 0, %s135
    %s153 = sphi 0, %s153
    %s155 = sphi 0, %s153
    %s156 = sphi 0, %s155
    %s170 = sphi 0, %s156
    %s176 = sphi 0, %s178
    %s179 = sphi 0, %s176
    %s180 = sphi 0, %s179
    %s196 = sphi 0, %s180
    %s202 = sphi 0, %s204
    %s205 = sphi 0, %s202
    %s206 = sphi 0, %s205
    %s222 = sphi 0, %s206
  $region4: #{albef_forward.24} parent=0 // loop_header_branch
    %17 = sbr.rel (%p15) target = $region8
  $region5: #{albef_forward.24} parent=0 // loop_body
    %s19 = ssub.s32 %s14, 1
    %s20 = ssub.s32 %s14, 2
    %s21 = sadd.s32 %s14, 1
    %s22 = ssub.s32 %s14, %s21
    %p23 = scmp.eq.s32.totalorder %s22, 0
    %s25 = sadd.s32 %s24, 1
    %s26 = scalar_select %p23, %s24, %s25
    %p29 = pneg %p23
    %p30 = scmp.eq.s32.totalorder %s14, 1
    %p31 = por %p29, %p30
    %p32 = scmp.ne.s32.totalorder %s24, %s27
    %p33 = scmp.eq.s32.totalorder %s14, 0
    %p34 = por %p32, %p33
    %p35 = scmp.ne.s32.totalorder %s24, %s27
    %p36 = scmp.eq.s32.totalorder %s19, 1
    %p37 = por %p35, %p36
    %p38 = scmp.ne.s32.totalorder %s27, %s28
    %p39 = scmp.eq.s32.totalorder %s19, 0
    %p40 = por %p38, %p39
    %p41 = scmp.ne.s32.totalorder %s27, %s28
    %p42 = scmp.eq.s32.totalorder %s20, 1
    %p43 = por %p41, %p42
    %p45 = scmp.ne.s32.totalorder %s28, %s44
    %p46 = scmp.eq.s32.totalorder %s20, 0
    %p47 = por %p45, %p46
    %s49 = sadd.s32 %s48, 1
    %p52 = scmp.eq.s32.totalorder %s14, 1
    %p53 = scmp.ne.s32.totalorder %s48, %s50
    %p54 = scmp.eq.s32.totalorder %s14, 0
    %p55 = por %p53, %p54
    %p56 = scmp.ne.s32.totalorder %s48, %s50
    %p57 = scmp.eq.s32.totalorder %s19, 1
    %p58 = por %p56, %p57
    %p59 = scmp.ne.s32.totalorder %s50, %s51
    %p60 = scmp.eq.s32.totalorder %s19, 0
    %p61 = por %p59, %p60
    %p62 = scmp.ne.s32.totalorder %s50, %s51
    %p63 = scmp.eq.s32.totalorder %s20, 1
    %p64 = por %p62, %p63
    %p66 = scmp.ne.s32.totalorder %s51, %s65
    %p67 = scmp.eq.s32.totalorder %s20, 0
    %p68 = por %p66, %p67
    %s70 = sadd.s32 %s69, 1
    %p73 = scmp.eq.s32.totalorder %s14, 1
    %p74 = scmp.ne.s32.totalorder %s69, %s71
    %p75 = scmp.eq.s32.totalorder %s14, 0
    %p76 = por %p74, %p75
    %p77 = scmp.ne.s32.totalorder %s69, %s71
    %p78 = scmp.eq.s32.totalorder %s19, 1
    %p79 = por %p77, %p78
    %p80 = scmp.ne.s32.totalorder %s71, %s72
    %p81 = scmp.eq.s32.totalorder %s19, 0
    %p82 = por %p80, %p81
    %p83 = scmp.ne.s32.totalorder %s71, %s72
    %p84 = scmp.eq.s32.totalorder %s20, 1
    %p85 = por %p83, %p84
    %p87 = scmp.ne.s32.totalorder %s72, %s86
    %p88 = scmp.eq.s32.totalorder %s20, 0
    %p89 = por %p87, %p88
    %s91 = sadd.s32 %s90, 1
    %p94 = scmp.eq.s32.totalorder %s14, 1
    %p95 = scmp.ne.s32.totalorder %s90, %s92
    %p96 = scmp.eq.s32.totalorder %s14, 0
    %p97 = por %p95, %p96
    %p98 = scmp.ne.s32.totalorder %s90, %s92
    %p99 = scmp.eq.s32.totalorder %s19, 1
    %p100 = por %p98, %p99
    %p101 = scmp.ne.s32.totalorder %s92, %s93
    %p102 = scmp.eq.s32.totalorder %s19, 0
    %p103 = por %p101, %p102
    %p104 = scmp.ne.s32.totalorder %s92, %s93
    %p105 = scmp.eq.s32.totalorder %s20, 1
    %p106 = por %p104, %p105
    %p108 = scmp.ne.s32.totalorder %s93, %s107
    %p109 = scmp.eq.s32.totalorder %s20, 0
    %p110 = por %p108, %p109
    %s112 = sadd.s32 %s111, 1
    %p115 = scmp.eq.s32.totalorder %s14, 1
    %p116 = scmp.ne.s32.totalorder %s111, %s113
    %p117 = scmp.eq.s32.totalorder %s14, 0
    %p118 = por %p116, %p117
    %p119 = scmp.ne.s32.totalorder %s111, %s113
    %p120 = scmp.eq.s32.totalorder %s19, 1
    %p121 = por %p119, %p120
    %p122 = scmp.ne.s32.totalorder %s113, %s114
    %p123 = scmp.eq.s32.totalorder %s19, 0
    %p124 = por %p122, %p123
    %p125 = scmp.ne.s32.totalorder %s113, %s114
    %p126 = scmp.eq.s32.totalorder %s20, 1
    %p127 = por %p125, %p126
    %p129 = scmp.ne.s32.totalorder %s114, %s128
    %p130 = scmp.eq.s32.totalorder %s20, 0
    %p131 = por %p129, %p130
    %s133 = sadd.s32 %s132, 1
    %p136 = scmp.eq.s32.totalorder %s14, 1
    %p137 = scmp.ne.s32.totalorder %s132, %s134
    %p138 = scmp.eq.s32.totalorder %s14, 0
    %p139 = por %p137, %p138
    %p140 = scmp.ne.s32.totalorder %s132, %s134
    %p141 = scmp.eq.s32.totalorder %s19, 1
    %p142 = por %p140, %p141
    %p143 = scmp.ne.s32.totalorder %s134, %s135
    %p144 = scmp.eq.s32.totalorder %s19, 0
    %p145 = por %p143, %p144
    %p146 = scmp.ne.s32.totalorder %s134, %s135
    %p147 = scmp.eq.s32.totalorder %s20, 1
    %p148 = por %p146, %p147
    %p150 = scmp.ne.s32.totalorder %s135, %s149
    %p151 = scmp.eq.s32.totalorder %s20, 0
    %p152 = por %p150, %p151
    %s154 = sadd.s32 %s153, 1
    %p157 = scmp.eq.s32.totalorder %s14, 1
    %p158 = scmp.ne.s32.totalorder %s153, %s155
    %p159 = scmp.eq.s32.totalorder %s14, 0
    %p160 = por %p158, %p159
    %p161 = scmp.ne.s32.totalorder %s153, %s155
    %p162 = scmp.eq.s32.totalorder %s19, 1
    %p163 = por %p161, %p162
    %p164 = scmp.ne.s32.totalorder %s155, %s156
    %p165 = scmp.eq.s32.totalorder %s19, 0
    %p166 = por %p164, %p165
    %p167 = scmp.ne.s32.totalorder %s155, %s156
    %p168 = scmp.eq.s32.totalorder %s20, 1
    %p169 = por %p167, %p168
    %p171 = scmp.ne.s32.totalorder %s156, %s170
    %p172 = scmp.eq.s32.totalorder %s20, 0
    %p173 = por %p171, %p172
    %s174 = ssub.s32 %s14, %s21
    %p175 = scmp.eq.s32.totalorder %s174, 0
    %s177 = sadd.s32 %s176, 1
    %s178 = scalar_select %p175, %s176, %s177
    %p181 = pneg %p175
    %p182 = scmp.eq.s32.totalorder %s14, 1
    %p183 = por %p181, %p182
    %p184 = scmp.ne.s32.totalorder %s176, %s179
    %p185 = scmp.eq.s32.totalorder %s14, 0
    %p186 = por %p184, %p185
    %p187 = scmp.ne.s32.totalorder %s176, %s179
    %p188 = scmp.eq.s32.totalorder %s19, 1
    %p189 = por %p187, %p188
    %p190 = scmp.ne.s32.totalorder %s179, %s180
    %p191 = scmp.eq.s32.totalorder %s19, 0
    %p192 = por %p190, %p191
    %p193 = scmp.ne.s32.totalorder %s179, %s180
    %p194 = scmp.eq.s32.totalorder %s20, 1
    %p195 = por %p193, %p194
    %p197 = scmp.ne.s32.totalorder %s180, %s196
    %p198 = scmp.eq.s32.totalorder %s20, 0
    %p199 = por %p197, %p198
    %s200 = ssub.s32 %s14, %s21
    %p201 = scmp.eq.s32.totalorder %s200, 0
    %s203 = sadd.s32 %s202, 1
    %s204 = scalar_select %p201, %s202, %s203
    %p207 = pneg %p201
    %p208 = scmp.eq.s32.totalorder %s14, 1
    %p209 = por %p207, %p208
    %p210 = scmp.ne.s32.totalorder %s202, %s205
    %p211 = scmp.eq.s32.totalorder %s14, 0
    %p212 = por %p210, %p211
    %p213 = scmp.ne.s32.totalorder %s202, %s205
    %p214 = scmp.eq.s32.totalorder %s19, 1
    %p215 = por %p213, %p214
    %p216 = scmp.ne.s32.totalorder %s205, %s206
    %p217 = scmp.eq.s32.totalorder %s19, 0
    %p218 = por %p216, %p217
    %p219 = scmp.ne.s32.totalorder %s205, %s206
    %p220 = scmp.eq.s32.totalorder %s20, 1
    %p221 = por %p219, %p220
    %p223 = scmp.ne.s32.totalorder %s206, %s222
    %p224 = scmp.eq.s32.totalorder %s20, 0
    %p225 = por %p223, %p224
    %p226 = scmp.le.s32.totalorder 1, %s14
    %p227 = scmp.lt.s32.totalorder %s14, 3
    %p228 = pnand %p226, %p227
    %p229 = pneg %p228
    // Predicated region
    $region9: #{albef_forward.24} parent=5 // pred_check
      _
    $region10: #{albef_forward.24} parent=5 // pred_check_branch
      %231 = sbr.rel (%p228) target = $region12
    $region11: #{albef_forward.24} parent=5 // pred_region
      %s232 = ssub.s32 %s14, 1
      // Predicated region
      $region13: #{albef_forward.24} parent=11 // pred_check
        %p233 = pneg %p61
      $region14: #{albef_forward.24} parent=11 // pred_check_branch
        %235 = sbr.rel (%p233) target = $region16
      $region15: #{albef_forward.24} parent=11 // pred_region
        _
      $region16: #{albef_forward.24} parent=11 // pred_fallthru
        _
      // Predicated region
      $region17: #{albef_forward.24} parent=11 // pred_check
        %p236 = pneg %p82
      $region18: #{albef_forward.24} parent=11 // pred_check_branch
        %238 = sbr.rel (%p236) target = $region20
      $region19: #{albef_forward.24} parent=11 // pred_region
        _
      $region20: #{albef_forward.24} parent=11 // pred_fallthru
        _
      // Predicated region
      $region21: #{albef_forward.24} parent=11 // pred_check
        %p239 = pneg %p103
      $region22: #{albef_forward.24} parent=11 // pred_check_branch
        %241 = sbr.rel (%p239) target = $region24
      $region23: #{albef_forward.24} parent=11 // pred_region
        _
      $region24: #{albef_forward.24} parent=11 // pred_fallthru
        _
      // Predicated region
      $region25: #{albef_forward.24} parent=11 // pred_check
        %p242 = pneg %p124
      $region26: #{albef_forward.24} parent=11 // pred_check_branch
        %244 = sbr.rel (%p242) target = $region28
      $region27: #{albef_forward.24} parent=11 // pred_region
        _
      $region28: #{albef_forward.24} parent=11 // pred_fallthru
        _
      // Predicated region
      $region29: #{albef_forward.24} parent=11 // pred_check
        %p245 = pneg %p145
      $region30: #{albef_forward.24} parent=11 // pred_check_branch
        %247 = sbr.rel (%p245) target = $region32
      $region31: #{albef_forward.24} parent=11 // pred_region
        _
      $region32: #{albef_forward.24} parent=11 // pred_fallthru
        _
      // Predicated region
      $region33: #{albef_forward.24} parent=11 // pred_check
        %p248 = pneg %p166
      $region34: #{albef_forward.24} parent=11 // pred_check_branch
        %250 = sbr.rel (%p248) target = $region36
      $region35: #{albef_forward.24} parent=11 // pred_region
        _
      $region36: #{albef_forward.24} parent=11 // pred_fallthru
        _
    $region12: #{albef_forward.24} parent=5 // pred_fallthru
      _
    %p251 = scmp.lt.s32.totalorder %s14, 2
    // Predicated region
    $region37: #{albef_forward.24} parent=5 // pred_check
      %p252 = pneg %p251
    $region38: #{albef_forward.24} parent=5 // pred_check_branch
      %254 = sbr.rel (%p252) target = $region40
    $region39: #{albef_forward.24} parent=5 // pred_region
      // Predicated region
      $region41: #{albef_forward.24} parent=39 // pred_check
        %p255 = pneg %p34
      $region42: #{albef_forward.24} parent=39 // pred_check_branch
        %257 = sbr.rel (%p255) target = $region44
      $region43: #{albef_forward.24} parent=39 // pred_region
        %p258 = scmp.lt.s32.totalorder %s14, 1
        %s259 = scalar_select %p258, %s14, 1
        %s260 = smul.addr %s259, 8
        %s261 = scalar_lea.vmem %s0, %s260
      $region44: #{albef_forward.24} parent=39 // pred_fallthru
        _
      // Predicated region
      $region45: #{albef_forward.24} parent=39 // pred_check
        %p262 = pneg %p186
      $region46: #{albef_forward.24} parent=39 // pred_check_branch
        %264 = sbr.rel (%p262) target = $region48
      $region47: #{albef_forward.24} parent=39 // pred_region
        %p265 = scmp.lt.s32.totalorder %s14, 1
        %s266 = scalar_select %p265, %s14, 1
        %s267 = scalar_lea.vmem %s7, %s266
      $region48: #{albef_forward.24} parent=39 // pred_fallthru
        _
    $region40: #{albef_forward.24} parent=5 // pred_fallthru
      _
    %p268 = scmp.le.s32.totalorder 1, %s14
    %p269 = scmp.lt.s32.totalorder %s14, 3
    %p270 = pnand %p268, %p269
    %p271 = pneg %p270
    // Predicated region
    $region49: #{albef_forward.24} parent=5 // pred_check
      _
    $region50: #{albef_forward.24} parent=5 // pred_check_branch
      %273 = sbr.rel (%p270) target = $region52
    $region51: #{albef_forward.24} parent=5 // pred_region
      %s274 = ssub.s32 %s14, 1
      %p275 = scmp.lt.s32.totalorder %s19, 1
      %s276 = scalar_select %p275, %s19, 1
      %s277 = smul.addr %s276, 8
      %s278 = scalar_lea.vmem %s0, %s277
      %p279 = pneg %p40
      %p280 = pneg %p37
      %p281 = pneg %p61
      %p282 = pneg %p58
      %p283 = pneg %p82
      %p284 = pneg %p79
      %p285 = pneg %p103
      %p286 = pneg %p100
      %p287 = pneg %p124
      %p288 = pneg %p121
      %p289 = pneg %p145
      %p290 = pneg %p142
      %p291 = pneg %p166
      %p292 = pneg %p163
      %p293 = scmp.lt.s32.totalorder %s19, 1
      %s294 = scalar_select %p293, %s19, 1
      %s295 = scalar_lea.vmem %s7, %s294
      %p296 = pneg %p192
      %p297 = pneg %p189
      %p298 = pneg %p218
      %p299 = pneg %p215
      %p300 = scmp.lt.s32.totalorder %s19, 1
      %s301 = scalar_select %p300, %s19, 1
      %s302 = smul.addr %s301, 8
      %s303 = scalar_lea.vmem %s8, %s302
      %p304 = scmp.lt.s32.totalorder %s19, 1
      %s305 = scalar_select %p304, %s19, 1
      %s306 = smul.addr %s305, 8
      %s307 = scalar_lea.vmem %s0, %s306
      %p308 = scmp.lt.s32.totalorder %s19, 1
      %s309 = scalar_select %p308, %s19, 1
      %s310 = scalar_lea.vmem %s7, %s309
      %p311 = scmp.lt.s32.totalorder %s19, 1
      %s312 = scalar_select %p311, %s19, 1
      %s313 = smul.addr %s312, 8
      %s314 = scalar_lea.vmem %s8, %s313
      %v316 = vld [vmem:[%s307] sm:$0xff]
      %v317 = vpack.c.bf16 %v316, %v316
      %v318 = vld [vmem:[%s3] sm:$0xf]
      %v319 = vld [vmem:[%s3 + $0x4] sm:$0xf]
      %v320 = vld [vmem:[%s3 + $0x8] sm:$0xf]
      %v321 = vld [vmem:[%s3 + $0xc] sm:$0xf]
      %v322 = vld [vmem:[%s4] sm:$0x1]
      %v324 = vlaneseq
      %v325 = vshrl.u32 %v324, 7
      %v326 = vsub.s32 0, %v325
      %v327 = vrot.slane %v322, %v326
      %v333 = vunpack.c.l.b16 %v318
      %v334 = vunpack.c.l.b16 %v319
      %v335 = vunpack.c.l.b16 %v320
      %v336 = vunpack.c.l.b16 %v321
      %v337 = vpack.c.b16 %v334, %v333
      %v338 = vpack.c.b16 %v336, %v335
      %vm341 = vcmask 261120
      %v343 = vsel %vm341, %v317, 0
      %345 = vmatprep.subr.bf16.mxu0 0
      %346 = vmatpush1.bf16.msra.mxu0 0
      %347 = vmatprep.subr.bf16.mxu0 0
      %348 = vmatpush1.bf16.msra.mxu0 0
      %349 = vmatprep.subr.bf16.mxu0 0
      %350 = vmatpush1.bf16.msra.mxu0 0
      %351 = vmatprep.subr.bf16.mxu0 0
      %352 = vmatpush1.bf16.msra.mxu0 0
      %353 = vmatprep.subr.bf16.mxu0 0
      %354 = vmatpush1.bf16.msra.mxu0 0
      %355 = vmatprep.subr.bf16.mxu0 0
      %356 = vmatpush1.bf16.msra.mxu0 0
      %357 = vmatprep.subr.bf16.mxu0 0
      %358 = vmatpush1.bf16.msra.mxu0 %v338
      %359 = vmatprep.subr.bf16.mxu0 0
      %360 = vmatpush1.bf16.msra.mxu0 %v337
      %361 = vmatprep.subr.bf16.mxu0 0
      %362 = vmatpush2.bf16.msra.mxu0 0
      %363 = vmatprep.subr.bf16.mxu0 0
      %364 = vmatpush2.bf16.msra.mxu0 0
      %365 = vmatprep.subr.bf16.mxu0 0
      %366 = vmatpush2.bf16.msra.mxu0 0
      %367 = vmatprep.subr.bf16.mxu0 0
      %368 = vmatpush2.bf16.msra.mxu0 0
      %369 = vmatprep.subr.bf16.mxu0 0
      %370 = vmatpush2.bf16.msra.mxu0 0
      %371 = vmatprep.subr.bf16.mxu0 0
      %372 = vmatpush2.bf16.msra.mxu0 0
      %373 = vmatprep.subr.bf16.mxu0 0
      %374 = vmatpush2.bf16.msra.mxu0 0
      %375 = vmatprep.subr.bf16.mxu0 0
      %376 = vmatpush2.bf16.msra.mxu0 0
      %377 = vmatprep.mubr.bf16.mxu0 0
      %378 = vmatmul.mubr.bf16.gmra.mxu0 %v343
      %v379 = vpop.f32.mrf.mxu0
      %v380 = vadd.f32 %v327, %v379
      %v381 = vpop.f32.mrf.mxu0
      %v382 = vpop.f32.mrf.mxu0
      %v383 = vpop.f32.mrf.mxu0
      %384 = vdwg.mxu0
      %v385 = vld [vmem:[%s310] sm:$0x1]
      %v386 = vpack.c.bf16 %v380, %v380
      %388 = vrot.lane.b32.xlu0 %v386, 96
      %v389 = vpop.permute.xlu0 %388
      %vm390 = vcmask 64512
      %v392 = vsel %vm390, %v386, 0
      %v395 = vsel %vm390, %v389, 0
      %397 = vmatprep.subr.bf16.mxu0 0
      %398 = vmatpush1.bf16.xpose.msra.mxu0 0
      %399 = vmatprep.subr.bf16.mxu0 0
      %400 = vmatpush1.bf16.xpose.msra.mxu0 0
      %401 = vmatprep.subr.bf16.mxu0 0
      %402 = vmatpush1.bf16.xpose.msra.mxu0 0
      %403 = vmatprep.subr.bf16.mxu0 0
      %404 = vmatpush1.bf16.xpose.msra.mxu0 0
      %405 = vmatprep.subr.bf16.mxu0 0
      %406 = vmatpush1.bf16.xpose.msra.mxu0 0
      %407 = vmatprep.subr.bf16.mxu0 0
      %408 = vmatpush1.bf16.xpose.msra.mxu0 0
      %409 = vmatprep.subr.bf16.mxu0 0
      %410 = vmatpush1.bf16.xpose.msra.mxu0 0
      %411 = vmatprep.subr.bf16.mxu0 0
      %412 = vmatpush1.bf16.xpose.msra.mxu0 %v395
      %413 = vmatprep.subr.bf16.mxu0 0
      %414 = vmatpush2.bf16.xpose.msra.mxu0 0
      %415 = vmatprep.subr.bf16.mxu0 0
      %416 = vmatpush2.bf16.xpose.msra.mxu0 0
      %417 = vmatprep.subr.bf16.mxu0 0
      %418 = vmatpush2.bf16.xpose.msra.mxu0 0
      %419 = vmatprep.subr.bf16.mxu0 0
      %420 = vmatpush2.bf16.xpose.msra.mxu0 0
      %421 = vmatprep.subr.bf16.mxu0 0
      %422 = vmatpush2.bf16.xpose.msra.mxu0 0
      %423 = vmatprep.subr.bf16.mxu0 0
      %424 = vmatpush2.bf16.xpose.msra.mxu0 0
      %425 = vmatprep.subr.bf16.mxu0 0
      %426 = vmatpush2.bf16.xpose.msra.mxu0 0
      %427 = vmatprep.subr.bf16.mxu0 0
      %428 = vmatpush2.bf16.xpose.msra.mxu0 0
      %429 = vmatprep.mubr.bf16.mxu0 0
      %430 = vmatmul.mubr.bf16.gmra.mxu0 %v392
      %v431 = vpop.f32.mrf.mxu0
      %v432 = vadd.f32 0.0, %v431
      %v433 = vpop.f32.mrf.mxu0
      %v434 = vpop.f32.mrf.mxu0
      %v435 = vpop.f32.mrf.mxu0
      %436 = vdwg.mxu0
      %v437 = vmul.f32 %v432, 0.35355338
      %v439 = vlaneseq
      %v440 = vshrl.u32 %v439, 7
      %v441 = vsub.s32 0, %v440
      %v442 = vrot.slane %v385, %v441
      %v444 = vadd.f32 %v437, %v442
      %v445 = vsel %vm390, %v444, -inf
      %446 = vmax.xlane.f32.xlu0 %v445
      %v447 = vpop.xlane.xlu0 %446
      %v448 = vsub.f32 %v444, %v447
      %v449 = vmul.f32 %v448, 1.442695
      %v450 = vpow.pop %v449
      %v451 = vsel %vm390, %v450, 0.0
      %452 = vadd.xlane.f32.xlu0 %v451
      %v453 = vpop.xlane.xlu0 %452
      %v454 = vrcp.pop %v453
      %v455 = vmul.f32 %v450, %v454
      %v456 = vpack.c.bf16 %v455, %v455
      %457 = vrot.lane.b32.xlu0 %v386, 64
      %v458 = vpop.permute.xlu0 %457
      %v460 = vsel %vm390, %v456, 0
      %vm462 = vcmask 1043456
      %v464 = vsel %vm462, %v458, 0
      %466 = vmatprep.subr.bf16.mxu0 0
      %467 = vmatpush1.bf16.msra.mxu0 0
      %468 = vmatprep.subr.bf16.mxu0 0
      %469 = vmatpush1.bf16.msra.mxu0 0
      %470 = vmatprep.subr.bf16.mxu0 0
      %471 = vmatpush1.bf16.msra.mxu0 0
      %472 = vmatprep.subr.bf16.mxu0 0
      %473 = vmatpush1.bf16.msra.mxu0 0
      %474 = vmatprep.subr.bf16.mxu0 0
      %475 = vmatpush1.bf16.msra.mxu0 0
      %476 = vmatprep.subr.bf16.mxu0 0
      %477 = vmatpush1.bf16.msra.mxu0 0
      %478 = vmatprep.subr.bf16.mxu0 0
      %479 = vmatpush1.bf16.msra.mxu0 0
      %480 = vmatprep.subr.bf16.mxu0 0
      %481 = vmatpush1.bf16.msra.mxu0 %v464
      %482 = vmatprep.subr.bf16.mxu0 0
      %483 = vmatpush2.bf16.msra.mxu0 0
      %484 = vmatprep.subr.bf16.mxu0 0
      %485 = vmatpush2.bf16.msra.mxu0 0
      %486 = vmatprep.subr.bf16.mxu0 0
      %487 = vmatpush2.bf16.msra.mxu0 0
      %488 = vmatprep.subr.bf16.mxu0 0
      %489 = vmatpush2.bf16.msra.mxu0 0
      %490 = vmatprep.subr.bf16.mxu0 0
      %491 = vmatpush2.bf16.msra.mxu0 0
      %492 = vmatprep.subr.bf16.mxu0 0
      %493 = vmatpush2.bf16.msra.mxu0 0
      %494 = vmatprep.subr.bf16.mxu0 0
      %495 = vmatpush2.bf16.msra.mxu0 0
      %496 = vmatprep.subr.bf16.mxu0 0
      %497 = vmatpush2.bf16.msra.mxu0 0
      %498 = vmatprep.mubr.bf16.mxu0 0
      %499 = vmatmul.mubr.bf16.gmra.mxu0 %v460
      %v500 = vpop.f32.mrf.mxu0
      %v501 = vadd.f32 0.0, %v500
      %v502 = vpop.f32.mrf.mxu0
      %v503 = vpop.f32.mrf.mxu0
      %v504 = vpop.f32.mrf.mxu0
      %505 = vdwg.mxu0
      %506 = vrot.lane.b32.xlu0 %v386, 120
      %v507 = vpop.permute.xlu0 %506
      %508 = vrot.lane.b32.xlu0 %v386, 88
      %v509 = vpop.permute.xlu0 %508
      %v511 = vsel %vm390, %v507, 0
      %v514 = vsel %vm390, %v509, 0
      %516 = vmatprep.subr.bf16.mxu0 0
      %517 = vmatpush1.bf16.xpose.msra.mxu0 0
      %518 = vmatprep.subr.bf16.mxu0 0
      %519 = vmatpush1.bf16.xpose.msra.mxu0 0
      %520 = vmatprep.subr.bf16.mxu0 0
      %521 = vmatpush1.bf16.xpose.msra.mxu0 0
      %522 = vmatprep.subr.bf16.mxu0 0
      %523 = vmatpush1.bf16.xpose.msra.mxu0 0
      %524 = vmatprep.subr.bf16.mxu0 0
      %525 = vmatpush1.bf16.xpose.msra.mxu0 0
      %526 = vmatprep.subr.bf16.mxu0 0
      %527 = vmatpush1.bf16.xpose.msra.mxu0 0
      %528 = vmatprep.subr.bf16.mxu0 0
      %529 = vmatpush1.bf16.xpose.msra.mxu0 0
      %530 = vmatprep.subr.bf16.mxu0 0
      %531 = vmatpush1.bf16.xpose.msra.mxu0 %v514
      %532 = vmatprep.subr.bf16.mxu0 0
      %533 = vmatpush2.bf16.xpose.msra.mxu0 0
      %534 = vmatprep.subr.bf16.mxu0 0
      %535 = vmatpush2.bf16.xpose.msra.mxu0 0
      %536 = vmatprep.subr.bf16.mxu0 0
      %537 = vmatpush2.bf16.xpose.msra.mxu0 0
      %538 = vmatprep.subr.bf16.mxu0 0
      %539 = vmatpush2.bf16.xpose.msra.mxu0 0
      %540 = vmatprep.subr.bf16.mxu0 0
      %541 = vmatpush2.bf16.xpose.msra.mxu0 0
      %542 = vmatprep.subr.bf16.mxu0 0
      %543 = vmatpush2.bf16.xpose.msra.mxu0 0
      %544 = vmatprep.subr.bf16.mxu0 0
      %545 = vmatpush2.bf16.xpose.msra.mxu0 0
      %546 = vmatprep.subr.bf16.mxu0 0
      %547 = vmatpush2.bf16.xpose.msra.mxu0 0
      %548 = vmatprep.mubr.bf16.mxu0 0
      %549 = vmatmul.mubr.bf16.gmra.mxu0 %v511
      %v550 = vpop.f32.mrf.mxu0
      %v551 = vadd.f32 0.0, %v550
      %v552 = vpop.f32.mrf.mxu0
      %v553 = vpop.f32.mrf.mxu0
      %v554 = vpop.f32.mrf.mxu0
      %555 = vdwg.mxu0
      %v556 = vmul.f32 %v551, 0.35355338
      %v557 = vadd.f32 %v556, %v442
      %v558 = vsel %vm390, %v557, -inf
      %559 = vmax.xlane.f32.xlu0 %v558
      %v560 = vpop.xlane.xlu0 %559
      %v561 = vsub.f32 %v557, %v560
      %v562 = vmul.f32 %v561, 1.442695
      %v563 = vpow.pop %v562
      %v564 = vsel %vm390, %v563, 0.0
      %565 = vadd.xlane.f32.xlu0 %v564
      %v566 = vpop.xlane.xlu0 %565
      %v567 = vrcp.pop %v566
      %v568 = vmul.f32 %v563, %v567
      %v569 = vpack.c.bf16 %v568, %v568
      %570 = vrot.lane.b32.xlu0 %v386, 56
      %v571 = vpop.permute.xlu0 %570
      %v573 = vsel %vm390, %v569, 0
      %v576 = vsel %vm462, %v571, 0
      %578 = vmatprep.subr.bf16.mxu0 0
      %579 = vmatpush1.bf16.msra.mxu0 0
      %580 = vmatprep.subr.bf16.mxu0 0
      %581 = vmatpush1.bf16.msra.mxu0 0
      %582 = vmatprep.subr.bf16.mxu0 0
      %583 = vmatpush1.bf16.msra.mxu0 0
      %584 = vmatprep.subr.bf16.mxu0 0
      %585 = vmatpush1.bf16.msra.mxu0 0
      %586 = vmatprep.subr.bf16.mxu0 0
      %587 = vmatpush1.bf16.msra.mxu0 0
      %588 = vmatprep.subr.bf16.mxu0 0
      %589 = vmatpush1.bf16.msra.mxu0 0
      %590 = vmatprep.subr.bf16.mxu0 0
      %591 = vmatpush1.bf16.msra.mxu0 0
      %592 = vmatprep.subr.bf16.mxu0 0
      %593 = vmatpush1.bf16.msra.mxu0 %v576
      %594 = vmatprep.subr.bf16.mxu0 0
      %595 = vmatpush2.bf16.msra.mxu0 0
      %596 = vmatprep.subr.bf16.mxu0 0
      %597 = vmatpush2.bf16.msra.mxu0 0
      %598 = vmatprep.subr.bf16.mxu0 0
      %599 = vmatpush2.bf16.msra.mxu0 0
      %600 = vmatprep.subr.bf16.mxu0 0
      %601 = vmatpush2.bf16.msra.mxu0 0
      %602 = vmatprep.subr.bf16.mxu0 0
      %603 = vmatpush2.bf16.msra.mxu0 0
      %604 = vmatprep.subr.bf16.mxu0 0
      %605 = vmatpush2.bf16.msra.mxu0 0
      %606 = vmatprep.subr.bf16.mxu0 0
      %607 = vmatpush2.bf16.msra.mxu0 0
      %608 = vmatprep.subr.bf16.mxu0 0
      %609 = vmatpush2.bf16.msra.mxu0 0
      %610 = vmatprep.mubr.bf16.mxu0 0
      %611 = vmatmul.mubr.bf16.gmra.mxu0 %v573
      %v612 = vpop.f32.mrf.mxu0
      %v613 = vadd.f32 0.0, %v612
      %v614 = vpop.f32.mrf.mxu0
      %v615 = vpop.f32.mrf.mxu0
      %v616 = vpop.f32.mrf.mxu0
      %617 = vdwg.mxu0
      %618 = vrot.lane.b32.xlu0 %v386, 112
      %v619 = vpop.permute.xlu0 %618
      %620 = vrot.lane.b32.xlu0 %v386, 80
      %v621 = vpop.permute.xlu0 %620
      %v623 = vsel %vm390, %v619, 0
      %v626 = vsel %vm390, %v621, 0
      %628 = vmatprep.subr.bf16.mxu0 0
      %629 = vmatpush1.bf16.xpose.msra.mxu0 0
      %630 = vmatprep.subr.bf16.mxu0 0
      %631 = vmatpush1.bf16.xpose.msra.mxu0 0
      %632 = vmatprep.subr.bf16.mxu0 0
      %633 = vmatpush1.bf16.xpose.msra.mxu0 0
      %634 = vmatprep.subr.bf16.mxu0 0
      %635 = vmatpush1.bf16.xpose.msra.mxu0 0
      %636 = vmatprep.subr.bf16.mxu0 0
      %637 = vmatpush1.bf16.xpose.msra.mxu0 0
      %638 = vmatprep.subr.bf16.mxu0 0
      %639 = vmatpush1.bf16.xpose.msra.mxu0 0
      %640 = vmatprep.subr.bf16.mxu0 0
      %641 = vmatpush1.bf16.xpose.msra.mxu0 0
      %642 = vmatprep.subr.bf16.mxu0 0
      %643 = vmatpush1.bf16.xpose.msra.mxu0 %v626
      %644 = vmatprep.subr.bf16.mxu0 0
      %645 = vmatpush2.bf16.xpose.msra.mxu0 0
      %646 = vmatprep.subr.bf16.mxu0 0
      %647 = vmatpush2.bf16.xpose.msra.mxu0 0
      %648 = vmatprep.subr.bf16.mxu0 0
      %649 = vmatpush2.bf16.xpose.msra.mxu0 0
      %650 = vmatprep.subr.bf16.mxu0 0
      %651 = vmatpush2.bf16.xpose.msra.mxu0 0
      %652 = vmatprep.subr.bf16.mxu0 0
      %653 = vmatpush2.bf16.xpose.msra.mxu0 0
      %654 = vmatprep.subr.bf16.mxu0 0
      %655 = vmatpush2.bf16.xpose.msra.mxu0 0
      %656 = vmatprep.subr.bf16.mxu0 0
      %657 = vmatpush2.bf16.xpose.msra.mxu0 0
      %658 = vmatprep.subr.bf16.mxu0 0
      %659 = vmatpush2.bf16.xpose.msra.mxu0 0
      %660 = vmatprep.mubr.bf16.mxu0 0
      %661 = vmatmul.mubr.bf16.gmra.mxu0 %v623
      %v662 = vpop.f32.mrf.mxu0
      %v663 = vadd.f32 0.0, %v662
      %v664 = vpop.f32.mrf.mxu0
      %v665 = vpop.f32.mrf.mxu0
      %v666 = vpop.f32.mrf.mxu0
      %667 = vdwg.mxu0
      %v668 = vmul.f32 %v663, 0.35355338
      %v669 = vadd.f32 %v668, %v442
      %v670 = vsel %vm390, %v669, -inf
      %671 = vmax.xlane.f32.xlu0 %v670
      %v672 = vpop.xlane.xlu0 %671
      %v673 = vsub.f32 %v669, %v672
      %v674 = vmul.f32 %v673, 1.442695
      %v675 = vpow.pop %v674
      %v676 = vsel %vm390, %v675, 0.0
      %677 = vadd.xlane.f32.xlu0 %v676
      %v678 = vpop.xlane.xlu0 %677
      %v679 = vrcp.pop %v678
      %v680 = vmul.f32 %v675, %v679
      %v681 = vpack.c.bf16 %v680, %v680
      %682 = vrot.lane.b32.xlu0 %v386, 48
      %v683 = vpop.permute.xlu0 %682
      %v685 = vsel %vm390, %v681, 0
      %v688 = vsel %vm462, %v683, 0
      %690 = vmatprep.subr.bf16.mxu0 0
      %691 = vmatpush1.bf16.msra.mxu0 0
      %692 = vmatprep.subr.bf16.mxu0 0
      %693 = vmatpush1.bf16.msra.mxu0 0
      %694 = vmatprep.subr.bf16.mxu0 0
      %695 = vmatpush1.bf16.msra.mxu0 0
      %696 = vmatprep.subr.bf16.mxu0 0
      %697 = vmatpush1.bf16.msra.mxu0 0
      %698 = vmatprep.subr.bf16.mxu0 0
      %699 = vmatpush1.bf16.msra.mxu0 0
      %700 = vmatprep.subr.bf16.mxu0 0
      %701 = vmatpush1.bf16.msra.mxu0 0
      %702 = vmatprep.subr.bf16.mxu0 0
      %703 = vmatpush1.bf16.msra.mxu0 0
      %704 = vmatprep.subr.bf16.mxu0 0
      %705 = vmatpush1.bf16.msra.mxu0 %v688
      %706 = vmatprep.subr.bf16.mxu0 0
      %707 = vmatpush2.bf16.msra.mxu0 0
      %708 = vmatprep.subr.bf16.mxu0 0
      %709 = vmatpush2.bf16.msra.mxu0 0
      %710 = vmatprep.subr.bf16.mxu0 0
      %711 = vmatpush2.bf16.msra.mxu0 0
      %712 = vmatprep.subr.bf16.mxu0 0
      %713 = vmatpush2.bf16.msra.mxu0 0
      %714 = vmatprep.subr.bf16.mxu0 0
      %715 = vmatpush2.bf16.msra.mxu0 0
      %716 = vmatprep.subr.bf16.mxu0 0
      %717 = vmatpush2.bf16.msra.mxu0 0
      %718 = vmatprep.subr.bf16.mxu0 0
      %719 = vmatpush2.bf16.msra.mxu0 0
      %720 = vmatprep.subr.bf16.mxu0 0
      %721 = vmatpush2.bf16.msra.mxu0 0
      %722 = vmatprep.mubr.bf16.mxu0 0
      %723 = vmatmul.mubr.bf16.gmra.mxu0 %v685
      %v724 = vpop.f32.mrf.mxu0
      %v725 = vadd.f32 0.0, %v724
      %v726 = vpop.f32.mrf.mxu0
      %v727 = vpop.f32.mrf.mxu0
      %v728 = vpop.f32.mrf.mxu0
      %729 = vdwg.mxu0
      %730 = vrot.lane.b32.xlu0 %v386, 104
      %v731 = vpop.permute.xlu0 %730
      %732 = vrot.lane.b32.xlu0 %v386, 72
      %v733 = vpop.permute.xlu0 %732
      %v735 = vsel %vm390, %v731, 0
      %v738 = vsel %vm390, %v733, 0
      %740 = vmatprep.subr.bf16.mxu0 0
      %741 = vmatpush1.bf16.xpose.msra.mxu0 0
      %742 = vmatprep.subr.bf16.mxu0 0
      %743 = vmatpush1.bf16.xpose.msra.mxu0 0
      %744 = vmatprep.subr.bf16.mxu0 0
      %745 = vmatpush1.bf16.xpose.msra.mxu0 0
      %746 = vmatprep.subr.bf16.mxu0 0
      %747 = vmatpush1.bf16.xpose.msra.mxu0 0
      %748 = vmatprep.subr.bf16.mxu0 0
      %749 = vmatpush1.bf16.xpose.msra.mxu0 0
      %750 = vmatprep.subr.bf16.mxu0 0
      %751 = vmatpush1.bf16.xpose.msra.mxu0 0
      %752 = vmatprep.subr.bf16.mxu0 0
      %753 = vmatpush1.bf16.xpose.msra.mxu0 0
      %754 = vmatprep.subr.bf16.mxu0 0
      %755 = vmatpush1.bf16.xpose.msra.mxu0 %v738
      %756 = vmatprep.subr.bf16.mxu0 0
      %757 = vmatpush2.bf16.xpose.msra.mxu0 0
      %758 = vmatprep.subr.bf16.mxu0 0
      %759 = vmatpush2.bf16.xpose.msra.mxu0 0
      %760 = vmatprep.subr.bf16.mxu0 0
      %761 = vmatpush2.bf16.xpose.msra.mxu0 0
      %762 = vmatprep.subr.bf16.mxu0 0
      %763 = vmatpush2.bf16.xpose.msra.mxu0 0
      %764 = vmatprep.subr.bf16.mxu0 0
      %765 = vmatpush2.bf16.xpose.msra.mxu0 0
      %766 = vmatprep.subr.bf16.mxu0 0
      %767 = vmatpush2.bf16.xpose.msra.mxu0 0
      %768 = vmatprep.subr.bf16.mxu0 0
      %769 = vmatpush2.bf16.xpose.msra.mxu0 0
      %770 = vmatprep.subr.bf16.mxu0 0
      %771 = vmatpush2.bf16.xpose.msra.mxu0 0
      %772 = vmatprep.mubr.bf16.mxu0 0
      %773 = vmatmul.mubr.bf16.gmra.mxu0 %v735
      %v774 = vpop.f32.mrf.mxu0
      %v775 = vadd.f32 0.0, %v774
      %v776 = vpop.f32.mrf.mxu0
      %v777 = vpop.f32.mrf.mxu0
      %v778 = vpop.f32.mrf.mxu0
      %779 = vdwg.mxu0
      %v780 = vmul.f32 %v775, 0.35355338
      %v781 = vadd.f32 %v780, %v442
      %v782 = vsel %vm390, %v781, -inf
      %783 = vmax.xlane.f32.xlu0 %v782
      %v784 = vpop.xlane.xlu0 %783
      %v785 = vsub.f32 %v781, %v784
      %v786 = vmul.f32 %v785, 1.442695
      %v787 = vpow.pop %v786
      %v788 = vsel %vm390, %v787, 0.0
      %789 = vadd.xlane.f32.xlu0 %v788
      %v790 = vpop.xlane.xlu0 %789
      %v791 = vrcp.pop %v790
      %v792 = vmul.f32 %v787, %v791
      %v793 = vpack.c.bf16 %v792, %v792
      %794 = vrot.lane.b32.xlu0 %v386, 40
      %v795 = vpop.permute.xlu0 %794
      %v797 = vsel %vm390, %v793, 0
      %v800 = vsel %vm462, %v795, 0
      %802 = vmatprep.subr.bf16.mxu0 0
      %803 = vmatpush1.bf16.msra.mxu0 0
      %804 = vmatprep.subr.bf16.mxu0 0
      %805 = vmatpush1.bf16.msra.mxu0 0
      %806 = vmatprep.subr.bf16.mxu0 0
      %807 = vmatpush1.bf16.msra.mxu0 0
      %808 = vmatprep.subr.bf16.mxu0 0
      %809 = vmatpush1.bf16.msra.mxu0 0
      %810 = vmatprep.subr.bf16.mxu0 0
      %811 = vmatpush1.bf16.msra.mxu0 0
      %812 = vmatprep.subr.bf16.mxu0 0
      %813 = vmatpush1.bf16.msra.mxu0 0
      %814 = vmatprep.subr.bf16.mxu0 0
      %815 = vmatpush1.bf16.msra.mxu0 0
      %816 = vmatprep.subr.bf16.mxu0 0
      %817 = vmatpush1.bf16.msra.mxu0 %v800
      %818 = vmatprep.subr.bf16.mxu0 0
      %819 = vmatpush2.bf16.msra.mxu0 0
      %820 = vmatprep.subr.bf16.mxu0 0
      %821 = vmatpush2.bf16.msra.mxu0 0
      %822 = vmatprep.subr.bf16.mxu0 0
      %823 = vmatpush2.bf16.msra.mxu0 0
      %824 = vmatprep.subr.bf16.mxu0 0
      %825 = vmatpush2.bf16.msra.mxu0 0
      %826 = vmatprep.subr.bf16.mxu0 0
      %827 = vmatpush2.bf16.msra.mxu0 0
      %828 = vmatprep.subr.bf16.mxu0 0
      %829 = vmatpush2.bf16.msra.mxu0 0
      %830 = vmatprep.subr.bf16.mxu0 0
      %831 = vmatpush2.bf16.msra.mxu0 0
      %832 = vmatprep.subr.bf16.mxu0 0
      %833 = vmatpush2.bf16.msra.mxu0 0
      %834 = vmatprep.mubr.bf16.mxu0 0
      %835 = vmatmul.mubr.bf16.gmra.mxu0 %v797
      %v836 = vpop.f32.mrf.mxu0
      %v837 = vadd.f32 0.0, %v836
      %v838 = vpop.f32.mrf.mxu0
      %v839 = vpop.f32.mrf.mxu0
      %v840 = vpop.f32.mrf.mxu0
      %841 = vdwg.mxu0
      %843 = vrot.lane.b32.xlu0 %v613, 8
      %v844 = vpop.permute.xlu0 %843
      %847 = vrot.lane.b32.xlu0 %v725, 16
      %v848 = vpop.permute.xlu0 %847
      %851 = vrot.lane.b32.xlu0 %v837, 24
      %v852 = vpop.permute.xlu0 %851
      %v854 = vsel %vm390, %v501, %v844
      %vm855 = vcmask 130048
      %v856 = vsel %vm855, %v854, %v848
      %vm857 = vcmask 195584
      %v858 = vsel %vm857, %v856, %v852
      %v859 = vpack.c.bf16 %v858, %v858
      %v860 = vld [vmem:[%s5] sm:$0xf]
      %v861 = vld [vmem:[%s5 + $0x4] sm:$0xf]
      %v862 = vld [vmem:[%s5 + $0x8] sm:$0xf]
      %v863 = vld [vmem:[%s5 + $0xc] sm:$0xf]
      %v864 = vld [vmem:[%s6] sm:$0x1]
      %v866 = vlaneseq
      %v867 = vshrl.u32 %v866, 7
      %v868 = vsub.s32 0, %v867
      %v869 = vrot.slane %v864, %v868
      %v875 = vunpack.c.l.b16 %v860
      %v876 = vunpack.c.l.b16 %v861
      %v877 = vunpack.c.l.b16 %v862
      %v878 = vunpack.c.l.b16 %v863
      %v879 = vpack.c.b16 %v876, %v875
      %v880 = vpack.c.b16 %v878, %v877
      %v884 = vsel %vm341, %v859, 0
      %886 = vmatprep.subr.bf16.mxu0 0
      %887 = vmatpush1.bf16.msra.mxu0 0
      %888 = vmatprep.subr.bf16.mxu0 0
      %889 = vmatpush1.bf16.msra.mxu0 0
      %890 = vmatprep.subr.bf16.mxu0 0
      %891 = vmatpush1.bf16.msra.mxu0 0
      %892 = vmatprep.subr.bf16.mxu0 0
      %893 = vmatpush1.bf16.msra.mxu0 0
      %894 = vmatprep.subr.bf16.mxu0 0
      %895 = vmatpush1.bf16.msra.mxu0 0
      %896 = vmatprep.subr.bf16.mxu0 0
      %897 = vmatpush1.bf16.msra.mxu0 0
      %898 = vmatprep.subr.bf16.mxu0 0
      %899 = vmatpush1.bf16.msra.mxu0 %v880
      %900 = vmatprep.subr.bf16.mxu0 0
      %901 = vmatpush1.bf16.msra.mxu0 %v879
      %902 = vmatprep.subr.bf16.mxu0 0
      %903 = vmatpush2.bf16.msra.mxu0 0
      %904 = vmatprep.subr.bf16.mxu0 0
      %905 = vmatpush2.bf16.msra.mxu0 0
      %906 = vmatprep.subr.bf16.mxu0 0
      %907 = vmatpush2.bf16.msra.mxu0 0
      %908 = vmatprep.subr.bf16.mxu0 0
      %909 = vmatpush2.bf16.msra.mxu0 0
      %910 = vmatprep.subr.bf16.mxu0 0
      %911 = vmatpush2.bf16.msra.mxu0 0
      %912 = vmatprep.subr.bf16.mxu0 0
      %913 = vmatpush2.bf16.msra.mxu0 0
      %914 = vmatprep.subr.bf16.mxu0 0
      %915 = vmatpush2.bf16.msra.mxu0 0
      %916 = vmatprep.subr.bf16.mxu0 0
      %917 = vmatpush2.bf16.msra.mxu0 0
      %918 = vmatprep.mubr.bf16.mxu0 0
      %919 = vmatmul.mubr.bf16.gmra.mxu0 %v884
      %v920 = vpop.f32.mrf.mxu0
      %v921 = vadd.f32 %v869, %v920
      %v922 = vpop.f32.mrf.mxu0
      %v923 = vpop.f32.mrf.mxu0
      %v924 = vpop.f32.mrf.mxu0
      %925 = vdwg.mxu0
      %v926 = vadd.f32 %v316, %v921
      %v927 = vld [vmem:[%s1] sm:$0x1]
      %v928 = vld [vmem:[%s2] sm:$0x1]
      %v929 = vsel %vm341, %v926, 0.0
      %930 = vadd.xlane.f32.xlu0 %v929
      %v931 = vpop.xlane.xlu0 %930
      %v932 = vrcp.pop 32.0
      %v933 = vmul.f32 %v931, %v932
      %v934 = vsub.f32 %v926, %v933
      %v935 = vmul.f32 %v934, %v934
      %v936 = vsel %vm341, %v935, 0.0
      %937 = vadd.xlane.f32.xlu0 %v936
      %v938 = vpop.xlane.xlu0 %937
      %v939 = vmul.f32 %v938, %v932
      %v940 = vadd.f32 %v939, 1e-12
      %v941 = vrsqrt.pop %v940
      %v942 = vmul.f32 %v934, %v941
      %v944 = vlaneseq
      %v945 = vshrl.u32 %v944, 7
      %v946 = vsub.s32 0, %v945
      %v947 = vrot.slane %v927, %v946
      %v949 = vmul.f32 %v942, %v947
      %v951 = vlaneseq
      %v952 = vshrl.u32 %v951, 7
      %v953 = vsub.s32 0, %v952
      %v954 = vrot.slane %v928, %v953
      %v956 = vadd.f32 %v949, %v954
      %957 = vst.msk [vmem:[%s314] sm:$0xff] %vm341, %v956
      %p958 = scmp.lt.s32.totalorder %s19, 1
      %s959 = scalar_select %p958, %s19, 1
      %s960 = smul.addr %s959, 8
      %s961 = scalar_lea.vmem %s8, %s960
      // Predicated region
      $region53: #{albef_forward.24} parent=51 // pred_check
        %p962 = pneg %p215
      $region54: #{albef_forward.24} parent=51 // pred_check_branch
        %964 = sbr.rel (%p962) target = $region56
      $region55: #{albef_forward.24} parent=51 // pred_region
        _
      $region56: #{albef_forward.24} parent=51 // pred_fallthru
        _
    $region52: #{albef_forward.24} parent=5 // pred_fallthru
      _
    %p965 = scmp.le.s32.totalorder 2, %s14
    // Predicated region
    $region57: #{albef_forward.24} parent=5 // pred_check
      %p966 = pneg %p965
    $region58: #{albef_forward.24} parent=5 // pred_check_branch
      %968 = sbr.rel (%p966) target = $region60
    $region59: #{albef_forward.24} parent=5 // pred_region
      %s969 = ssub.s32 %s14, 2
      // Predicated region
      $region61: #{albef_forward.24} parent=59 // pred_check
        %p970 = pneg %p221
      $region62: #{albef_forward.24} parent=59 // pred_check_branch
        %972 = sbr.rel (%p970) target = $region64
      $region63: #{albef_forward.24} parent=59 // pred_region
        %p973 = scmp.lt.s32.totalorder %s20, 1
        %s974 = scalar_select %p973, %s20, 1
        %s975 = smul.addr %s974, 8
        %s976 = scalar_lea.vmem %s8, %s975
      $region64: #{albef_forward.24} parent=59 // pred_fallthru
        _
    $region60: #{albef_forward.24} parent=5 // pred_fallthru
      _
  $region6: #{albef_forward.24} parent=0 // loop_footer
    %s18 = sadd.s32 1, %s14
  $region7: #{albef_forward.24} parent=0 // loop_footer_branch
    %13 = sbr.rel target = $region3
  $region8: #{albef_forward.24} parent=0 // loop_exit
    _

// kernel: albef_forward.17
$region0: #{albef_forward.17}
  #allocation0 [shape = 'u32[]', space=smem, size = 0x4, offset = 0x4, fixed_abs, tag = 'smem constant byte address 0x4 - core index']
  #allocation1 [shape = 'u32[144,128]{1,0:T(1,128)}', space=vmem, size = 0x12000, scoped, tag = 'internal scratch']
  %s0 = inlined_call_operand.vmem [shape: f32[2,16,48], index: 0, kind: input, shape index: {}]
  %s1 = inlined_call_operand.vmem [shape: bf16[48,32], index: 1, kind: input, shape index: {}]
  %s2 = inlined_call_operand.vmem [shape: f32[1,32], index: 2, kind: input, shape index: {}]
  %s3 = inlined_call_operand.vmem [shape: f32[2,16,32], index: 3, kind: output, shape index: {}]
  %s4 = sld [smem:[#allocation0]]
  $region45: #{albef_forward.17} parent=0
    _
  %s6 = ssub.s32 1, %s4
  %s7 = scalar_select 0, %s6, %s4
  loop: start=0, step=1, limit=4
  $region2: #{albef_forward.17} parent=0 // loop_pre_header
    _
  $region3: #{albef_forward.17} parent=0 // loop_header
    %s9 = sphi 0, %s13
    %p10 = scmp.ge.s32.totalorder %s9, 4
    %s19 = sphi 0, %s21
    %s22 = sphi 0, %s19
    %s23 = sphi 0, %s22
    %s39 = sphi 0, %s23
    %s43 = sphi 0, %s43
    %s45 = sphi 0, %s43
    %s46 = sphi 0, %s45
    %s60 = sphi 0, %s46
    %s64 = sphi 0, %s64
    %s66 = sphi 0, %s64
    %s67 = sphi 0, %s66
    %s81 = sphi 0, %s67
    %s87 = sphi 0, %s89
    %s90 = sphi 0, %s87
    %s91 = sphi 0, %s90
    %s107 = sphi 0, %s91
  $region4: #{albef_forward.17} parent=0 // loop_header_branch
    %12 = sbr.rel (%p10) target = $region8
  $region5: #{albef_forward.17} parent=0 // loop_body
    %s14 = ssub.s32 %s9, 1
    %s15 = ssub.s32 %s9, 2
    %s16 = sadd.s32 %s9, 1
    %s17 = ssub.s32 %s9, %s16
    %p18 = scmp.eq.s32.totalorder %s17, 0
    %s20 = sadd.s32 %s19, 1
    %s21 = scalar_select %p18, %s19, %s20
    %p24 = pneg %p18
    %p25 = scmp.eq.s32.totalorder %s9, 1
    %p26 = por %p24, %p25
    %p27 = scmp.ne.s32.totalorder %s19, %s22
    %p28 = scmp.eq.s32.totalorder %s9, 0
    %p29 = por %p27, %p28
    %p30 = scmp.ne.s32.totalorder %s19, %s22
    %p31 = scmp.eq.s32.totalorder %s14, 1
    %p32 = por %p30, %p31
    %p33 = scmp.ne.s32.totalorder %s22, %s23
    %p34 = scmp.eq.s32.totalorder %s14, 0
    %p35 = por %p33, %p34
    %p36 = scmp.ne.s32.totalorder %s22, %s23
    %p37 = scmp.eq.s32.totalorder %s15, 1
    %p38 = por %p36, %p37
    %p40 = scmp.ne.s32.totalorder %s23, %s39
    %p41 = scmp.eq.s32.totalorder %s15, 0
    %p42 = por %p40, %p41
    %s44 = sadd.s32 %s43, 1
    %p47 = scmp.eq.s32.totalorder %s9, 1
    %p48 = scmp.ne.s32.totalorder %s43, %s45
    %p49 = scmp.eq.s32.totalorder %s9, 0
    %p50 = por %p48, %p49
    %p51 = scmp.ne.s32.totalorder %s43, %s45
    %p52 = scmp.eq.s32.totalorder %s14, 1
    %p53 = por %p51, %p52
    %p54 = scmp.ne.s32.totalorder %s45, %s46
    %p55 = scmp.eq.s32.totalorder %s14, 0
    %p56 = por %p54, %p55
    %p57 = scmp.ne.s32.totalorder %s45, %s46
    %p58 = scmp.eq.s32.totalorder %s15, 1
    %p59 = por %p57, %p58
    %p61 = scmp.ne.s32.totalorder %s46, %s60
    %p62 = scmp.eq.s32.totalorder %s15, 0
    %p63 = por %p61, %p62
    %s65 = sadd.s32 %s64, 1
    %p68 = scmp.eq.s32.totalorder %s9, 1
    %p69 = scmp.ne.s32.totalorder %s64, %s66
    %p70 = scmp.eq.s32.totalorder %s9, 0
    %p71 = por %p69, %p70
    %p72 = scmp.ne.s32.totalorder %s64, %s66
    %p73 = scmp.eq.s32.totalorder %s14, 1
    %p74 = por %p72, %p73
    %p75 = scmp.ne.s32.totalorder %s66, %s67
    %p76 = scmp.eq.s32.totalorder %s14, 0
    %p77 = por %p75, %p76
    %p78 = scmp.ne.s32.totalorder %s66, %s67
    %p79 = scmp.eq.s32.totalorder %s15, 1
    %p80 = por %p78, %p79
    %p82 = scmp.ne.s32.totalorder %s67, %s81
    %p83 = scmp.eq.s32.totalorder %s15, 0
    %p84 = por %p82, %p83
    %s85 = ssub.s32 %s9, %s16
    %p86 = scmp.eq.s32.totalorder %s85, 0
    %s88 = sadd.s32 %s87, 1
    %s89 = scalar_select %p86, %s87, %s88
    %p92 = pneg %p86
    %p93 = scmp.eq.s32.totalorder %s9, 1
    %p94 = por %p92, %p93
    %p95 = scmp.ne.s32.totalorder %s87, %s90
    %p96 = scmp.eq.s32.totalorder %s9, 0
    %p97 = por %p95, %p96
    %p98 = scmp.ne.s32.totalorder %s87, %s90
    %p99 = scmp.eq.s32.totalorder %s14, 1
    %p100 = por %p98, %p99
    %p101 = scmp.ne.s32.totalorder %s90, %s91
    %p102 = scmp.eq.s32.totalorder %s14, 0
    %p103 = por %p101, %p102
    %p104 = scmp.ne.s32.totalorder %s90, %s91
    %p105 = scmp.eq.s32.totalorder %s15, 1
    %p106 = por %p104, %p105
    %p108 = scmp.ne.s32.totalorder %s91, %s107
    %p109 = scmp.eq.s32.totalorder %s15, 0
    %p110 = por %p108, %p109
    %p111 = scmp.le.s32.totalorder 1, %s9
    %p112 = scmp.lt.s32.totalorder %s9, 3
    %p113 = pnand %p111, %p112
    %p114 = pneg %p113
    // Predicated region
    $region9: #{albef_forward.17} parent=5 // pred_check
      _
    $region10: #{albef_forward.17} parent=5 // pred_check_branch
      %116 = sbr.rel (%p113) target = $region12
    $region11: #{albef_forward.17} parent=5 // pred_region
      %s117 = ssub.s32 %s9, 1
      // Predicated region
      $region13: #{albef_forward.17} parent=11 // pred_check
        %p118 = pneg %p56
      $region14: #{albef_forward.17} parent=11 // pred_check_branch
        %120 = sbr.rel (%p118) target = $region16
      $region15: #{albef_forward.17} parent=11 // pred_region
        _
      $region16: #{albef_forward.17} parent=11 // pred_fallthru
        _
      // Predicated region
      $region17: #{albef_forward.17} parent=11 // pred_check
        %p121 = pneg %p77
      $region18: #{albef_forward.17} parent=11 // pred_check_branch
        %123 = sbr.rel (%p121) target = $region20
      $region19: #{albef_forward.17} parent=11 // pred_region
        _
      $region20: #{albef_forward.17} parent=11 // pred_fallthru
        _
    $region12: #{albef_forward.17} parent=5 // pred_fallthru
      _
    %p124 = scmp.lt.s32.totalorder %s9, 2
    // Predicated region
    $region21: #{albef_forward.17} parent=5 // pred_check
      %p125 = pneg %p124
    $region22: #{albef_forward.17} parent=5 // pred_check_branch
      %127 = sbr.rel (%p125) target = $region24
    $region23: #{albef_forward.17} parent=5 // pred_region
      // Predicated region
      $region25: #{albef_forward.17} parent=23 // pred_check
        %p128 = pneg %p29
      $region26: #{albef_forward.17} parent=23 // pred_check_branch
        %130 = sbr.rel (%p128) target = $region28
      $region27: #{albef_forward.17} parent=23 // pred_region
        %p131 = scmp.lt.s32.totalorder %s9, 1
        %s132 = scalar_select %p131, %s9, 1
        %s133 = smul.addr %s132, 2
        %s134 = smul.addr %s133, 8
        %s135 = scalar_lea.vmem %s0, %s134
      $region28: #{albef_forward.17} parent=23 // pred_fallthru
        _
    $region24: #{albef_forward.17} parent=5 // pred_fallthru
      _
    %p136 = scmp.le.s32.totalorder 1, %s9
    %p137 = scmp.lt.s32.totalorder %s9, 3
    %p138 = pnand %p136, %p137
    %p139 = pneg %p138
    // Predicated region
    $region29: #{albef_forward.17} parent=5 // pred_check
      _
    $region30: #{albef_forward.17} parent=5 // pred_check_branch
      %141 = sbr.rel (%p138) target = $region32
    $region31: #{albef_forward.17} parent=5 // pred_region
      %s142 = ssub.s32 %s9, 1
      %p143 = scmp.lt.s32.totalorder %s14, 1
      %s144 = scalar_select %p143, %s14, 1
      %s145 = smul.addr %s144, 2
      %s146 = smul.addr %s145, 8
      %s147 = scalar_lea.vmem %s0, %s146
      %p148 = pneg %p35
      %p149 = pneg %p32
      %p150 = pneg %p56
      %p151 = pneg %p53
      %p152 = pneg %p77
      %p153 = pneg %p74
      %p154 = pneg %p103
      %p155 = pneg %p100
      %p156 = scmp.lt.s32.totalorder %s14, 1
      %s157 = scalar_select %p156, %s14, 1
      %s158 = smul.addr %s157, 2
      %s159 = smul.addr %s158, 8
      %s160 = scalar_lea.vmem %s3, %s159
      %p161 = scmp.lt.s32.totalorder %s14, 1
      %s162 = scalar_select %p161, %s14, 1
      %s163 = smul.addr %s162, 2
      %s164 = smul.addr %s163, 8
      %s165 = scalar_lea.vmem %s0, %s164
      %p166 = scmp.lt.s32.totalorder %s14, 1
      %s167 = scalar_select %p166, %s14, 1
      %s168 = smul.addr %s167, 2
      %s169 = smul.addr %s168, 8
      %s170 = scalar_lea.vmem %s3, %s169
      %v172 = vld [vmem:[%s165] sm:$0xff]
      %v173 = vld [vmem:[%s165 + $0x8] sm:$0xff]
      %v174 = vpack.c.bf16 %v173, %v172
      %v175 = vld [vmem:[%s1] sm:$0xf]
      %v176 = vld [vmem:[%s1 + $0x4] sm:$0xf]
      %v177 = vld [vmem:[%s1 + $0x8] sm:$0xf]
      %v178 = vld [vmem:[%s1 + $0xc] sm:$0xf]
      %v179 = vld [vmem:[%s1 + $0x10] sm:$0xf]
      %v180 = vld [vmem:[%s1 + $0x14] sm:$0xf]
      %v181 = vld [vmem:[%s2] sm:$0x1]
      %v183 = vlaneseq
      %v184 = vshrl.u32 %v183, 7
      %v185 = vsub.s32 0, %v184
      %v186 = vrot.slane %v181, %v185
      %v194 = vunpack.c.l.b16 %v175
      %v195 = vunpack.c.l.b16 %v176
      %v196 = vunpack.c.l.b16 %v177
      %v197 = vunpack.c.l.b16 %v178
      %v198 = vunpack.c.l.b16 %v179
      %v199 = vunpack.c.l.b16 %v180
      %v200 = vpack.c.b16 %v195, %v194
      %v201 = vpack.c.b16 %v197, %v196
      %v202 = vpack.c.b16 %v199, %v198
      %vm206 = vcmask 392192
      %v208 = vsel %vm206, %v174, 0
      %210 = vmatprep.subr.bf16.mxu0 0
      %211 = vmatpush1.bf16.msra.mxu0 0
      %212 = vmatprep.subr.bf16.mxu0 0
      %213 = vmatpush1.bf16.msra.mxu0 0
      %214 = vmatprep.subr.bf16.mxu0 0
      %215 = vmatpush1.bf16.msra.mxu0 0
      %216 = vmatprep.subr.bf16.mxu0 0
      %217 = vmatpush1.bf16.msra.mxu0 0
      %218 = vmatprep.subr.bf16.mxu0 0
      %219 = vmatpush1.bf16.msra.mxu0 0
      %220 = vmatprep.subr.bf16.mxu0 0
      %221 = vmatpush1.bf16.msra.mxu0 %v202
      %222 = vmatprep.subr.bf16.mxu0 0
      %223 = vmatpush1.bf16.msra.mxu0 %v201
      %224 = vmatprep.subr.bf16.mxu0 0
      %225 = vmatpush1.bf16.msra.mxu0 %v200
      %226 = vmatprep.subr.bf16.mxu0 0
      %227 = vmatpush2.bf16.msra.mxu0 0
      %228 = vmatprep.subr.bf16.mxu0 0
      %229 = vmatpush2.bf16.msra.mxu0 0
      %230 = vmatprep.subr.bf16.mxu0 0
      %231 = vmatpush2.bf16.msra.mxu0 0
      %232 = vmatprep.subr.bf16.mxu0 0
      %233 = vmatpush2.bf16.msra.mxu0 0
      %234 = vmatprep.subr.bf16.mxu0 0
      %235 = vmatpush2.bf16.msra.mxu0 0
      %236 = vmatprep.subr.bf16.mxu0 0
      %237 = vmatpush2.bf16.msra.mxu0 0
      %238 = vmatprep.subr.bf16.mxu0 0
      %239 = vmatpush2.bf16.msra.mxu0 0
      %240 = vmatprep.subr.bf16.mxu0 0
      %241 = vmatpush2.bf16.msra.mxu0 0
      %242 = vmatprep.mubr.bf16.mxu0 0
      %243 = vmatmul.mubr.bf16.gmra.mxu0 %v208
      %v244 = vpop.f32.mrf.mxu0
      %v245 = vadd.f32 %v186, %v244
      %v246 = vpop.f32.mrf.mxu0
      %v247 = vpop.f32.mrf.mxu0
      %v248 = vadd.f32 %v186, %v247
      %v249 = vpop.f32.mrf.mxu0
      %250 = vdwg.mxu0
      %vm251 = vcmask 261120
      %252 = vst.msk [vmem:[%s170] sm:$0xff] %vm251, %v245
      %253 = vst.msk [vmem:[%s170 + $0x8] sm:$0xff] %vm251, %v248
      %p254 = scmp.lt.s32.totalorder %s14, 1
      %s255 = scalar_select %p254, %s14, 1
      %s256 = smul.addr %s255, 2
      %s257 = smul.addr %s256, 8
      %s258 = scalar_lea.vmem %s3, %s257
      // Predicated region
      $region33: #{albef_forward.17} parent=31 // pred_check
        %p259 = pneg %p100
      $region34: #{albef_forward.17} parent=31 // pred_check_branch
        %261 = sbr.rel (%p259) target = $region36
      $region35: #{albef_forward.17} parent=31 // pred_region
        _
      $region36: #{albef_forward.17} parent=31 // pred_fallthru
        _
    $region32: #{albef_forward.17} parent=5 // pred_fallthru
      _
    %p262 = scmp.le.s32.totalorder 2, %s9
    // Predicated region
    $region37: #{albef_forward.17} parent=5 // pred_check
      %p263 = pneg %p262
    $region38: #{albef_forward.17} parent=5 // pred_check_branch
      %265 = sbr.rel (%p263) target = $region40
    $region39: #{albef_forward.17} parent=5 // pred_region
      %s266 = ssub.s32 %s9, 2
      // Predicated region
      $region41: #{albef_forward.17} parent=39 // pred_check
        %p267 = pneg %p106
      $region42: #{albef_forward.17} parent=39 // pred_check_branch
        %269 = sbr.rel (%p267) target = $region44
      $region43: #{albef_forward.17} parent=39 // pred_region
        %p270 = scmp.lt.s32.totalorder %s15, 1
        %s271 = scalar_select %p270, %s15, 1
        %s272 = smul.addr %s271, 2
        %s273 = smul.addr %s272, 8
        %s274 = scalar_lea.vmem %s3, %s273
      $region44: #{albef_forward.17} parent=39 // pred_fallthru
        _
    $region40: #{albef_forward.17} parent=5 // pred_fallthru
      _
  $region6: #{albef_forward.17} parent=0 // loop_footer
    %s13 = sadd.s32 1, %s9
  $region7: #{albef_forward.17} parent=0 // loop_footer_branch
    %8 = sbr.rel target = $region3
  $region8: #{albef_forward.17} parent=0 // loop_exit
    _

// kernel: albef_forward.22
$region0: #{albef_forward.22}
  #allocation0 [shape = 'u32[]', space=smem, size = 0x4, offset = 0x4, fixed_abs, tag = 'smem constant byte address 0x4 - core index']
  #allocation1 [shape = 'u32[144,128]{1,0:T(1,128)}', space=vmem, size = 0x12000, scoped, tag = 'internal scratch']
  %s0 = inlined_call_operand.vmem [shape: f32[2,24,32], index: 0, kind: input, shape index: {}]
  %s1 = inlined_call_operand.vmem [shape: f32[1,32], index: 1, kind: input, shape index: {}]
  %s2 = inlined_call_operand.vmem [shape: f32[1,32], index: 2, kind: input, shape index: {}]
  %s3 = inlined_call_operand.vmem [shape: f32[2,24,32], index: 3, kind: output, shape index: {}]
  %s4 = sld [smem:[#allocation0]]
  $region45: #{albef_forward.22} parent=0
    _
  %s6 = ssub.s32 1, %s4
  %s7 = scalar_select 0, %s6, %s4
  loop: start=0, step=1, limit=4
  $region2: #{albef_forward.22} parent=0 // loop_pre_header
    _
  $region3: #{albef_forward.22} parent=0 // loop_header
    %s9 = sphi 0, %s13
    %p10 = scmp.ge.s32.totalorder %s9, 4
    %s19 = sphi 0, %s21
    %s22 = sphi 0, %s19
    %s23 = sphi 0, %s22
    %s39 = sphi 0, %s23
    %s43 = sphi 0, %s43
    %s45 = sphi 0, %s43
    %s46 = sphi 0, %s45
    %s60 = sphi 0, %s46
    %s64 = sphi 0, %s64
    %s66 = sphi 0, %s64
    %s67 = sphi 0, %s66
    %s81 = sphi 0, %s67
    %s87 = sphi 0, %s89
    %s90 = sphi 0, %s87
    %s91 = sphi 0, %s90
    %s107 = sphi 0, %s91
  $region4: #{albef_forward.22} parent=0 // loop_header_branch
    %12 = sbr.rel (%p10) target = $region8
  $region5: #{albef_forward.22} parent=0 // loop_body
    %s14 = ssub.s32 %s9, 1
    %s15 = ssub.s32 %s9, 2
    %s16 = sadd.s32 %s9, 1
    %s17 = ssub.s32 %s9, %s16
    %p18 = scmp.eq.s32.totalorder %s17, 0
    %s20 = sadd.s32 %s19, 1
    %s21 = scalar_select %p18, %s19, %s20
    %p24 = pneg %p18
    %p25 = scmp.eq.s32.totalorder %s9, 1
    %p26 = por %p24, %p25
    %p27 = scmp.ne.s32.totalorder %s19, %s22
    %p28 = scmp.eq.s32.totalorder %s9, 0
    %p29 = por %p27, %p28
    %p30 = scmp.ne.s32.totalorder %s19, %s22
    %p31 = scmp.eq.s32.totalorder %s14, 1
    %p32 = por %p30, %p31
    %p33 = scmp.ne.s32.totalorder %s22, %s23
    %p34 = scmp.eq.s32.totalorder %s14, 0
    %p35 = por %p33, %p34
    %p36 = scmp.ne.s32.totalorder %s22, %s23
    %p37 = scmp.eq.s32.totalorder %s15, 1
    %p38 = por %p36, %p37
    %p40 = scmp.ne.s32.totalorder %s23, %s39
    %p41 = scmp.eq.s32.totalorder %s15, 0
    %p42 = por %p40, %p41
    %s44 = sadd.s32 %s43, 1
    %p47 = scmp.eq.s32.totalorder %s9, 1
    %p48 = scmp.ne.s32.totalorder %s43, %s45
    %p49 = scmp.eq.s32.totalorder %s9, 0
    %p50 = por %p48, %p49
    %p51 = scmp.ne.s32.totalorder %s43, %s45
    %p52 = scmp.eq.s32.totalorder %s14, 1
    %p53 = por %p51, %p52
    %p54 = scmp.ne.s32.totalorder %s45, %s46
    %p55 = scmp.eq.s32.totalorder %s14, 0
    %p56 = por %p54, %p55
    %p57 = scmp.ne.s32.totalorder %s45, %s46
    %p58 = scmp.eq.s32.totalorder %s15, 1
    %p59 = por %p57, %p58
    %p61 = scmp.ne.s32.totalorder %s46, %s60
    %p62 = scmp.eq.s32.totalorder %s15, 0
    %p63 = por %p61, %p62
    %s65 = sadd.s32 %s64, 1
    %p68 = scmp.eq.s32.totalorder %s9, 1
    %p69 = scmp.ne.s32.totalorder %s64, %s66
    %p70 = scmp.eq.s32.totalorder %s9, 0
    %p71 = por %p69, %p70
    %p72 = scmp.ne.s32.totalorder %s64, %s66
    %p73 = scmp.eq.s32.totalorder %s14, 1
    %p74 = por %p72, %p73
    %p75 = scmp.ne.s32.totalorder %s66, %s67
    %p76 = scmp.eq.s32.totalorder %s14, 0
    %p77 = por %p75, %p76
    %p78 = scmp.ne.s32.totalorder %s66, %s67
    %p79 = scmp.eq.s32.totalorder %s15, 1
    %p80 = por %p78, %p79
    %p82 = scmp.ne.s32.totalorder %s67, %s81
    %p83 = scmp.eq.s32.totalorder %s15, 0
    %p84 = por %p82, %p83
    %s85 = ssub.s32 %s9, %s16
    %p86 = scmp.eq.s32.totalorder %s85, 0
    %s88 = sadd.s32 %s87, 1
    %s89 = scalar_select %p86, %s87, %s88
    %p92 = pneg %p86
    %p93 = scmp.eq.s32.totalorder %s9, 1
    %p94 = por %p92, %p93
    %p95 = scmp.ne.s32.totalorder %s87, %s90
    %p96 = scmp.eq.s32.totalorder %s9, 0
    %p97 = por %p95, %p96
    %p98 = scmp.ne.s32.totalorder %s87, %s90
    %p99 = scmp.eq.s32.totalorder %s14, 1
    %p100 = por %p98, %p99
    %p101 = scmp.ne.s32.totalorder %s90, %s91
    %p102 = scmp.eq.s32.totalorder %s14, 0
    %p103 = por %p101, %p102
    %p104 = scmp.ne.s32.totalorder %s90, %s91
    %p105 = scmp.eq.s32.totalorder %s15, 1
    %p106 = por %p104, %p105
    %p108 = scmp.ne.s32.totalorder %s91, %s107
    %p109 = scmp.eq.s32.totalorder %s15, 0
    %p110 = por %p108, %p109
    %p111 = scmp.le.s32.totalorder 1, %s9
    %p112 = scmp.lt.s32.totalorder %s9, 3
    %p113 = pnand %p111, %p112
    %p114 = pneg %p113
    // Predicated region
    $region9: #{albef_forward.22} parent=5 // pred_check
      _
    $region10: #{albef_forward.22} parent=5 // pred_check_branch
      %116 = sbr.rel (%p113) target = $region12
    $region11: #{albef_forward.22} parent=5 // pred_region
      %s117 = ssub.s32 %s9, 1
      // Predicated region
      $region13: #{albef_forward.22} parent=11 // pred_check
        %p118 = pneg %p56
      $region14: #{albef_forward.22} parent=11 // pred_check_branch
        %120 = sbr.rel (%p118) target = $region16
      $region15: #{albef_forward.22} parent=11 // pred_region
        _
      $region16: #{albef_forward.22} parent=11 // pred_fallthru
        _
      // Predicated region
      $region17: #{albef_forward.22} parent=11 // pred_check
        %p121 = pneg %p77
      $region18: #{albef_forward.22} parent=11 // pred_check_branch
        %123 = sbr.rel (%p121) target = $region20
      $region19: #{albef_forward.22} parent=11 // pred_region
        _
      $region20: #{albef_forward.22} parent=11 // pred_fallthru
        _
    $region12: #{albef_forward.22} parent=5 // pred_fallthru
      _
    %p124 = scmp.lt.s32.totalorder %s9, 2
    // Predicated region
    $region21: #{albef_forward.22} parent=5 // pred_check
      %p125 = pneg %p124
    $region22: #{albef_forward.22} parent=5 // pred_check_branch
      %127 = sbr.rel (%p125) target = $region24
    $region23: #{albef_forward.22} parent=5 // pred_region
      // Predicated region
      $region25: #{albef_forward.22} parent=23 // pred_check
        %p128 = pneg %p29
      $region26: #{albef_forward.22} parent=23 // pred_check_branch
        %130 = sbr.rel (%p128) target = $region28
      $region27: #{albef_forward.22} parent=23 // pred_region
        %p131 = scmp.lt.s32.totalorder %s9, 1
        %s132 = scalar_select %p131, %s9, 1
        %s133 = smul.addr %s132, 3
        %s134 = smul.addr %s133, 8
        %s135 = scalar_lea.vmem %s0, %s134
      $region28: #{albef_forward.22} parent=23 // pred_fallthru
        _
    $region24: #{albef_forward.22} parent=5 // pred_fallthru
      _
    %p136 = scmp.le.s32.totalorder 1, %s9
    %p137 = scmp.lt.s32.totalorder %s9, 3
    %p138 = pnand %p136, %p137
    %p139 = pneg %p138
    // Predicated region
    $region29: #{albef_forward.22} parent=5 // pred_check
      _
    $region30: #{albef_forward.22} parent=5 // pred_check_branch
      %141 = sbr.rel (%p138) target = $region32
    $region31: #{albef_forward.22} parent=5 // pred_region
      %s142 = ssub.s32 %s9, 1
      %p143 = scmp.lt.s32.totalorder %s14, 1
      %s144 = scalar_select %p143, %s14, 1
      %s145 = smul.addr %s144, 3
      %s146 = smul.addr %s145, 8
      %s147 = scalar_lea.vmem %s0, %s146
      %p148 = pneg %p35
      %p149 = pneg %p32
      %p150 = pneg %p56
      %p151 = pneg %p53
      %p152 = pneg %p77
      %p153 = pneg %p74
      %p154 = pneg %p103
      %p155 = pneg %p100
      %p156 = scmp.lt.s32.totalorder %s14, 1
      %s157 = scalar_select %p156, %s14, 1
      %s158 = smul.addr %s157, 3
      %s159 = smul.addr %s158, 8
      %s160 = scalar_lea.vmem %s3, %s159
      %p161 = scmp.lt.s32.totalorder %s14, 1
      %s162 = scalar_select %p161, %s14, 1
      %s163 = smul.addr %s162, 3
      %s164 = smul.addr %s163, 8
      %s165 = scalar_lea.vmem %s0, %s164
      %p166 = scmp.lt.s32.totalorder %s14, 1
      %s167 = scalar_select %p166, %s14, 1
      %s168 = smul.addr %s167, 3
      %s169 = smul.addr %s168, 8
      %s170 = scalar_lea.vmem %s3, %s169
      %v171 = vld [vmem:[%s165] sm:$0xff]
      %v172 = vld [vmem:[%s165 + $0x8] sm:$0xff]
      %v173 = vld [vmem:[%s165 + $0x10] sm:$0xff]
      %v174 = vld [vmem:[%s1] sm:$0x1]
      %v175 = vld [vmem:[%s2] sm:$0x1]
      %vm176 = vcmask 261120
      %v177 = vsel %vm176, %v171, 0.0
      %178 = vadd.xlane.f32.xlu0 %v177
      %v179 = vpop.xlane.xlu0 %178
      %v180 = vsel %vm176, %v172, 0.0
      %181 = vadd.xlane.f32.xlu0 %v180
      %v182 = vpop.xlane.xlu0 %181
      %v183 = vsel %vm176, %v173, 0.0
      %184 = vadd.xlane.f32.xlu0 %v183
      %v185 = vpop.xlane.xlu0 %184
      %v186 = vrcp.pop 32.0
      %v187 = vmul.f32 %v179, %v186
      %v188 = vmul.f32 %v182, %v186
      %v189 = vmul.f32 %v185, %v186
      %v190 = vsub.f32 %v171, %v187
      %v191 = vsub.f32 %v172, %v188
      %v192 = vsub.f32 %v173, %v189
      %v193 = vmul.f32 %v190, %v190
      %v194 = vmul.f32 %v191, %v191
      %v195 = vmul.f32 %v192, %v192
      %v196 = vsel %vm176, %v193, 0.0
      %197 = vadd.xlane.f32.xlu0 %v196
      %v198 = vpop.xlane.xlu0 %197
      %v199 = vsel %vm176, %v194, 0.0
      %200 = vadd.xlane.f32.xlu0 %v199
      %v201 = vpop.xlane.xlu0 %200
      %v202 = vsel %vm176, %v195, 0.0
      %203 = vadd.xlane.f32.xlu0 %v202
      %v204 = vpop.xlane.xlu0 %203
      %v205 = vmul.f32 %v198, %v186
      %v206 = vmul.f32 %v201, %v186
      %v207 = vmul.f32 %v204, %v186
      %v208 = vadd.f32 %v205, 1e-06
      %v209 = vadd.f32 %v206, 1e-06
      %v210 = vadd.f32 %v207, 1e-06
      %v211 = vrsqrt.pop %v208
      %v212 = vrsqrt.pop %v209
      %v213 = vrsqrt.pop %v210
      %v214 = vmul.f32 %v190, %v211
      %v215 = vmul.f32 %v191, %v212
      %v216 = vmul.f32 %v192, %v213
      %v218 = vlaneseq
      %v219 = vshrl.u32 %v218, 7
      %v220 = vsub.s32 0, %v219
      %v221 = vrot.slane %v174, %v220
      %v223 = vmul.f32 %v214, %v221
      %v224 = vmul.f32 %v215, %v221
      %v225 = vmul.f32 %v216, %v221
      %v227 = vlaneseq
      %v228 = vshrl.u32 %v227, 7
      %v229 = vsub.s32 0, %v228
      %v230 = vrot.slane %v175, %v229
      %v232 = vadd.f32 %v223, %v230
      %v233 = vadd.f32 %v224, %v230
      %v234 = vadd.f32 %v225, %v230
      %235 = vst.msk [vmem:[%s170] sm:$0xff] %vm176, %v232
      %236 = vst.msk [vmem:[%s170 + $0x8] sm:$0xff] %vm176, %v233
      %237 = vst.msk [vmem:[%s170 + $0x10] sm:$0xff] %vm176, %v234
      %p238 = scmp.lt.s32.totalorder %s14, 1
      %s239 = scalar_select %p238, %s14, 1
      %s240 = smul.addr %s239, 3
      %s241 = smul.addr %s240, 8
      %s242 = scalar_lea.vmem %s3, %s241
      // Predicated region
      $region33: #{albef_forward.22} parent=31 // pred_check
        %p243 = pneg %p100
      $region34: #{albef_forward.22} parent=31 // pred_check_branch
        %245 = sbr.rel (%p243) target = $region36
      $region35: #{albef_forward.22} parent=31 // pred_region
        _
      $region36: #{albef_forward.22} parent=31 // pred_fallthru
        _
    $region32: #{albef_forward.22} parent=5 // pred_fallthru
      _
    %p246 = scmp.le.s32.totalorder 2, %s9
    // Predicated region
    $region37: #{albef_forward.22} parent=5 // pred_check
      %p247 = pneg %p246
    $region38: #{albef_forward.22} parent=5 // pred_check_branch
      %249 = sbr.rel (%p247) target = $region40
    $region39: #{albef_forward.22} parent=5 // pred_region
      %s250 = ssub.s32 %s9, 2
      // Predicated region
      $region41: #{albef_forward.22} parent=39 // pred_check
        %p251 = pneg %p106
      $region42: #{albef_forward.22} parent=39 // pred_check_branch
        %253 = sbr.rel (%p251) target = $region44
      $region43: #{albef_forward.22} parent=39 // pred_region
        %p254 = scmp.lt.s32.totalorder %s15, 1
        %s255 = scalar_select %p254, %s15, 1
        %s256 = smul.addr %s255, 3
        %s257 = smul.addr %s256, 8
        %s258 = scalar_lea.vmem %s3, %s257
      $region44: #{albef_forward.22} parent=39 // pred_fallthru
        _
    $region40: #{albef_forward.22} parent=5 // pred_fallthru
      _
  $region6: #{albef_forward.22} parent=0 // loop_footer
    %s13 = sadd.s32 1, %s9
  $region7: #{albef_forward.22} parent=0 // loop_footer_branch
    %8 = sbr.rel target = $region3
  $region8: #{albef_forward.22} parent=0 // loop_exit
    _

// kernel: albef_forward.19
$region0: #{albef_forward.19}
  #allocation0 [shape = 'u32[]', space=smem, size = 0x4, offset = 0x4, fixed_abs, tag = 'smem constant byte address 0x4 - core index']
  #allocation1 [shape = 'u32[144,128]{1,0:T(1,128)}', space=vmem, size = 0x12000, scoped, tag = 'internal scratch']
  %s0 = inlined_call_operand.vmem [shape: f32[2,24,32], index: 0, kind: input, shape index: {}]
  %s1 = inlined_call_operand.vmem [shape: f32[1,32], index: 1, kind: input, shape index: {}]
  %s2 = inlined_call_operand.vmem [shape: f32[1,32], index: 2, kind: input, shape index: {}]
  %s3 = inlined_call_operand.vmem [shape: bf16[32,128], index: 3, kind: input, shape index: {}]
  %s4 = inlined_call_operand.vmem [shape: f32[1,128], index: 4, kind: input, shape index: {}]
  %s5 = inlined_call_operand.vmem [shape: bf16[128,32], index: 5, kind: input, shape index: {}]
  %s6 = inlined_call_operand.vmem [shape: f32[1,32], index: 6, kind: input, shape index: {}]
  %s7 = inlined_call_operand.vmem [shape: f32[2,24,32], index: 7, kind: output, shape index: {}]
  %s8 = sld [smem:[#allocation0]]
  $region61: #{albef_forward.19} parent=0
    _
  %s10 = ssub.s32 1, %s8
  %s11 = scalar_select 0, %s10, %s8
  loop: start=0, step=1, limit=4
  $region2: #{albef_forward.19} parent=0 // loop_pre_header
    _
  $region3: #{albef_forward.19} parent=0 // loop_header
    %s13 = sphi 0, %s17
    %p14 = scmp.ge.s32.totalorder %s13, 4
    %s23 = sphi 0, %s25
    %s26 = sphi 0, %s23
    %s27 = sphi 0, %s26
    %s43 = sphi 0, %s27
    %s47 = sphi 0, %s47
    %s49 = sphi 0, %s47
    %s50 = sphi 0, %s49
    %s64 = sphi 0, %s50
    %s68 = sphi 0, %s68
    %s70 = sphi 0, %s68
    %s71 = sphi 0, %s70
    %s85 = sphi 0, %s71
    %s89 = sphi 0, %s89
    %s91 = sphi 0, %s89
    %s92 = sphi 0, %s91
    %s106 = sphi 0, %s92
    %s110 = sphi 0, %s110
    %s112 = sphi 0, %s110
    %s113 = sphi 0, %s112
    %s127 = sphi 0, %s113
    %s131 = sphi 0, %s131
    %s133 = sphi 0, %s131
    %s134 = sphi 0, %s133
    %s148 = sphi 0, %s134
    %s152 = sphi 0, %s152
    %s154 = sphi 0, %s152
    %s155 = sphi 0, %s154
    %s169 = sphi 0, %s155
    %s175 = sphi 0, %s177
    %s178 = sphi 0, %s175
    %s179 = sphi 0, %s178
    %s195 = sphi 0, %s179
  $region4: #{albef_forward.19} parent=0 // loop_header_branch
    %16 = sbr.rel (%p14) target = $region8
  $region5: #{albef_forward.19} parent=0 // loop_body
    %s18 = ssub.s32 %s13, 1
    %s19 = ssub.s32 %s13, 2
    %s20 = sadd.s32 %s13, 1
    %s21 = ssub.s32 %s13, %s20
    %p22 = scmp.eq.s32.totalorder %s21, 0
    %s24 = sadd.s32 %s23, 1
    %s25 = scalar_select %p22, %s23, %s24
    %p28 = pneg %p22
    %p29 = scmp.eq.s32.totalorder %s13, 1
    %p30 = por %p28, %p29
    %p31 = scmp.ne.s32.totalorder %s23, %s26
    %p32 = scmp.eq.s32.totalorder %s13, 0
    %p33 = por %p31, %p32
    %p34 = scmp.ne.s32.totalorder %s23, %s26
    %p35 = scmp.eq.s32.totalorder %s18, 1
    %p36 = por %p34, %p35
    %p37 = scmp.ne.s32.totalorder %s26, %s27
    %p38 = scmp.eq.s32.totalorder %s18, 0
    %p39 = por %p37, %p38
    %p40 = scmp.ne.s32.totalorder %s26, %s27
    %p41 = scmp.eq.s32.totalorder %s19, 1
    %p42 = por %p40, %p41
    %p44 = scmp.ne.s32.totalorder %s27, %s43
    %p45 = scmp.eq.s32.totalorder %s19, 0
    %p46 = por %p44, %p45
    %s48 = sadd.s32 %s47, 1
    %p51 = scmp.eq.s32.totalorder %s13, 1
    %p52 = scmp.ne.s32.totalorder %s47, %s49
    %p53 = scmp.eq.s32.totalorder %s13, 0
    %p54 = por %p52, %p53
    %p55 = scmp.ne.s32.totalorder %s47, %s49
    %p56 = scmp.eq.s32.totalorder %s18, 1
    %p57 = por %p55, %p56
    %p58 = scmp.ne.s32.totalorder %s49, %s50
    %p59 = scmp.eq.s32.totalorder %s18, 0
    %p60 = por %p58, %p59
    %p61 = scmp.ne.s32.totalorder %s49, %s50
    %p62 = scmp.eq.s32.totalorder %s19, 1
    %p63 = por %p61, %p62
    %p65 = scmp.ne.s32.totalorder %s50, %s64
    %p66 = scmp.eq.s32.totalorder %s19, 0
    %p67 = por %p65, %p66
    %s69 = sadd.s32 %s68, 1
    %p72 = scmp.eq.s32.totalorder %s13, 1
    %p73 = scmp.ne.s32.totalorder %s68, %s70
    %p74 = scmp.eq.s32.totalorder %s13, 0
    %p75 = por %p73, %p74
    %p76 = scmp.ne.s32.totalorder %s68, %s70
    %p77 = scmp.eq.s32.totalorder %s18, 1
    %p78 = por %p76, %p77
    %p79 = scmp.ne.s32.totalorder %s70, %s71
    %p80 = scmp.eq.s32.totalorder %s18, 0
    %p81 = por %p79, %p80
    %p82 = scmp.ne.s32.totalorder %s70, %s71
    %p83 = scmp.eq.s32.totalorder %s19, 1
    %p84 = por %p82, %p83
    %p86 = scmp.ne.s32.totalorder %s71, %s85
    %p87 = scmp.eq.s32.totalorder %s19, 0
    %p88 = por %p86, %p87
    %s90 = sadd.s32 %s89, 1
    %p93 = scmp.eq.s32.totalorder %s13, 1
    %p94 = scmp.ne.s32.totalorder %s89, %s91
    %p95 = scmp.eq.s32.totalorder %s13, 0
    %p96 = por %p94, %p95
    %p97 = scmp.ne.s32.totalorder %s89, %s91
    %p98 = scmp.eq.s32.totalorder %s18, 1
    %p99 = por %p97, %p98
    %p100 = scmp.ne.s32.totalorder %s91, %s92
    %p101 = scmp.eq.s32.totalorder %s18, 0
    %p102 = por %p100, %p101
    %p103 = scmp.ne.s32.totalorder %s91, %s92
    %p104 = scmp.eq.s32.totalorder %s19, 1
    %p105 = por %p103, %p104
    %p107 = scmp.ne.s32.totalorder %s92, %s106
    %p108 = scmp.eq.s32.totalorder %s19, 0
    %p109 = por %p107, %p108
    %s111 = sadd.s32 %s110, 1
    %p114 = scmp.eq.s32.totalorder %s13, 1
    %p115 = scmp.ne.s32.totalorder %s110, %s112
    %p116 = scmp.eq.s32.totalorder %s13, 0
    %p117 = por %p115, %p116
    %p118 = scmp.ne.s32.totalorder %s110, %s112
    %p119 = scmp.eq.s32.totalorder %s18, 1
    %p120 = por %p118, %p119
    %p121 = scmp.ne.s32.totalorder %s112, %s113
    %p122 = scmp.eq.s32.totalorder %s18, 0
    %p123 = por %p121, %p122
    %p124 = scmp.ne.s32.totalorder %s112, %s113
    %p125 = scmp.eq.s32.totalorder %s19, 1
    %p126 = por %p124, %p125
    %p128 = scmp.ne.s32.totalorder %s113, %s127
    %p129 = scmp.eq.s32.totalorder %s19, 0
    %p130 = por %p128, %p129
    %s132 = sadd.s32 %s131, 1
    %p135 = scmp.eq.s32.totalorder %s13, 1
    %p136 = scmp.ne.s32.totalorder %s131, %s133
    %p137 = scmp.eq.s32.totalorder %s13, 0
    %p138 = por %p136, %p137
    %p139 = scmp.ne.s32.totalorder %s131, %s133
    %p140 = scmp.eq.s32.totalorder %s18, 1
    %p141 = por %p139, %p140
    %p142 = scmp.ne.s32.totalorder %s133, %s134
    %p143 = scmp.eq.s32.totalorder %s18, 0
    %p144 = por %p142, %p143
    %p145 = scmp.ne.s32.totalorder %s133, %s134
    %p146 = scmp.eq.s32.totalorder %s19, 1
    %p147 = por %p145, %p146
    %p149 = scmp.ne.s32.totalorder %s134, %s148
    %p150 = scmp.eq.s32.totalorder %s19, 0
    %p151 = por %p149, %p150
    %s153 = sadd.s32 %s152, 1
    %p156 = scmp.eq.s32.totalorder %s13, 1
    %p157 = scmp.ne.s32.totalorder %s152, %s154
    %p158 = scmp.eq.s32.totalorder %s13, 0
    %p159 = por %p157, %p158
    %p160 = scmp.ne.s32.totalorder %s152, %s154
    %p161 = scmp.eq.s32.totalorder %s18, 1
    %p162 = por %p160, %p161
    %p163 = scmp.ne.s32.totalorder %s154, %s155
    %p164 = scmp.eq.s32.totalorder %s18, 0
    %p165 = por %p163, %p164
    %p166 = scmp.ne.s32.totalorder %s154, %s155
    %p167 = scmp.eq.s32.totalorder %s19, 1
    %p168 = por %p166, %p167
    %p170 = scmp.ne.s32.totalorder %s155, %s169
    %p171 = scmp.eq.s32.totalorder %s19, 0
    %p172 = por %p170, %p171
    %s173 = ssub.s32 %s13, %s20
    %p174 = scmp.eq.s32.totalorder %s173, 0
    %s176 = sadd.s32 %s175, 1
    %s177 = scalar_select %p174, %s175, %s176
    %p180 = pneg %p174
    %p181 = scmp.eq.s32.totalorder %s13, 1
    %p182 = por %p180, %p181
    %p183 = scmp.ne.s32.totalorder %s175, %s178
    %p184 = scmp.eq.s32.totalorder %s13, 0
    %p185 = por %p183, %p184
    %p186 = scmp.ne.s32.totalorder %s175, %s178
    %p187 = scmp.eq.s32.totalorder %s18, 1
    %p188 = por %p186, %p187
    %p189 = scmp.ne.s32.totalorder %s178, %s179
    %p190 = scmp.eq.s32.totalorder %s18, 0
    %p191 = por %p189, %p190
    %p192 = scmp.ne.s32.totalorder %s178, %s179
    %p193 = scmp.eq.s32.totalorder %s19, 1
    %p194 = por %p192, %p193
    %p196 = scmp.ne.s32.totalorder %s179, %s195
    %p197 = scmp.eq.s32.totalorder %s19, 0
    %p198 = por %p196, %p197
    %p199 = scmp.le.s32.totalorder 1, %s13
    %p200 = scmp.lt.s32.totalorder %s13, 3
    %p201 = pnand %p199, %p200
    %p202 = pneg %p201
    // Predicated region
    $region9: #{albef_forward.19} parent=5 // pred_check
      _
    $region10: #{albef_forward.19} parent=5 // pred_check_branch
      %204 = sbr.rel (%p201) target = $region12
    $region11: #{albef_forward.19} parent=5 // pred_region
      %s205 = ssub.s32 %s13, 1
      // Predicated region
      $region13: #{albef_forward.19} parent=11 // pred_check
        %p206 = pneg %p60
      $region14: #{albef_forward.19} parent=11 // pred_check_branch
        %208 = sbr.rel (%p206) target = $region16
      $region15: #{albef_forward.19} parent=11 // pred_region
        _
      $region16: #{albef_forward.19} parent=11 // pred_fallthru
        _
      // Predicated region
      $region17: #{albef_forward.19} parent=11 // pred_check
        %p209 = pneg %p81
      $region18: #{albef_forward.19} parent=11 // pred_check_branch
        %211 = sbr.rel (%p209) target = $region20
      $region19: #{albef_forward.19} parent=11 // pred_region
        _
      $region20: #{albef_forward.19} parent=11 // pred_fallthru
        _
      // Predicated region
      $region21: #{albef_forward.19} parent=11 // pred_check
        %p212 = pneg %p102
      $region22: #{albef_forward.19} parent=11 // pred_check_branch
        %214 = sbr.rel (%p212) target = $region24
      $region23: #{albef_forward.19} parent=11 // pred_region
        _
      $region24: #{albef_forward.19} parent=11 // pred_fallthru
        _
      // Predicated region
      $region25: #{albef_forward.19} parent=11 // pred_check
        %p215 = pneg %p123
      $region26: #{albef_forward.19} parent=11 // pred_check_branch
        %217 = sbr.rel (%p215) target = $region28
      $region27: #{albef_forward.19} parent=11 // pred_region
        _
      $region28: #{albef_forward.19} parent=11 // pred_fallthru
        _
      // Predicated region
      $region29: #{albef_forward.19} parent=11 // pred_check
        %p218 = pneg %p144
      $region30: #{albef_forward.19} parent=11 // pred_check_branch
        %220 = sbr.rel (%p218) target = $region32
      $region31: #{albef_forward.19} parent=11 // pred_region
        _
      $region32: #{albef_forward.19} parent=11 // pred_fallthru
        _
      // Predicated region
      $region33: #{albef_forward.19} parent=11 // pred_check
        %p221 = pneg %p165
      $region34: #{albef_forward.19} parent=11 // pred_check_branch
        %223 = sbr.rel (%p221) target = $region36
      $region35: #{albef_forward.19} parent=11 // pred_region
        _
      $region36: #{albef_forward.19} parent=11 // pred_fallthru
        _
    $region12: #{albef_forward.19} parent=5 // pred_fallthru
      _
    %p224 = scmp.lt.s32.totalorder %s13, 2
    // Predicated region
    $region37: #{albef_forward.19} parent=5 // pred_check
      %p225 = pneg %p224
    $region38: #{albef_forward.19} parent=5 // pred_check_branch
      %227 = sbr.rel (%p225) target = $region40
    $region39: #{albef_forward.19} parent=5 // pred_region
      // Predicated region
      $region41: #{albef_forward.19} parent=39 // pred_check
        %p228 = pneg %p33
      $region42: #{albef_forward.19} parent=39 // pred_check_branch
        %230 = sbr.rel (%p228) target = $region44
      $region43: #{albef_forward.19} parent=39 // pred_region
        %p231 = scmp.lt.s32.totalorder %s13, 1
        %s232 = scalar_select %p231, %s13, 1
        %s233 = smul.addr %s232, 3
        %s234 = smul.addr %s233, 8
        %s235 = scalar_lea.vmem %s0, %s234
      $region44: #{albef_forward.19} parent=39 // pred_fallthru
        _
    $region40: #{albef_forward.19} parent=5 // pred_fallthru
      _
    %p236 = scmp.le.s32.totalorder 1, %s13
    %p237 = scmp.lt.s32.totalorder %s13, 3
    %p238 = pnand %p236, %p237
    %p239 = pneg %p238
    // Predicated region
    $region45: #{albef_forward.19} parent=5 // pred_check
      _
    $region46: #{albef_forward.19} parent=5 // pred_check_branch
      %241 = sbr.rel (%p238) target = $region48
    $region47: #{albef_forward.19} parent=5 // pred_region
      %s242 = ssub.s32 %s13, 1
      %p243 = scmp.lt.s32.totalorder %s18, 1
      %s244 = scalar_select %p243, %s18, 1
      %s245 = smul.addr %s244, 3
      %s246 = smul.addr %s245, 8
      %s247 = scalar_lea.vmem %s0, %s246
      %p248 = pneg %p39
      %p249 = pneg %p36
      %p250 = pneg %p60
      %p251 = pneg %p57
      %p252 = pneg %p81
      %p253 = pneg %p78
      %p254 = pneg %p102
      %p255 = pneg %p99
      %p256 = pneg %p123
      %p257 = pneg %p120
      %p258 = pneg %p144
      %p259 = pneg %p141
      %p260 = pneg %p165
      %p261 = pneg %p162
      %p262 = pneg %p191
      %p263 = pneg %p188
      %p264 = scmp.lt.s32.totalorder %s18, 1
      %s265 = scalar_select %p264, %s18, 1
      %s266 = smul.addr %s265, 3
      %s267 = smul.addr %s266, 8
      %s268 = scalar_lea.vmem %s7, %s267
      %p269 = scmp.lt.s32.totalorder %s18, 1
      %s270 = scalar_select %p269, %s18, 1
      %s271 = smul.addr %s270, 3
      %s272 = smul.addr %s271, 8
      %s273 = scalar_lea.vmem %s0, %s272
      %p274 = scmp.lt.s32.totalorder %s18, 1
      %s275 = scalar_select %p274, %s18, 1
      %s276 = smul.addr %s275, 3
      %s277 = smul.addr %s276, 8
      %s278 = scalar_lea.vmem %s7, %s277
      %v280 = vld [vmem:[%s273] sm:$0xff]
      %v281 = vld [vmem:[%s273 + $0x8] sm:$0xff]
      %v282 = vld [vmem:[%s273 + $0x10] sm:$0xff]
      %v283 = vld [vmem:[%s1] sm:$0x1]
      %v284 = vld [vmem:[%s2] sm:$0x1]
      %vm285 = vcmask 261120
      %v286 = vsel %vm285, %v280, 0.0
      %287 = vadd.xlane.f32.xlu0 %v286
      %v288 = vpop.xlane.xlu0 %287
      %v289 = vsel %vm285, %v281, 0.0
      %290 = vadd.xlane.f32.xlu0 %v289
      %v291 = vpop.xlane.xlu0 %290
      %v292 = vsel %vm285, %v282, 0.0
      %293 = vadd.xlane.f32.xlu0 %v292
      %v294 = vpop.xlane.xlu0 %293
      %v295 = vrcp.pop 32.0
      %v296 = vmul.f32 %v288, %v295
      %v297 = vmul.f32 %v291, %v295
      %v298 = vmul.f32 %v294, %v295
      %v299 = vsub.f32 %v280, %v296
      %v300 = vsub.f32 %v281, %v297
      %v301 = vsub.f32 %v282, %v298
      %v302 = vmul.f32 %v299, %v299
      %v303 = vmul.f32 %v300, %v300
      %v304 = vmul.f32 %v301, %v301
      %v305 = vsel %vm285, %v302, 0.0
      %306 = vadd.xlane.f32.xlu0 %v305
      %v307 = vpop.xlane.xlu0 %306
      %v308 = vsel %vm285, %v303, 0.0
      %309 = vadd.xlane.f32.xlu0 %v308
      %v310 = vpop.xlane.xlu0 %309
      %v311 = vsel %vm285, %v304, 0.0
      %312 = vadd.xlane.f32.xlu0 %v311
      %v313 = vpop.xlane.xlu0 %312
      %v314 = vmul.f32 %v307, %v295
      %v315 = vmul.f32 %v310, %v295
      %v316 = vmul.f32 %v313, %v295
      %v317 = vadd.f32 %v314, 1e-06
      %v318 = vadd.f32 %v315, 1e-06
      %v319 = vadd.f32 %v316, 1e-06
      %v320 = vrsqrt.pop %v317
      %v321 = vrsqrt.pop %v318
      %v322 = vrsqrt.pop %v319
      %v323 = vmul.f32 %v299, %v320
      %v324 = vmul.f32 %v300, %v321
      %v325 = vmul.f32 %v301, %v322
      %v327 = vlaneseq
      %v328 = vshrl.u32 %v327, 7
      %v329 = vsub.s32 0, %v328
      %v330 = vrot.slane %v283, %v329
      %v332 = vmul.f32 %v323, %v330
      %v333 = vmul.f32 %v324, %v330
      %v334 = vmul.f32 %v325, %v330
      %v336 = vlaneseq
      %v337 = vshrl.u32 %v336, 7
      %v338 = vsub.s32 0, %v337
      %v339 = vrot.slane %v284, %v338
      %v341 = vadd.f32 %v332, %v339
      %v342 = vadd.f32 %v333, %v339
      %v343 = vadd.f32 %v334, %v339
      %v344 = vpack.c.bf16 %v342, %v341
      %v345 = vpack.c.bf16 %v343, %v343
      %v346 = vld [vmem:[%s3] sm:$0xf]
      %v347 = vld [vmem:[%s3 + $0x4] sm:$0xf]
      %v348 = vld [vmem:[%s3 + $0x8] sm:$0xf]
      %v349 = vld [vmem:[%s3 + $0xc] sm:$0xf]
      %v350 = vld [vmem:[%s4] sm:$0x1]
      %v352 = vlaneseq
      %v353 = vshrl.u32 %v352, 7
      %v354 = vsub.s32 0, %v353
      %v355 = vrot.slane %v350, %v354
      %v361 = vunpack.c.l.b16 %v346
      %v362 = vunpack.c.l.b16 %v347
      %v363 = vunpack.c.l.b16 %v348
      %v364 = vunpack.c.l.b16 %v349
      %v365 = vpack.c.b16 %v362, %v361
      %v366 = vpack.c.b16 %v364, %v363
      %v370 = vsel %vm285, %v344, 0
      %v373 = vsel %vm285, %v345, 0
      %375 = vmatprep.subr.bf16.mxu0 0
      %376 = vmatpush1.bf16.msra.mxu0 0
      %377 = vmatprep.subr.bf16.mxu0 0
      %378 = vmatpush1.bf16.msra.mxu0 0
      %379 = vmatprep.subr.bf16.mxu0 0
      %380 = vmatpush1.bf16.msra.mxu0 0
      %381 = vmatprep.subr.bf16.mxu0 0
      %382 = vmatpush1.bf16.msra.mxu0 0
      %383 = vmatprep.subr.bf16.mxu0 0
      %384 = vmatpush1.bf16.msra.mxu0 0
      %385 = vmatprep.subr.bf16.mxu0 0
      %386 = vmatpush1.bf16.msra.mxu0 0
      %387 = vmatprep.subr.bf16.mxu0 0
      %388 = vmatpush1.bf16.msra.mxu0 %v366
      %389 = vmatprep.subr.bf16.mxu0 0
      %390 = vmatpush1.bf16.msra.mxu0 %v365
      %391 = vmatprep.subr.bf16.mxu0 0
      %392 = vmatpush2.bf16.msra.mxu0 0
      %393 = vmatprep.subr.bf16.mxu0 0
      %394 = vmatpush2.bf16.msra.mxu0 0
      %395 = vmatprep.subr.bf16.mxu0 0
      %396 = vmatpush2.bf16.msra.mxu0 0
      %397 = vmatprep.subr.bf16.mxu0 0
      %398 = vmatpush2.bf16.msra.mxu0 0
      %399 = vmatprep.subr.bf16.mxu0 0
      %400 = vmatpush2.bf16.msra.mxu0 0
      %401 = vmatprep.subr.bf16.mxu0 0
      %402 = vmatpush2.bf16.msra.mxu0 0
      %403 = vmatprep.subr.bf16.mxu0 0
      %404 = vmatpush2.bf16.msra.mxu0 0
      %405 = vmatprep.subr.bf16.mxu0 0
      %406 = vmatpush2.bf16.msra.mxu0 0
      %407 = vmatprep.mubr.bf16.mxu0 0
      %408 = vmatmul.mubr.bf16.gmra.mxu0 %v370
      %v409 = vpop.f32.mrf.mxu0
      %v410 = vadd.f32 %v355, %v409
      %v411 = vpop.f32.mrf.mxu0
      %v412 = vpop.f32.mrf.mxu0
      %v413 = vadd.f32 %v355, %v412
      %v414 = vpop.f32.mrf.mxu0
      %415 = vmatprep.mubr.bf16.mxu0 0
      %416 = vmatmul.mubr.bf16.gmra.mxu0 %v373
      %v417 = vpop.f32.mrf.mxu0
      %v418 = vadd.f32 %v355, %v417
      %v419 = vpop.f32.mrf.mxu0
      %v420 = vpop.f32.mrf.mxu0
      %v421 = vpop.f32.mrf.mxu0
      %422 = vdwg.mxu0
      %v423 = vmul.f32 %v410, %v410
      %v424 = vmul.f32 %v413, %v413
      %v425 = vmul.f32 %v418, %v418
      %v426 = vmul.f32 %v410, %v423
      %v427 = vmul.f32 %v413, %v424
      %v428 = vmul.f32 %v418, %v425
      %v429 = vmul.f32 %v426, 0.044715
      %v430 = vmul.f32 %v427, 0.044715
      %v431 = vmul.f32 %v428, 0.044715
      %v432 = vadd.f32 %v410, %v429
      %v433 = vadd.f32 %v413, %v430
      %v434 = vadd.f32 %v418, %v431
      %v435 = vmul.f32 %v432, 0.7978846
      %v436 = vmul.f32 %v433, 0.7978846
      %v437 = vmul.f32 %v434, 0.7978846
      %v438 = vtanh.pop %v435
      %v439 = vtanh.pop %v436
      %v440 = vtanh.pop %v437
      %v441 = vadd.f32 %v438, 1.0
      %v442 = vadd.f32 %v439, 1.0
      %v443 = vadd.f32 %v440, 1.0
      %v444 = vmul.f32 %v441, 0.5
      %v445 = vmul.f32 %v442, 0.5
      %v446 = vmul.f32 %v443, 0.5
      %v447 = vmul.f32 %v410, %v444
      %v448 = vmul.f32 %v413, %v445
      %v449 = vmul.f32 %v418, %v446
      %v450 = vpack.c.bf16 %v448, %v447
      %v451 = vpack.c.bf16 %v449, %v449
      %v452 = vld [vmem:[%s5] sm:$0xf]
      %v453 = vld [vmem:[%s5 + $0x4] sm:$0xf]
      %v454 = vld [vmem:[%s5 + $0x8] sm:$0xf]
      %v455 = vld [vmem:[%s5 + $0xc] sm:$0xf]
      %v456 = vld [vmem:[%s5 + $0x10] sm:$0xf]
      %v457 = vld [vmem:[%s5 + $0x14] sm:$0xf]
      %v458 = vld [vmem:[%s5 + $0x18] sm:$0xf]
      %v459 = vld [vmem:[%s5 + $0x1c] sm:$0xf]
      %v460 = vld [vmem:[%s5 + $0x20] sm:$0xf]
      %v461 = vld [vmem:[%s5 + $0x24] sm:$0xf]
      %v462 = vld [vmem:[%s5 + $0x28] sm:$0xf]
      %v463 = vld [vmem:[%s5 + $0x2c] sm:$0xf]
      %v464 = vld [vmem:[%s5 + $0x30] sm:$0xf]
      %v465 = vld [vmem:[%s5 + $0x34] sm:$0xf]
      %v466 = vld [vmem:[%s5 + $0x38] sm:$0xf]
      %v467 = vld [vmem:[%s5 + $0x3c] sm:$0xf]
      %v468 = vld [vmem:[%s6] sm:$0x1]
      %v470 = vlaneseq
      %v471 = vshrl.u32 %v470, 7
      %v472 = vsub.s32 0, %v471
      %v473 = vrot.slane %v468, %v472
      %v491 = vunpack.c.l.b16 %v452
      %v492 = vunpack.c.l.b16 %v453
      %v493 = vunpack.c.l.b16 %v454
      %v494 = vunpack.c.l.b16 %v455
      %v495 = vunpack.c.l.b16 %v456
      %v496 = vunpack.c.l.b16 %v457
      %v497 = vunpack.c.l.b16 %v458
      %v498 = vunpack.c.l.b16 %v459
      %v499 = vunpack.c.l.b16 %v460
      %v500 = vunpack.c.l.b16 %v461
      %v501 = vunpack.c.l.b16 %v462
      %v502 = vunpack.c.l.b16 %v463
      %v503 = vunpack.c.l.b16 %v464
      %v504 = vunpack.c.l.b16 %v465
      %v505 = vunpack.c.l.b16 %v466
      %v506 = vunpack.c.l.b16 %v467
      %v507 = vpack.c.b16 %v492, %v491
      %v508 = vpack.c.b16 %v494, %v493
      %v509 = vpack.c.b16 %v496, %v495
      %v510 = vpack.c.b16 %v498, %v497
      %v511 = vpack.c.b16 %v500, %v499
      %v512 = vpack.c.b16 %v502, %v501
      %v513 = vpack.c.b16 %v504, %v503
      %v514 = vpack.c.b16 %v506, %v505
      %523 = vmatprep.subr.bf16.mxu0 0
      %524 = vmatpush1.bf16.msra.mxu0 %v514
      %525 = vmatprep.subr.bf16.mxu0 0
      %526 = vmatpush1.bf16.msra.mxu0 %v513
      %527 = vmatprep.subr.bf16.mxu0 0
      %528 = vmatpush1.bf16.msra.mxu0 %v512
      %529 = vmatprep.subr.bf16.mxu0 0
      %530 = vmatpush1.bf16.msra.mxu0 %v511
      %531 = vmatprep.subr.bf16.mxu0 0
      %532 = vmatpush1.bf16.msra.mxu0 %v510
      %533 = vmatprep.subr.bf16.mxu0 0
      %534 = vmatpush1.bf16.msra.mxu0 %v509
      %535 = vmatprep.subr.bf16.mxu0 0
      %536 = vmatpush1.bf16.msra.mxu0 %v508
      %537 = vmatprep.subr.bf16.mxu0 0
      %538 = vmatpush1.bf16.msra.mxu0 %v507
      %539 = vmatprep.subr.bf16.mxu0 0
      %540 = vmatpush2.bf16.msra.mxu0 0
      %541 = vmatprep.subr.bf16.mxu0 0
      %542 = vmatpush2.bf16.msra.mxu0 0
      %543 = vmatprep.subr.bf16.mxu0 0
      %544 = vmatpush2.bf16.msra.mxu0 0
      %545 = vmatprep.subr.bf16.mxu0 0
      %546 = vmatpush2.bf16.msra.mxu0 0
      %547 = vmatprep.subr.bf16.mxu0 0
      %548 = vmatpush2.bf16.msra.mxu0 0
      %549 = vmatprep.subr.bf16.mxu0 0
      %550 = vmatpush2.bf16.msra.mxu0 0
      %551 = vmatprep.subr.bf16.mxu0 0
      %552 = vmatpush2.bf16.msra.mxu0 0
      %553 = vmatprep.subr.bf16.mxu0 0
      %554 = vmatpush2.bf16.msra.mxu0 0
      %555 = vmatprep.mubr.bf16.mxu0 0
      %556 = vmatmul.mubr.bf16.gmra.mxu0 %v450
      %v557 = vpop.f32.mrf.mxu0
      %v558 = vadd.f32 %v473, %v557
      %v559 = vpop.f32.mrf.mxu0
      %v560 = vpop.f32.mrf.mxu0
      %v561 = vadd.f32 %v473, %v560
      %v562 = vpop.f32.mrf.mxu0
      %563 = vmatprep.mubr.bf16.mxu0 0
      %564 = vmatmul.mubr.bf16.gmra.mxu0 %v451
      %v565 = vpop.f32.mrf.mxu0
      %v566 = vadd.f32 %v473, %v565
      %v567 = vpop.f32.mrf.mxu0
      %v568 = vpop.f32.mrf.mxu0
      %v569 = vpop.f32.mrf.mxu0
      %570 = vdwg.mxu0
      %v571 = vadd.f32 %v280, %v558
      %v572 = vadd.f32 %v281, %v561
      %v573 = vadd.f32 %v282, %v566
      %574 = vst.msk [vmem:[%s278] sm:$0xff] %vm285, %v571
      %575 = vst.msk [vmem:[%s278 + $0x8] sm:$0xff] %vm285, %v572
      %576 = vst.msk [vmem:[%s278 + $0x10] sm:$0xff] %vm285, %v573
      %p577 = scmp.lt.s32.totalorder %s18, 1
      %s578 = scalar_select %p577, %s18, 1
      %s579 = smul.addr %s578, 3
      %s580 = smul.addr %s579, 8
      %s581 = scalar_lea.vmem %s7, %s580
      // Predicated region
      $region49: #{albef_forward.19} parent=47 // pred_check
        %p582 = pneg %p188
      $region50: #{albef_forward.19} parent=47 // pred_check_branch
        %584 = sbr.rel (%p582) target = $region52
      $region51: #{albef_forward.19} parent=47 // pred_region
        _
      $region52: #{albef_forward.19} parent=47 // pred_fallthru
        _
    $region48: #{albef_forward.19} parent=5 // pred_fallthru
      _
    %p585 = scmp.le.s32.totalorder 2, %s13
    // Predicated region
    $region53: #{albef_forward.19} parent=5 // pred_check
      %p586 = pneg %p585
    $region54: #{albef_forward.19} parent=5 // pred_check_branch
      %588 = sbr.rel (%p586) target = $region56
    $region55: #{albef_forward.19} parent=5 // pred_region
      %s589 = ssub.s32 %s13, 2
      // Predicated region
      $region57: #{albef_forward.19} parent=55 // pred_check
        %p590 = pneg %p194
      $region58: #{albef_forward.19} parent=55 // pred_check_branch
        %592 = sbr.rel (%p590) target = $region60
      $region59: #{albef_forward.19} parent=55 // pred_region
        %p593 = scmp.lt.s32.totalorder %s19, 1
        %s594 = scalar_select %p593, %s19, 1
        %s595 = smul.addr %s594, 3
        %s596 = smul.addr %s595, 8
        %s597 = scalar_lea.vmem %s7, %s596
      $region60: #{albef_forward.19} parent=55 // pred_fallthru
        _
    $region56: #{albef_forward.19} parent=5 // pred_fallthru
      _
  $region6: #{albef_forward.19} parent=0 // loop_footer
    %s17 = sadd.s32 1, %s13
  $region7: #{albef_forward.19} parent=0 // loop_footer_branch
    %12 = sbr.rel target = $region3
  $region8: #{albef_forward.19} parent=0 // loop_exit
    _

// kernel: albef_forward.18
$region0: #{albef_forward.18}
  #allocation0 [shape = 'u32[]', space=smem, size = 0x4, offset = 0x4, fixed_abs, tag = 'smem constant byte address 0x4 - core index']
  #allocation1 [shape = 'u32[144,128]{1,0:T(1,128)}', space=vmem, size = 0x12000, scoped, tag = 'internal scratch']
  %s0 = inlined_call_operand.vmem [shape: f32[2,24,32], index: 0, kind: input, shape index: {}]
  %s1 = inlined_call_operand.vmem [shape: f32[1,32], index: 1, kind: input, shape index: {}]
  %s2 = inlined_call_operand.vmem [shape: f32[1,32], index: 2, kind: input, shape index: {}]
  %s3 = inlined_call_operand.vmem [shape: bf16[32,96], index: 3, kind: input, shape index: {}]
  %s4 = inlined_call_operand.vmem [shape: f32[1,96], index: 4, kind: input, shape index: {}]
  %s5 = inlined_call_operand.vmem [shape: bf16[32,32], index: 5, kind: input, shape index: {}]
  %s6 = inlined_call_operand.vmem [shape: f32[1,32], index: 6, kind: input, shape index: {}]
  %s7 = inlined_call_operand.vmem [shape: f32[1,1,24], index: 7, kind: input, shape index: {}]
  %s8 = inlined_call_operand.vmem [shape: f32[2,24,32], index: 8, kind: output, shape index: {}]
  %s9 = sld [smem:[#allocation0]]
  $region65: #{albef_forward.18} parent=0
    _
  %s11 = ssub.s32 1, %s9
  %s12 = scalar_select 0, %s11, %s9
  loop: start=0, step=1, limit=4
  $region2: #{albef_forward.18} parent=0 // loop_pre_header
    _
  $region3: #{albef_forward.18} parent=0 // loop_header
    %s14 = sphi 0, %s18
    %p15 = scmp.ge.s32.totalorder %s14, 4
    %s24 = sphi 0, %s26
    %s27 = sphi 0, %s24
    %s28 = sphi 0, %s27
    %s44 = sphi 0, %s28
    %s48 = sphi 0, %s48
    %s50 = sphi 0, %s48
    %s51 = sphi 0, %s50
    %s65 = sphi 0, %s51
    %s69 = sphi 0, %s69
    %s71 = sphi 0, %s69
    %s72 = sphi 0, %s71
    %s86 = sphi 0, %s72
    %s90 = sphi 0, %s90
    %s92 = sphi 0, %s90
    %s93 = sphi 0, %s92
    %s107 = sphi 0, %s93
    %s111 = sphi 0, %s111
    %s113 = sphi 0, %s111
    %s114 = sphi 0, %s113
    %s128 = sphi 0, %s114
    %s132 = sphi 0, %s132
    %s134 = sphi 0, %s132
    %s135 = sphi 0, %s134
    %s149 = sphi 0, %s135
    %s153 = sphi 0, %s153
    %s155 = sphi 0, %s153
    %s156 = sphi 0, %s155
    %s170 = sphi 0, %s156
    %s174 = sphi 0, %s174
    %s176 = sphi 0, %s174
    %s177 = sphi 0, %s176
    %s191 = sphi 0, %s177
    %s197 = sphi 0, %s199
    %s200 = sphi 0, %s197
    %s201 = sphi 0, %s200
    %s217 = sphi 0, %s201
  $region4: #{albef_forward.18} parent=0 // loop_header_branch
    %17 = sbr.rel (%p15) target = $region8
  $region5: #{albef_forward.18} parent=0 // loop_body
    %s19 = ssub.s32 %s14, 1
    %s20 = ssub.s32 %s14, 2
    %s21 = sadd.s32 %s14, 1
    %s22 = ssub.s32 %s14, %s21
    %p23 = scmp.eq.s32.totalorder %s22, 0
    %s25 = sadd.s32 %s24, 1
    %s26 = scalar_select %p23, %s24, %s25
    %p29 = pneg %p23
    %p30 = scmp.eq.s32.totalorder %s14, 1
    %p31 = por %p29, %p30
    %p32 = scmp.ne.s32.totalorder %s24, %s27
    %p33 = scmp.eq.s32.totalorder %s14, 0
    %p34 = por %p32, %p33
    %p35 = scmp.ne.s32.totalorder %s24, %s27
    %p36 = scmp.eq.s32.totalorder %s19, 1
    %p37 = por %p35, %p36
    %p38 = scmp.ne.s32.totalorder %s27, %s28
    %p39 = scmp.eq.s32.totalorder %s19, 0
    %p40 = por %p38, %p39
    %p41 = scmp.ne.s32.totalorder %s27, %s28
    %p42 = scmp.eq.s32.totalorder %s20, 1
    %p43 = por %p41, %p42
    %p45 = scmp.ne.s32.totalorder %s28, %s44
    %p46 = scmp.eq.s32.totalorder %s20, 0
    %p47 = por %p45, %p46
    %s49 = sadd.s32 %s48, 1
    %p52 = scmp.eq.s32.totalorder %s14, 1
    %p53 = scmp.ne.s32.totalorder %s48, %s50
    %p54 = scmp.eq.s32.totalorder %s14, 0
    %p55 = por %p53, %p54
    %p56 = scmp.ne.s32.totalorder %s48, %s50
    %p57 = scmp.eq.s32.totalorder %s19, 1
    %p58 = por %p56, %p57
    %p59 = scmp.ne.s32.totalorder %s50, %s51
    %p60 = scmp.eq.s32.totalorder %s19, 0
    %p61 = por %p59, %p60
    %p62 = scmp.ne.s32.totalorder %s50, %s51
    %p63 = scmp.eq.s32.totalorder %s20, 1
    %p64 = por %p62, %p63
    %p66 = scmp.ne.s32.totalorder %s51, %s65
    %p67 = scmp.eq.s32.totalorder %s20, 0
    %p68 = por %p66, %p67
    %s70 = sadd.s32 %s69, 1
    %p73 = scmp.eq.s32.totalorder %s14, 1
    %p74 = scmp.ne.s32.totalorder %s69, %s71
    %p75 = scmp.eq.s32.totalorder %s14, 0
    %p76 = por %p74, %p75
    %p77 = scmp.ne.s32.totalorder %s69, %s71
    %p78 = scmp.eq.s32.totalorder %s19, 1
    %p79 = por %p77, %p78
    %p80 = scmp.ne.s32.totalorder %s71, %s72
    %p81 = scmp.eq.s32.totalorder %s19, 0
    %p82 = por %p80, %p81
    %p83 = scmp.ne.s32.totalorder %s71, %s72
    %p84 = scmp.eq.s32.totalorder %s20, 1
    %p85 = por %p83, %p84
    %p87 = scmp.ne.s32.totalorder %s72, %s86
    %p88 = scmp.eq.s32.totalorder %s20, 0
    %p89 = por %p87, %p88
    %s91 = sadd.s32 %s90, 1
    %p94 = scmp.eq.s32.totalorder %s14, 1
    %p95 = scmp.ne.s32.totalorder %s90, %s92
    %p96 = scmp.eq.s32.totalorder %s14, 0
    %p97 = por %p95, %p96
    %p98 = scmp.ne.s32.totalorder %s90, %s92
    %p99 = scmp.eq.s32.totalorder %s19, 1
    %p100 = por %p98, %p99
    %p101 = scmp.ne.s32.totalorder %s92, %s93
    %p102 = scmp.eq.s32.totalorder %s19, 0
    %p103 = por %p101, %p102
    %p104 = scmp.ne.s32.totalorder %s92, %s93
    %p105 = scmp.eq.s32.totalorder %s20, 1
    %p106 = por %p104, %p105
    %p108 = scmp.ne.s32.totalorder %s93, %s107
    %p109 = scmp.eq.s32.totalorder %s20, 0
    %p110 = por %p108, %p109
    %s112 = sadd.s32 %s111, 1
    %p115 = scmp.eq.s32.totalorder %s14, 1
    %p116 = scmp.ne.s32.totalorder %s111, %s113
    %p117 = scmp.eq.s32.totalorder %s14, 0
    %p118 = por %p116, %p117
    %p119 = scmp.ne.s32.totalorder %s111, %s113
    %p120 = scmp.eq.s32.totalorder %s19, 1
    %p121 = por %p119, %p120
    %p122 = scmp.ne.s32.totalorder %s113, %s114
    %p123 = scmp.eq.s32.totalorder %s19, 0
    %p124 = por %p122, %p123
    %p125 = scmp.ne.s32.totalorder %s113, %s114
    %p126 = scmp.eq.s32.totalorder %s20, 1
    %p127 = por %p125, %p126
    %p129 = scmp.ne.s32.totalorder %s114, %s128
    %p130 = scmp.eq.s32.totalorder %s20, 0
    %p131 = por %p129, %p130
    %s133 = sadd.s32 %s132, 1
    %p136 = scmp.eq.s32.totalorder %s14, 1
    %p137 = scmp.ne.s32.totalorder %s132, %s134
    %p138 = scmp.eq.s32.totalorder %s14, 0
    %p139 = por %p137, %p138
    %p140 = scmp.ne.s32.totalorder %s132, %s134
    %p141 = scmp.eq.s32.totalorder %s19, 1
    %p142 = por %p140, %p141
    %p143 = scmp.ne.s32.totalorder %s134, %s135
    %p144 = scmp.eq.s32.totalorder %s19, 0
    %p145 = por %p143, %p144
    %p146 = scmp.ne.s32.totalorder %s134, %s135
    %p147 = scmp.eq.s32.totalorder %s20, 1
    %p148 = por %p146, %p147
    %p150 = scmp.ne.s32.totalorder %s135, %s149
    %p151 = scmp.eq.s32.totalorder %s20, 0
    %p152 = por %p150, %p151
    %s154 = sadd.s32 %s153, 1
    %p157 = scmp.eq.s32.totalorder %s14, 1
    %p158 = scmp.ne.s32.totalorder %s153, %s155
    %p159 = scmp.eq.s32.totalorder %s14, 0
    %p160 = por %p158, %p159
    %p161 = scmp.ne.s32.totalorder %s153, %s155
    %p162 = scmp.eq.s32.totalorder %s19, 1
    %p163 = por %p161, %p162
    %p164 = scmp.ne.s32.totalorder %s155, %s156
    %p165 = scmp.eq.s32.totalorder %s19, 0
    %p166 = por %p164, %p165
    %p167 = scmp.ne.s32.totalorder %s155, %s156
    %p168 = scmp.eq.s32.totalorder %s20, 1
    %p169 = por %p167, %p168
    %p171 = scmp.ne.s32.totalorder %s156, %s170
    %p172 = scmp.eq.s32.totalorder %s20, 0
    %p173 = por %p171, %p172
    %s175 = sadd.s32 %s174, 1
    %p178 = scmp.eq.s32.totalorder %s14, 1
    %p179 = scmp.ne.s32.totalorder %s174, %s176
    %p180 = scmp.eq.s32.totalorder %s14, 0
    %p181 = por %p179, %p180
    %p182 = scmp.ne.s32.totalorder %s174, %s176
    %p183 = scmp.eq.s32.totalorder %s19, 1
    %p184 = por %p182, %p183
    %p185 = scmp.ne.s32.totalorder %s176, %s177
    %p186 = scmp.eq.s32.totalorder %s19, 0
    %p187 = por %p185, %p186
    %p188 = scmp.ne.s32.totalorder %s176, %s177
    %p189 = scmp.eq.s32.totalorder %s20, 1
    %p190 = por %p188, %p189
    %p192 = scmp.ne.s32.totalorder %s177, %s191
    %p193 = scmp.eq.s32.totalorder %s20, 0
    %p194 = por %p192, %p193
    %s195 = ssub.s32 %s14, %s21
    %p196 = scmp.eq.s32.totalorder %s195, 0
    %s198 = sadd.s32 %s197, 1
    %s199 = scalar_select %p196, %s197, %s198
    %p202 = pneg %p196
    %p203 = scmp.eq.s32.totalorder %s14, 1
    %p204 = por %p202, %p203
    %p205 = scmp.ne.s32.totalorder %s197, %s200
    %p206 = scmp.eq.s32.totalorder %s14, 0
    %p207 = por %p205, %p206
    %p208 = scmp.ne.s32.totalorder %s197, %s200
    %p209 = scmp.eq.s32.totalorder %s19, 1
    %p210 = por %p208, %p209
    %p211 = scmp.ne.s32.totalorder %s200, %s201
    %p212 = scmp.eq.s32.totalorder %s19, 0
    %p213 = por %p211, %p212
    %p214 = scmp.ne.s32.totalorder %s200, %s201
    %p215 = scmp.eq.s32.totalorder %s20, 1
    %p216 = por %p214, %p215
    %p218 = scmp.ne.s32.totalorder %s201, %s217
    %p219 = scmp.eq.s32.totalorder %s20, 0
    %p220 = por %p218, %p219
    %p221 = scmp.le.s32.totalorder 1, %s14
    %p222 = scmp.lt.s32.totalorder %s14, 3
    %p223 = pnand %p221, %p222
    %p224 = pneg %p223
    // Predicated region
    $region9: #{albef_forward.18} parent=5 // pred_check
      _
    $region10: #{albef_forward.18} parent=5 // pred_check_branch
      %226 = sbr.rel (%p223) target = $region12
    $region11: #{albef_forward.18} parent=5 // pred_region
      %s227 = ssub.s32 %s14, 1
      // Predicated region
      $region13: #{albef_forward.18} parent=11 // pred_check
        %p228 = pneg %p61
      $region14: #{albef_forward.18} parent=11 // pred_check_branch
        %230 = sbr.rel (%p228) target = $region16
      $region15: #{albef_forward.18} parent=11 // pred_region
        _
      $region16: #{albef_forward.18} parent=11 // pred_fallthru
        _
      // Predicated region
      $region17: #{albef_forward.18} parent=11 // pred_check
        %p231 = pneg %p82
      $region18: #{albef_forward.18} parent=11 // pred_check_branch
        %233 = sbr.rel (%p231) target = $region20
      $region19: #{albef_forward.18} parent=11 // pred_region
        _
      $region20: #{albef_forward.18} parent=11 // pred_fallthru
        _
      // Predicated region
      $region21: #{albef_forward.18} parent=11 // pred_check
        %p234 = pneg %p103
      $region22: #{albef_forward.18} parent=11 // pred_check_branch
        %236 = sbr.rel (%p234) target = $region24
      $region23: #{albef_forward.18} parent=11 // pred_region
        _
      $region24: #{albef_forward.18} parent=11 // pred_fallthru
        _
      // Predicated region
      $region25: #{albef_forward.18} parent=11 // pred_check
        %p237 = pneg %p124
      $region26: #{albef_forward.18} parent=11 // pred_check_branch
        %239 = sbr.rel (%p237) target = $region28
      $region27: #{albef_forward.18} parent=11 // pred_region
        _
      $region28: #{albef_forward.18} parent=11 // pred_fallthru
        _
      // Predicated region
      $region29: #{albef_forward.18} parent=11 // pred_check
        %p240 = pneg %p145
      $region30: #{albef_forward.18} parent=11 // pred_check_branch
        %242 = sbr.rel (%p240) target = $region32
      $region31: #{albef_forward.18} parent=11 // pred_region
        _
      $region32: #{albef_forward.18} parent=11 // pred_fallthru
        _
      // Predicated region
      $region33: #{albef_forward.18} parent=11 // pred_check
        %p243 = pneg %p166
      $region34: #{albef_forward.18} parent=11 // pred_check_branch
        %245 = sbr.rel (%p243) target = $region36
      $region35: #{albef_forward.18} parent=11 // pred_region
        _
      $region36: #{albef_forward.18} parent=11 // pred_fallthru
        _
      // Predicated region
      $region37: #{albef_forward.18} parent=11 // pred_check
        %p246 = pneg %p187
      $region38: #{albef_forward.18} parent=11 // pred_check_branch
        %248 = sbr.rel (%p246) target = $region40
      $region39: #{albef_forward.18} parent=11 // pred_region
        _
      $region40: #{albef_forward.18} parent=11 // pred_fallthru
        _
    $region12: #{albef_forward.18} parent=5 // pred_fallthru
      _
    %p249 = scmp.lt.s32.totalorder %s14, 2
    // Predicated region
    $region41: #{albef_forward.18} parent=5 // pred_check
      %p250 = pneg %p249
    $region42: #{albef_forward.18} parent=5 // pred_check_branch
      %252 = sbr.rel (%p250) target = $region44
    $region43: #{albef_forward.18} parent=5 // pred_region
      // Predicated region
      $region45: #{albef_forward.18} parent=43 // pred_check
        %p253 = pneg %p34
      $region46: #{albef_forward.18} parent=43 // pred_check_branch
        %255 = sbr.rel (%p253) target = $region48
      $region47: #{albef_forward.18} parent=43 // pred_region
        %p256 = scmp.lt.s32.totalorder %s14, 1
        %s257 = scalar_select %p256, %s14, 1
        %s258 = smul.addr %s257, 3
        %s259 = smul.addr %s258, 8
        %s260 = scalar_lea.vmem %s0, %s259
      $region48: #{albef_forward.18} parent=43 // pred_fallthru
        _
    $region44: #{albef_forward.18} parent=5 // pred_fallthru
      _
    %p261 = scmp.le.s32.totalorder 1, %s14
    %p262 = scmp.lt.s32.totalorder %s14, 3
    %p263 = pnand %p261, %p262
    %p264 = pneg %p263
    // Predicated region
    $region49: #{albef_forward.18} parent=5 // pred_check
      _
    $region50: #{albef_forward.18} parent=5 // pred_check_branch
      %266 = sbr.rel (%p263) target = $region52
    $region51: #{albef_forward.18} parent=5 // pred_region
      %s267 = ssub.s32 %s14, 1
      %p268 = scmp.lt.s32.totalorder %s19, 1
      %s269 = scalar_select %p268, %s19, 1
      %s270 = smul.addr %s269, 3
      %s271 = smul.addr %s270, 8
      %s272 = scalar_lea.vmem %s0, %s271
      %p273 = pneg %p40
      %p274 = pneg %p37
      %p275 = pneg %p61
      %p276 = pneg %p58
      %p277 = pneg %p82
      %p278 = pneg %p79
      %p279 = pneg %p103
      %p280 = pneg %p100
      %p281 = pneg %p124
      %p282 = pneg %p121
      %p283 = pneg %p145
      %p284 = pneg %p142
      %p285 = pneg %p166
      %p286 = pneg %p163
      %p287 = pneg %p187
      %p288 = pneg %p184
      %p289 = pneg %p213
      %p290 = pneg %p210
      %p291 = scmp.lt.s32.totalorder %s19, 1
      %s292 = scalar_select %p291, %s19, 1
      %s293 = smul.addr %s292, 3
      %s294 = smul.addr %s293, 8
      %s295 = scalar_lea.vmem %s8, %s294
      %p296 = scmp.lt.s32.totalorder %s19, 1
      %s297 = scalar_select %p296, %s19, 1
      %s298 = smul.addr %s297, 3
      %s299 = smul.addr %s298, 8
      %s300 = scalar_lea.vmem %s0, %s299
      %p301 = scmp.lt.s32.totalorder %s19, 1
      %s302 = scalar_select %p301, %s19, 1
      %s303 = smul.addr %s302, 3
      %s304 = smul.addr %s303, 8
      %s305 = scalar_lea.vmem %s8, %s304
      %v307 = vld [vmem:[%s300] sm:$0xff]
      %v308 = vld [vmem:[%s300 + $0x8] sm:$0xff]
      %v309 = vld [vmem:[%s300 + $0x10] sm:$0xff]
      %v310 = vld [vmem:[%s1] sm:$0x1]
      %v311 = vld [vmem:[%s2] sm:$0x1]
      %vm312 = vcmask 261120
      %v313 = vsel %vm312, %v307, 0.0
      %314 = vadd.xlane.f32.xlu0 %v313
      %v315 = vpop.xlane.xlu0 %314
      %v316 = vsel %vm312, %v308, 0.0
      %317 = vadd.xlane.f32.xlu0 %v316
      %v318 = vpop.xlane.xlu0 %317
      %v319 = vsel %vm312, %v309, 0.0
      %320 = vadd.xlane.f32.xlu0 %v319
      %v321 = vpop.xlane.xlu0 %320
      %v322 = vrcp.pop 32.0
      %v323 = vmul.f32 %v315, %v322
      %v324 = vmul.f32 %v318, %v322
      %v325 = vmul.f32 %v321, %v322
      %v326 = vsub.f32 %v307, %v323
      %v327 = vsub.f32 %v308, %v324
      %v328 = vsub.f32 %v309, %v325
      %v329 = vmul.f32 %v326, %v326
      %v330 = vmul.f32 %v327, %v327
      %v331 = vmul.f32 %v328, %v328
      %v332 = vsel %vm312, %v329, 0.0
      %333 = vadd.xlane.f32.xlu0 %v332
      %v334 = vpop.xlane.xlu0 %333
      %v335 = vsel %vm312, %v330, 0.0
      %336 = vadd.xlane.f32.xlu0 %v335
      %v337 = vpop.xlane.xlu0 %336
      %v338 = vsel %vm312, %v331, 0.0
      %339 = vadd.xlane.f32.xlu0 %v338
      %v340 = vpop.xlane.xlu0 %339
      %v341 = vmul.f32 %v334, %v322
      %v342 = vmul.f32 %v337, %v322
      %v343 = vmul.f32 %v340, %v322
      %v344 = vadd.f32 %v341, 1e-06
      %v345 = vadd.f32 %v342, 1e-06
      %v346 = vadd.f32 %v343, 1e-06
      %v347 = vrsqrt.pop %v344
      %v348 = vrsqrt.pop %v345
      %v349 = vrsqrt.pop %v346
      %v350 = vmul.f32 %v326, %v347
      %v351 = vmul.f32 %v327, %v348
      %v352 = vmul.f32 %v328, %v349
      %v354 = vlaneseq
      %v355 = vshrl.u32 %v354, 7
      %v356 = vsub.s32 0, %v355
      %v357 = vrot.slane %v310, %v356
      %v359 = vmul.f32 %v350, %v357
      %v360 = vmul.f32 %v351, %v357
      %v361 = vmul.f32 %v352, %v357
      %v363 = vlaneseq
      %v364 = vshrl.u32 %v363, 7
      %v365 = vsub.s32 0, %v364
      %v366 = vrot.slane %v311, %v365
      %v368 = vadd.f32 %v359, %v366
      %v369 = vadd.f32 %v360, %v366
      %v370 = vadd.f32 %v361, %v366
      %v371 = vpack.c.bf16 %v369, %v368
      %v372 = vpack.c.bf16 %v370, %v370
      %v373 = vld [vmem:[%s3] sm:$0xf]
      %v374 = vld [vmem:[%s3 + $0x4] sm:$0xf]
      %v375 = vld [vmem:[%s3 + $0x8] sm:$0xf]
      %v376 = vld [vmem:[%s3 + $0xc] sm:$0xf]
      %v377 = vld [vmem:[%s4] sm:$0x1]
      %v379 = vlaneseq
      %v380 = vshrl.u32 %v379, 7
      %v381 = vsub.s32 0, %v380
      %v382 = vrot.slane %v377, %v381
      %v388 = vunpack.c.l.b16 %v373
      %v389 = vunpack.c.l.b16 %v374
      %v390 = vunpack.c.l.b16 %v375
      %v391 = vunpack.c.l.b16 %v376
      %v392 = vpack.c.b16 %v389, %v388
      %v393 = vpack.c.b16 %v391, %v390
      %v397 = vsel %vm312, %v371, 0
      %v400 = vsel %vm312, %v372, 0
      %402 = vmatprep.subr.bf16.mxu0 0
      %403 = vmatpush1.bf16.msra.mxu0 0
      %404 = vmatprep.subr.bf16.mxu0 0
      %405 = vmatpush1.bf16.msra.mxu0 0
      %406 = vmatprep.subr.bf16.mxu0 0
      %407 = vmatpush1.bf16.msra.mxu0 0
      %408 = vmatprep.subr.bf16.mxu0 0
      %409 = vmatpush1.bf16.msra.mxu0 0
      %410 = vmatprep.subr.bf16.mxu0 0
      %411 = vmatpush1.bf16.msra.mxu0 0
      %412 = vmatprep.subr.bf16.mxu0 0
      %413 = vmatpush1.bf16.msra.mxu0 0
      %414 = vmatprep.subr.bf16.mxu0 0
      %415 = vmatpush1.bf16.msra.mxu0 %v393
      %416 = vmatprep.subr.bf16.mxu0 0
      %417 = vmatpush1.bf16.msra.mxu0 %v392
      %418 = vmatprep.subr.bf16.mxu0 0
      %419 = vmatpush2.bf16.msra.mxu0 0
      %420 = vmatprep.subr.bf16.mxu0 0
      %421 = vmatpush2.bf16.msra.mxu0 0
      %422 = vmatprep.subr.bf16.mxu0 0
      %423 = vmatpush2.bf16.msra.mxu0 0
      %424 = vmatprep.subr.bf16.mxu0 0
      %425 = vmatpush2.bf16.msra.mxu0 0
      %426 = vmatprep.subr.bf16.mxu0 0
      %427 = vmatpush2.bf16.msra.mxu0 0
      %428 = vmatprep.subr.bf16.mxu0 0
      %429 = vmatpush2.bf16.msra.mxu0 0
      %430 = vmatprep.subr.bf16.mxu0 0
      %431 = vmatpush2.bf16.msra.mxu0 0
      %432 = vmatprep.subr.bf16.mxu0 0
      %433 = vmatpush2.bf16.msra.mxu0 0
      %434 = vmatprep.mubr.bf16.mxu0 0
      %435 = vmatmul.mubr.bf16.gmra.mxu0 %v397
      %v436 = vpop.f32.mrf.mxu0
      %v437 = vadd.f32 %v382, %v436
      %v438 = vpop.f32.mrf.mxu0
      %v439 = vpop.f32.mrf.mxu0
      %v440 = vadd.f32 %v382, %v439
      %v441 = vpop.f32.mrf.mxu0
      %442 = vmatprep.mubr.bf16.mxu0 0
      %443 = vmatmul.mubr.bf16.gmra.mxu0 %v400
      %v444 = vpop.f32.mrf.mxu0
      %v445 = vadd.f32 %v382, %v444
      %v446 = vpop.f32.mrf.mxu0
      %v447 = vpop.f32.mrf.mxu0
      %v448 = vpop.f32.mrf.mxu0
      %449 = vdwg.mxu0
      %v450 = vld [vmem:[%s7] sm:$0x1]
      %v451 = vpack.c.bf16 %v440, %v437
      %v452 = vpack.c.bf16 %v445, %v445
      %455 = vrot.lane.b32.xlu0 %v451, 96
      %v456 = vpop.permute.xlu0 %455
      %457 = vrot.lane.b32.xlu0 %v452, 96
      %v458 = vpop.permute.xlu0 %457
      %vm459 = vcmask 64512
      %v461 = vsel %vm459, %v451, 0
      %v464 = vsel %vm459, %v452, 0
      %v467 = vsel %vm459, %v456, 0
      %v470 = vsel %vm459, %v458, 0
      %472 = vmatprep.subr.bf16.mxu0 0
      %473 = vmatpush1.bf16.xpose.msra.mxu0 0
      %474 = vmatprep.subr.bf16.mxu0 0
      %475 = vmatpush1.bf16.xpose.msra.mxu0 0
      %476 = vmatprep.subr.bf16.mxu0 0
      %477 = vmatpush1.bf16.xpose.msra.mxu0 0
      %478 = vmatprep.subr.bf16.mxu0 0
      %479 = vmatpush1.bf16.xpose.msra.mxu0 0
      %480 = vmatprep.subr.bf16.mxu0 0
      %481 = vmatpush1.bf16.xpose.msra.mxu0 0
      %482 = vmatprep.subr.bf16.mxu0 0
      %483 = vmatpush1.bf16.xpose.msra.mxu0 0
      %484 = vmatprep.subr.bf16.mxu0 0
      %485 = vmatpush1.bf16.xpose.msra.mxu0 %v470
      %486 = vmatprep.subr.bf16.mxu0 0
      %487 = vmatpush1.bf16.xpose.msra.mxu0 %v467
      %488 = vmatprep.subr.bf16.mxu0 0
      %489 = vmatpush2.bf16.xpose.msra.mxu0 0
      %490 = vmatprep.subr.bf16.mxu0 0
      %491 = vmatpush2.bf16.xpose.msra.mxu0 0
      %492 = vmatprep.subr.bf16.mxu0 0
      %493 = vmatpush2.bf16.xpose.msra.mxu0 0
      %494 = vmatprep.subr.bf16.mxu0 0
      %495 = vmatpush2.bf16.xpose.msra.mxu0 0
      %496 = vmatprep.subr.bf16.mxu0 0
      %497 = vmatpush2.bf16.xpose.msra.mxu0 0
      %498 = vmatprep.subr.bf16.mxu0 0
      %499 = vmatpush2.bf16.xpose.msra.mxu0 0
      %500 = vmatprep.subr.bf16.mxu0 0
      %501 = vmatpush2.bf16.xpose.msra.mxu0 0
      %502 = vmatprep.subr.bf16.mxu0 0
      %503 = vmatpush2.bf16.xpose.msra.mxu0 0
      %504 = vmatprep.mubr.bf16.mxu0 0
      %505 = vmatmul.mubr.bf16.gmra.mxu0 %v461
      %v506 = vpop.f32.mrf.mxu0
      %v507 = vadd.f32 0.0, %v506
      %v508 = vpop.f32.mrf.mxu0
      %v509 = vpop.f32.mrf.mxu0
      %v510 = vadd.f32 0.0, %v509
      %v511 = vpop.f32.mrf.mxu0
      %512 = vmatprep.mubr.bf16.mxu0 0
      %513 = vmatmul.mubr.bf16.gmra.mxu0 %v464
      %v514 = vpop.f32.mrf.mxu0
      %v515 = vadd.f32 0.0, %v514
      %v516 = vpop.f32.mrf.mxu0
      %v517 = vpop.f32.mrf.mxu0
      %v518 = vpop.f32.mrf.mxu0
      %519 = vdwg.mxu0
      %v520 = vmul.f32 %v507, 0.35355338
      %v521 = vmul.f32 %v510, 0.35355338
      %v522 = vmul.f32 %v515, 0.35355338
      %v524 = vlaneseq
      %v525 = vshrl.u32 %v524, 7
      %v526 = vsub.s32 0, %v525
      %v527 = vrot.slane %v450, %v526
      %v529 = vadd.f32 %v520, %v527
      %v530 = vadd.f32 %v521, %v527
      %v531 = vadd.f32 %v522, %v527
      %vm532 = vcmask 195584
      %v533 = vsel %vm532, %v529, -inf
      %534 = vmax.xlane.f32.xlu0 %v533
      %v535 = vpop.xlane.xlu0 %534
      %v536 = vsel %vm532, %v530, -inf
      %537 = vmax.xlane.f32.xlu0 %v536
      %v538 = vpop.xlane.xlu0 %537
      %v539 = vsel %vm532, %v531, -inf
      %540 = vmax.xlane.f32.xlu0 %v539
      %v541 = vpop.xlane.xlu0 %540
      %v542 = vsub.f32 %v529, %v535
      %v543 = vsub.f32 %v530, %v538
      %v544 = vsub.f32 %v531, %v541
      %v545 = vmul.f32 %v542, 1.442695
      %v546 = vpow.pop %v545
      %v547 = vmul.f32 %v543, 1.442695
      %v548 = vpow.pop %v547
      %v549 = vmul.f32 %v544, 1.442695
      %v550 = vpow.pop %v549
      %v551 = vsel %vm532, %v546, 0.0
      %552 = vadd.xlane.f32.xlu0 %v551
      %v553 = vpop.xlane.xlu0 %552
      %v554 = vsel %vm532, %v548, 0.0
      %555 = vadd.xlane.f32.xlu0 %v554
      %v556 = vpop.xlane.xlu0 %555
      %v557 = vsel %vm532, %v550, 0.0
      %558 = vadd.xlane.f32.xlu0 %v557
      %v559 = vpop.xlane.xlu0 %558
      %v560 = vrcp.pop %v553
      %v561 = vrcp.pop %v556
      %v562 = vrcp.pop %v559
      %v563 = vmul.f32 %v546, %v560
      %v564 = vmul.f32 %v548, %v561
      %v565 = vmul.f32 %v550, %v562
      %v566 = vpack.c.bf16 %v564, %v563
      %v567 = vpack.c.bf16 %v565, %v565
      %568 = vrot.lane.b32.xlu0 %v451, 64
      %v569 = vpop.permute.xlu0 %568
      %570 = vrot.lane.b32.xlu0 %v452, 64
      %v571 = vpop.permute.xlu0 %570
      %v574 = vsel %vm532, %v566, 0
      %v577 = vsel %vm532, %v567, 0
      %vm579 = vcmask 1043456
      %v581 = vsel %vm579, %v571, 0
      %583 = vmatprep.subr.bf16.mxu0 0
      %584 = vmatpush1.bf16.msra.mxu0 0
      %585 = vmatprep.subr.bf16.mxu0 0
      %586 = vmatpush1.bf16.msra.mxu0 0
      %587 = vmatprep.subr.bf16.mxu0 0
      %588 = vmatpush1.bf16.msra.mxu0 0
      %589 = vmatprep.subr.bf16.mxu0 0
      %590 = vmatpush1.bf16.msra.mxu0 0
      %591 = vmatprep.subr.bf16.mxu0 0
      %592 = vmatpush1.bf16.msra.mxu0 0
      %593 = vmatprep.subr.bf16.mxu0 0
      %594 = vmatpush1.bf16.msra.mxu0 0
      %595 = vmatprep.subr.bf16.mxu0 0
      %596 = vmatpush1.bf16.msra.mxu0 %v581
      %597 = vmatprep.subr.bf16.mxu0 0
      %598 = vmatpush1.bf16.msra.mxu0 %v569
      %599 = vmatprep.subr.bf16.mxu0 0
      %600 = vmatpush2.bf16.msra.mxu0 0
      %601 = vmatprep.subr.bf16.mxu0 0
      %602 = vmatpush2.bf16.msra.mxu0 0
      %603 = vmatprep.subr.bf16.mxu0 0
      %604 = vmatpush2.bf16.msra.mxu0 0
      %605 = vmatprep.subr.bf16.mxu0 0
      %606 = vmatpush2.bf16.msra.mxu0 0
      %607 = vmatprep.subr.bf16.mxu0 0
      %608 = vmatpush2.bf16.msra.mxu0 0
      %609 = vmatprep.subr.bf16.mxu0 0
      %610 = vmatpush2.bf16.msra.mxu0 0
      %611 = vmatprep.subr.bf16.mxu0 0
      %612 = vmatpush2.bf16.msra.mxu0 0
      %613 = vmatprep.subr.bf16.mxu0 0
      %614 = vmatpush2.bf16.msra.mxu0 0
      %615 = vmatprep.mubr.bf16.mxu0 0
      %616 = vmatmul.mubr.bf16.gmra.mxu0 %v574
      %v617 = vpop.f32.mrf.mxu0
      %v618 = vadd.f32 0.0, %v617
      %v619 = vpop.f32.mrf.mxu0
      %v620 = vpop.f32.mrf.mxu0
      %v621 = vadd.f32 0.0, %v620
      %v622 = vpop.f32.mrf.mxu0
      %623 = vmatprep.mubr.bf16.mxu0 0
      %624 = vmatmul.mubr.bf16.gmra.mxu0 %v577
      %v625 = vpop.f32.mrf.mxu0
      %v626 = vadd.f32 0.0, %v625
      %v627 = vpop.f32.mrf.mxu0
      %v628 = vpop.f32.mrf.mxu0
      %v629 = vpop.f32.mrf.mxu0
      %630 = vdwg.mxu0
      %631 = vrot.lane.b32.xlu0 %v451, 120
      %v632 = vpop.permute.xlu0 %631
      %633 = vrot.lane.b32.xlu0 %v452, 120
      %v634 = vpop.permute.xlu0 %633
      %635 = vrot.lane.b32.xlu0 %v451, 88
      %v636 = vpop.permute.xlu0 %635
      %637 = vrot.lane.b32.xlu0 %v452, 88
      %v638 = vpop.permute.xlu0 %637
      %v640 = vsel %vm459, %v632, 0
      %v643 = vsel %vm459, %v634, 0
      %v646 = vsel %vm459, %v636, 0
      %v649 = vsel %vm459, %v638, 0
      %651 = vmatprep.subr.bf16.mxu0 0
      %652 = vmatpush1.bf16.xpose.msra.mxu0 0
      %653 = vmatprep.subr.bf16.mxu0 0
      %654 = vmatpush1.bf16.xpose.msra.mxu0 0
      %655 = vmatprep.subr.bf16.mxu0 0
      %656 = vmatpush1.bf16.xpose.msra.mxu0 0
      %657 = vmatprep.subr.bf16.mxu0 0
      %658 = vmatpush1.bf16.xpose.msra.mxu0 0
      %659 = vmatprep.subr.bf16.mxu0 0
      %660 = vmatpush1.bf16.xpose.msra.mxu0 0
      %661 = vmatprep.subr.bf16.mxu0 0
      %662 = vmatpush1.bf16.xpose.msra.mxu0 0
      %663 = vmatprep.subr.bf16.mxu0 0
      %664 = vmatpush1.bf16.xpose.msra.mxu0 %v649
      %665 = vmatprep.subr.bf16.mxu0 0
      %666 = vmatpush1.bf16.xpose.msra.mxu0 %v646
      %667 = vmatprep.subr.bf16.mxu0 0
      %668 = vmatpush2.bf16.xpose.msra.mxu0 0
      %669 = vmatprep.subr.bf16.mxu0 0
      %670 = vmatpush2.bf16.xpose.msra.mxu0 0
      %671 = vmatprep.subr.bf16.mxu0 0
      %672 = vmatpush2.bf16.xpose.msra.mxu0 0
      %673 = vmatprep.subr.bf16.mxu0 0
      %674 = vmatpush2.bf16.xpose.msra.mxu0 0
      %675 = vmatprep.subr.bf16.mxu0 0
      %676 = vmatpush2.bf16.xpose.msra.mxu0 0
      %677 = vmatprep.subr.bf16.mxu0 0
      %678 = vmatpush2.bf16.xpose.msra.mxu0 0
      %679 = vmatprep.subr.bf16.mxu0 0
      %680 = vmatpush2.bf16.xpose.msra.mxu0 0
      %681 = vmatprep.subr.bf16.mxu0 0
      %682 = vmatpush2.bf16.xpose.msra.mxu0 0
      %683 = vmatprep.mubr.bf16.mxu0 0
      %684 = vmatmul.mubr.bf16.gmra.mxu0 %v640
      %v685 = vpop.f32.mrf.mxu0
      %v686 = vadd.f32 0.0, %v685
      %v687 = vpop.f32.mrf.mxu0
      %v688 = vpop.f32.mrf.mxu0
      %v689 = vadd.f32 0.0, %v688
      %v690 = vpop.f32.mrf.mxu0
      %691 = vmatprep.mubr.bf16.mxu0 0
      %692 = vmatmul.mubr.bf16.gmra.mxu0 %v643
      %v693 = vpop.f32.mrf.mxu0
      %v694 = vadd.f32 0.0, %v693
      %v695 = vpop.f32.mrf.mxu0
      %v696 = vpop.f32.mrf.mxu0
      %v697 = vpop.f32.mrf.mxu0
      %698 = vdwg.mxu0
      %v699 = vmul.f32 %v686, 0.35355338
      %v700 = vmul.f32 %v689, 0.35355338
      %v701 = vmul.f32 %v694, 0.35355338
      %v702 = vadd.f32 %v699, %v527
      %v703 = vadd.f32 %v700, %v527
      %v704 = vadd.f32 %v701, %v527
      %v705 = vsel %vm532, %v702, -inf
      %706 = vmax.xlane.f32.xlu0 %v705
      %v707 = vpop.xlane.xlu0 %706
      %v708 = vsel %vm532, %v703, -inf
      %709 = vmax.xlane.f32.xlu0 %v708
      %v710 = vpop.xlane.xlu0 %709
      %v711 = vsel %vm532, %v704, -inf
      %712 = vmax.xlane.f32.xlu0 %v711
      %v713 = vpop.xlane.xlu0 %712
      %v714 = vsub.f32 %v702, %v707
      %v715 = vsub.f32 %v703, %v710
      %v716 = vsub.f32 %v704, %v713
      %v717 = vmul.f32 %v714, 1.442695
      %v718 = vpow.pop %v717
      %v719 = vmul.f32 %v715, 1.442695
      %v720 = vpow.pop %v719
      %v721 = vmul.f32 %v716, 1.442695
      %v722 = vpow.pop %v721
      %v723 = vsel %vm532, %v718, 0.0
      %724 = vadd.xlane.f32.xlu0 %v723
      %v725 = vpop.xlane.xlu0 %724
      %v726 = vsel %vm532, %v720, 0.0
      %727 = vadd.xlane.f32.xlu0 %v726
      %v728 = vpop.xlane.xlu0 %727
      %v729 = vsel %vm532, %v722, 0.0
      %730 = vadd.xlane.f32.xlu0 %v729
      %v731 = vpop.xlane.xlu0 %730
      %v732 = vrcp.pop %v725
      %v733 = vrcp.pop %v728
      %v734 = vrcp.pop %v731
      %v735 = vmul.f32 %v718, %v732
      %v736 = vmul.f32 %v720, %v733
      %v737 = vmul.f32 %v722, %v734
      %v738 = vpack.c.bf16 %v736, %v735
      %v739 = vpack.c.bf16 %v737, %v737
      %740 = vrot.lane.b32.xlu0 %v451, 56
      %v741 = vpop.permute.xlu0 %740
      %742 = vrot.lane.b32.xlu0 %v452, 56
      %v743 = vpop.permute.xlu0 %742
      %v746 = vsel %vm532, %v738, 0
      %v749 = vsel %vm532, %v739, 0
      %v752 = vsel %vm579, %v743, 0
      %754 = vmatprep.subr.bf16.mxu0 0
      %755 = vmatpush1.bf16.msra.mxu0 0
      %756 = vmatprep.subr.bf16.mxu0 0
      %757 = vmatpush1.bf16.msra.mxu0 0
      %758 = vmatprep.subr.bf16.mxu0 0
      %759 = vmatpush1.bf16.msra.mxu0 0
      %760 = vmatprep.subr.bf16.mxu0 0
      %761 = vmatpush1.bf16.msra.mxu0 0
      %762 = vmatprep.subr.bf16.mxu0 0
      %763 = vmatpush1.bf16.msra.mxu0 0
      %764 = vmatprep.subr.bf16.mxu0 0
      %765 = vmatpush1.bf16.msra.mxu0 0
      %766 = vmatprep.subr.bf16.mxu0 0
      %767 = vmatpush1.bf16.msra.mxu0 %v752
      %768 = vmatprep.subr.bf16.mxu0 0
      %769 = vmatpush1.bf16.msra.mxu0 %v741
      %770 = vmatprep.subr.bf16.mxu0 0
      %771 = vmatpush2.bf16.msra.mxu0 0
      %772 = vmatprep.subr.bf16.mxu0 0
      %773 = vmatpush2.bf16.msra.mxu0 0
      %774 = vmatprep.subr.bf16.mxu0 0
      %775 = vmatpush2.bf16.msra.mxu0 0
      %776 = vmatprep.subr.bf16.mxu0 0
      %777 = vmatpush2.bf16.msra.mxu0 0
      %778 = vmatprep.subr.bf16.mxu0 0
      %779 = vmatpush2.bf16.msra.mxu0 0
      %780 = vmatprep.subr.bf16.mxu0 0
      %781 = vmatpush2.bf16.msra.mxu0 0
      %782 = vmatprep.subr.bf16.mxu0 0
      %783 = vmatpush2.bf16.msra.mxu0 0
      %784 = vmatprep.subr.bf16.mxu0 0
      %785 = vmatpush2.bf16.msra.mxu0 0
      %786 = vmatprep.mubr.bf16.mxu0 0
      %787 = vmatmul.mubr.bf16.gmra.mxu0 %v746
      %v788 = vpop.f32.mrf.mxu0
      %v789 = vadd.f32 0.0, %v788
      %v790 = vpop.f32.mrf.mxu0
      %v791 = vpop.f32.mrf.mxu0
      %v792 = vadd.f32 0.0, %v791
      %v793 = vpop.f32.mrf.mxu0
      %794 = vmatprep.mubr.bf16.mxu0 0
      %795 = vmatmul.mubr.bf16.gmra.mxu0 %v749
      %v796 = vpop.f32.mrf.mxu0
      %v797 = vadd.f32 0.0, %v796
      %v798 = vpop.f32.mrf.mxu0
      %v799 = vpop.f32.mrf.mxu0
      %v800 = vpop.f32.mrf.mxu0
      %801 = vdwg.mxu0
      %802 = vrot.lane.b32.xlu0 %v451, 112
      %v803 = vpop.permute.xlu0 %802
      %804 = vrot.lane.b32.xlu0 %v452, 112
      %v805 = vpop.permute.xlu0 %804
      %806 = vrot.lane.b32.xlu0 %v451, 80
      %v807 = vpop.permute.xlu0 %806
      %808 = vrot.lane.b32.xlu0 %v452, 80
      %v809 = vpop.permute.xlu0 %808
      %v811 = vsel %vm459, %v803, 0
      %v814 = vsel %vm459, %v805, 0
      %v817 = vsel %vm459, %v807, 0
      %v820 = vsel %vm459, %v809, 0
      %822 = vmatprep.subr.bf16.mxu0 0
      %823 = vmatpush1.bf16.xpose.msra.mxu0 0
      %824 = vmatprep.subr.bf16.mxu0 0
      %825 = vmatpush1.bf16.xpose.msra.mxu0 0
      %826 = vmatprep.subr.bf16.mxu0 0
      %827 = vmatpush1.bf16.xpose.msra.mxu0 0
      %828 = vmatprep.subr.bf16.mxu0 0
      %829 = vmatpush1.bf16.xpose.msra.mxu0 0
      %830 = vmatprep.subr.bf16.mxu0 0
      %831 = vmatpush1.bf16.xpose.msra.mxu0 0
      %832 = vmatprep.subr.bf16.mxu0 0
      %833 = vmatpush1.bf16.xpose.msra.mxu0 0
      %834 = vmatprep.subr.bf16.mxu0 0
      %835 = vmatpush1.bf16.xpose.msra.mxu0 %v820
      %836 = vmatprep.subr.bf16.mxu0 0
      %837 = vmatpush1.bf16.xpose.msra.mxu0 %v817
      %838 = vmatprep.subr.bf16.mxu0 0
      %839 = vmatpush2.bf16.xpose.msra.mxu0 0
      %840 = vmatprep.subr.bf16.mxu0 0
      %841 = vmatpush2.bf16.xpose.msra.mxu0 0
      %842 = vmatprep.subr.bf16.mxu0 0
      %843 = vmatpush2.bf16.xpose.msra.mxu0 0
      %844 = vmatprep.subr.bf16.mxu0 0
      %845 = vmatpush2.bf16.xpose.msra.mxu0 0
      %846 = vmatprep.subr.bf16.mxu0 0
      %847 = vmatpush2.bf16.xpose.msra.mxu0 0
      %848 = vmatprep.subr.bf16.mxu0 0
      %849 = vmatpush2.bf16.xpose.msra.mxu0 0
      %850 = vmatprep.subr.bf16.mxu0 0
      %851 = vmatpush2.bf16.xpose.msra.mxu0 0
      %852 = vmatprep.subr.bf16.mxu0 0
      %853 = vmatpush2.bf16.xpose.msra.mxu0 0
      %854 = vmatprep.mubr.bf16.mxu0 0
      %855 = vmatmul.mubr.bf16.gmra.mxu0 %v811
      %v856 = vpop.f32.mrf.mxu0
      %v857 = vadd.f32 0.0, %v856
      %v858 = vpop.f32.mrf.mxu0
      %v859 = vpop.f32.mrf.mxu0
      %v860 = vadd.f32 0.0, %v859
      %v861 = vpop.f32.mrf.mxu0
      %862 = vmatprep.mubr.bf16.mxu0 0
      %863 = vmatmul.mubr.bf16.gmra.mxu0 %v814
      %v864 = vpop.f32.mrf.mxu0
      %v865 = vadd.f32 0.0, %v864
      %v866 = vpop.f32.mrf.mxu0
      %v867 = vpop.f32.mrf.mxu0
      %v868 = vpop.f32.mrf.mxu0
      %869 = vdwg.mxu0
      %v870 = vmul.f32 %v857, 0.35355338
      %v871 = vmul.f32 %v860, 0.35355338
      %v872 = vmul.f32 %v865, 0.35355338
      %v873 = vadd.f32 %v870, %v527
      %v874 = vadd.f32 %v871, %v527
      %v875 = vadd.f32 %v872, %v527
      %v876 = vsel %vm532, %v873, -inf
      %877 = vmax.xlane.f32.xlu0 %v876
      %v878 = vpop.xlane.xlu0 %877
      %v879 = vsel %vm532, %v874, -inf
      %880 = vmax.xlane.f32.xlu0 %v879
      %v881 = vpop.xlane.xlu0 %880
      %v882 = vsel %vm532, %v875, -inf
      %883 = vmax.xlane.f32.xlu0 %v882
      %v884 = vpop.xlane.xlu0 %883
      %v885 = vsub.f32 %v873, %v878
      %v886 = vsub.f32 %v874, %v881
      %v887 = vsub.f32 %v875, %v884
      %v888 = vmul.f32 %v885, 1.442695
      %v889 = vpow.pop %v888
      %v890 = vmul.f32 %v886, 1.442695
      %v891 = vpow.pop %v890
      %v892 = vmul.f32 %v887, 1.442695
      %v893 = vpow.pop %v892
      %v894 = vsel %vm532, %v889, 0.0
      %895 = vadd.xlane.f32.xlu0 %v894
      %v896 = vpop.xlane.xlu0 %895
      %v897 = vsel %vm532, %v891, 0.0
      %898 = vadd.xlane.f32.xlu0 %v897
      %v899 = vpop.xlane.xlu0 %898
      %v900 = vsel %vm532, %v893, 0.0
      %901 = vadd.xlane.f32.xlu0 %v900
      %v902 = vpop.xlane.xlu0 %901
      %v903 = vrcp.pop %v896
      %v904 = vrcp.pop %v899
      %v905 = vrcp.pop %v902
      %v906 = vmul.f32 %v889, %v903
      %v907 = vmul.f32 %v891, %v904
      %v908 = vmul.f32 %v893, %v905
      %v909 = vpack.c.bf16 %v907, %v906
      %v910 = vpack.c.bf16 %v908, %v908
      %911 = vrot.lane.b32.xlu0 %v451, 48
      %v912 = vpop.permute.xlu0 %911
      %913 = vrot.lane.b32.xlu0 %v452, 48
      %v914 = vpop.permute.xlu0 %913
      %v917 = vsel %vm532, %v909, 0
      %v920 = vsel %vm532, %v910, 0
      %v923 = vsel %vm579, %v914, 0
      %925 = vmatprep.subr.bf16.mxu0 0
      %926 = vmatpush1.bf16.msra.mxu0 0
      %927 = vmatprep.subr.bf16.mxu0 0
      %928 = vmatpush1.bf16.msra.mxu0 0
      %929 = vmatprep.subr.bf16.mxu0 0
      %930 = vmatpush1.bf16.msra.mxu0 0
      %931 = vmatprep.subr.bf16.mxu0 0
      %932 = vmatpush1.bf16.msra.mxu0 0
      %933 = vmatprep.subr.bf16.mxu0 0
      %934 = vmatpush1.bf16.msra.mxu0 0
      %935 = vmatprep.subr.bf16.mxu0 0
      %936 = vmatpush1.bf16.msra.mxu0 0
      %937 = vmatprep.subr.bf16.mxu0 0
      %938 = vmatpush1.bf16.msra.mxu0 %v923
      %939 = vmatprep.subr.bf16.mxu0 0
      %940 = vmatpush1.bf16.msra.mxu0 %v912
      %941 = vmatprep.subr.bf16.mxu0 0
      %942 = vmatpush2.bf16.msra.mxu0 0
      %943 = vmatprep.subr.bf16.mxu0 0
      %944 = vmatpush2.bf16.msra.mxu0 0
      %945 = vmatprep.subr.bf16.mxu0 0
      %946 = vmatpush2.bf16.msra.mxu0 0
      %947 = vmatprep.subr.bf16.mxu0 0
      %948 = vmatpush2.bf16.msra.mxu0 0
      %949 = vmatprep.subr.bf16.mxu0 0
      %950 = vmatpush2.bf16.msra.mxu0 0
      %951 = vmatprep.subr.bf16.mxu0 0
      %952 = vmatpush2.bf16.msra.mxu0 0
      %953 = vmatprep.subr.bf16.mxu0 0
      %954 = vmatpush2.bf16.msra.mxu0 0
      %955 = vmatprep.subr.bf16.mxu0 0
      %956 = vmatpush2.bf16.msra.mxu0 0
      %957 = vmatprep.mubr.bf16.mxu0 0
      %958 = vmatmul.mubr.bf16.gmra.mxu0 %v917
      %v959 = vpop.f32.mrf.mxu0
      %v960 = vadd.f32 0.0, %v959
      %v961 = vpop.f32.mrf.mxu0
      %v962 = vpop.f32.mrf.mxu0
      %v963 = vadd.f32 0.0, %v962
      %v964 = vpop.f32.mrf.mxu0
      %965 = vmatprep.mubr.bf16.mxu0 0
      %966 = vmatmul.mubr.bf16.gmra.mxu0 %v920
      %v967 = vpop.f32.mrf.mxu0
      %v968 = vadd.f32 0.0, %v967
      %v969 = vpop.f32.mrf.mxu0
      %v970 = vpop.f32.mrf.mxu0
      %v971 = vpop.f32.mrf.mxu0
      %972 = vdwg.mxu0
      %973 = vrot.lane.b32.xlu0 %v451, 104
      %v974 = vpop.permute.xlu0 %973
      %975 = vrot.lane.b32.xlu0 %v452, 104
      %v976 = vpop.permute.xlu0 %975
      %977 = vrot.lane.b32.xlu0 %v451, 72
      %v978 = vpop.permute.xlu0 %977
      %979 = vrot.lane.b32.xlu0 %v452, 72
      %v980 = vpop.permute.xlu0 %979
      %v982 = vsel %vm459, %v974, 0
      %v985 = vsel %vm459, %v976, 0
      %v988 = vsel %vm459, %v978, 0
      %v991 = vsel %vm459, %v980, 0
      %993 = vmatprep.subr.bf16.mxu0 0
      %994 = vmatpush1.bf16.xpose.msra.mxu0 0
      %995 = vmatprep.subr.bf16.mxu0 0
      %996 = vmatpush1.bf16.xpose.msra.mxu0 0
      %997 = vmatprep.subr.bf16.mxu0 0
      %998 = vmatpush1.bf16.xpose.msra.mxu0 0
      %999 = vmatprep.subr.bf16.mxu0 0
      %1000 = vmatpush1.bf16.xpose.msra.mxu0 0
      %1001 = vmatprep.subr.bf16.mxu0 0
      %1002 = vmatpush1.bf16.xpose.msra.mxu0 0
      %1003 = vmatprep.subr.bf16.mxu0 0
      %1004 = vmatpush1.bf16.xpose.msra.mxu0 0
      %1005 = vmatprep.subr.bf16.mxu0 0
      %1006 = vmatpush1.bf16.xpose.msra.mxu0 %v991
      %1007 = vmatprep.subr.bf16.mxu0 0
      %1008 = vmatpush1.bf16.xpose.msra.mxu0 %v988
      %1009 = vmatprep.subr.bf16.mxu0 0
      %1010 = vmatpush2.bf16.xpose.msra.mxu0 0
      %1011 = vmatprep.subr.bf16.mxu0 0
      %1012 = vmatpush2.bf16.xpose.msra.mxu0 0
      %1013 = vmatprep.subr.bf16.mxu0 0
      %1014 = vmatpush2.bf16.xpose.msra.mxu0 0
      %1015 = vmatprep.subr.bf16.mxu0 0
      %1016 = vmatpush2.bf16.xpose.msra.mxu0 0
      %1017 = vmatprep.subr.bf16.mxu0 0
      %1018 = vmatpush2.bf16.xpose.msra.mxu0 0
      %1019 = vmatprep.subr.bf16.mxu0 0
      %1020 = vmatpush2.bf16.xpose.msra.mxu0 0
      %1021 = vmatprep.subr.bf16.mxu0 0
      %1022 = vmatpush2.bf16.xpose.msra.mxu0 0
      %1023 = vmatprep.subr.bf16.mxu0 0
      %1024 = vmatpush2.bf16.xpose.msra.mxu0 0
      %1025 = vmatprep.mubr.bf16.mxu0 0
      %1026 = vmatmul.mubr.bf16.gmra.mxu0 %v982
      %v1027 = vpop.f32.mrf.mxu0
      %v1028 = vadd.f32 0.0, %v1027
      %v1029 = vpop.f32.mrf.mxu0
      %v1030 = vpop.f32.mrf.mxu0
      %v1031 = vadd.f32 0.0, %v1030
      %v1032 = vpop.f32.mrf.mxu0
      %1033 = vmatprep.mubr.bf16.mxu0 0
      %1034 = vmatmul.mubr.bf16.gmra.mxu0 %v985
      %v1035 = vpop.f32.mrf.mxu0
      %v1036 = vadd.f32 0.0, %v1035
      %v1037 = vpop.f32.mrf.mxu0
      %v1038 = vpop.f32.mrf.mxu0
      %v1039 = vpop.f32.mrf.mxu0
      %1040 = vdwg.mxu0
      %v1041 = vmul.f32 %v1028, 0.35355338
      %v1042 = vmul.f32 %v1031, 0.35355338
      %v1043 = vmul.f32 %v1036, 0.35355338
      %v1044 = vadd.f32 %v1041, %v527
      %v1045 = vadd.f32 %v1042, %v527
      %v1046 = vadd.f32 %v1043, %v527
      %v1047 = vsel %vm532, %v1044, -inf
      %1048 = vmax.xlane.f32.xlu0 %v1047
      %v1049 = vpop.xlane.xlu0 %1048
      %v1050 = vsel %vm532, %v1045, -inf
      %1051 = vmax.xlane.f32.xlu0 %v1050
      %v1052 = vpop.xlane.xlu0 %1051
      %v1053 = vsel %vm532, %v1046, -inf
      %1054 = vmax.xlane.f32.xlu0 %v1053
      %v1055 = vpop.xlane.xlu0 %1054
      %v1056 = vsub.f32 %v1044, %v1049
      %v1057 = vsub.f32 %v1045, %v1052
      %v1058 = vsub.f32 %v1046, %v1055
      %v1059 = vmul.f32 %v1056, 1.442695
      %v1060 = vpow.pop %v1059
      %v1061 = vmul.f32 %v1057, 1.442695
      %v1062 = vpow.pop %v1061
      %v1063 = vmul.f32 %v1058, 1.442695
      %v1064 = vpow.pop %v1063
      %v1065 = vsel %vm532, %v1060, 0.0
      %1066 = vadd.xlane.f32.xlu0 %v1065
      %v1067 = vpop.xlane.xlu0 %1066
      %v1068 = vsel %vm532, %v1062, 0.0
      %1069 = vadd.xlane.f32.xlu0 %v1068
      %v1070 = vpop.xlane.xlu0 %1069
      %v1071 = vsel %vm532, %v1064, 0.0
      %1072 = vadd.xlane.f32.xlu0 %v1071
      %v1073 = vpop.xlane.xlu0 %1072
      %v1074 = vrcp.pop %v1067
      %v1075 = vrcp.pop %v1070
      %v1076 = vrcp.pop %v1073
      %v1077 = vmul.f32 %v1060, %v1074
      %v1078 = vmul.f32 %v1062, %v1075
      %v1079 = vmul.f32 %v1064, %v1076
      %v1080 = vpack.c.bf16 %v1078, %v1077
      %v1081 = vpack.c.bf16 %v1079, %v1079
      %1082 = vrot.lane.b32.xlu0 %v451, 40
      %v1083 = vpop.permute.xlu0 %1082
      %1084 = vrot.lane.b32.xlu0 %v452, 40
      %v1085 = vpop.permute.xlu0 %1084
      %v1088 = vsel %vm532, %v1080, 0
      %v1091 = vsel %vm532, %v1081, 0
      %v1094 = vsel %vm579, %v1085, 0
      %1096 = vmatprep.subr.bf16.mxu0 0
      %1097 = vmatpush1.bf16.msra.mxu0 0
      %1098 = vmatprep.subr.bf16.mxu0 0
      %1099 = vmatpush1.bf16.msra.mxu0 0
      %1100 = vmatprep.subr.bf16.mxu0 0
      %1101 = vmatpush1.bf16.msra.mxu0 0
      %1102 = vmatprep.subr.bf16.mxu0 0
      %1103 = vmatpush1.bf16.msra.mxu0 0
      %1104 = vmatprep.subr.bf16.mxu0 0
      %1105 = vmatpush1.bf16.msra.mxu0 0
      %1106 = vmatprep.subr.bf16.mxu0 0
      %1107 = vmatpush1.bf16.msra.mxu0 0
      %1108 = vmatprep.subr.bf16.mxu0 0
      %1109 = vmatpush1.bf16.msra.mxu0 %v1094
      %1110 = vmatprep.subr.bf16.mxu0 0
      %1111 = vmatpush1.bf16.msra.mxu0 %v1083
      %1112 = vmatprep.subr.bf16.mxu0 0
      %1113 = vmatpush2.bf16.msra.mxu0 0
      %1114 = vmatprep.subr.bf16.mxu0 0
      %1115 = vmatpush2.bf16.msra.mxu0 0
      %1116 = vmatprep.subr.bf16.mxu0 0
      %1117 = vmatpush2.bf16.msra.mxu0 0
      %1118 = vmatprep.subr.bf16.mxu0 0
      %1119 = vmatpush2.bf16.msra.mxu0 0
      %1120 = vmatprep.subr.bf16.mxu0 0
      %1121 = vmatpush2.bf16.msra.mxu0 0
      %1122 = vmatprep.subr.bf16.mxu0 0
      %1123 = vmatpush2.bf16.msra.mxu0 0
      %1124 = vmatprep.subr.bf16.mxu0 0
      %1125 = vmatpush2.bf16.msra.mxu0 0
      %1126 = vmatprep.subr.bf16.mxu0 0
      %1127 = vmatpush2.bf16.msra.mxu0 0
      %1128 = vmatprep.mubr.bf16.mxu0 0
      %1129 = vmatmul.mubr.bf16.gmra.mxu0 %v1088
      %v1130 = vpop.f32.mrf.mxu0
      %v1131 = vadd.f32 0.0, %v1130
      %v1132 = vpop.f32.mrf.mxu0
      %v1133 = vpop.f32.mrf.mxu0
      %v1134 = vadd.f32 0.0, %v1133
      %v1135 = vpop.f32.mrf.mxu0
      %1136 = vmatprep.mubr.bf16.mxu0 0
      %1137 = vmatmul.mubr.bf16.gmra.mxu0 %v1091
      %v1138 = vpop.f32.mrf.mxu0
      %v1139 = vadd.f32 0.0, %v1138
      %v1140 = vpop.f32.mrf.mxu0
      %v1141 = vpop.f32.mrf.mxu0
      %v1142 = vpop.f32.mrf.mxu0
      %1143 = vdwg.mxu0
      %1147 = vrot.lane.b32.xlu0 %v789, 8
      %v1148 = vpop.permute.xlu0 %1147
      %1149 = vrot.lane.b32.xlu0 %v792, 8
      %v1150 = vpop.permute.xlu0 %1149
      %1151 = vrot.lane.b32.xlu0 %v797, 8
      %v1152 = vpop.permute.xlu0 %1151
      %1159 = vrot.lane.b32.xlu0 %v960, 16
      %v1160 = vpop.permute.xlu0 %1159
      %1161 = vrot.lane.b32.xlu0 %v963, 16
      %v1162 = vpop.permute.xlu0 %1161
      %1163 = vrot.lane.b32.xlu0 %v968, 16
      %v1164 = vpop.permute.xlu0 %1163
      %1171 = vrot.lane.b32.xlu0 %v1131, 24
      %v1172 = vpop.permute.xlu0 %1171
      %1173 = vrot.lane.b32.xlu0 %v1134, 24
      %v1174 = vpop.permute.xlu0 %1173
      %1175 = vrot.lane.b32.xlu0 %v1139, 24
      %v1176 = vpop.permute.xlu0 %1175
      %v1180 = vsel %vm459, %v618, %v1148
      %v1181 = vsel %vm459, %v621, %v1150
      %v1182 = vsel %vm459, %v626, %v1152
      %vm1183 = vcmask 130048
      %v1184 = vsel %vm1183, %v1180, %v1160
      %v1185 = vsel %vm1183, %v1181, %v1162
      %v1186 = vsel %vm1183, %v1182, %v1164
      %v1187 = vsel %vm532, %v1184, %v1172
      %v1188 = vsel %vm532, %v1185, %v1174
      %v1189 = vsel %vm532, %v1186, %v1176
      %v1190 = vpack.c.bf16 %v1188, %v1187
      %v1191 = vpack.c.bf16 %v1189, %v1189
      %v1192 = vld [vmem:[%s5] sm:$0xf]
      %v1193 = vld [vmem:[%s5 + $0x4] sm:$0xf]
      %v1194 = vld [vmem:[%s5 + $0x8] sm:$0xf]
      %v1195 = vld [vmem:[%s5 + $0xc] sm:$0xf]
      %v1196 = vld [vmem:[%s6] sm:$0x1]
      %v1198 = vlaneseq
      %v1199 = vshrl.u32 %v1198, 7
      %v1200 = vsub.s32 0, %v1199
      %v1201 = vrot.slane %v1196, %v1200
      %v1207 = vunpack.c.l.b16 %v1192
      %v1208 = vunpack.c.l.b16 %v1193
      %v1209 = vunpack.c.l.b16 %v1194
      %v1210 = vunpack.c.l.b16 %v1195
      %v1211 = vpack.c.b16 %v1208, %v1207
      %v1212 = vpack.c.b16 %v1210, %v1209
      %v1216 = vsel %vm312, %v1190, 0
      %v1219 = vsel %vm312, %v1191, 0
      %1221 = vmatprep.subr.bf16.mxu0 0
      %1222 = vmatpush1.bf16.msra.mxu0 0
      %1223 = vmatprep.subr.bf16.mxu0 0
      %1224 = vmatpush1.bf16.msra.mxu0 0
      %1225 = vmatprep.subr.bf16.mxu0 0
      %1226 = vmatpush1.bf16.msra.mxu0 0
      %1227 = vmatprep.subr.bf16.mxu0 0
      %1228 = vmatpush1.bf16.msra.mxu0 0
      %1229 = vmatprep.subr.bf16.mxu0 0
      %1230 = vmatpush1.bf16.msra.mxu0 0
      %1231 = vmatprep.subr.bf16.mxu0 0
      %1232 = vmatpush1.bf16.msra.mxu0 0
      %1233 = vmatprep.subr.bf16.mxu0 0
      %1234 = vmatpush1.bf16.msra.mxu0 %v1212
      %1235 = vmatprep.subr.bf16.mxu0 0
      %1236 = vmatpush1.bf16.msra.mxu0 %v1211
      %1237 = vmatprep.subr.bf16.mxu0 0
      %1238 = vmatpush2.bf16.msra.mxu0 0
      %1239 = vmatprep.subr.bf16.mxu0 0
      %1240 = vmatpush2.bf16.msra.mxu0 0
      %1241 = vmatprep.subr.bf16.mxu0 0
      %1242 = vmatpush2.bf16.msra.mxu0 0
      %1243 = vmatprep.subr.bf16.mxu0 0
      %1244 = vmatpush2.bf16.msra.mxu0 0
      %1245 = vmatprep.subr.bf16.mxu0 0
      %1246 = vmatpush2.bf16.msra.mxu0 0
      %1247 = vmatprep.subr.bf16.mxu0 0
      %1248 = vmatpush2.bf16.msra.mxu0 0
      %1249 = vmatprep.subr.bf16.mxu0 0
      %1250 = vmatpush2.bf16.msra.mxu0 0
      %1251 = vmatprep.subr.bf16.mxu0 0
      %1252 = vmatpush2.bf16.msra.mxu0 0
      %1253 = vmatprep.mubr.bf16.mxu0 0
      %1254 = vmatmul.mubr.bf16.gmra.mxu0 %v1216
      %v1255 = vpop.f32.mrf.mxu0
      %v1256 = vadd.f32 %v1201, %v1255
      %v1257 = vpop.f32.mrf.mxu0
      %v1258 = vpop.f32.mrf.mxu0
      %v1259 = vadd.f32 %v1201, %v1258
      %v1260 = vpop.f32.mrf.mxu0
      %1261 = vmatprep.mubr.bf16.mxu0 0
      %1262 = vmatmul.mubr.bf16.gmra.mxu0 %v1219
      %v1263 = vpop.f32.mrf.mxu0
      %v1264 = vadd.f32 %v1201, %v1263
      %v1265 = vpop.f32.mrf.mxu0
      %v1266 = vpop.f32.mrf.mxu0
      %v1267 = vpop.f32.mrf.mxu0
      %1268 = vdwg.mxu0
      %v1269 = vadd.f32 %v307, %v1256
      %v1270 = vadd.f32 %v308, %v1259
      %v1271 = vadd.f32 %v309, %v1264
      %1272 = vst.msk [vmem:[%s305] sm:$0xff] %vm312, %v1269
      %1273 = vst.msk [vmem:[%s305 + $0x8] sm:$0xff] %vm312, %v1270
      %1274 = vst.msk [vmem:[%s305 + $0x10] sm:$0xff] %vm312, %v1271
      %p1275 = scmp.lt.s32.totalorder %s19, 1
      %s1276 = scalar_select %p1275, %s19, 1
      %s1277 = smul.addr %s1276, 3
      %s1278 = smul.addr %s1277, 8
      %s1279 = scalar_lea.vmem %s8, %s1278
      // Predicated region
      $region53: #{albef_forward.18} parent=51 // pred_check
        %p1280 = pneg %p210
      $region54: #{albef_forward.18} parent=51 // pred_check_branch
        %1282 = sbr.rel (%p1280) target = $region56
      $region55: #{albef_forward.18} parent=51 // pred_region
        _
      $region56: #{albef_forward.18} parent=51 // pred_fallthru
        _
    $region52: #{albef_forward.18} parent=5 // pred_fallthru
      _
    %p1283 = scmp.le.s32.totalorder 2, %s14
    // Predicated region
    $region57: #{albef_forward.18} parent=5 // pred_check
      %p1284 = pneg %p1283
    $region58: #{albef_forward.18} parent=5 // pred_check_branch
      %1286 = sbr.rel (%p1284) target = $region60
    $region59: #{albef_forward.18} parent=5 // pred_region
      %s1287 = ssub.s32 %s14, 2
      // Predicated region
      $region61: #{albef_forward.18} parent=59 // pred_check
        %p1288 = pneg %p216
      $region62: #{albef_forward.18} parent=59 // pred_check_branch
        %1290 = sbr.rel (%p1288) target = $region64
      $region63: #{albef_forward.18} parent=59 // pred_region
        %p1291 = scmp.lt.s32.totalorder %s20, 1
        %s1292 = scalar_select %p1291, %s20, 1
        %s1293 = smul.addr %s1292, 3
        %s1294 = smul.addr %s1293, 8
        %s1295 = scalar_lea.vmem %s8, %s1294
      $region64: #{albef_forward.18} parent=59 // pred_fallthru
        _
    $region60: #{albef_forward.18} parent=5 // pred_fallthru
      _
  $region6: #{albef_forward.18} parent=0 // loop_footer
    %s18 = sadd.s32 1, %s14
  $region7: #{albef_forward.18} parent=0 // loop_footer_branch
    %13 = sbr.rel target = $region3
  $region8: #{albef_forward.18} parent=0 // loop_exit
    _

// kernel: albef_forward.33
$region0: #{albef_forward.33}
  #allocation0 [shape = 'u32[]', space=smem, size = 0x4, offset = 0x4, fixed_abs, tag = 'smem constant byte address 0x4 - core index']
  #allocation1 [shape = 'u32[144,128]{1,0:T(1,128)}', space=vmem, size = 0x12000, scoped, tag = 'internal scratch']
  %s0 = inlined_call_operand.vmem [shape: f32[2,8,32], index: 0, kind: input, shape index: {}]
  %s1 = inlined_call_operand.vmem [shape: f32[1,32], index: 1, kind: input, shape index: {}]
  %s2 = inlined_call_operand.vmem [shape: f32[1,32], index: 2, kind: input, shape index: {}]
  %s3 = inlined_call_operand.vmem [shape: bf16[32,128], index: 3, kind: input, shape index: {}]
  %s4 = inlined_call_operand.vmem [shape: f32[1,128], index: 4, kind: input, shape index: {}]
  %s5 = inlined_call_operand.vmem [shape: bf16[128,32], index: 5, kind: input, shape index: {}]
  %s6 = inlined_call_operand.vmem [shape: f32[1,32], index: 6, kind: input, shape index: {}]
  %s7 = inlined_call_operand.hbm [shape: f32[2,8,32], index: 7, kind: output, shape index: {}]
  %s8 = sld [smem:[#allocation0]]
  $region61: #{albef_forward.33} parent=0
    _
  %s10 = ssub.s32 1, %s8
  %s11 = scalar_select 0, %s10, %s8
  $region1: #{albef_forward.33} parent=0
    #allocation2 [shape = 'u8[8192]{0}', space=vmem, size = 0x2000, scoped, tag = 'output window, operand 0']
    #allocation3 [shape = 's32[2]{0}', space=sflag, size = 0x8, scoped, tag = 'scoped memory for albef_forward.33']
    %12 = vsyncpa [#allocation3], 0
    %s13 = scalar_lea.sflag [#allocation3], 1
    %14 = vsyncpa %s13, 0
    loop: start=0, step=1, limit=4
    $region2: #{albef_forward.33} parent=1 // loop_pre_header
      _
    $region3: #{albef_forward.33} parent=1 // loop_header
      %s16 = sphi 0, %s20
      %p17 = scmp.ge.s32.totalorder %s16, 4
      %s26 = sphi 0, %s28
      %s29 = sphi 0, %s26
      %s30 = sphi 0, %s29
      %s46 = sphi 0, %s30
      %s50 = sphi 0, %s50
      %s52 = sphi 0, %s50
      %s53 = sphi 0, %s52
      %s67 = sphi 0, %s53
      %s71 = sphi 0, %s71
      %s73 = sphi 0, %s71
      %s74 = sphi 0, %s73
      %s88 = sphi 0, %s74
      %s92 = sphi 0, %s92
      %s94 = sphi 0, %s92
      %s95 = sphi 0, %s94
      %s109 = sphi 0, %s95
      %s113 = sphi 0, %s113
      %s115 = sphi 0, %s113
      %s116 = sphi 0, %s115
      %s130 = sphi 0, %s116
      %s134 = sphi 0, %s134
      %s136 = sphi 0, %s134
      %s137 = sphi 0, %s136
      %s151 = sphi 0, %s137
      %s155 = sphi 0, %s155
      %s157 = sphi 0, %s155
      %s158 = sphi 0, %s157
      %s172 = sphi 0, %s158
      %s178 = sphi 0, %s180
      %s181 = sphi 0, %s178
      %s182 = sphi 0, %s181
      %s198 = sphi 0, %s182
    $region4: #{albef_forward.33} parent=1 // loop_header_branch
      %19 = sbr.rel (%p17) target = $region8
    $region5: #{albef_forward.33} parent=1 // loop_body
      %s21 = ssub.s32 %s16, 1
      %s22 = ssub.s32 %s16, 2
      %s23 = sadd.s32 %s16, 1
      %s24 = ssub.s32 %s16, %s23
      %p25 = scmp.eq.s32.totalorder %s24, 0
      %s27 = sadd.s32 %s26, 1
      %s28 = scalar_select %p25, %s26, %s27
      %p31 = pneg %p25
      %p32 = scmp.eq.s32.totalorder %s16, 1
      %p33 = por %p31, %p32
      %p34 = scmp.ne.s32.totalorder %s26, %s29
      %p35 = scmp.eq.s32.totalorder %s16, 0
      %p36 = por %p34, %p35
      %p37 = scmp.ne.s32.totalorder %s26, %s29
      %p38 = scmp.eq.s32.totalorder %s21, 1
      %p39 = por %p37, %p38
      %p40 = scmp.ne.s32.totalorder %s29, %s30
      %p41 = scmp.eq.s32.totalorder %s21, 0
      %p42 = por %p40, %p41
      %p43 = scmp.ne.s32.totalorder %s29, %s30
      %p44 = scmp.eq.s32.totalorder %s22, 1
      %p45 = por %p43, %p44
      %p47 = scmp.ne.s32.totalorder %s30, %s46
      %p48 = scmp.eq.s32.totalorder %s22, 0
      %p49 = por %p47, %p48
      %s51 = sadd.s32 %s50, 1
      %p54 = scmp.eq.s32.totalorder %s16, 1
      %p55 = scmp.ne.s32.totalorder %s50, %s52
      %p56 = scmp.eq.s32.totalorder %s16, 0
      %p57 = por %p55, %p56
      %p58 = scmp.ne.s32.totalorder %s50, %s52
      %p59 = scmp.eq.s32.totalorder %s21, 1
      %p60 = por %p58, %p59
      %p61 = scmp.ne.s32.totalorder %s52, %s53
      %p62 = scmp.eq.s32.totalorder %s21, 0
      %p63 = por %p61, %p62
      %p64 = scmp.ne.s32.totalorder %s52, %s53
      %p65 = scmp.eq.s32.totalorder %s22, 1
      %p66 = por %p64, %p65
      %p68 = scmp.ne.s32.totalorder %s53, %s67
      %p69 = scmp.eq.s32.totalorder %s22, 0
      %p70 = por %p68, %p69
      %s72 = sadd.s32 %s71, 1
      %p75 = scmp.eq.s32.totalorder %s16, 1
      %p76 = scmp.ne.s32.totalorder %s71, %s73
      %p77 = scmp.eq.s32.totalorder %s16, 0
      %p78 = por %p76, %p77
      %p79 = scmp.ne.s32.totalorder %s71, %s73
      %p80 = scmp.eq.s32.totalorder %s21, 1
      %p81 = por %p79, %p80
      %p82 = scmp.ne.s32.totalorder %s73, %s74
      %p83 = scmp.eq.s32.totalorder %s21, 0
      %p84 = por %p82, %p83
      %p85 = scmp.ne.s32.totalorder %s73, %s74
      %p86 = scmp.eq.s32.totalorder %s22, 1
      %p87 = por %p85, %p86
      %p89 = scmp.ne.s32.totalorder %s74, %s88
      %p90 = scmp.eq.s32.totalorder %s22, 0
      %p91 = por %p89, %p90
      %s93 = sadd.s32 %s92, 1
      %p96 = scmp.eq.s32.totalorder %s16, 1
      %p97 = scmp.ne.s32.totalorder %s92, %s94
      %p98 = scmp.eq.s32.totalorder %s16, 0
      %p99 = por %p97, %p98
      %p100 = scmp.ne.s32.totalorder %s92, %s94
      %p101 = scmp.eq.s32.totalorder %s21, 1
      %p102 = por %p100, %p101
      %p103 = scmp.ne.s32.totalorder %s94, %s95
      %p104 = scmp.eq.s32.totalorder %s21, 0
      %p105 = por %p103, %p104
      %p106 = scmp.ne.s32.totalorder %s94, %s95
      %p107 = scmp.eq.s32.totalorder %s22, 1
      %p108 = por %p106, %p107
      %p110 = scmp.ne.s32.totalorder %s95, %s109
      %p111 = scmp.eq.s32.totalorder %s22, 0
      %p112 = por %p110, %p111
      %s114 = sadd.s32 %s113, 1
      %p117 = scmp.eq.s32.totalorder %s16, 1
      %p118 = scmp.ne.s32.totalorder %s113, %s115
      %p119 = scmp.eq.s32.totalorder %s16, 0
      %p120 = por %p118, %p119
      %p121 = scmp.ne.s32.totalorder %s113, %s115
      %p122 = scmp.eq.s32.totalorder %s21, 1
      %p123 = por %p121, %p122
      %p124 = scmp.ne.s32.totalorder %s115, %s116
      %p125 = scmp.eq.s32.totalorder %s21, 0
      %p126 = por %p124, %p125
      %p127 = scmp.ne.s32.totalorder %s115, %s116
      %p128 = scmp.eq.s32.totalorder %s22, 1
      %p129 = por %p127, %p128
      %p131 = scmp.ne.s32.totalorder %s116, %s130
      %p132 = scmp.eq.s32.totalorder %s22, 0
      %p133 = por %p131, %p132
      %s135 = sadd.s32 %s134, 1
      %p138 = scmp.eq.s32.totalorder %s16, 1
      %p139 = scmp.ne.s32.totalorder %s134, %s136
      %p140 = scmp.eq.s32.totalorder %s16, 0
      %p141 = por %p139, %p140
      %p142 = scmp.ne.s32.totalorder %s134, %s136
      %p143 = scmp.eq.s32.totalorder %s21, 1
      %p144 = por %p142, %p143
      %p145 = scmp.ne.s32.totalorder %s136, %s137
      %p146 = scmp.eq.s32.totalorder %s21, 0
      %p147 = por %p145, %p146
      %p148 = scmp.ne.s32.totalorder %s136, %s137
      %p149 = scmp.eq.s32.totalorder %s22, 1
      %p150 = por %p148, %p149
      %p152 = scmp.ne.s32.totalorder %s137, %s151
      %p153 = scmp.eq.s32.totalorder %s22, 0
      %p154 = por %p152, %p153
      %s156 = sadd.s32 %s155, 1
      %p159 = scmp.eq.s32.totalorder %s16, 1
      %p160 = scmp.ne.s32.totalorder %s155, %s157
      %p161 = scmp.eq.s32.totalorder %s16, 0
      %p162 = por %p160, %p161
      %p163 = scmp.ne.s32.totalorder %s155, %s157
      %p164 = scmp.eq.s32.totalorder %s21, 1
      %p165 = por %p163, %p164
      %p166 = scmp.ne.s32.totalorder %s157, %s158
      %p167 = scmp.eq.s32.totalorder %s21, 0
      %p168 = por %p166, %p167
      %p169 = scmp.ne.s32.totalorder %s157, %s158
      %p170 = scmp.eq.s32.totalorder %s22, 1
      %p171 = por %p169, %p170
      %p173 = scmp.ne.s32.totalorder %s158, %s172
      %p174 = scmp.eq.s32.totalorder %s22, 0
      %p175 = por %p173, %p174
      %s176 = ssub.s32 %s16, %s23
      %p177 = scmp.eq.s32.totalorder %s176, 0
      %s179 = sadd.s32 %s178, 1
      %s180 = scalar_select %p177, %s178, %s179
      %p183 = pneg %p177
      %p184 = scmp.eq.s32.totalorder %s16, 1
      %p185 = por %p183, %p184
      %p186 = scmp.ne.s32.totalorder %s178, %s181
      %p187 = scmp.eq.s32.totalorder %s16, 0
      %p188 = por %p186, %p187
      %p189 = scmp.ne.s32.totalorder %s178, %s181
      %p190 = scmp.eq.s32.totalorder %s21, 1
      %p191 = por %p189, %p190
      %p192 = scmp.ne.s32.totalorder %s181, %s182
      %p193 = scmp.eq.s32.totalorder %s21, 0
      %p194 = por %p192, %p193
      %p195 = scmp.ne.s32.totalorder %s181, %s182
      %p196 = scmp.eq.s32.totalorder %s22, 1
      %p197 = por %p195, %p196
      %p199 = scmp.ne.s32.totalorder %s182, %s198
      %p200 = scmp.eq.s32.totalorder %s22, 0
      %p201 = por %p199, %p200
      %p202 = scmp.le.s32.totalorder 1, %s16
      %p203 = scmp.lt.s32.totalorder %s16, 3
      %p204 = pnand %p202, %p203
      %p205 = pneg %p204
      // Predicated region
      $region9: #{albef_forward.33} parent=5 // pred_check
        _
      $region10: #{albef_forward.33} parent=5 // pred_check_branch
        %207 = sbr.rel (%p204) target = $region12
      $region11: #{albef_forward.33} parent=5 // pred_region
        %s208 = ssub.s32 %s16, 1
        // Predicated region
        $region13: #{albef_forward.33} parent=11 // pred_check
          %p209 = pneg %p63
        $region14: #{albef_forward.33} parent=11 // pred_check_branch
          %211 = sbr.rel (%p209) target = $region16
        $region15: #{albef_forward.33} parent=11 // pred_region
          _
        $region16: #{albef_forward.33} parent=11 // pred_fallthru
          _
        // Predicated region
        $region17: #{albef_forward.33} parent=11 // pred_check
          %p212 = pneg %p84
        $region18: #{albef_forward.33} parent=11 // pred_check_branch
          %214 = sbr.rel (%p212) target = $region20
        $region19: #{albef_forward.33} parent=11 // pred_region
          _
        $region20: #{albef_forward.33} parent=11 // pred_fallthru
          _
        // Predicated region
        $region21: #{albef_forward.33} parent=11 // pred_check
          %p215 = pneg %p105
        $region22: #{albef_forward.33} parent=11 // pred_check_branch
          %217 = sbr.rel (%p215) target = $region24
        $region23: #{albef_forward.33} parent=11 // pred_region
          _
        $region24: #{albef_forward.33} parent=11 // pred_fallthru
          _
        // Predicated region
        $region25: #{albef_forward.33} parent=11 // pred_check
          %p218 = pneg %p126
        $region26: #{albef_forward.33} parent=11 // pred_check_branch
          %220 = sbr.rel (%p218) target = $region28
        $region27: #{albef_forward.33} parent=11 // pred_region
          _
        $region28: #{albef_forward.33} parent=11 // pred_fallthru
          _
        // Predicated region
        $region29: #{albef_forward.33} parent=11 // pred_check
          %p221 = pneg %p147
        $region30: #{albef_forward.33} parent=11 // pred_check_branch
          %223 = sbr.rel (%p221) target = $region32
        $region31: #{albef_forward.33} parent=11 // pred_region
          _
        $region32: #{albef_forward.33} parent=11 // pred_fallthru
          _
        // Predicated region
        $region33: #{albef_forward.33} parent=11 // pred_check
          %p224 = pneg %p168
        $region34: #{albef_forward.33} parent=11 // pred_check_branch
          %226 = sbr.rel (%p224) target = $region36
        $region35: #{albef_forward.33} parent=11 // pred_region
          _
        $region36: #{albef_forward.33} parent=11 // pred_fallthru
          _
      $region12: #{albef_forward.33} parent=5 // pred_fallthru
        _
      %p227 = scmp.lt.s32.totalorder %s16, 2
      // Predicated region
      $region37: #{albef_forward.33} parent=5 // pred_check
        %p228 = pneg %p227
      $region38: #{albef_forward.33} parent=5 // pred_check_branch
        %230 = sbr.rel (%p228) target = $region40
      $region39: #{albef_forward.33} parent=5 // pred_region
        // Predicated region
        $region41: #{albef_forward.33} parent=39 // pred_check
          %p231 = pneg %p36
        $region42: #{albef_forward.33} parent=39 // pred_check_branch
          %233 = sbr.rel (%p231) target = $region44
        $region43: #{albef_forward.33} parent=39 // pred_region
          %p234 = scmp.lt.s32.totalorder %s16, 1
          %s235 = scalar_select %p234, %s16, 1
          %s236 = smul.addr %s235, 8
          %s237 = scalar_lea.vmem %s0, %s236
        $region44: #{albef_forward.33} parent=39 // pred_fallthru
          _
      $region40: #{albef_forward.33} parent=5 // pred_fallthru
        _
      %p238 = scmp.le.s32.totalorder 1, %s16
      %p239 = scmp.lt.s32.totalorder %s16, 3
      %p240 = pnand %p238, %p239
      %p241 = pneg %p240
      // Predicated region
      $region45: #{albef_forward.33} parent=5 // pred_check
        _
      $region46: #{albef_forward.33} parent=5 // pred_check_branch
        %243 = sbr.rel (%p240) target = $region48
      $region47: #{albef_forward.33} parent=5 // pred_region
        %s244 = ssub.s32 %s16, 1
        %p245 = scmp.lt.s32.totalorder %s21, 1
        %s246 = scalar_select %p245, %s21, 1
        %s247 = smul.addr %s246, 8
        %s248 = scalar_lea.vmem %s0, %s247
        %p249 = pneg %p42
        %p250 = pneg %p39
        %p251 = pneg %p63
        %p252 = pneg %p60
        %p253 = pneg %p84
        %p254 = pneg %p81
        %p255 = pneg %p105
        %p256 = pneg %p102
        %p257 = pneg %p126
        %p258 = pneg %p123
        %p259 = pneg %p147
        %p260 = pneg %p144
        %p261 = pneg %p168
        %p262 = pneg %p165
        %p263 = pneg %p194
        %p264 = pneg %p191
        %s265 = sand.u32 %s181, 1
        %s266 = scalar_lea.sflag [#allocation3], %s265
        %s267 = sand.u32 %s181, 1
        %s268 = smul.addr %s267, 8
        %s269 = scalar_lea.vmem [#allocation2], %s268
        %p270 = scmp.lt.s32.totalorder %s21, 1
        %s271 = scalar_select %p270, %s21, 1
        %s272 = smul.addr %s271, 8
        %s273 = scalar_lea.vmem %s0, %s272
        %v275 = vld [vmem:[%s273] sm:$0xff]
        %v276 = vpack.c.bf16 %v275, %v275
        %v277 = vld [vmem:[%s3] sm:$0xf]
        %v278 = vld [vmem:[%s3 + $0x4] sm:$0xf]
        %v279 = vld [vmem:[%s3 + $0x8] sm:$0xf]
        %v280 = vld [vmem:[%s3 + $0xc] sm:$0xf]
        %v281 = vld [vmem:[%s4] sm:$0x1]
        %v283 = vlaneseq
        %v284 = vshrl.u32 %v283, 7
        %v285 = vsub.s32 0, %v284
        %v286 = vrot.slane %v281, %v285
        %v292 = vunpack.c.l.b16 %v277
        %v293 = vunpack.c.l.b16 %v278
        %v294 = vunpack.c.l.b16 %v279
        %v295 = vunpack.c.l.b16 %v280
        %v296 = vpack.c.b16 %v293, %v292
        %v297 = vpack.c.b16 %v295, %v294
        %vm300 = vcmask 261120
        %v302 = vsel %vm300, %v276, 0
        %304 = vmatprep.subr.bf16.mxu0 0
        %305 = vmatpush1.bf16.msra.mxu0 0
        %306 = vmatprep.subr.bf16.mxu0 0
        %307 = vmatpush1.bf16.msra.mxu0 0
        %308 = vmatprep.subr.bf16.mxu0 0
        %309 = vmatpush1.bf16.msra.mxu0 0
        %310 = vmatprep.subr.bf16.mxu0 0
        %311 = vmatpush1.bf16.msra.mxu0 0
        %312 = vmatprep.subr.bf16.mxu0 0
        %313 = vmatpush1.bf16.msra.mxu0 0
        %314 = vmatprep.subr.bf16.mxu0 0
        %315 = vmatpush1.bf16.msra.mxu0 0
        %316 = vmatprep.subr.bf16.mxu0 0
        %317 = vmatpush1.bf16.msra.mxu0 %v297
        %318 = vmatprep.subr.bf16.mxu0 0
        %319 = vmatpush1.bf16.msra.mxu0 %v296
        %320 = vmatprep.subr.bf16.mxu0 0
        %321 = vmatpush2.bf16.msra.mxu0 0
        %322 = vmatprep.subr.bf16.mxu0 0
        %323 = vmatpush2.bf16.msra.mxu0 0
        %324 = vmatprep.subr.bf16.mxu0 0
        %325 = vmatpush2.bf16.msra.mxu0 0
        %326 = vmatprep.subr.bf16.mxu0 0
        %327 = vmatpush2.bf16.msra.mxu0 0
        %328 = vmatprep.subr.bf16.mxu0 0
        %329 = vmatpush2.bf16.msra.mxu0 0
        %330 = vmatprep.subr.bf16.mxu0 0
        %331 = vmatpush2.bf16.msra.mxu0 0
        %332 = vmatprep.subr.bf16.mxu0 0
        %333 = vmatpush2.bf16.msra.mxu0 0
        %334 = vmatprep.subr.bf16.mxu0 0
        %335 = vmatpush2.bf16.msra.mxu0 0
        %336 = vmatprep.mubr.bf16.mxu0 0
        %337 = vmatmul.mubr.bf16.gmra.mxu0 %v302
        %v338 = vpop.f32.mrf.mxu0
        %v339 = vadd.f32 %v286, %v338
        %v340 = vpop.f32.mrf.mxu0
        %v341 = vpop.f32.mrf.mxu0
        %v342 = vpop.f32.mrf.mxu0
        %343 = vdwg.mxu0
        %v344 = vmul.f32 %v339, %v339
        %v345 = vmul.f32 %v339, %v344
        %v346 = vmul.f32 %v345, 0.044715
        %v347 = vadd.f32 %v339, %v346
        %v348 = vmul.f32 %v347, 0.7978846
        %v349 = vtanh.pop %v348
        %v350 = vadd.f32 %v349, 1.0
        %v351 = vmul.f32 %v350, 0.5
        %v352 = vmul.f32 %v339, %v351
        %v353 = vpack.c.bf16 %v352, %v352
        %v354 = vld [vmem:[%s5] sm:$0xf]
        %v355 = vld [vmem:[%s5 + $0x4] sm:$0xf]
        %v356 = vld [vmem:[%s5 + $0x8] sm:$0xf]
        %v357 = vld [vmem:[%s5 + $0xc] sm:$0xf]
        %v358 = vld [vmem:[%s5 + $0x10] sm:$0xf]
        %v359 = vld [vmem:[%s5 + $0x14] sm:$0xf]
        %v360 = vld [vmem:[%s5 + $0x18] sm:$0xf]
        %v361 = vld [vmem:[%s5 + $0x1c] sm:$0xf]
        %v362 = vld [vmem:[%s5 + $0x20] sm:$0xf]
        %v363 = vld [vmem:[%s5 + $0x24] sm:$0xf]
        %v364 = vld [vmem:[%s5 + $0x28] sm:$0xf]
        %v365 = vld [vmem:[%s5 + $0x2c] sm:$0xf]
        %v366 = vld [vmem:[%s5 + $0x30] sm:$0xf]
        %v367 = vld [vmem:[%s5 + $0x34] sm:$0xf]
        %v368 = vld [vmem:[%s5 + $0x38] sm:$0xf]
        %v369 = vld [vmem:[%s5 + $0x3c] sm:$0xf]
        %v370 = vld [vmem:[%s6] sm:$0x1]
        %v372 = vlaneseq
        %v373 = vshrl.u32 %v372, 7
        %v374 = vsub.s32 0, %v373
        %v375 = vrot.slane %v370, %v374
        %v393 = vunpack.c.l.b16 %v354
        %v394 = vunpack.c.l.b16 %v355
        %v395 = vunpack.c.l.b16 %v356
        %v396 = vunpack.c.l.b16 %v357
        %v397 = vunpack.c.l.b16 %v358
        %v398 = vunpack.c.l.b16 %v359
        %v399 = vunpack.c.l.b16 %v360
        %v400 = vunpack.c.l.b16 %v361
        %v401 = vunpack.c.l.b16 %v362
        %v402 = vunpack.c.l.b16 %v363
        %v403 = vunpack.c.l.b16 %v364
        %v404 = vunpack.c.l.b16 %v365
        %v405 = vunpack.c.l.b16 %v366
        %v406 = vunpack.c.l.b16 %v367
        %v407 = vunpack.c.l.b16 %v368
        %v408 = vunpack.c.l.b16 %v369
        %v409 = vpack.c.b16 %v394, %v393
        %v410 = vpack.c.b16 %v396, %v395
        %v411 = vpack.c.b16 %v398, %v397
        %v412 = vpack.c.b16 %v400, %v399
        %v413 = vpack.c.b16 %v402, %v401
        %v414 = vpack.c.b16 %v404, %v403
        %v415 = vpack.c.b16 %v406, %v405
        %v416 = vpack.c.b16 %v408, %v407
        %425 = vmatprep.subr.bf16.mxu0 0
        %426 = vmatpush1.bf16.msra.mxu0 %v416
        %427 = vmatprep.subr.bf16.mxu0 0
        %428 = vmatpush1.bf16.msra.mxu0 %v415
        %429 = vmatprep.subr.bf16.mxu0 0
        %430 = vmatpush1.bf16.msra.mxu0 %v414
        %431 = vmatprep.subr.bf16.mxu0 0
        %432 = vmatpush1.bf16.msra.mxu0 %v413
        %433 = vmatprep.subr.bf16.mxu0 0
        %434 = vmatpush1.bf16.msra.mxu0 %v412
        %435 = vmatprep.subr.bf16.mxu0 0
        %436 = vmatpush1.bf16.msra.mxu0 %v411
        %437 = vmatprep.subr.bf16.mxu0 0
        %438 = vmatpush1.bf16.msra.mxu0 %v410
        %439 = vmatprep.subr.bf16.mxu0 0
        %440 = vmatpush1.bf16.msra.mxu0 %v409
        %441 = vmatprep.subr.bf16.mxu0 0
        %442 = vmatpush2.bf16.msra.mxu0 0
        %443 = vmatprep.subr.bf16.mxu0 0
        %444 = vmatpush2.bf16.msra.mxu0 0
        %445 = vmatprep.subr.bf16.mxu0 0
        %446 = vmatpush2.bf16.msra.mxu0 0
        %447 = vmatprep.subr.bf16.mxu0 0
        %448 = vmatpush2.bf16.msra.mxu0 0
        %449 = vmatprep.subr.bf16.mxu0 0
        %450 = vmatpush2.bf16.msra.mxu0 0
        %451 = vmatprep.subr.bf16.mxu0 0
        %452 = vmatpush2.bf16.msra.mxu0 0
        %453 = vmatprep.subr.bf16.mxu0 0
        %454 = vmatpush2.bf16.msra.mxu0 0
        %455 = vmatprep.subr.bf16.mxu0 0
        %456 = vmatpush2.bf16.msra.mxu0 0
        %457 = vmatprep.mubr.bf16.mxu0 0
        %458 = vmatmul.mubr.bf16.gmra.mxu0 %v353
        %v459 = vpop.f32.mrf.mxu0
        %v460 = vadd.f32 %v375, %v459
        %v461 = vpop.f32.mrf.mxu0
        %v462 = vpop.f32.mrf.mxu0
        %v463 = vpop.f32.mrf.mxu0
        %464 = vdwg.mxu0
        %v465 = vadd.f32 %v275, %v460
        %v466 = vld [vmem:[%s1] sm:$0x1]
        %v467 = vld [vmem:[%s2] sm:$0x1]
        %v468 = vsel %vm300, %v465, 0.0
        %469 = vadd.xlane.f32.xlu0 %v468
        %v470 = vpop.xlane.xlu0 %469
        %v471 = vrcp.pop 32.0
        %v472 = vmul.f32 %v470, %v471
        %v473 = vsub.f32 %v465, %v472
        %v474 = vmul.f32 %v473, %v473
        %v475 = vsel %vm300, %v474, 0.0
        %476 = vadd.xlane.f32.xlu0 %v475
        %v477 = vpop.xlane.xlu0 %476
        %v478 = vmul.f32 %v477, %v471
        %v479 = vadd.f32 %v478, 1e-12
        %v480 = vrsqrt.pop %v479
        %v481 = vmul.f32 %v473, %v480
        %v483 = vlaneseq
        %v484 = vshrl.u32 %v483, 7
        %v485 = vsub.s32 0, %v484
        %v486 = vrot.slane %v466, %v485
        %v488 = vmul.f32 %v481, %v486
        %v490 = vlaneseq
        %v491 = vshrl.u32 %v490, 7
        %v492 = vsub.s32 0, %v491
        %v493 = vrot.slane %v467, %v492
        %v495 = vadd.f32 %v488, %v493
        %496 = vst.msk [vmem:[%s269] sm:$0xff] %vm300, %v495
        %s497 = sand.u32 %s181, 1
        %s498 = scalar_lea.sflag [#allocation3], %s497
        %s499 = sand.u32 %s181, 1
        %s500 = smul.addr %s499, 8
        %s501 = scalar_lea.vmem [#allocation2], %s500
        // Predicated region
        $region49: #{albef_forward.33} parent=47 // pred_check
          %p502 = pneg %p191
        $region50: #{albef_forward.33} parent=47 // pred_check_branch
          %504 = sbr.rel (%p502) target = $region52
        $region51: #{albef_forward.33} parent=47 // pred_region
          %s506 = ssub.s32 128, 128
          %507 = vsyncadd %s498, %s506
          %s508 = smul.addr %s21, 128
          %s509 = scalar_lea.hbm %s7, %s508
          %s511 = sshll.u32 %s501, 4
          %s512 = int_to_ptr.vmem [resolvable:$true] %s511
          %514 = dma.vmem_to_hbm [thread:$0]  %s512, 128, %s509, %s498
        $region52: #{albef_forward.33} parent=47 // pred_fallthru
          _
      $region48: #{albef_forward.33} parent=5 // pred_fallthru
        _
      %p515 = scmp.le.s32.totalorder 2, %s16
      // Predicated region
      $region53: #{albef_forward.33} parent=5 // pred_check
        %p516 = pneg %p515
      $region54: #{albef_forward.33} parent=5 // pred_check_branch
        %518 = sbr.rel (%p516) target = $region56
      $region55: #{albef_forward.33} parent=5 // pred_region
        %s519 = ssub.s32 %s16, 2
        // Predicated region
        $region57: #{albef_forward.33} parent=55 // pred_check
          %p520 = pneg %p197
        $region58: #{albef_forward.33} parent=55 // pred_check_branch
          %522 = sbr.rel (%p520) target = $region60
        $region59: #{albef_forward.33} parent=55 // pred_region
          %s523 = sand.u32 %s182, 1
          %s524 = scalar_lea.sflag [#allocation3], %s523
          %s525 = sand.u32 %s182, 1
          %s526 = smul.addr %s525, 8
          %s527 = scalar_lea.vmem [#allocation2], %s526
          %528 = dma.done %s524, 128
        $region60: #{albef_forward.33} parent=55 // pred_fallthru
          _
      $region56: #{albef_forward.33} parent=5 // pred_fallthru
        _
    $region6: #{albef_forward.33} parent=1 // loop_footer
      %s20 = sadd.s32 1, %s16
    $region7: #{albef_forward.33} parent=1 // loop_footer_branch
      %15 = sbr.rel target = $region3
    $region8: #{albef_forward.33} parent=1 // loop_exit
      _
    %529 = vsyncpa [#allocation3], 1
    %s530 = scalar_lea.sflag [#allocation3], 1
    %531 = vsyncpa %s530, 1

// kernel: albef_forward.29
$region0: #{albef_forward.29}
  #allocation0 [shape = 'u32[]', space=smem, size = 0x4, offset = 0x4, fixed_abs, tag = 'smem constant byte address 0x4 - core index']
  #allocation1 [shape = 'u32[144,128]{1,0:T(1,128)}', space=vmem, size = 0x12000, scoped, tag = 'internal scratch']
  %s0 = inlined_call_operand.vmem [shape: f32[2,8,32], index: 0, kind: input, shape index: {}]
  %s1 = inlined_call_operand.vmem [shape: f32[2,24,32], index: 1, kind: input, shape index: {}]
  %s2 = inlined_call_operand.vmem [shape: f32[1,32], index: 2, kind: input, shape index: {}]
  %s3 = inlined_call_operand.vmem [shape: f32[1,32], index: 3, kind: input, shape index: {}]
  %s4 = inlined_call_operand.vmem [shape: bf16[32,32], index: 4, kind: input, shape index: {}]
  %s5 = inlined_call_operand.vmem [shape: f32[1,32], index: 5, kind: input, shape index: {}]
  %s6 = inlined_call_operand.vmem [shape: bf16[32,64], index: 6, kind: input, shape index: {}]
  %s7 = inlined_call_operand.vmem [shape: f32[1,64], index: 7, kind: input, shape index: {}]
  %s8 = inlined_call_operand.vmem [shape: bf16[32,32], index: 8, kind: input, shape index: {}]
  %s9 = inlined_call_operand.vmem [shape: f32[1,32], index: 9, kind: input, shape index: {}]
  %s10 = inlined_call_operand.vmem [shape: f32[1,1,24], index: 10, kind: input, shape index: {}]
  %s11 = inlined_call_operand.vmem [shape: f32[2,8,32], index: 11, kind: output, shape index: {}]
  %s12 = sld [smem:[#allocation0]]
  $region77: #{albef_forward.29} parent=0
    _
  %s14 = ssub.s32 1, %s12
  %s15 = scalar_select 0, %s14, %s12
  loop: start=0, step=1, limit=4
  $region2: #{albef_forward.29} parent=0 // loop_pre_header
    _
  $region3: #{albef_forward.29} parent=0 // loop_header
    %s17 = sphi 0, %s21
    %p18 = scmp.ge.s32.totalorder %s17, 4
    %s27 = sphi 0, %s29
    %s30 = sphi 0, %s27
    %s31 = sphi 0, %s30
    %s47 = sphi 0, %s31
    %s53 = sphi 0, %s55
    %s56 = sphi 0, %s53
    %s57 = sphi 0, %s56
    %s73 = sphi 0, %s57
    %s77 = sphi 0, %s77
    %s79 = sphi 0, %s77
    %s80 = sphi 0, %s79
    %s94 = sphi 0, %s80
    %s98 = sphi 0, %s98
    %s100 = sphi 0, %s98
    %s101 = sphi 0, %s100
    %s115 = sphi 0, %s101
    %s119 = sphi 0, %s119
    %s121 = sphi 0, %s119
    %s122 = sphi 0, %s121
    %s136 = sphi 0, %s122
    %s140 = sphi 0, %s140
    %s142 = sphi 0, %s140
    %s143 = sphi 0, %s142
    %s157 = sphi 0, %s143
    %s161 = sphi 0, %s161
    %s163 = sphi 0, %s161
    %s164 = sphi 0, %s163
    %s178 = sphi 0, %s164
    %s182 = sphi 0, %s182
    %s184 = sphi 0, %s182
    %s185 = sphi 0, %s184
    %s199 = sphi 0, %s185
    %s203 = sphi 0, %s203
    %s205 = sphi 0, %s203
    %s206 = sphi 0, %s205
    %s220 = sphi 0, %s206
    %s224 = sphi 0, %s224
    %s226 = sphi 0, %s224
    %s227 = sphi 0, %s226
    %s241 = sphi 0, %s227
    %s245 = sphi 0, %s245
    %s247 = sphi 0, %s245
    %s248 = sphi 0, %s247
    %s262 = sphi 0, %s248
    %s268 = sphi 0, %s270
    %s271 = sphi 0, %s268
    %s272 = sphi 0, %s271
    %s288 = sphi 0, %s272
  $region4: #{albef_forward.29} parent=0 // loop_header_branch
    %20 = sbr.rel (%p18) target = $region8
  $region5: #{albef_forward.29} parent=0 // loop_body
    %s22 = ssub.s32 %s17, 1
    %s23 = ssub.s32 %s17, 2
    %s24 = sadd.s32 %s17, 1
    %s25 = ssub.s32 %s17, %s24
    %p26 = scmp.eq.s32.totalorder %s25, 0
    %s28 = sadd.s32 %s27, 1
    %s29 = scalar_select %p26, %s27, %s28
    %p32 = pneg %p26
    %p33 = scmp.eq.s32.totalorder %s17, 1
    %p34 = por %p32, %p33
    %p35 = scmp.ne.s32.totalorder %s27, %s30
    %p36 = scmp.eq.s32.totalorder %s17, 0
    %p37 = por %p35, %p36
    %p38 = scmp.ne.s32.totalorder %s27, %s30
    %p39 = scmp.eq.s32.totalorder %s22, 1
    %p40 = por %p38, %p39
    %p41 = scmp.ne.s32.totalorder %s30, %s31
    %p42 = scmp.eq.s32.totalorder %s22, 0
    %p43 = por %p41, %p42
    %p44 = scmp.ne.s32.totalorder %s30, %s31
    %p45 = scmp.eq.s32.totalorder %s23, 1
    %p46 = por %p44, %p45
    %p48 = scmp.ne.s32.totalorder %s31, %s47
    %p49 = scmp.eq.s32.totalorder %s23, 0
    %p50 = por %p48, %p49
    %s51 = ssub.s32 %s17, %s24
    %p52 = scmp.eq.s32.totalorder %s51, 0
    %s54 = sadd.s32 %s53, 1
    %s55 = scalar_select %p52, %s53, %s54
    %p58 = pneg %p52
    %p59 = scmp.eq.s32.totalorder %s17, 1
    %p60 = por %p58, %p59
    %p61 = scmp.ne.s32.totalorder %s53, %s56
    %p62 = scmp.eq.s32.totalorder %s17, 0
    %p63 = por %p61, %p62
    %p64 = scmp.ne.s32.totalorder %s53, %s56
    %p65 = scmp.eq.s32.totalorder %s22, 1
    %p66 = por %p64, %p65
    %p67 = scmp.ne.s32.totalorder %s56, %s57
    %p68 = scmp.eq.s32.totalorder %s22, 0
    %p69 = por %p67, %p68
    %p70 = scmp.ne.s32.totalorder %s56, %s57
    %p71 = scmp.eq.s32.totalorder %s23, 1
    %p72 = por %p70, %p71
    %p74 = scmp.ne.s32.totalorder %s57, %s73
    %p75 = scmp.eq.s32.totalorder %s23, 0
    %p76 = por %p74, %p75
    %s78 = sadd.s32 %s77, 1
    %p81 = scmp.eq.s32.totalorder %s17, 1
    %p82 = scmp.ne.s32.totalorder %s77, %s79
    %p83 = scmp.eq.s32.totalorder %s17, 0
    %p84 = por %p82, %p83
    %p85 = scmp.ne.s32.totalorder %s77, %s79
    %p86 = scmp.eq.s32.totalorder %s22, 1
    %p87 = por %p85, %p86
    %p88 = scmp.ne.s32.totalorder %s79, %s80
    %p89 = scmp.eq.s32.totalorder %s22, 0
    %p90 = por %p88, %p89
    %p91 = scmp.ne.s32.totalorder %s79, %s80
    %p92 = scmp.eq.s32.totalorder %s23, 1
    %p93 = por %p91, %p92
    %p95 = scmp.ne.s32.totalorder %s80, %s94
    %p96 = scmp.eq.s32.totalorder %s23, 0
    %p97 = por %p95, %p96
    %s99 = sadd.s32 %s98, 1
    %p102 = scmp.eq.s32.totalorder %s17, 1
    %p103 = scmp.ne.s32.totalorder %s98, %s100
    %p104 = scmp.eq.s32.totalorder %s17, 0
    %p105 = por %p103, %p104
    %p106 = scmp.ne.s32.totalorder %s98, %s100
    %p107 = scmp.eq.s32.totalorder %s22, 1
    %p108 = por %p106, %p107
    %p109 = scmp.ne.s32.totalorder %s100, %s101
    %p110 = scmp.eq.s32.totalorder %s22, 0
    %p111 = por %p109, %p110
    %p112 = scmp.ne.s32.totalorder %s100, %s101
    %p113 = scmp.eq.s32.totalorder %s23, 1
    %p114 = por %p112, %p113
    %p116 = scmp.ne.s32.totalorder %s101, %s115
    %p117 = scmp.eq.s32.totalorder %s23, 0
    %p118 = por %p116, %p117
    %s120 = sadd.s32 %s119, 1
    %p123 = scmp.eq.s32.totalorder %s17, 1
    %p124 = scmp.ne.s32.totalorder %s119, %s121
    %p125 = scmp.eq.s32.totalorder %s17, 0
    %p126 = por %p124, %p125
    %p127 = scmp.ne.s32.totalorder %s119, %s121
    %p128 = scmp.eq.s32.totalorder %s22, 1
    %p129 = por %p127, %p128
    %p130 = scmp.ne.s32.totalorder %s121, %s122
    %p131 = scmp.eq.s32.totalorder %s22, 0
    %p132 = por %p130, %p131
    %p133 = scmp.ne.s32.totalorder %s121, %s122
    %p134 = scmp.eq.s32.totalorder %s23, 1
    %p135 = por %p133, %p134
    %p137 = scmp.ne.s32.totalorder %s122, %s136
    %p138 = scmp.eq.s32.totalorder %s23, 0
    %p139 = por %p137, %p138
    %s141 = sadd.s32 %s140, 1
    %p144 = scmp.eq.s32.totalorder %s17, 1
    %p145 = scmp.ne.s32.totalorder %s140, %s142
    %p146 = scmp.eq.s32.totalorder %s17, 0
    %p147 = por %p145, %p146
    %p148 = scmp.ne.s32.totalorder %s140, %s142
    %p149 = scmp.eq.s32.totalorder %s22, 1
    %p150 = por %p148, %p149
    %p151 = scmp.ne.s32.totalorder %s142, %s143
    %p152 = scmp.eq.s32.totalorder %s22, 0
    %p153 = por %p151, %p152
    %p154 = scmp.ne.s32.totalorder %s142, %s143
    %p155 = scmp.eq.s32.totalorder %s23, 1
    %p156 = por %p154, %p155
    %p158 = scmp.ne.s32.totalorder %s143, %s157
    %p159 = scmp.eq.s32.totalorder %s23, 0
    %p160 = por %p158, %p159
    %s162 = sadd.s32 %s161, 1
    %p165 = scmp.eq.s32.totalorder %s17, 1
    %p166 = scmp.ne.s32.totalorder %s161, %s163
    %p167 = scmp.eq.s32.totalorder %s17, 0
    %p168 = por %p166, %p167
    %p169 = scmp.ne.s32.totalorder %s161, %s163
    %p170 = scmp.eq.s32.totalorder %s22, 1
    %p171 = por %p169, %p170
    %p172 = scmp.ne.s32.totalorder %s163, %s164
    %p173 = scmp.eq.s32.totalorder %s22, 0
    %p174 = por %p172, %p173
    %p175 = scmp.ne.s32.totalorder %s163, %s164
    %p176 = scmp.eq.s32.totalorder %s23, 1
    %p177 = por %p175, %p176
    %p179 = scmp.ne.s32.totalorder %s164, %s178
    %p180 = scmp.eq.s32.totalorder %s23, 0
    %p181 = por %p179, %p180
    %s183 = sadd.s32 %s182, 1
    %p186 = scmp.eq.s32.totalorder %s17, 1
    %p187 = scmp.ne.s32.totalorder %s182, %s184
    %p188 = scmp.eq.s32.totalorder %s17, 0
    %p189 = por %p187, %p188
    %p190 = scmp.ne.s32.totalorder %s182, %s184
    %p191 = scmp.eq.s32.totalorder %s22, 1
    %p192 = por %p190, %p191
    %p193 = scmp.ne.s32.totalorder %s184, %s185
    %p194 = scmp.eq.s32.totalorder %s22, 0
    %p195 = por %p193, %p194
    %p196 = scmp.ne.s32.totalorder %s184, %s185
    %p197 = scmp.eq.s32.totalorder %s23, 1
    %p198 = por %p196, %p197
    %p200 = scmp.ne.s32.totalorder %s185, %s199
    %p201 = scmp.eq.s32.totalorder %s23, 0
    %p202 = por %p200, %p201
    %s204 = sadd.s32 %s203, 1
    %p207 = scmp.eq.s32.totalorder %s17, 1
    %p208 = scmp.ne.s32.totalorder %s203, %s205
    %p209 = scmp.eq.s32.totalorder %s17, 0
    %p210 = por %p208, %p209
    %p211 = scmp.ne.s32.totalorder %s203, %s205
    %p212 = scmp.eq.s32.totalorder %s22, 1
    %p213 = por %p211, %p212
    %p214 = scmp.ne.s32.totalorder %s205, %s206
    %p215 = scmp.eq.s32.totalorder %s22, 0
    %p216 = por %p214, %p215
    %p217 = scmp.ne.s32.totalorder %s205, %s206
    %p218 = scmp.eq.s32.totalorder %s23, 1
    %p219 = por %p217, %p218
    %p221 = scmp.ne.s32.totalorder %s206, %s220
    %p222 = scmp.eq.s32.totalorder %s23, 0
    %p223 = por %p221, %p222
    %s225 = sadd.s32 %s224, 1
    %p228 = scmp.eq.s32.totalorder %s17, 1
    %p229 = scmp.ne.s32.totalorder %s224, %s226
    %p230 = scmp.eq.s32.totalorder %s17, 0
    %p231 = por %p229, %p230
    %p232 = scmp.ne.s32.totalorder %s224, %s226
    %p233 = scmp.eq.s32.totalorder %s22, 1
    %p234 = por %p232, %p233
    %p235 = scmp.ne.s32.totalorder %s226, %s227
    %p236 = scmp.eq.s32.totalorder %s22, 0
    %p237 = por %p235, %p236
    %p238 = scmp.ne.s32.totalorder %s226, %s227
    %p239 = scmp.eq.s32.totalorder %s23, 1
    %p240 = por %p238, %p239
    %p242 = scmp.ne.s32.totalorder %s227, %s241
    %p243 = scmp.eq.s32.totalorder %s23, 0
    %p244 = por %p242, %p243
    %s246 = sadd.s32 %s245, 1
    %p249 = scmp.eq.s32.totalorder %s17, 1
    %p250 = scmp.ne.s32.totalorder %s245, %s247
    %p251 = scmp.eq.s32.totalorder %s17, 0
    %p252 = por %p250, %p251
    %p253 = scmp.ne.s32.totalorder %s245, %s247
    %p254 = scmp.eq.s32.totalorder %s22, 1
    %p255 = por %p253, %p254
    %p256 = scmp.ne.s32.totalorder %s247, %s248
    %p257 = scmp.eq.s32.totalorder %s22, 0
    %p258 = por %p256, %p257
    %p259 = scmp.ne.s32.totalorder %s247, %s248
    %p260 = scmp.eq.s32.totalorder %s23, 1
    %p261 = por %p259, %p260
    %p263 = scmp.ne.s32.totalorder %s248, %s262
    %p264 = scmp.eq.s32.totalorder %s23, 0
    %p265 = por %p263, %p264
    %s266 = ssub.s32 %s17, %s24
    %p267 = scmp.eq.s32.totalorder %s266, 0
    %s269 = sadd.s32 %s268, 1
    %s270 = scalar_select %p267, %s268, %s269
    %p273 = pneg %p267
    %p274 = scmp.eq.s32.totalorder %s17, 1
    %p275 = por %p273, %p274
    %p276 = scmp.ne.s32.totalorder %s268, %s271
    %p277 = scmp.eq.s32.totalorder %s17, 0
    %p278 = por %p276, %p277
    %p279 = scmp.ne.s32.totalorder %s268, %s271
    %p280 = scmp.eq.s32.totalorder %s22, 1
    %p281 = por %p279, %p280
    %p282 = scmp.ne.s32.totalorder %s271, %s272
    %p283 = scmp.eq.s32.totalorder %s22, 0
    %p284 = por %p282, %p283
    %p285 = scmp.ne.s32.totalorder %s271, %s272
    %p286 = scmp.eq.s32.totalorder %s23, 1
    %p287 = por %p285, %p286
    %p289 = scmp.ne.s32.totalorder %s272, %s288
    %p290 = scmp.eq.s32.totalorder %s23, 0
    %p291 = por %p289, %p290
    %p292 = scmp.le.s32.totalorder 1, %s17
    %p293 = scmp.lt.s32.totalorder %s17, 3
    %p294 = pnand %p292, %p293
    %p295 = pneg %p294
    // Predicated region
    $region9: #{albef_forward.29} parent=5 // pred_check
      _
    $region10: #{albef_forward.29} parent=5 // pred_check_branch
      %297 = sbr.rel (%p294) target = $region12
    $region11: #{albef_forward.29} parent=5 // pred_region
      %s298 = ssub.s32 %s17, 1
      // Predicated region
      $region13: #{albef_forward.29} parent=11 // pred_check
        %p299 = pneg %p90
      $region14: #{albef_forward.29} parent=11 // pred_check_branch
        %301 = sbr.rel (%p299) target = $region16
      $region15: #{albef_forward.29} parent=11 // pred_region
        _
      $region16: #{albef_forward.29} parent=11 // pred_fallthru
        _
      // Predicated region
      $region17: #{albef_forward.29} parent=11 // pred_check
        %p302 = pneg %p111
      $region18: #{albef_forward.29} parent=11 // pred_check_branch
        %304 = sbr.rel (%p302) target = $region20
      $region19: #{albef_forward.29} parent=11 // pred_region
        _
      $region20: #{albef_forward.29} parent=11 // pred_fallthru
        _
      // Predicated region
      $region21: #{albef_forward.29} parent=11 // pred_check
        %p305 = pneg %p132
      $region22: #{albef_forward.29} parent=11 // pred_check_branch
        %307 = sbr.rel (%p305) target = $region24
      $region23: #{albef_forward.29} parent=11 // pred_region
        _
      $region24: #{albef_forward.29} parent=11 // pred_fallthru
        _
      // Predicated region
      $region25: #{albef_forward.29} parent=11 // pred_check
        %p308 = pneg %p153
      $region26: #{albef_forward.29} parent=11 // pred_check_branch
        %310 = sbr.rel (%p308) target = $region28
      $region27: #{albef_forward.29} parent=11 // pred_region
        _
      $region28: #{albef_forward.29} parent=11 // pred_fallthru
        _
      // Predicated region
      $region29: #{albef_forward.29} parent=11 // pred_check
        %p311 = pneg %p174
      $region30: #{albef_forward.29} parent=11 // pred_check_branch
        %313 = sbr.rel (%p311) target = $region32
      $region31: #{albef_forward.29} parent=11 // pred_region
        _
      $region32: #{albef_forward.29} parent=11 // pred_fallthru
        _
      // Predicated region
      $region33: #{albef_forward.29} parent=11 // pred_check
        %p314 = pneg %p195
      $region34: #{albef_forward.29} parent=11 // pred_check_branch
        %316 = sbr.rel (%p314) target = $region36
      $region35: #{albef_forward.29} parent=11 // pred_region
        _
      $region36: #{albef_forward.29} parent=11 // pred_fallthru
        _
      // Predicated region
      $region37: #{albef_forward.29} parent=11 // pred_check
        %p317 = pneg %p216
      $region38: #{albef_forward.29} parent=11 // pred_check_branch
        %319 = sbr.rel (%p317) target = $region40
      $region39: #{albef_forward.29} parent=11 // pred_region
        _
      $region40: #{albef_forward.29} parent=11 // pred_fallthru
        _
      // Predicated region
      $region41: #{albef_forward.29} parent=11 // pred_check
        %p320 = pneg %p237
      $region42: #{albef_forward.29} parent=11 // pred_check_branch
        %322 = sbr.rel (%p320) target = $region44
      $region43: #{albef_forward.29} parent=11 // pred_region
        _
      $region44: #{albef_forward.29} parent=11 // pred_fallthru
        _
      // Predicated region
      $region45: #{albef_forward.29} parent=11 // pred_check
        %p323 = pneg %p258
      $region46: #{albef_forward.29} parent=11 // pred_check_branch
        %325 = sbr.rel (%p323) target = $region48
      $region47: #{albef_forward.29} parent=11 // pred_region
        _
      $region48: #{albef_forward.29} parent=11 // pred_fallthru
        _
    $region12: #{albef_forward.29} parent=5 // pred_fallthru
      _
    %p326 = scmp.lt.s32.totalorder %s17, 2
    // Predicated region
    $region49: #{albef_forward.29} parent=5 // pred_check
      %p327 = pneg %p326
    $region50: #{albef_forward.29} parent=5 // pred_check_branch
      %329 = sbr.rel (%p327) target = $region52
    $region51: #{albef_forward.29} parent=5 // pred_region
      // Predicated region
      $region53: #{albef_forward.29} parent=51 // pred_check
        %p330 = pneg %p37
      $region54: #{albef_forward.29} parent=51 // pred_check_branch
        %332 = sbr.rel (%p330) target = $region56
      $region55: #{albef_forward.29} parent=51 // pred_region
        %p333 = scmp.lt.s32.totalorder %s17, 1
        %s334 = scalar_select %p333, %s17, 1
        %s335 = smul.addr %s334, 8
        %s336 = scalar_lea.vmem %s0, %s335
      $region56: #{albef_forward.29} parent=51 // pred_fallthru
        _
      // Predicated region
      $region57: #{albef_forward.29} parent=51 // pred_check
        %p337 = pneg %p63
      $region58: #{albef_forward.29} parent=51 // pred_check_branch
        %339 = sbr.rel (%p337) target = $region60
      $region59: #{albef_forward.29} parent=51 // pred_region
        %p340 = scmp.lt.s32.totalorder %s17, 1
        %s341 = scalar_select %p340, %s17, 1
        %s342 = smul.addr %s341, 3
        %s343 = smul.addr %s342, 8
        %s344 = scalar_lea.vmem %s1, %s343
      $region60: #{albef_forward.29} parent=51 // pred_fallthru
        _
    $region52: #{albef_forward.29} parent=5 // pred_fallthru
      _
    %p345 = scmp.le.s32.totalorder 1, %s17
    %p346 = scmp.lt.s32.totalorder %s17, 3
    %p347 = pnand %p345, %p346
    %p348 = pneg %p347
    // Predicated region
    $region61: #{albef_forward.29} parent=5 // pred_check
      _
    $region62: #{albef_forward.29} parent=5 // pred_check_branch
      %350 = sbr.rel (%p347) target = $region64
    $region63: #{albef_forward.29} parent=5 // pred_region
      %s351 = ssub.s32 %s17, 1
      %p352 = scmp.lt.s32.totalorder %s22, 1
      %s353 = scalar_select %p352, %s22, 1
      %s354 = smul.addr %s353, 8
      %s355 = scalar_lea.vmem %s0, %s354
      %p356 = pneg %p43
      %p357 = pneg %p40
      %p358 = scmp.lt.s32.totalorder %s22, 1
      %s359 = scalar_select %p358, %s22, 1
      %s360 = smul.addr %s359, 3
      %s361 = smul.addr %s360, 8
      %s362 = scalar_lea.vmem %s1, %s361
      %p363 = pneg %p69
      %p364 = pneg %p66
      %p365 = pneg %p90
      %p366 = pneg %p87
      %p367 = pneg %p111
      %p368 = pneg %p108
      %p369 = pneg %p132
      %p370 = pneg %p129
      %p371 = pneg %p153
      %p372 = pneg %p150
      %p373 = pneg %p174
      %p374 = pneg %p171
      %p375 = pneg %p195
      %p376 = pneg %p192
      %p377 = pneg %p216
      %p378 = pneg %p213
      %p379 = pneg %p237
      %p380 = pneg %p234
      %p381 = pneg %p258
      %p382 = pneg %p255
      %p383 = pneg %p284
      %p384 = pneg %p281
      %p385 = scmp.lt.s32.totalorder %s22, 1
      %s386 = scalar_select %p385, %s22, 1
      %s387 = smul.addr %s386, 8
      %s388 = scalar_lea.vmem %s11, %s387
      %p389 = scmp.lt.s32.totalorder %s22, 1
      %s390 = scalar_select %p389, %s22, 1
      %s391 = smul.addr %s390, 8
      %s392 = scalar_lea.vmem %s0, %s391
      %p393 = scmp.lt.s32.totalorder %s22, 1
      %s394 = scalar_select %p393, %s22, 1
      %s395 = smul.addr %s394, 3
      %s396 = smul.addr %s395, 8
      %s397 = scalar_lea.vmem %s1, %s396
      %p398 = scmp.lt.s32.totalorder %s22, 1
      %s399 = scalar_select %p398, %s22, 1
      %s400 = smul.addr %s399, 8
      %s401 = scalar_lea.vmem %s11, %s400
      %v403 = vld [vmem:[%s392] sm:$0xff]
      %v404 = vld [vmem:[%s397] sm:$0xff]
      %v405 = vld [vmem:[%s397 + $0x8] sm:$0xff]
      %v406 = vld [vmem:[%s397 + $0x10] sm:$0xff]
      %v407 = vpack.c.bf16 %v403, %v403
      %v408 = vld [vmem:[%s4] sm:$0xf]
      %v409 = vld [vmem:[%s4 + $0x4] sm:$0xf]
      %v410 = vld [vmem:[%s4 + $0x8] sm:$0xf]
      %v411 = vld [vmem:[%s4 + $0xc] sm:$0xf]
      %v412 = vld [vmem:[%s5] sm:$0x1]
      %v414 = vlaneseq
      %v415 = vshrl.u32 %v414, 7
      %v416 = vsub.s32 0, %v415
      %v417 = vrot.slane %v412, %v416
      %v423 = vunpack.c.l.b16 %v408
      %v424 = vunpack.c.l.b16 %v409
      %v425 = vunpack.c.l.b16 %v410
      %v426 = vunpack.c.l.b16 %v411
      %v427 = vpack.c.b16 %v424, %v423
      %v428 = vpack.c.b16 %v426, %v425
      %vm431 = vcmask 261120
      %v433 = vsel %vm431, %v407, 0
      %435 = vmatprep.subr.bf16.mxu0 0
      %436 = vmatpush1.bf16.msra.mxu0 0
      %437 = vmatprep.subr.bf16.mxu0 0
      %438 = vmatpush1.bf16.msra.mxu0 0
      %439 = vmatprep.subr.bf16.mxu0 0
      %440 = vmatpush1.bf16.msra.mxu0 0
      %441 = vmatprep.subr.bf16.mxu0 0
      %442 = vmatpush1.bf16.msra.mxu0 0
      %443 = vmatprep.subr.bf16.mxu0 0
      %444 = vmatpush1.bf16.msra.mxu0 0
      %445 = vmatprep.subr.bf16.mxu0 0
      %446 = vmatpush1.bf16.msra.mxu0 0
      %447 = vmatprep.subr.bf16.mxu0 0
      %448 = vmatpush1.bf16.msra.mxu0 %v428
      %449 = vmatprep.subr.bf16.mxu0 0
      %450 = vmatpush1.bf16.msra.mxu0 %v427
      %451 = vmatprep.subr.bf16.mxu0 0
      %452 = vmatpush2.bf16.msra.mxu0 0
      %453 = vmatprep.subr.bf16.mxu0 0
      %454 = vmatpush2.bf16.msra.mxu0 0
      %455 = vmatprep.subr.bf16.mxu0 0
      %456 = vmatpush2.bf16.msra.mxu0 0
      %457 = vmatprep.subr.bf16.mxu0 0
      %458 = vmatpush2.bf16.msra.mxu0 0
      %459 = vmatprep.subr.bf16.mxu0 0
      %460 = vmatpush2.bf16.msra.mxu0 0
      %461 = vmatprep.subr.bf16.mxu0 0
      %462 = vmatpush2.bf16.msra.mxu0 0
      %463 = vmatprep.subr.bf16.mxu0 0
      %464 = vmatpush2.bf16.msra.mxu0 0
      %465 = vmatprep.subr.bf16.mxu0 0
      %466 = vmatpush2.bf16.msra.mxu0 0
      %467 = vmatprep.mubr.bf16.mxu0 0
      %468 = vmatmul.mubr.bf16.gmra.mxu0 %v433
      %v469 = vpop.f32.mrf.mxu0
      %v470 = vadd.f32 %v417, %v469
      %v471 = vpop.f32.mrf.mxu0
      %v472 = vpop.f32.mrf.mxu0
      %v473 = vpop.f32.mrf.mxu0
      %474 = vdwg.mxu0
      %v475 = vpack.c.bf16 %v405, %v404
      %v476 = vpack.c.bf16 %v406, %v406
      %v477 = vld [vmem:[%s6] sm:$0xf]
      %v478 = vld [vmem:[%s6 + $0x4] sm:$0xf]
      %v479 = vld [vmem:[%s6 + $0x8] sm:$0xf]
      %v480 = vld [vmem:[%s6 + $0xc] sm:$0xf]
      %v481 = vld [vmem:[%s7] sm:$0x1]
      %v483 = vlaneseq
      %v484 = vshrl.u32 %v483, 7
      %v485 = vsub.s32 0, %v484
      %v486 = vrot.slane %v481, %v485
      %v492 = vunpack.c.l.b16 %v477
      %v493 = vunpack.c.l.b16 %v478
      %v494 = vunpack.c.l.b16 %v479
      %v495 = vunpack.c.l.b16 %v480
      %v496 = vpack.c.b16 %v493, %v492
      %v497 = vpack.c.b16 %v495, %v494
      %v501 = vsel %vm431, %v475, 0
      %v504 = vsel %vm431, %v476, 0
      %506 = vmatprep.subr.bf16.mxu0 0
      %507 = vmatpush1.bf16.msra.mxu0 0
      %508 = vmatprep.subr.bf16.mxu0 0
      %509 = vmatpush1.bf16.msra.mxu0 0
      %510 = vmatprep.subr.bf16.mxu0 0
      %511 = vmatpush1.bf16.msra.mxu0 0
      %512 = vmatprep.subr.bf16.mxu0 0
      %513 = vmatpush1.bf16.msra.mxu0 0
      %514 = vmatprep.subr.bf16.mxu0 0
      %515 = vmatpush1.bf16.msra.mxu0 0
      %516 = vmatprep.subr.bf16.mxu0 0
      %517 = vmatpush1.bf16.msra.mxu0 0
      %518 = vmatprep.subr.bf16.mxu0 0
      %519 = vmatpush1.bf16.msra.mxu0 %v497
      %520 = vmatprep.subr.bf16.mxu0 0
      %521 = vmatpush1.bf16.msra.mxu0 %v496
      %522 = vmatprep.subr.bf16.mxu0 0
      %523 = vmatpush2.bf16.msra.mxu0 0
      %524 = vmatprep.subr.bf16.mxu0 0
      %525 = vmatpush2.bf16.msra.mxu0 0
      %526 = vmatprep.subr.bf16.mxu0 0
      %527 = vmatpush2.bf16.msra.mxu0 0
      %528 = vmatprep.subr.bf16.mxu0 0
      %529 = vmatpush2.bf16.msra.mxu0 0
      %530 = vmatprep.subr.bf16.mxu0 0
      %531 = vmatpush2.bf16.msra.mxu0 0
      %532 = vmatprep.subr.bf16.mxu0 0
      %533 = vmatpush2.bf16.msra.mxu0 0
      %534 = vmatprep.subr.bf16.mxu0 0
      %535 = vmatpush2.bf16.msra.mxu0 0
      %536 = vmatprep.subr.bf16.mxu0 0
      %537 = vmatpush2.bf16.msra.mxu0 0
      %538 = vmatprep.mubr.bf16.mxu0 0
      %539 = vmatmul.mubr.bf16.gmra.mxu0 %v501
      %v540 = vpop.f32.mrf.mxu0
      %v541 = vadd.f32 %v486, %v540
      %v542 = vpop.f32.mrf.mxu0
      %v543 = vpop.f32.mrf.mxu0
      %v544 = vadd.f32 %v486, %v543
      %v545 = vpop.f32.mrf.mxu0
      %546 = vmatprep.mubr.bf16.mxu0 0
      %547 = vmatmul.mubr.bf16.gmra.mxu0 %v504
      %v548 = vpop.f32.mrf.mxu0
      %v549 = vadd.f32 %v486, %v548
      %v550 = vpop.f32.mrf.mxu0
      %v551 = vpop.f32.mrf.mxu0
      %v552 = vpop.f32.mrf.mxu0
      %553 = vdwg.mxu0
      %v554 = vld [vmem:[%s10] sm:$0x1]
      %v555 = vpack.c.bf16 %v470, %v470
      %v556 = vpack.c.bf16 %v544, %v541
      %v557 = vpack.c.bf16 %v549, %v549
      %vm558 = vcmask 64512
      %v560 = vsel %vm558, %v555, 0
      %v563 = vsel %vm558, %v556, 0
      %v566 = vsel %vm558, %v557, 0
      %568 = vmatprep.subr.bf16.mxu0 0
      %569 = vmatpush1.bf16.xpose.msra.mxu0 0
      %570 = vmatprep.subr.bf16.mxu0 0
      %571 = vmatpush1.bf16.xpose.msra.mxu0 0
      %572 = vmatprep.subr.bf16.mxu0 0
      %573 = vmatpush1.bf16.xpose.msra.mxu0 0
      %574 = vmatprep.subr.bf16.mxu0 0
      %575 = vmatpush1.bf16.xpose.msra.mxu0 0
      %576 = vmatprep.subr.bf16.mxu0 0
      %577 = vmatpush1.bf16.xpose.msra.mxu0 0
      %578 = vmatprep.subr.bf16.mxu0 0
      %579 = vmatpush1.bf16.xpose.msra.mxu0 0
      %580 = vmatprep.subr.bf16.mxu0 0
      %581 = vmatpush1.bf16.xpose.msra.mxu0 %v566
      %582 = vmatprep.subr.bf16.mxu0 0
      %583 = vmatpush1.bf16.xpose.msra.mxu0 %v563
      %584 = vmatprep.subr.bf16.mxu0 0
      %585 = vmatpush2.bf16.xpose.msra.mxu0 0
      %586 = vmatprep.subr.bf16.mxu0 0
      %587 = vmatpush2.bf16.xpose.msra.mxu0 0
      %588 = vmatprep.subr.bf16.mxu0 0
      %589 = vmatpush2.bf16.xpose.msra.mxu0 0
      %590 = vmatprep.subr.bf16.mxu0 0
      %591 = vmatpush2.bf16.xpose.msra.mxu0 0
      %592 = vmatprep.subr.bf16.mxu0 0
      %593 = vmatpush2.bf16.xpose.msra.mxu0 0
      %594 = vmatprep.subr.bf16.mxu0 0
      %595 = vmatpush2.bf16.xpose.msra.mxu0 0
      %596 = vmatprep.subr.bf16.mxu0 0
      %597 = vmatpush2.bf16.xpose.msra.mxu0 0
      %598 = vmatprep.subr.bf16.mxu0 0
      %599 = vmatpush2.bf16.xpose.msra.mxu0 0
      %600 = vmatprep.mubr.bf16.mxu0 0
      %601 = vmatmul.mubr.bf16.gmra.mxu0 %v560
      %v602 = vpop.f32.mrf.mxu0
      %v603 = vadd.f32 0.0, %v602
      %v604 = vpop.f32.mrf.mxu0
      %v605 = vpop.f32.mrf.mxu0
      %v606 = vpop.f32.mrf.mxu0
      %607 = vdwg.mxu0
      %v608 = vmul.f32 %v603, 0.35355338
      %v610 = vlaneseq
      %v611 = vshrl.u32 %v610, 7
      %v612 = vsub.s32 0, %v611
      %v613 = vrot.slane %v554, %v612
      %v615 = vadd.f32 %v608, %v613
      %vm616 = vcmask 195584
      %v617 = vsel %vm616, %v615, -inf
      %618 = vmax.xlane.f32.xlu0 %v617
      %v619 = vpop.xlane.xlu0 %618
      %v620 = vsub.f32 %v615, %v619
      %v621 = vmul.f32 %v620, 1.442695
      %v622 = vpow.pop %v621
      %v623 = vsel %vm616, %v622, 0.0
      %624 = vadd.xlane.f32.xlu0 %v623
      %v625 = vpop.xlane.xlu0 %624
      %v626 = vrcp.pop %v625
      %v627 = vmul.f32 %v622, %v626
      %v628 = vpack.c.bf16 %v627, %v627
      %631 = vrot.lane.b32.xlu0 %v556, 96
      %v632 = vpop.permute.xlu0 %631
      %633 = vrot.lane.b32.xlu0 %v557, 96
      %v634 = vpop.permute.xlu0 %633
      %v637 = vsel %vm616, %v628, 0
      %vm639 = vcmask 1043456
      %v641 = vsel %vm639, %v634, 0
      %643 = vmatprep.subr.bf16.mxu0 0
      %644 = vmatpush1.bf16.msra.mxu0 0
      %645 = vmatprep.subr.bf16.mxu0 0
      %646 = vmatpush1.bf16.msra.mxu0 0
      %647 = vmatprep.subr.bf16.mxu0 0
      %648 = vmatpush1.bf16.msra.mxu0 0
      %649 = vmatprep.subr.bf16.mxu0 0
      %650 = vmatpush1.bf16.msra.mxu0 0
      %651 = vmatprep.subr.bf16.mxu0 0
      %652 = vmatpush1.bf16.msra.mxu0 0
      %653 = vmatprep.subr.bf16.mxu0 0
      %654 = vmatpush1.bf16.msra.mxu0 0
      %655 = vmatprep.subr.bf16.mxu0 0
      %656 = vmatpush1.bf16.msra.mxu0 %v641
      %657 = vmatprep.subr.bf16.mxu0 0
      %658 = vmatpush1.bf16.msra.mxu0 %v632
      %659 = vmatprep.subr.bf16.mxu0 0
      %660 = vmatpush2.bf16.msra.mxu0 0
      %661 = vmatprep.subr.bf16.mxu0 0
      %662 = vmatpush2.bf16.msra.mxu0 0
      %663 = vmatprep.subr.bf16.mxu0 0
      %664 = vmatpush2.bf16.msra.mxu0 0
      %665 = vmatprep.subr.bf16.mxu0 0
      %666 = vmatpush2.bf16.msra.mxu0 0
      %667 = vmatprep.subr.bf16.mxu0 0
      %668 = vmatpush2.bf16.msra.mxu0 0
      %669 = vmatprep.subr.bf16.mxu0 0
      %670 = vmatpush2.bf16.msra.mxu0 0
      %671 = vmatprep.subr.bf16.mxu0 0
      %672 = vmatpush2.bf16.msra.mxu0 0
      %673 = vmatprep.subr.bf16.mxu0 0
      %674 = vmatpush2.bf16.msra.mxu0 0
      %675 = vmatprep.mubr.bf16.mxu0 0
      %676 = vmatmul.mubr.bf16.gmra.mxu0 %v637
      %v677 = vpop.f32.mrf.mxu0
      %v678 = vadd.f32 0.0, %v677
      %v679 = vpop.f32.mrf.mxu0
      %v680 = vpop.f32.mrf.mxu0
      %v681 = vpop.f32.mrf.mxu0
      %682 = vdwg.mxu0
      %684 = vrot.lane.b32.xlu0 %v555, 120
      %v685 = vpop.permute.xlu0 %684
      %686 = vrot.lane.b32.xlu0 %v556, 120
      %v687 = vpop.permute.xlu0 %686
      %688 = vrot.lane.b32.xlu0 %v557, 120
      %v689 = vpop.permute.xlu0 %688
      %v691 = vsel %vm558, %v685, 0
      %v694 = vsel %vm558, %v687, 0
      %v697 = vsel %vm558, %v689, 0
      %699 = vmatprep.subr.bf16.mxu0 0
      %700 = vmatpush1.bf16.xpose.msra.mxu0 0
      %701 = vmatprep.subr.bf16.mxu0 0
      %702 = vmatpush1.bf16.xpose.msra.mxu0 0
      %703 = vmatprep.subr.bf16.mxu0 0
      %704 = vmatpush1.bf16.xpose.msra.mxu0 0
      %705 = vmatprep.subr.bf16.mxu0 0
      %706 = vmatpush1.bf16.xpose.msra.mxu0 0
      %707 = vmatprep.subr.bf16.mxu0 0
      %708 = vmatpush1.bf16.xpose.msra.mxu0 0
      %709 = vmatprep.subr.bf16.mxu0 0
      %710 = vmatpush1.bf16.xpose.msra.mxu0 0
      %711 = vmatprep.subr.bf16.mxu0 0
      %712 = vmatpush1.bf16.xpose.msra.mxu0 %v697
      %713 = vmatprep.subr.bf16.mxu0 0
      %714 = vmatpush1.bf16.xpose.msra.mxu0 %v694
      %715 = vmatprep.subr.bf16.mxu0 0
      %716 = vmatpush2.bf16.xpose.msra.mxu0 0
      %717 = vmatprep.subr.bf16.mxu0 0
      %718 = vmatpush2.bf16.xpose.msra.mxu0 0
      %719 = vmatprep.subr.bf16.mxu0 0
      %720 = vmatpush2.bf16.xpose.msra.mxu0 0
      %721 = vmatprep.subr.bf16.mxu0 0
      %722 = vmatpush2.bf16.xpose.msra.mxu0 0
      %723 = vmatprep.subr.bf16.mxu0 0
      %724 = vmatpush2.bf16.xpose.msra.mxu0 0
      %725 = vmatprep.subr.bf16.mxu0 0
      %726 = vmatpush2.bf16.xpose.msra.mxu0 0
      %727 = vmatprep.subr.bf16.mxu0 0
      %728 = vmatpush2.bf16.xpose.msra.mxu0 0
      %729 = vmatprep.subr.bf16.mxu0 0
      %730 = vmatpush2.bf16.xpose.msra.mxu0 0
      %731 = vmatprep.mubr.bf16.mxu0 0
      %732 = vmatmul.mubr.bf16.gmra.mxu0 %v691
      %v733 = vpop.f32.mrf.mxu0
      %v734 = vadd.f32 0.0, %v733
      %v735 = vpop.f32.mrf.mxu0
      %v736 = vpop.f32.mrf.mxu0
      %v737 = vpop.f32.mrf.mxu0
      %738 = vdwg.mxu0
      %v739 = vmul.f32 %v734, 0.35355338
      %v740 = vadd.f32 %v739, %v613
      %v741 = vsel %vm616, %v740, -inf
      %742 = vmax.xlane.f32.xlu0 %v741
      %v743 = vpop.xlane.xlu0 %742
      %v744 = vsub.f32 %v740, %v743
      %v745 = vmul.f32 %v744, 1.442695
      %v746 = vpow.pop %v745
      %v747 = vsel %vm616, %v746, 0.0
      %748 = vadd.xlane.f32.xlu0 %v747
      %v749 = vpop.xlane.xlu0 %748
      %v750 = vrcp.pop %v749
      %v751 = vmul.f32 %v746, %v750
      %v752 = vpack.c.bf16 %v751, %v751
      %753 = vrot.lane.b32.xlu0 %v556, 88
      %v754 = vpop.permute.xlu0 %753
      %755 = vrot.lane.b32.xlu0 %v557, 88
      %v756 = vpop.permute.xlu0 %755
      %v759 = vsel %vm616, %v752, 0
      %v762 = vsel %vm639, %v756, 0
      %764 = vmatprep.subr.bf16.mxu0 0
      %765 = vmatpush1.bf16.msra.mxu0 0
      %766 = vmatprep.subr.bf16.mxu0 0
      %767 = vmatpush1.bf16.msra.mxu0 0
      %768 = vmatprep.subr.bf16.mxu0 0
      %769 = vmatpush1.bf16.msra.mxu0 0
      %770 = vmatprep.subr.bf16.mxu0 0
      %771 = vmatpush1.bf16.msra.mxu0 0
      %772 = vmatprep.subr.bf16.mxu0 0
      %773 = vmatpush1.bf16.msra.mxu0 0
      %774 = vmatprep.subr.bf16.mxu0 0
      %775 = vmatpush1.bf16.msra.mxu0 0
      %776 = vmatprep.subr.bf16.mxu0 0
      %777 = vmatpush1.bf16.msra.mxu0 %v762
      %778 = vmatprep.subr.bf16.mxu0 0
      %779 = vmatpush1.bf16.msra.mxu0 %v754
      %780 = vmatprep.subr.bf16.mxu0 0
      %781 = vmatpush2.bf16.msra.mxu0 0
      %782 = vmatprep.subr.bf16.mxu0 0
      %783 = vmatpush2.bf16.msra.mxu0 0
      %784 = vmatprep.subr.bf16.mxu0 0
      %785 = vmatpush2.bf16.msra.mxu0 0
      %786 = vmatprep.subr.bf16.mxu0 0
      %787 = vmatpush2.bf16.msra.mxu0 0
      %788 = vmatprep.subr.bf16.mxu0 0
      %789 = vmatpush2.bf16.msra.mxu0 0
      %790 = vmatprep.subr.bf16.mxu0 0
      %791 = vmatpush2.bf16.msra.mxu0 0
      %792 = vmatprep.subr.bf16.mxu0 0
      %793 = vmatpush2.bf16.msra.mxu0 0
      %794 = vmatprep.subr.bf16.mxu0 0
      %795 = vmatpush2.bf16.msra.mxu0 0
      %796 = vmatprep.mubr.bf16.mxu0 0
      %797 = vmatmul.mubr.bf16.gmra.mxu0 %v759
      %v798 = vpop.f32.mrf.mxu0
      %v799 = vadd.f32 0.0, %v798
      %v800 = vpop.f32.mrf.mxu0
      %v801 = vpop.f32.mrf.mxu0
      %v802 = vpop.f32.mrf.mxu0
      %803 = vdwg.mxu0
      %804 = vrot.lane.b32.xlu0 %v555, 112
      %v805 = vpop.permute.xlu0 %804
      %806 = vrot.lane.b32.xlu0 %v556, 112
      %v807 = vpop.permute.xlu0 %806
      %808 = vrot.lane.b32.xlu0 %v557, 112
      %v809 = vpop.permute.xlu0 %808
      %v811 = vsel %vm558, %v805, 0
      %v814 = vsel %vm558, %v807, 0
      %v817 = vsel %vm558, %v809, 0
      %819 = vmatprep.subr.bf16.mxu0 0
      %820 = vmatpush1.bf16.xpose.msra.mxu0 0
      %821 = vmatprep.subr.bf16.mxu0 0
      %822 = vmatpush1.bf16.xpose.msra.mxu0 0
      %823 = vmatprep.subr.bf16.mxu0 0
      %824 = vmatpush1.bf16.xpose.msra.mxu0 0
      %825 = vmatprep.subr.bf16.mxu0 0
      %826 = vmatpush1.bf16.xpose.msra.mxu0 0
      %827 = vmatprep.subr.bf16.mxu0 0
      %828 = vmatpush1.bf16.xpose.msra.mxu0 0
      %829 = vmatprep.subr.bf16.mxu0 0
      %830 = vmatpush1.bf16.xpose.msra.mxu0 0
      %831 = vmatprep.subr.bf16.mxu0 0
      %832 = vmatpush1.bf16.xpose.msra.mxu0 %v817
      %833 = vmatprep.subr.bf16.mxu0 0
      %834 = vmatpush1.bf16.xpose.msra.mxu0 %v814
      %835 = vmatprep.subr.bf16.mxu0 0
      %836 = vmatpush2.bf16.xpose.msra.mxu0 0
      %837 = vmatprep.subr.bf16.mxu0 0
      %838 = vmatpush2.bf16.xpose.msra.mxu0 0
      %839 = vmatprep.subr.bf16.mxu0 0
      %840 = vmatpush2.bf16.xpose.msra.mxu0 0
      %841 = vmatprep.subr.bf16.mxu0 0
      %842 = vmatpush2.bf16.xpose.msra.mxu0 0
      %843 = vmatprep.subr.bf16.mxu0 0
      %844 = vmatpush2.bf16.xpose.msra.mxu0 0
      %845 = vmatprep.subr.bf16.mxu0 0
      %846 = vmatpush2.bf16.xpose.msra.mxu0 0
      %847 = vmatprep.subr.bf16.mxu0 0
      %848 = vmatpush2.bf16.xpose.msra.mxu0 0
      %849 = vmatprep.subr.bf16.mxu0 0
      %850 = vmatpush2.bf16.xpose.msra.mxu0 0
      %851 = vmatprep.mubr.bf16.mxu0 0
      %852 = vmatmul.mubr.bf16.gmra.mxu0 %v811
      %v853 = vpop.f32.mrf.mxu0
      %v854 = vadd.f32 0.0, %v853
      %v855 = vpop.f32.mrf.mxu0
      %v856 = vpop.f32.mrf.mxu0
      %v857 = vpop.f32.mrf.mxu0
      %858 = vdwg.mxu0
      %v859 = vmul.f32 %v854, 0.35355338
      %v860 = vadd.f32 %v859, %v613
      %v861 = vsel %vm616, %v860, -inf
      %862 = vmax.xlane.f32.xlu0 %v861
      %v863 = vpop.xlane.xlu0 %862
      %v864 = vsub.f32 %v860, %v863
      %v865 = vmul.f32 %v864, 1.442695
      %v866 = vpow.pop %v865
      %v867 = vsel %vm616, %v866, 0.0
      %868 = vadd.xlane.f32.xlu0 %v867
      %v869 = vpop.xlane.xlu0 %868
      %v870 = vrcp.pop %v869
      %v871 = vmul.f32 %v866, %v870
      %v872 = vpack.c.bf16 %v871, %v871
      %873 = vrot.lane.b32.xlu0 %v556, 80
      %v874 = vpop.permute.xlu0 %873
      %875 = vrot.lane.b32.xlu0 %v557, 80
      %v876 = vpop.permute.xlu0 %875
      %v879 = vsel %vm616, %v872, 0
      %v882 = vsel %vm639, %v876, 0
      %884 = vmatprep.subr.bf16.mxu0 0
      %885 = vmatpush1.bf16.msra.mxu0 0
      %886 = vmatprep.subr.bf16.mxu0 0
      %887 = vmatpush1.bf16.msra.mxu0 0
      %888 = vmatprep.subr.bf16.mxu0 0
      %889 = vmatpush1.bf16.msra.mxu0 0
      %890 = vmatprep.subr.bf16.mxu0 0
      %891 = vmatpush1.bf16.msra.mxu0 0
      %892 = vmatprep.subr.bf16.mxu0 0
      %893 = vmatpush1.bf16.msra.mxu0 0
      %894 = vmatprep.subr.bf16.mxu0 0
      %895 = vmatpush1.bf16.msra.mxu0 0
      %896 = vmatprep.subr.bf16.mxu0 0
      %897 = vmatpush1.bf16.msra.mxu0 %v882
      %898 = vmatprep.subr.bf16.mxu0 0
      %899 = vmatpush1.bf16.msra.mxu0 %v874
      %900 = vmatprep.subr.bf16.mxu0 0
      %901 = vmatpush2.bf16.msra.mxu0 0
      %902 = vmatprep.subr.bf16.mxu0 0
      %903 = vmatpush2.bf16.msra.mxu0 0
      %904 = vmatprep.subr.bf16.mxu0 0
      %905 = vmatpush2.bf16.msra.mxu0 0
      %906 = vmatprep.subr.bf16.mxu0 0
      %907 = vmatpush2.bf16.msra.mxu0 0
      %908 = vmatprep.subr.bf16.mxu0 0
      %909 = vmatpush2.bf16.msra.mxu0 0
      %910 = vmatprep.subr.bf16.mxu0 0
      %911 = vmatpush2.bf16.msra.mxu0 0
      %912 = vmatprep.subr.bf16.mxu0 0
      %913 = vmatpush2.bf16.msra.mxu0 0
      %914 = vmatprep.subr.bf16.mxu0 0
      %915 = vmatpush2.bf16.msra.mxu0 0
      %916 = vmatprep.mubr.bf16.mxu0 0
      %917 = vmatmul.mubr.bf16.gmra.mxu0 %v879
      %v918 = vpop.f32.mrf.mxu0
      %v919 = vadd.f32 0.0, %v918
      %v920 = vpop.f32.mrf.mxu0
      %v921 = vpop.f32.mrf.mxu0
      %v922 = vpop.f32.mrf.mxu0
      %923 = vdwg.mxu0
      %924 = vrot.lane.b32.xlu0 %v555, 104
      %v925 = vpop.permute.xlu0 %924
      %926 = vrot.lane.b32.xlu0 %v556, 104
      %v927 = vpop.permute.xlu0 %926
      %928 = vrot.lane.b32.xlu0 %v557, 104
      %v929 = vpop.permute.xlu0 %928
      %v931 = vsel %vm558, %v925, 0
      %v934 = vsel %vm558, %v927, 0
      %v937 = vsel %vm558, %v929, 0
      %939 = vmatprep.subr.bf16.mxu0 0
      %940 = vmatpush1.bf16.xpose.msra.mxu0 0
      %941 = vmatprep.subr.bf16.mxu0 0
      %942 = vmatpush1.bf16.xpose.msra.mxu0 0
      %943 = vmatprep.subr.bf16.mxu0 0
      %944 = vmatpush1.bf16.xpose.msra.mxu0 0
      %945 = vmatprep.subr.bf16.mxu0 0
      %946 = vmatpush1.bf16.xpose.msra.mxu0 0
      %947 = vmatprep.subr.bf16.mxu0 0
      %948 = vmatpush1.bf16.xpose.msra.mxu0 0
      %949 = vmatprep.subr.bf16.mxu0 0
      %950 = vmatpush1.bf16.xpose.msra.mxu0 0
      %951 = vmatprep.subr.bf16.mxu0 0
      %952 = vmatpush1.bf16.xpose.msra.mxu0 %v937
      %953 = vmatprep.subr.bf16.mxu0 0
      %954 = vmatpush1.bf16.xpose.msra.mxu0 %v934
      %955 = vmatprep.subr.bf16.mxu0 0
      %956 = vmatpush2.bf16.xpose.msra.mxu0 0
      %957 = vmatprep.subr.bf16.mxu0 0
      %958 = vmatpush2.bf16.xpose.msra.mxu0 0
      %959 = vmatprep.subr.bf16.mxu0 0
      %960 = vmatpush2.bf16.xpose.msra.mxu0 0
      %961 = vmatprep.subr.bf16.mxu0 0
      %962 = vmatpush2.bf16.xpose.msra.mxu0 0
      %963 = vmatprep.subr.bf16.mxu0 0
      %964 = vmatpush2.bf16.xpose.msra.mxu0 0
      %965 = vmatprep.subr.bf16.mxu0 0
      %966 = vmatpush2.bf16.xpose.msra.mxu0 0
      %967 = vmatprep.subr.bf16.mxu0 0
      %968 = vmatpush2.bf16.xpose.msra.mxu0 0
      %969 = vmatprep.subr.bf16.mxu0 0
      %970 = vmatpush2.bf16.xpose.msra.mxu0 0
      %971 = vmatprep.mubr.bf16.mxu0 0
      %972 = vmatmul.mubr.bf16.gmra.mxu0 %v931
      %v973 = vpop.f32.mrf.mxu0
      %v974 = vadd.f32 0.0, %v973
      %v975 = vpop.f32.mrf.mxu0
      %v976 = vpop.f32.mrf.mxu0
      %v977 = vpop.f32.mrf.mxu0
      %978 = vdwg.mxu0
      %v979 = vmul.f32 %v974, 0.35355338
      %v980 = vadd.f32 %v979, %v613
      %v981 = vsel %vm616, %v980, -inf
      %982 = vmax.xlane.f32.xlu0 %v981
      %v983 = vpop.xlane.xlu0 %982
      %v984 = vsub.f32 %v980, %v983
      %v985 = vmul.f32 %v984, 1.442695
      %v986 = vpow.pop %v985
      %v987 = vsel %vm616, %v986, 0.0
      %988 = vadd.xlane.f32.xlu0 %v987
      %v989 = vpop.xlane.xlu0 %988
      %v990 = vrcp.pop %v989
      %v991 = vmul.f32 %v986, %v990
      %v992 = vpack.c.bf16 %v991, %v991
      %993 = vrot.lane.b32.xlu0 %v556, 72
      %v994 = vpop.permute.xlu0 %993
      %995 = vrot.lane.b32.xlu0 %v557, 72
      %v996 = vpop.permute.xlu0 %995
      %v999 = vsel %vm616, %v992, 0
      %v1002 = vsel %vm639, %v996, 0
      %1004 = vmatprep.subr.bf16.mxu0 0
      %1005 = vmatpush1.bf16.msra.mxu0 0
      %1006 = vmatprep.subr.bf16.mxu0 0
      %1007 = vmatpush1.bf16.msra.mxu0 0
      %1008 = vmatprep.subr.bf16.mxu0 0
      %1009 = vmatpush1.bf16.msra.mxu0 0
      %1010 = vmatprep.subr.bf16.mxu0 0
      %1011 = vmatpush1.bf16.msra.mxu0 0
      %1012 = vmatprep.subr.bf16.mxu0 0
      %1013 = vmatpush1.bf16.msra.mxu0 0
      %1014 = vmatprep.subr.bf16.mxu0 0
      %1015 = vmatpush1.bf16.msra.mxu0 0
      %1016 = vmatprep.subr.bf16.mxu0 0
      %1017 = vmatpush1.bf16.msra.mxu0 %v1002
      %1018 = vmatprep.subr.bf16.mxu0 0
      %1019 = vmatpush1.bf16.msra.mxu0 %v994
      %1020 = vmatprep.subr.bf16.mxu0 0
      %1021 = vmatpush2.bf16.msra.mxu0 0
      %1022 = vmatprep.subr.bf16.mxu0 0
      %1023 = vmatpush2.bf16.msra.mxu0 0
      %1024 = vmatprep.subr.bf16.mxu0 0
      %1025 = vmatpush2.bf16.msra.mxu0 0
      %1026 = vmatprep.subr.bf16.mxu0 0
      %1027 = vmatpush2.bf16.msra.mxu0 0
      %1028 = vmatprep.subr.bf16.mxu0 0
      %1029 = vmatpush2.bf16.msra.mxu0 0
      %1030 = vmatprep.subr.bf16.mxu0 0
      %1031 = vmatpush2.bf16.msra.mxu0 0
      %1032 = vmatprep.subr.bf16.mxu0 0
      %1033 = vmatpush2.bf16.msra.mxu0 0
      %1034 = vmatprep.subr.bf16.mxu0 0
      %1035 = vmatpush2.bf16.msra.mxu0 0
      %1036 = vmatprep.mubr.bf16.mxu0 0
      %1037 = vmatmul.mubr.bf16.gmra.mxu0 %v999
      %v1038 = vpop.f32.mrf.mxu0
      %v1039 = vadd.f32 0.0, %v1038
      %v1040 = vpop.f32.mrf.mxu0
      %v1041 = vpop.f32.mrf.mxu0
      %v1042 = vpop.f32.mrf.mxu0
      %1043 = vdwg.mxu0
      %1045 = vrot.lane.b32.xlu0 %v799, 8
      %v1046 = vpop.permute.xlu0 %1045
      %1049 = vrot.lane.b32.xlu0 %v919, 16
      %v1050 = vpop.permute.xlu0 %1049
      %1053 = vrot.lane.b32.xlu0 %v1039, 24
      %v1054 = vpop.permute.xlu0 %1053
      %v1056 = vsel %vm558, %v678, %v1046
      %vm1057 = vcmask 130048
      %v1058 = vsel %vm1057, %v1056, %v1050
      %v1059 = vsel %vm616, %v1058, %v1054
      %v1060 = vpack.c.bf16 %v1059, %v1059
      %v1061 = vld [vmem:[%s8] sm:$0xf]
      %v1062 = vld [vmem:[%s8 + $0x4] sm:$0xf]
      %v1063 = vld [vmem:[%s8 + $0x8] sm:$0xf]
      %v1064 = vld [vmem:[%s8 + $0xc] sm:$0xf]
      %v1065 = vld [vmem:[%s9] sm:$0x1]
      %v1067 = vlaneseq
      %v1068 = vshrl.u32 %v1067, 7
      %v1069 = vsub.s32 0, %v1068
      %v1070 = vrot.slane %v1065, %v1069
      %v1076 = vunpack.c.l.b16 %v1061
      %v1077 = vunpack.c.l.b16 %v1062
      %v1078 = vunpack.c.l.b16 %v1063
      %v1079 = vunpack.c.l.b16 %v1064
      %v1080 = vpack.c.b16 %v1077, %v1076
      %v1081 = vpack.c.b16 %v1079, %v1078
      %v1085 = vsel %vm431, %v1060, 0
      %1087 = vmatprep.subr.bf16.mxu0 0
      %1088 = vmatpush1.bf16.msra.mxu0 0
      %1089 = vmatprep.subr.bf16.mxu0 0
      %1090 = vmatpush1.bf16.msra.mxu0 0
      %1091 = vmatprep.subr.bf16.mxu0 0
      %1092 = vmatpush1.bf16.msra.mxu0 0
      %1093 = vmatprep.subr.bf16.mxu0 0
      %1094 = vmatpush1.bf16.msra.mxu0 0
      %1095 = vmatprep.subr.bf16.mxu0 0
      %1096 = vmatpush1.bf16.msra.mxu0 0
      %1097 = vmatprep.subr.bf16.mxu0 0
      %1098 = vmatpush1.bf16.msra.mxu0 0
      %1099 = vmatprep.subr.bf16.mxu0 0
      %1100 = vmatpush1.bf16.msra.mxu0 %v1081
      %1101 = vmatprep.subr.bf16.mxu0 0
      %1102 = vmatpush1.bf16.msra.mxu0 %v1080
      %1103 = vmatprep.subr.bf16.mxu0 0
      %1104 = vmatpush2.bf16.msra.mxu0 0
      %1105 = vmatprep.subr.bf16.mxu0 0
      %1106 = vmatpush2.bf16.msra.mxu0 0
      %1107 = vmatprep.subr.bf16.mxu0 0
      %1108 = vmatpush2.bf16.msra.mxu0 0
      %1109 = vmatprep.subr.bf16.mxu0 0
      %1110 = vmatpush2.bf16.msra.mxu0 0
      %1111 = vmatprep.subr.bf16.mxu0 0
      %1112 = vmatpush2.bf16.msra.mxu0 0
      %1113 = vmatprep.subr.bf16.mxu0 0
      %1114 = vmatpush2.bf16.msra.mxu0 0
      %1115 = vmatprep.subr.bf16.mxu0 0
      %1116 = vmatpush2.bf16.msra.mxu0 0
      %1117 = vmatprep.subr.bf16.mxu0 0
      %1118 = vmatpush2.bf16.msra.mxu0 0
      %1119 = vmatprep.mubr.bf16.mxu0 0
      %1120 = vmatmul.mubr.bf16.gmra.mxu0 %v1085
      %v1121 = vpop.f32.mrf.mxu0
      %v1122 = vadd.f32 %v1070, %v1121
      %v1123 = vpop.f32.mrf.mxu0
      %v1124 = vpop.f32.mrf.mxu0
      %v1125 = vpop.f32.mrf.mxu0
      %1126 = vdwg.mxu0
      %v1127 = vadd.f32 %v403, %v1122
      %v1128 = vld [vmem:[%s2] sm:$0x1]
      %v1129 = vld [vmem:[%s3] sm:$0x1]
      %v1130 = vsel %vm431, %v1127, 0.0
      %1131 = vadd.xlane.f32.xlu0 %v1130
      %v1132 = vpop.xlane.xlu0 %1131
      %v1133 = vrcp.pop 32.0
      %v1134 = vmul.f32 %v1132, %v1133
      %v1135 = vsub.f32 %v1127, %v1134
      %v1136 = vmul.f32 %v1135, %v1135
      %v1137 = vsel %vm431, %v1136, 0.0
      %1138 = vadd.xlane.f32.xlu0 %v1137
      %v1139 = vpop.xlane.xlu0 %1138
      %v1140 = vmul.f32 %v1139, %v1133
      %v1141 = vadd.f32 %v1140, 1e-12
      %v1142 = vrsqrt.pop %v1141
      %v1143 = vmul.f32 %v1135, %v1142
      %v1145 = vlaneseq
      %v1146 = vshrl.u32 %v1145, 7
      %v1147 = vsub.s32 0, %v1146
      %v1148 = vrot.slane %v1128, %v1147
      %v1150 = vmul.f32 %v1143, %v1148
      %v1152 = vlaneseq
      %v1153 = vshrl.u32 %v1152, 7
      %v1154 = vsub.s32 0, %v1153
      %v1155 = vrot.slane %v1129, %v1154
      %v1157 = vadd.f32 %v1150, %v1155
      %1158 = vst.msk [vmem:[%s401] sm:$0xff] %vm431, %v1157
      %p1159 = scmp.lt.s32.totalorder %s22, 1
      %s1160 = scalar_select %p1159, %s22, 1
      %s1161 = smul.addr %s1160, 8
      %s1162 = scalar_lea.vmem %s11, %s1161
      // Predicated region
      $region65: #{albef_forward.29} parent=63 // pred_check
        %p1163 = pneg %p281
      $region66: #{albef_forward.29} parent=63 // pred_check_branch
        %1165 = sbr.rel (%p1163) target = $region68
      $region67: #{albef_forward.29} parent=63 // pred_region
        _
      $region68: #{albef_forward.29} parent=63 // pred_fallthru
        _
    $region64: #{albef_forward.29} parent=5 // pred_fallthru
      _
    %p1166 = scmp.le.s32.totalorder 2, %s17
    // Predicated region
    $region69: #{albef_forward.29} parent=5 // pred_check
      %p1167 = pneg %p1166
    $region70: #{albef_forward.29} parent=5 // pred_check_branch
      %1169 = sbr.rel (%p1167) target = $region72
    $region71: #{albef_forward.29} parent=5 // pred_region
      %s1170 = ssub.s32 %s17, 2
      // Predicated region
      $region73: #{albef_forward.29} parent=71 // pred_check
        %p1171 = pneg %p287
      $region74: #{albef_forward.29} parent=71 // pred_check_branch
        %1173 = sbr.rel (%p1171) target = $region76
      $region75: #{albef_forward.29} parent=71 // pred_region
        %p1174 = scmp.lt.s32.totalorder %s23, 1
        %s1175 = scalar_select %p1174, %s23, 1
        %s1176 = smul.addr %s1175, 8
        %s1177 = scalar_lea.vmem %s11, %s1176
      $region76: #{albef_forward.29} parent=71 // pred_fallthru
        _
    $region72: #{albef_forward.29} parent=5 // pred_fallthru
      _
  $region6: #{albef_forward.29} parent=0 // loop_footer
    %s21 = sadd.s32 1, %s17
  $region7: #{albef_forward.29} parent=0 // loop_footer_branch
    %16 = sbr.rel target = $region3
  $region8: #{albef_forward.29} parent=0 // loop_exit
    _

</llo_original>
